<compile_context>
chip_gen: v6e
topology: v6e:2x2x1
jax: 0.10.0
libtpu: 0.0.40
codegen_flags: <defaults>
</compile_context>

<pallas_src>
import functools

import jax
import jax.numpy as jnp
from jax.experimental import pallas as pl
from jax.experimental.pallas import tpu as pltpu

LANE = 128                          # TPU lane width; conv channels padded to this
_VMEM_LIMIT = 32 * 1024 * 1024      # explicit budget, safe on v5e/v6e/v7x


def _round_up(x, m):
    return ((x + m - 1) // m) * m


# ---------------------------------------------------------------------------
# Fused Conv3x3(pad=1) + ReLU + MaxPool2x2   (one pallas_call per layer)
# ---------------------------------------------------------------------------
def _conv_relu_pool_kernel(xp_ref, w_ref, b_ref, o_ref, patch_ref, *, H, W, Cin, Cout):
    """One image per grid step.

    xp_ref    : (1, H+2, W+2, Cin)  bf16, spatially zero-padded input
    w_ref     : (9*Cin, Cout)       bf16, rows ordered (ky, kx, cin)
    b_ref     : (1, Cout)           f32
    o_ref     : (1, H//2, W//2, Cout) bf16 pooled output
    patch_ref : (H, W, 9*Cin)       bf16 VMEM scratch (im2col patches)
    """
    xp = xp_ref[0]                                            # (H+2, W+2, Cin)

    # Build the im2col patch buffer entirely in VMEM (9 lane-offset stores).
    for ky in range(3):
        for kx in range(3):
            c0 = (ky * 3 + kx) * Cin
            patch_ref[:, :, c0:c0 + Cin] = xp[ky:ky + H, kx:kx + W, :]

    # Single MXU matmul: bf16 inputs, f32 accumulation.
    patches = patch_ref[...].reshape(H * W, 9 * Cin)
    acc = jnp.dot(patches, w_ref[...], preferred_element_type=jnp.float32)

    # 2x2 max-pool on the f32 accumulator (rows of acc are m = h*W + w).
    Hh, Wh = H // 2, W // 2
    a = acc.reshape(H * Wh, 2, Cout)
    a = jnp.maximum(a[:, 0, :], a[:, 1, :])                   # pool along W
    a = a.reshape(Hh, 2 * Wh, Cout)
    y = jnp.maximum(a[:, :Wh, :], a[:, Wh:, :])               # pool along H

    # Bias + ReLU commute with max -> apply on the 4x smaller pooled tensor (f32 VPU).
    y = jnp.maximum(y + b_ref[...].reshape(1, 1, Cout), 0.0)
    o_ref[0] = y.astype(o_ref.dtype)


def conv_relu_pool(x, w, b):
    """x: (N, H, W, Cin) bf16 NHWC -> (N, H//2, W//2, Cout) bf16."""
    N, H, W, Cin = x.shape
    assert H % 2 == 0 and W % 2 == 0
    K, Cout = w.shape
    assert K == 9 * Cin and b.shape == (1, Cout)
    Hh, Wh = H // 2, W // 2

    # 1-pixel spatial zero-pad ("same" conv); tiny, keeps in-kernel stores tile-aligned.
    xp = jnp.pad(x, ((0, 0), (1, 1), (1, 1), (0, 0)))

    kernel = functools.partial(_conv_relu_pool_kernel, H=H, W=W, Cin=Cin, Cout=Cout)
    return pl.pallas_call(
        kernel,
        out_shape=jax.ShapeDtypeStruct((N, Hh, Wh, Cout), jnp.bfloat16),
        grid=(N,),
        in_specs=[
            pl.BlockSpec((1, H + 2, W + 2, Cin), lambda n: (n, 0, 0, 0)),
            pl.BlockSpec((K, Cout), lambda n: (0, 0)),
            pl.BlockSpec((1, Cout), lambda n: (0, 0)),
        ],
        out_specs=pl.BlockSpec((1, Hh, Wh, Cout), lambda n: (n, 0, 0, 0)),
        scratch_shapes=[pltpu.VMEM((H, W, 9 * Cin), jnp.bfloat16)],
        compiler_params=pltpu.CompilerParams(
            dimension_semantics=("parallel",),
            vmem_limit_bytes=_VMEM_LIMIT,
        ),
    )(xp, w, b)


# ---------------------------------------------------------------------------
# Fused classifier: fc1 (matmul + bias + ReLU) -> [Dropout=identity] -> fc2
# ---------------------------------------------------------------------------
def _classifier_kernel(x_ref, w1_ref, b1_ref, w2_ref, b2_ref, o_ref):
    h = jnp.dot(x_ref[...], w1_ref[...], preferred_element_type=jnp.float32)
    h = jnp.maximum(h + b1_ref[...], 0.0)
    # nn.Dropout(0.5) is identity at inference.
    # TODO(synk): training-mode dropout (pltpu.prng_seed / pltpu.prng_random_bits) not implemented.
    logits = jnp.dot(h.astype(w2_ref.dtype), w2_ref[...],
                     preferred_element_type=jnp.float32)
    o_ref[...] = (logits + b2_ref[...]).astype(o_ref.dtype)


def classifier(x, w1, b1, w2, b2):
    """x: (N, Din) bf16 -> logits (N, num_classes) f32."""
    N, Din = x.shape
    D1 = w1.shape[1]
    NC = w2.shape[1]
    TB = N if N <= 256 else 256                     # batch tile (full batch when small)
    return pl.pallas_call(
        _classifier_kernel,
        out_shape=jax.ShapeDtypeStruct((N, NC), jnp.float32),
        grid=(pl.cdiv(N, TB),),
        in_specs=[
            pl.BlockSpec((TB, Din), lambda i: (i, 0)),
            pl.BlockSpec((Din, D1), lambda i: (0, 0)),
            pl.BlockSpec((1, D1), lambda i: (0, 0)),
            pl.BlockSpec((D1, NC), lambda i: (0, 0)),
            pl.BlockSpec((1, NC), lambda i: (0, 0)),
        ],
        out_specs=pl.BlockSpec((TB, NC), lambda i: (i, 0)),
        compiler_params=pltpu.CompilerParams(
            dimension_semantics=("parallel",),
            vmem_limit_bytes=_VMEM_LIMIT,
        ),
    )(x, w1, b1, w2, b2)


# ---------------------------------------------------------------------------
# Parameters (channel-padded, bf16 matmul weights, f32 biases)
# ---------------------------------------------------------------------------
def init_params(key, img_channels=1, img_size=16, num_classes=10):
    feature_size = img_size // 2 ** 3
    if feature_size < 1:
        feature_size = 1
    cin1_pad = _round_up(img_channels, 8)           # avoid K=9*1 contraction
    ks = jax.random.split(key, 5)

    def conv_init(k, cin_real, cin_pad, cout_real):
        fan_in = float(9 * cin_real)
        w = jax.random.uniform(k, (3, 3, cin_real, cout_real), jnp.float32, -1.0, 1.0)
        w = w / (fan_in ** 0.5)
        w_pad = jnp.zeros((3, 3, cin_pad, LANE), jnp.float32)
        w_pad = w_pad.at[:, :, :cin_real, :cout_real].set(w)    # zero rows/cols for padding
        w_pad = w_pad.reshape(9 * cin_pad, LANE).astype(jnp.bfloat16)
        b_pad = jnp.zeros((1, LANE), jnp.float32)
        return w_pad, b_pad

    def fc1_init(k, fs, dout):
        din = LANE * fs * fs
        w = jax.random.uniform(k, (din, dout), jnp.float32, -1.0, 1.0) / (float(din) ** 0.5)
        # Fold PyTorch's NCHW flatten order (c, h, w) into our NHWC flatten order (h, w, c).
        w = w.reshape(LANE, fs, fs, dout).transpose(1, 2, 0, 3).reshape(din, dout)
        return w.astype(jnp.bfloat16), jnp.zeros((1, dout), jnp.float32)

    def fc2_init(k, din, dout):
        w = jax.random.uniform(k, (din, dout), jnp.float32, -1.0, 1.0) / (float(din) ** 0.5)
        return w.astype(jnp.bfloat16), jnp.zeros((1, dout), jnp.float32)

    return {
        "conv1": conv_init(ks[0], img_channels, cin1_pad, 32),
        "conv2": conv_init(ks[1], 32, LANE, 64),
        "conv3": conv_init(ks[2], 64, LANE, 128),
        "fc1": fc1_init(ks[3], feature_size, 256),
        "fc2": fc2_init(ks[4], 256, num_classes),
    }


# ---------------------------------------------------------------------------
# Forward pass
# ---------------------------------------------------------------------------
def simple_cnn_forward(params, x):
    """x: (N, C, H, W) float32 (PyTorch NCHW) -> logits (N, num_classes) float32."""
    N, C, H, W = x.shape
    assert H % 8 == 0 and W % 8 == 0, "img_size must be divisible by 8 (three MaxPool2d(2))"

    x = jnp.transpose(x, (0, 2, 3, 1)).astype(jnp.bfloat16)     # NCHW -> NHWC, bf16
    cin1_pad = params["conv1"][0].shape[0] // 9
    if C < cin1_pad:                                            # lane/K padding of the input
        x = jnp.pad(x, ((0, 0), (0, 0), (0, 0), (0, cin1_pad - C)))

    for name in ("conv1", "conv2", "conv3"):
        w, b = params[name]
        x = conv_relu_pool(x, w, b)                             # fused conv+ReLU+pool

    Nb, fh, fw, Cc = x.shape
    flat = x.reshape(Nb, fh * fw * Cc)   # NHWC flatten; fc1 rows pre-permuted to match NCHW semantics

    w1, b1 = params["fc1"]
    w2, b2 = params["fc2"]
    return classifier(flat, w1, b1, w2, b2)                     # fused fc1+ReLU+(dropout)+fc2


# ---------------------------------------------------------------------------
if __name__ == "__main__":
    key = jax.random.PRNGKey(0)
    pkey, xkey = jax.random.split(key)

    batch, img_channels, img_size, num_classes = 2, 1, 16, 10
    params = init_params(pkey, img_channels, img_size, num_classes)
    x = jax.random.normal(xkey, (batch, img_channels, img_size, img_size), jnp.float32)

    fwd = jax.jit(functools.partial(simple_cnn_forward, params))
    out = jax.block_until_ready(fwd(x))
    assert out.shape == (batch, num_classes)
    assert out.dtype == jnp.float32
    print("KERNEL_OK")
</pallas_src>

<mosaic_0001>
module attributes {stable_mosaic.version = 11 : i64} {
  func.func @_conv_relu_pool_kernel(%arg0: i32, %arg1: memref<1x10x10x128xbf16, #tpu.memory_space<vmem>>, %arg2: memref<1152x128xbf16, #tpu.memory_space<vmem>>, %arg3: memref<1x128xf32, #tpu.memory_space<vmem>>, %arg4: memref<1x4x4x128xbf16, #tpu.memory_space<vmem>>, %arg5: memref<8x8x1152xbf16, #tpu.memory_space<vmem>>) attributes {dimension_semantics = [#tpu.dimension_semantics<parallel>], iteration_bounds = array<i64: 2>, scalar_prefetch = 0 : i64, scratch_operands = 1 : i64, tpu.core_type = #tpu.core_type<tc>, window_params = [{transform_indices = @transform_0, window_bounds = array<i64: 1, 10, 10, 128>}, {pipeline_mode = #tpu.pipeline_mode<synchronous>, transform_indices = @transform_1, window_bounds = array<i64: 1152, 128>}, {pipeline_mode = #tpu.pipeline_mode<synchronous>, transform_indices = @transform_2, window_bounds = array<i64: 1, 128>}, {transform_indices = @transform_3, window_bounds = array<i64: 1, 4, 4, 128>}]} {
    %c0 = arith.constant 0 : index
    %c0_0 = arith.constant 0 : index
    %c0_1 = arith.constant 0 : index
    %c0_2 = arith.constant 0 : index
    %0 = vector.load %arg1[%c0, %c0_0, %c0_1, %c0_2] : memref<1x10x10x128xbf16, #tpu.memory_space<vmem>>, vector<1x10x10x128xbf16>
    %1 = vector.shape_cast %0 : vector<1x10x10x128xbf16> to vector<10x10x128xbf16>
    %2 = vector.extract_strided_slice %1 {offsets = [0, 0, 0], sizes = [8, 8, 128], strides = [1, 1, 1]} : vector<10x10x128xbf16> to vector<8x8x128xbf16>
    %c0_3 = arith.constant 0 : index
    %c0_4 = arith.constant 0 : index
    %c0_5 = arith.constant 0 : index
    %3 = vector.load %arg5[%c0_3, %c0_4, %c0_5] : memref<8x8x1152xbf16, #tpu.memory_space<vmem>>, vector<8x8x128xbf16>
    tpu.vector_store %arg5[%c0_3, %c0_4, %c0_5], %2 {strides = array<i32>} : memref<8x8x1152xbf16, #tpu.memory_space<vmem>>, vector<8x8x128xbf16>,
    %4 = vector.extract_strided_slice %1 {offsets = [0, 1, 0], sizes = [8, 8, 128], strides = [1, 1, 1]} : vector<10x10x128xbf16> to vector<8x8x128xbf16>
    %c0_6 = arith.constant 0 : index
    %c0_7 = arith.constant 0 : index
    %c128 = arith.constant 128 : index
    %5 = vector.load %arg5[%c0_6, %c0_7, %c128] : memref<8x8x1152xbf16, #tpu.memory_space<vmem>>, vector<8x8x128xbf16>
    tpu.vector_store %arg5[%c0_6, %c0_7, %c128], %4 {strides = array<i32>} : memref<8x8x1152xbf16, #tpu.memory_space<vmem>>, vector<8x8x128xbf16>,
    %6 = vector.extract_strided_slice %1 {offsets = [0, 2, 0], sizes = [8, 8, 128], strides = [1, 1, 1]} : vector<10x10x128xbf16> to vector<8x8x128xbf16>
    %c0_8 = arith.constant 0 : index
    %c0_9 = arith.constant 0 : index
    %c256 = arith.constant 256 : index
    %7 = vector.load %arg5[%c0_8, %c0_9, %c256] : memref<8x8x1152xbf16, #tpu.memory_space<vmem>>, vector<8x8x128xbf16>
    tpu.vector_store %arg5[%c0_8, %c0_9, %c256], %6 {strides = array<i32>} : memref<8x8x1152xbf16, #tpu.memory_space<vmem>>, vector<8x8x128xbf16>,
    %8 = vector.extract_strided_slice %1 {offsets = [1, 0, 0], sizes = [8, 8, 128], strides = [1, 1, 1]} : vector<10x10x128xbf16> to vector<8x8x128xbf16>
    %c0_10 = arith.constant 0 : index
    %c0_11 = arith.constant 0 : index
    %c384 = arith.constant 384 : index
    %9 = vector.load %arg5[%c0_10, %c0_11, %c384] : memref<8x8x1152xbf16, #tpu.memory_space<vmem>>, vector<8x8x128xbf16>
    tpu.vector_store %arg5[%c0_10, %c0_11, %c384], %8 {strides = array<i32>} : memref<8x8x1152xbf16, #tpu.memory_space<vmem>>, vector<8x8x128xbf16>,
    %10 = vector.extract_strided_slice %1 {offsets = [1, 1, 0], sizes = [8, 8, 128], strides = [1, 1, 1]} : vector<10x10x128xbf16> to vector<8x8x128xbf16>
    %c0_12 = arith.constant 0 : index
    %c0_13 = arith.constant 0 : index
    %c512 = arith.constant 512 : index
    %11 = vector.load %arg5[%c0_12, %c0_13, %c512] : memref<8x8x1152xbf16, #tpu.memory_space<vmem>>, vector<8x8x128xbf16>
    tpu.vector_store %arg5[%c0_12, %c0_13, %c512], %10 {strides = array<i32>} : memref<8x8x1152xbf16, #tpu.memory_space<vmem>>, vector<8x8x128xbf16>,
    %12 = vector.extract_strided_slice %1 {offsets = [1, 2, 0], sizes = [8, 8, 128], strides = [1, 1, 1]} : vector<10x10x128xbf16> to vector<8x8x128xbf16>
    %c0_14 = arith.constant 0 : index
    %c0_15 = arith.constant 0 : index
    %c640 = arith.constant 640 : index
    %13 = vector.load %arg5[%c0_14, %c0_15, %c640] : memref<8x8x1152xbf16, #tpu.memory_space<vmem>>, vector<8x8x128xbf16>
    tpu.vector_store %arg5[%c0_14, %c0_15, %c640], %12 {strides = array<i32>} : memref<8x8x1152xbf16, #tpu.memory_space<vmem>>, vector<8x8x128xbf16>,
    %14 = vector.extract_strided_slice %1 {offsets = [2, 0, 0], sizes = [8, 8, 128], strides = [1, 1, 1]} : vector<10x10x128xbf16> to vector<8x8x128xbf16>
    %c0_16 = arith.constant 0 : index
    %c0_17 = arith.constant 0 : index
    %c768 = arith.constant 768 : index
    %15 = vector.load %arg5[%c0_16, %c0_17, %c768] : memref<8x8x1152xbf16, #tpu.memory_space<vmem>>, vector<8x8x128xbf16>
    tpu.vector_store %arg5[%c0_16, %c0_17, %c768], %14 {strides = array<i32>} : memref<8x8x1152xbf16, #tpu.memory_space<vmem>>, vector<8x8x128xbf16>,
    %16 = vector.extract_strided_slice %1 {offsets = [2, 1, 0], sizes = [8, 8, 128], strides = [1, 1, 1]} : vector<10x10x128xbf16> to vector<8x8x128xbf16>
    %c0_18 = arith.constant 0 : index
    %c0_19 = arith.constant 0 : index
    %c896 = arith.constant 896 : index
    %17 = vector.load %arg5[%c0_18, %c0_19, %c896] : memref<8x8x1152xbf16, #tpu.memory_space<vmem>>, vector<8x8x128xbf16>
    tpu.vector_store %arg5[%c0_18, %c0_19, %c896], %16 {strides = array<i32>} : memref<8x8x1152xbf16, #tpu.memory_space<vmem>>, vector<8x8x128xbf16>,
    %18 = vector.extract_strided_slice %1 {offsets = [2, 2, 0], sizes = [8, 8, 128], strides = [1, 1, 1]} : vector<10x10x128xbf16> to vector<8x8x128xbf16>
    %c0_20 = arith.constant 0 : index
    %c0_21 = arith.constant 0 : index
    %c1024 = arith.constant 1024 : index
    %19 = vector.load %arg5[%c0_20, %c0_21, %c1024] : memref<8x8x1152xbf16, #tpu.memory_space<vmem>>, vector<8x8x128xbf16>
    tpu.vector_store %arg5[%c0_20, %c0_21, %c1024], %18 {strides = array<i32>} : memref<8x8x1152xbf16, #tpu.memory_space<vmem>>, vector<8x8x128xbf16>,
    %c0_22 = arith.constant 0 : index
    %c0_23 = arith.constant 0 : index
    %c0_24 = arith.constant 0 : index
    %20 = vector.load %arg5[%c0_22, %c0_23, %c0_24] : memref<8x8x1152xbf16, #tpu.memory_space<vmem>>, vector<8x8x1152xbf16>
    %21 = vector.shape_cast %20 : vector<8x8x1152xbf16> to vector<64x1152xbf16>
    %c0_25 = arith.constant 0 : index
    %c0_26 = arith.constant 0 : index
    %22 = vector.load %arg2[%c0_25, %c0_26] : memref<1152x128xbf16, #tpu.memory_space<vmem>>, vector<1152x128xbf16>
    %cst = arith.constant dense<0.000000e+00> : vector<64x128xf32>
    %23 = tpu.matmul %21, %22, %cst {dimension_numbers = #tpu.dot_dimension_numbers<[1], [0], [0], [1], [0, 0, 1, 1], [], []>} : vector<64x1152xbf16>, vector<1152x128xbf16>, vector<64x128xf32> -> vector<64x128xf32>
    %24 = vector.shape_cast %23 : vector<64x128xf32> to vector<32x2x128xf32>
    %25 = vector.extract_strided_slice %24 {offsets = [0, 0, 0], sizes = [32, 1, 128], strides = [1, 1, 1]} : vector<32x2x128xf32> to vector<32x1x128xf32>
    %26 = vector.shape_cast %25 : vector<32x1x128xf32> to vector<32x128xf32>
    %27 = vector.extract_strided_slice %24 {offsets = [0, 1, 0], sizes = [32, 1, 128], strides = [1, 1, 1]} : vector<32x2x128xf32> to vector<32x1x128xf32>
    %28 = vector.shape_cast %27 : vector<32x1x128xf32> to vector<32x128xf32>
    %29 = arith.maximumf %26, %28 : vector<32x128xf32>
    %30 = vector.shape_cast %29 : vector<32x128xf32> to vector<4x8x128xf32>
    %31 = vector.extract_strided_slice %30 {offsets = [0, 0, 0], sizes = [4, 4, 128], strides = [1, 1, 1]} : vector<4x8x128xf32> to vector<4x4x128xf32>
    %32 = vector.extract_strided_slice %30 {offsets = [0, 4, 0], sizes = [4, 4, 128], strides = [1, 1, 1]} : vector<4x8x128xf32> to vector<4x4x128xf32>
    %33 = arith.maximumf %31, %32 : vector<4x4x128xf32>
    %c0_27 = arith.constant 0 : index
    %c0_28 = arith.constant 0 : index
    %34 = vector.load %arg3[%c0_27, %c0_28] : memref<1x128xf32, #tpu.memory_space<vmem>>, vector<1x128xf32>
    %35 = vector.shape_cast %34 : vector<1x128xf32> to vector<1x1x128xf32>
    %36 = vector.broadcast %35 : vector<1x1x128xf32> to vector<4x4x128xf32>
    %37 = arith.addf %33, %36 : vector<4x4x128xf32>
    %cst_29 = arith.constant 0.000000e+00 : f32
    %38 = vector.broadcast %cst_29 : f32 to vector<4x4x128xf32>
    %39 = arith.maximumf %37, %38 : vector<4x4x128xf32>
    %40 = arith.truncf %39 : vector<4x4x128xf32> to vector<4x4x128xbf16>
    %c0_30 = arith.constant 0 : index
    %c0_31 = arith.constant 0 : index
    %c0_32 = arith.constant 0 : index
    %c0_33 = arith.constant 0 : index
    %41 = vector.load %arg4[%c0_30, %c0_31, %c0_32, %c0_33] : memref<1x4x4x128xbf16, #tpu.memory_space<vmem>>, vector<1x4x4x128xbf16>
    %42 = vector.shape_cast %41 : vector<1x4x4x128xbf16> to vector<4x4x128xbf16>
    %43 = vector.shape_cast %40 : vector<4x4x128xbf16> to vector<1x4x4x128xbf16>
    tpu.vector_store %arg4[%c0_30, %c0_31, %c0_32, %c0_33], %43 {strides = array<i32>} : memref<1x4x4x128xbf16, #tpu.memory_space<vmem>>, vector<1x4x4x128xbf16>,
    return
  }
  func.func @transform_0(%arg0: i32) -> (i32, i32, i32, i32) {
    %c0_i32 = arith.constant 0 : i32
    %c0_i32_0 = arith.constant 0 : i32
    %c0_i32_1 = arith.constant 0 : i32
    %c0_i32_2 = arith.constant 0 : i32
    return %arg0, %c0_i32, %c0_i32_0, %c0_i32_1 : i32, i32, i32, i32
  }
  func.func @transform_1(%arg0: i32) -> (i32, i32) {
    %c0_i32 = arith.constant 0 : i32
    %c0_i32_0 = arith.constant 0 : i32
    %c0_i32_1 = arith.constant 0 : i32
    return %c0_i32, %c0_i32_0 : i32, i32
  }
  func.func @transform_2(%arg0: i32) -> (i32, i32) {
    %c0_i32 = arith.constant 0 : i32
    %c0_i32_0 = arith.constant 0 : i32
    %c0_i32_1 = arith.constant 0 : i32
    return %c0_i32, %c0_i32_0 : i32, i32
  }
  func.func @transform_3(%arg0: i32) -> (i32, i32, i32, i32) {
    %c0_i32 = arith.constant 0 : i32
    %c0_i32_0 = arith.constant 0 : i32
    %c0_i32_1 = arith.constant 0 : i32
    %c0_i32_2 = arith.constant 0 : i32
    return %arg0, %c0_i32, %c0_i32_0, %c0_i32_1 : i32, i32, i32, i32
  }
}

module attributes {stable_mosaic.version = 11 : i64} {
  func.func @_conv_relu_pool_kernel(%arg0: i32, %arg1: memref<1x18x18x8xbf16, #tpu.memory_space<vmem>>, %arg2: memref<72x128xbf16, #tpu.memory_space<vmem>>, %arg3: memref<1x128xf32, #tpu.memory_space<vmem>>, %arg4: memref<1x8x8x128xbf16, #tpu.memory_space<vmem>>, %arg5: memref<16x16x72xbf16, #tpu.memory_space<vmem>>) attributes {dimension_semantics = [#tpu.dimension_semantics<parallel>], iteration_bounds = array<i64: 2>, scalar_prefetch = 0 : i64, scratch_operands = 1 : i64, tpu.core_type = #tpu.core_type<tc>, window_params = [{transform_indices = @transform_0, window_bounds = array<i64: 1, 18, 18, 8>}, {pipeline_mode = #tpu.pipeline_mode<synchronous>, transform_indices = @transform_1, window_bounds = array<i64: 72, 128>}, {pipeline_mode = #tpu.pipeline_mode<synchronous>, transform_indices = @transform_2, window_bounds = array<i64: 1, 128>}, {transform_indices = @transform_3, window_bounds = array<i64: 1, 8, 8, 128>}]} {
    %c0 = arith.constant 0 : index
    %c0_0 = arith.constant 0 : index
    %c0_1 = arith.constant 0 : index
    %c0_2 = arith.constant 0 : index
    %0 = vector.load %arg1[%c0, %c0_0, %c0_1, %c0_2] : memref<1x18x18x8xbf16, #tpu.memory_space<vmem>>, vector<1x18x18x8xbf16>
    %1 = vector.shape_cast %0 : vector<1x18x18x8xbf16> to vector<18x18x8xbf16>
    %2 = vector.extract_strided_slice %1 {offsets = [0, 0, 0], sizes = [16, 16, 8], strides = [1, 1, 1]} : vector<18x18x8xbf16> to vector<16x16x8xbf16>
    %c0_3 = arith.constant 0 : index
    %c0_4 = arith.constant 0 : index
    %c0_5 = arith.constant 0 : index
    %3 = vector.load %arg5[%c0_3, %c0_4, %c0_5] : memref<16x16x72xbf16, #tpu.memory_space<vmem>>, vector<16x16x8xbf16>
    tpu.vector_store %arg5[%c0_3, %c0_4, %c0_5], %2 {strides = array<i32>} : memref<16x16x72xbf16, #tpu.memory_space<vmem>>, vector<16x16x8xbf16>,
    %4 = vector.extract_strided_slice %1 {offsets = [0, 1, 0], sizes = [16, 16, 8], strides = [1, 1, 1]} : vector<18x18x8xbf16> to vector<16x16x8xbf16>
    %c0_6 = arith.constant 0 : index
    %c0_7 = arith.constant 0 : index
    %c8 = arith.constant 8 : index
    %5 = vector.load %arg5[%c0_6, %c0_7, %c8] : memref<16x16x72xbf16, #tpu.memory_space<vmem>>, vector<16x16x8xbf16>
    tpu.vector_store %arg5[%c0_6, %c0_7, %c8], %4 {strides = array<i32>} : memref<16x16x72xbf16, #tpu.memory_space<vmem>>, vector<16x16x8xbf16>,
    %6 = vector.extract_strided_slice %1 {offsets = [0, 2, 0], sizes = [16, 16, 8], strides = [1, 1, 1]} : vector<18x18x8xbf16> to vector<16x16x8xbf16>
    %c0_8 = arith.constant 0 : index
    %c0_9 = arith.constant 0 : index
    %c16 = arith.constant 16 : index
    %7 = vector.load %arg5[%c0_8, %c0_9, %c16] : memref<16x16x72xbf16, #tpu.memory_space<vmem>>, vector<16x16x8xbf16>
    tpu.vector_store %arg5[%c0_8, %c0_9, %c16], %6 {strides = array<i32>} : memref<16x16x72xbf16, #tpu.memory_space<vmem>>, vector<16x16x8xbf16>,
    %8 = vector.extract_strided_slice %1 {offsets = [1, 0, 0], sizes = [16, 16, 8], strides = [1, 1, 1]} : vector<18x18x8xbf16> to vector<16x16x8xbf16>
    %c0_10 = arith.constant 0 : index
    %c0_11 = arith.constant 0 : index
    %c24 = arith.constant 24 : index
    %9 = vector.load %arg5[%c0_10, %c0_11, %c24] : memref<16x16x72xbf16, #tpu.memory_space<vmem>>, vector<16x16x8xbf16>
    tpu.vector_store %arg5[%c0_10, %c0_11, %c24], %8 {strides = array<i32>} : memref<16x16x72xbf16, #tpu.memory_space<vmem>>, vector<16x16x8xbf16>,
    %10 = vector.extract_strided_slice %1 {offsets = [1, 1, 0], sizes = [16, 16, 8], strides = [1, 1, 1]} : vector<18x18x8xbf16> to vector<16x16x8xbf16>
    %c0_12 = arith.constant 0 : index
    %c0_13 = arith.constant 0 : index
    %c32 = arith.constant 32 : index
    %11 = vector.load %arg5[%c0_12, %c0_13, %c32] : memref<16x16x72xbf16, #tpu.memory_space<vmem>>, vector<16x16x8xbf16>
    tpu.vector_store %arg5[%c0_12, %c0_13, %c32], %10 {strides = array<i32>} : memref<16x16x72xbf16, #tpu.memory_space<vmem>>, vector<16x16x8xbf16>,
    %12 = vector.extract_strided_slice %1 {offsets = [1, 2, 0], sizes = [16, 16, 8], strides = [1, 1, 1]} : vector<18x18x8xbf16> to vector<16x16x8xbf16>
    %c0_14 = arith.constant 0 : index
    %c0_15 = arith.constant 0 : index
    %c40 = arith.constant 40 : index
    %13 = vector.load %arg5[%c0_14, %c0_15, %c40] : memref<16x16x72xbf16, #tpu.memory_space<vmem>>, vector<16x16x8xbf16>
    tpu.vector_store %arg5[%c0_14, %c0_15, %c40], %12 {strides = array<i32>} : memref<16x16x72xbf16, #tpu.memory_space<vmem>>, vector<16x16x8xbf16>,
    %14 = vector.extract_strided_slice %1 {offsets = [2, 0, 0], sizes = [16, 16, 8], strides = [1, 1, 1]} : vector<18x18x8xbf16> to vector<16x16x8xbf16>
    %c0_16 = arith.constant 0 : index
    %c0_17 = arith.constant 0 : index
    %c48 = arith.constant 48 : index
    %15 = vector.load %arg5[%c0_16, %c0_17, %c48] : memref<16x16x72xbf16, #tpu.memory_space<vmem>>, vector<16x16x8xbf16>
    tpu.vector_store %arg5[%c0_16, %c0_17, %c48], %14 {strides = array<i32>} : memref<16x16x72xbf16, #tpu.memory_space<vmem>>, vector<16x16x8xbf16>,
    %16 = vector.extract_strided_slice %1 {offsets = [2, 1, 0], sizes = [16, 16, 8], strides = [1, 1, 1]} : vector<18x18x8xbf16> to vector<16x16x8xbf16>
    %c0_18 = arith.constant 0 : index
    %c0_19 = arith.constant 0 : index
    %c56 = arith.constant 56 : index
    %17 = vector.load %arg5[%c0_18, %c0_19, %c56] : memref<16x16x72xbf16, #tpu.memory_space<vmem>>, vector<16x16x8xbf16>
    tpu.vector_store %arg5[%c0_18, %c0_19, %c56], %16 {strides = array<i32>} : memref<16x16x72xbf16, #tpu.memory_space<vmem>>, vector<16x16x8xbf16>,
    %18 = vector.extract_strided_slice %1 {offsets = [2, 2, 0], sizes = [16, 16, 8], strides = [1, 1, 1]} : vector<18x18x8xbf16> to vector<16x16x8xbf16>
    %c0_20 = arith.constant 0 : index
    %c0_21 = arith.constant 0 : index
    %c64 = arith.constant 64 : index
    %19 = vector.load %arg5[%c0_20, %c0_21, %c64] : memref<16x16x72xbf16, #tpu.memory_space<vmem>>, vector<16x16x8xbf16>
    tpu.vector_store %arg5[%c0_20, %c0_21, %c64], %18 {strides = array<i32>} : memref<16x16x72xbf16, #tpu.memory_space<vmem>>, vector<16x16x8xbf16>,
    %c0_22 = arith.constant 0 : index
    %c0_23 = arith.constant 0 : index
    %c0_24 = arith.constant 0 : index
    %20 = vector.load %arg5[%c0_22, %c0_23, %c0_24] : memref<16x16x72xbf16, #tpu.memory_space<vmem>>, vector<16x16x72xbf16>
    %21 = vector.shape_cast %20 : vector<16x16x72xbf16> to vector<256x72xbf16>
    %c0_25 = arith.constant 0 : index
    %c0_26 = arith.constant 0 : index
    %22 = vector.load %arg2[%c0_25, %c0_26] : memref<72x128xbf16, #tpu.memory_space<vmem>>, vector<72x128xbf16>
    %cst = arith.constant dense<0.000000e+00> : vector<256x128xf32>
    %23 = tpu.matmul %21, %22, %cst {dimension_numbers = #tpu.dot_dimension_numbers<[1], [0], [0], [1], [0, 0, 1, 1], [], []>} : vector<256x72xbf16>, vector<72x128xbf16>, vector<256x128xf32> -> vector<256x128xf32>
    %24 = vector.shape_cast %23 : vector<256x128xf32> to vector<128x2x128xf32>
    %25 = vector.extract_strided_slice %24 {offsets = [0, 0, 0], sizes = [128, 1, 128], strides = [1, 1, 1]} : vector<128x2x128xf32> to vector<128x1x128xf32>
    %26 = vector.shape_cast %25 : vector<128x1x128xf32> to vector<128x128xf32>
    %27 = vector.extract_strided_slice %24 {offsets = [0, 1, 0], sizes = [128, 1, 128], strides = [1, 1, 1]} : vector<128x2x128xf32> to vector<128x1x128xf32>
    %28 = vector.shape_cast %27 : vector<128x1x128xf32> to vector<128x128xf32>
    %29 = arith.maximumf %26, %28 : vector<128x128xf32>
    %30 = vector.shape_cast %29 : vector<128x128xf32> to vector<8x16x128xf32>
    %31 = vector.extract_strided_slice %30 {offsets = [0, 0, 0], sizes = [8, 8, 128], strides = [1, 1, 1]} : vector<8x16x128xf32> to vector<8x8x128xf32>
    %32 = vector.extract_strided_slice %30 {offsets = [0, 8, 0], sizes = [8, 8, 128], strides = [1, 1, 1]} : vector<8x16x128xf32> to vector<8x8x128xf32>
    %33 = arith.maximumf %31, %32 : vector<8x8x128xf32>
    %c0_27 = arith.constant 0 : index
    %c0_28 = arith.constant 0 : index
    %34 = vector.load %arg3[%c0_27, %c0_28] : memref<1x128xf32, #tpu.memory_space<vmem>>, vector<1x128xf32>
    %35 = vector.shape_cast %34 : vector<1x128xf32> to vector<1x1x128xf32>
    %36 = vector.broadcast %35 : vector<1x1x128xf32> to vector<8x8x128xf32>
    %37 = arith.addf %33, %36 : vector<8x8x128xf32>
    %cst_29 = arith.constant 0.000000e+00 : f32
    %38 = vector.broadcast %cst_29 : f32 to vector<8x8x128xf32>
    %39 = arith.maximumf %37, %38 : vector<8x8x128xf32>
    %40 = arith.truncf %39 : vector<8x8x128xf32> to vector<8x8x128xbf16>
    %c0_30 = arith.constant 0 : index
    %c0_31 = arith.constant 0 : index
    %c0_32 = arith.constant 0 : index
    %c0_33 = arith.constant 0 : index
    %41 = vector.load %arg4[%c0_30, %c0_31, %c0_32, %c0_33] : memref<1x8x8x128xbf16, #tpu.memory_space<vmem>>, vector<1x8x8x128xbf16>
    %42 = vector.shape_cast %41 : vector<1x8x8x128xbf16> to vector<8x8x128xbf16>
    %43 = vector.shape_cast %40 : vector<8x8x128xbf16> to vector<1x8x8x128xbf16>
    tpu.vector_store %arg4[%c0_30, %c0_31, %c0_32, %c0_33], %43 {strides = array<i32>} : memref<1x8x8x128xbf16, #tpu.memory_space<vmem>>, vector<1x8x8x128xbf16>,
    return
  }
  func.func @transform_0(%arg0: i32) -> (i32, i32, i32, i32) {
    %c0_i32 = arith.constant 0 : i32
    %c0_i32_0 = arith.constant 0 : i32
    %c0_i32_1 = arith.constant 0 : i32
    %c0_i32_2 = arith.constant 0 : i32
    return %arg0, %c0_i32, %c0_i32_0, %c0_i32_1 : i32, i32, i32, i32
  }
  func.func @transform_1(%arg0: i32) -> (i32, i32) {
    %c0_i32 = arith.constant 0 : i32
    %c0_i32_0 = arith.constant 0 : i32
    %c0_i32_1 = arith.constant 0 : i32
    return %c0_i32, %c0_i32_0 : i32, i32
  }
  func.func @transform_2(%arg0: i32) -> (i32, i32) {
    %c0_i32 = arith.constant 0 : i32
    %c0_i32_0 = arith.constant 0 : i32
    %c0_i32_1 = arith.constant 0 : i32
    return %c0_i32, %c0_i32_0 : i32, i32
  }
  func.func @transform_3(%arg0: i32) -> (i32, i32, i32, i32) {
    %c0_i32 = arith.constant 0 : i32
    %c0_i32_0 = arith.constant 0 : i32
    %c0_i32_1 = arith.constant 0 : i32
    %c0_i32_2 = arith.constant 0 : i32
    return %arg0, %c0_i32, %c0_i32_0, %c0_i32_1 : i32, i32, i32, i32
  }
}

module attributes {stable_mosaic.version = 11 : i64} {
  func.func @_conv_relu_pool_kernel(%arg0: i32, %arg1: memref<1x6x6x128xbf16, #tpu.memory_space<vmem>>, %arg2: memref<1152x128xbf16, #tpu.memory_space<vmem>>, %arg3: memref<1x128xf32, #tpu.memory_space<vmem>>, %arg4: memref<1x2x2x128xbf16, #tpu.memory_space<vmem>>, %arg5: memref<4x4x1152xbf16, #tpu.memory_space<vmem>>) attributes {dimension_semantics = [#tpu.dimension_semantics<parallel>], iteration_bounds = array<i64: 2>, scalar_prefetch = 0 : i64, scratch_operands = 1 : i64, tpu.core_type = #tpu.core_type<tc>, window_params = [{transform_indices = @transform_0, window_bounds = array<i64: 1, 6, 6, 128>}, {pipeline_mode = #tpu.pipeline_mode<synchronous>, transform_indices = @transform_1, window_bounds = array<i64: 1152, 128>}, {pipeline_mode = #tpu.pipeline_mode<synchronous>, transform_indices = @transform_2, window_bounds = array<i64: 1, 128>}, {transform_indices = @transform_3, window_bounds = array<i64: 1, 2, 2, 128>}]} {
    %c0 = arith.constant 0 : index
    %c0_0 = arith.constant 0 : index
    %c0_1 = arith.constant 0 : index
    %c0_2 = arith.constant 0 : index
    %0 = vector.load %arg1[%c0, %c0_0, %c0_1, %c0_2] : memref<1x6x6x128xbf16, #tpu.memory_space<vmem>>, vector<1x6x6x128xbf16>
    %1 = vector.shape_cast %0 : vector<1x6x6x128xbf16> to vector<6x6x128xbf16>
    %2 = vector.extract_strided_slice %1 {offsets = [0, 0, 0], sizes = [4, 4, 128], strides = [1, 1, 1]} : vector<6x6x128xbf16> to vector<4x4x128xbf16>
    %c0_3 = arith.constant 0 : index
    %c0_4 = arith.constant 0 : index
    %c0_5 = arith.constant 0 : index
    %3 = vector.load %arg5[%c0_3, %c0_4, %c0_5] : memref<4x4x1152xbf16, #tpu.memory_space<vmem>>, vector<4x4x128xbf16>
    tpu.vector_store %arg5[%c0_3, %c0_4, %c0_5], %2 {strides = array<i32>} : memref<4x4x1152xbf16, #tpu.memory_space<vmem>>, vector<4x4x128xbf16>,
    %4 = vector.extract_strided_slice %1 {offsets = [0, 1, 0], sizes = [4, 4, 128], strides = [1, 1, 1]} : vector<6x6x128xbf16> to vector<4x4x128xbf16>
    %c0_6 = arith.constant 0 : index
    %c0_7 = arith.constant 0 : index
    %c128 = arith.constant 128 : index
    %5 = vector.load %arg5[%c0_6, %c0_7, %c128] : memref<4x4x1152xbf16, #tpu.memory_space<vmem>>, vector<4x4x128xbf16>
    tpu.vector_store %arg5[%c0_6, %c0_7, %c128], %4 {strides = array<i32>} : memref<4x4x1152xbf16, #tpu.memory_space<vmem>>, vector<4x4x128xbf16>,
    %6 = vector.extract_strided_slice %1 {offsets = [0, 2, 0], sizes = [4, 4, 128], strides = [1, 1, 1]} : vector<6x6x128xbf16> to vector<4x4x128xbf16>
    %c0_8 = arith.constant 0 : index
    %c0_9 = arith.constant 0 : index
    %c256 = arith.constant 256 : index
    %7 = vector.load %arg5[%c0_8, %c0_9, %c256] : memref<4x4x1152xbf16, #tpu.memory_space<vmem>>, vector<4x4x128xbf16>
    tpu.vector_store %arg5[%c0_8, %c0_9, %c256], %6 {strides = array<i32>} : memref<4x4x1152xbf16, #tpu.memory_space<vmem>>, vector<4x4x128xbf16>,
    %8 = vector.extract_strided_slice %1 {offsets = [1, 0, 0], sizes = [4, 4, 128], strides = [1, 1, 1]} : vector<6x6x128xbf16> to vector<4x4x128xbf16>
    %c0_10 = arith.constant 0 : index
    %c0_11 = arith.constant 0 : index
    %c384 = arith.constant 384 : index
    %9 = vector.load %arg5[%c0_10, %c0_11, %c384] : memref<4x4x1152xbf16, #tpu.memory_space<vmem>>, vector<4x4x128xbf16>
    tpu.vector_store %arg5[%c0_10, %c0_11, %c384], %8 {strides = array<i32>} : memref<4x4x1152xbf16, #tpu.memory_space<vmem>>, vector<4x4x128xbf16>,
    %10 = vector.extract_strided_slice %1 {offsets = [1, 1, 0], sizes = [4, 4, 128], strides = [1, 1, 1]} : vector<6x6x128xbf16> to vector<4x4x128xbf16>
    %c0_12 = arith.constant 0 : index
    %c0_13 = arith.constant 0 : index
    %c512 = arith.constant 512 : index
    %11 = vector.load %arg5[%c0_12, %c0_13, %c512] : memref<4x4x1152xbf16, #tpu.memory_space<vmem>>, vector<4x4x128xbf16>
    tpu.vector_store %arg5[%c0_12, %c0_13, %c512], %10 {strides = array<i32>} : memref<4x4x1152xbf16, #tpu.memory_space<vmem>>, vector<4x4x128xbf16>,
    %12 = vector.extract_strided_slice %1 {offsets = [1, 2, 0], sizes = [4, 4, 128], strides = [1, 1, 1]} : vector<6x6x128xbf16> to vector<4x4x128xbf16>
    %c0_14 = arith.constant 0 : index
    %c0_15 = arith.constant 0 : index
    %c640 = arith.constant 640 : index
    %13 = vector.load %arg5[%c0_14, %c0_15, %c640] : memref<4x4x1152xbf16, #tpu.memory_space<vmem>>, vector<4x4x128xbf16>
    tpu.vector_store %arg5[%c0_14, %c0_15, %c640], %12 {strides = array<i32>} : memref<4x4x1152xbf16, #tpu.memory_space<vmem>>, vector<4x4x128xbf16>,
    %14 = vector.extract_strided_slice %1 {offsets = [2, 0, 0], sizes = [4, 4, 128], strides = [1, 1, 1]} : vector<6x6x128xbf16> to vector<4x4x128xbf16>
    %c0_16 = arith.constant 0 : index
    %c0_17 = arith.constant 0 : index
    %c768 = arith.constant 768 : index
    %15 = vector.load %arg5[%c0_16, %c0_17, %c768] : memref<4x4x1152xbf16, #tpu.memory_space<vmem>>, vector<4x4x128xbf16>
    tpu.vector_store %arg5[%c0_16, %c0_17, %c768], %14 {strides = array<i32>} : memref<4x4x1152xbf16, #tpu.memory_space<vmem>>, vector<4x4x128xbf16>,
    %16 = vector.extract_strided_slice %1 {offsets = [2, 1, 0], sizes = [4, 4, 128], strides = [1, 1, 1]} : vector<6x6x128xbf16> to vector<4x4x128xbf16>
    %c0_18 = arith.constant 0 : index
    %c0_19 = arith.constant 0 : index
    %c896 = arith.constant 896 : index
    %17 = vector.load %arg5[%c0_18, %c0_19, %c896] : memref<4x4x1152xbf16, #tpu.memory_space<vmem>>, vector<4x4x128xbf16>
    tpu.vector_store %arg5[%c0_18, %c0_19, %c896], %16 {strides = array<i32>} : memref<4x4x1152xbf16, #tpu.memory_space<vmem>>, vector<4x4x128xbf16>,
    %18 = vector.extract_strided_slice %1 {offsets = [2, 2, 0], sizes = [4, 4, 128], strides = [1, 1, 1]} : vector<6x6x128xbf16> to vector<4x4x128xbf16>
    %c0_20 = arith.constant 0 : index
    %c0_21 = arith.constant 0 : index
    %c1024 = arith.constant 1024 : index
    %19 = vector.load %arg5[%c0_20, %c0_21, %c1024] : memref<4x4x1152xbf16, #tpu.memory_space<vmem>>, vector<4x4x128xbf16>
    tpu.vector_store %arg5[%c0_20, %c0_21, %c1024], %18 {strides = array<i32>} : memref<4x4x1152xbf16, #tpu.memory_space<vmem>>, vector<4x4x128xbf16>,
    %c0_22 = arith.constant 0 : index
    %c0_23 = arith.constant 0 : index
    %c0_24 = arith.constant 0 : index
    %20 = vector.load %arg5[%c0_22, %c0_23, %c0_24] : memref<4x4x1152xbf16, #tpu.memory_space<vmem>>, vector<4x4x1152xbf16>
    %21 = vector.shape_cast %20 : vector<4x4x1152xbf16> to vector<16x1152xbf16>
    %c0_25 = arith.constant 0 : index
    %c0_26 = arith.constant 0 : index
    %22 = vector.load %arg2[%c0_25, %c0_26] : memref<1152x128xbf16, #tpu.memory_space<vmem>>, vector<1152x128xbf16>
    %cst = arith.constant dense<0.000000e+00> : vector<16x128xf32>
    %23 = tpu.matmul %21, %22, %cst {dimension_numbers = #tpu.dot_dimension_numbers<[1], [0], [0], [1], [0, 0, 1, 1], [], []>} : vector<16x1152xbf16>, vector<1152x128xbf16>, vector<16x128xf32> -> vector<16x128xf32>
    %24 = vector.shape_cast %23 : vector<16x128xf32> to vector<8x2x128xf32>
    %25 = vector.extract_strided_slice %24 {offsets = [0, 0, 0], sizes = [8, 1, 128], strides = [1, 1, 1]} : vector<8x2x128xf32> to vector<8x1x128xf32>
    %26 = vector.shape_cast %25 : vector<8x1x128xf32> to vector<8x128xf32>
    %27 = vector.extract_strided_slice %24 {offsets = [0, 1, 0], sizes = [8, 1, 128], strides = [1, 1, 1]} : vector<8x2x128xf32> to vector<8x1x128xf32>
    %28 = vector.shape_cast %27 : vector<8x1x128xf32> to vector<8x128xf32>
    %29 = arith.maximumf %26, %28 : vector<8x128xf32>
    %30 = vector.shape_cast %29 : vector<8x128xf32> to vector<2x4x128xf32>
    %31 = vector.extract_strided_slice %30 {offsets = [0, 0, 0], sizes = [2, 2, 128], strides = [1, 1, 1]} : vector<2x4x128xf32> to vector<2x2x128xf32>
    %32 = vector.extract_strided_slice %30 {offsets = [0, 2, 0], sizes = [2, 2, 128], strides = [1, 1, 1]} : vector<2x4x128xf32> to vector<2x2x128xf32>
    %33 = arith.maximumf %31, %32 : vector<2x2x128xf32>
    %c0_27 = arith.constant 0 : index
    %c0_28 = arith.constant 0 : index
    %34 = vector.load %arg3[%c0_27, %c0_28] : memref<1x128xf32, #tpu.memory_space<vmem>>, vector<1x128xf32>
    %35 = vector.shape_cast %34 : vector<1x128xf32> to vector<1x1x128xf32>
    %36 = vector.broadcast %35 : vector<1x1x128xf32> to vector<2x2x128xf32>
    %37 = arith.addf %33, %36 : vector<2x2x128xf32>
    %cst_29 = arith.constant 0.000000e+00 : f32
    %38 = vector.broadcast %cst_29 : f32 to vector<2x2x128xf32>
    %39 = arith.maximumf %37, %38 : vector<2x2x128xf32>
    %40 = arith.truncf %39 : vector<2x2x128xf32> to vector<2x2x128xbf16>
    %c0_30 = arith.constant 0 : index
    %c0_31 = arith.constant 0 : index
    %c0_32 = arith.constant 0 : index
    %c0_33 = arith.constant 0 : index
    %41 = vector.load %arg4[%c0_30, %c0_31, %c0_32, %c0_33] : memref<1x2x2x128xbf16, #tpu.memory_space<vmem>>, vector<1x2x2x128xbf16>
    %42 = vector.shape_cast %41 : vector<1x2x2x128xbf16> to vector<2x2x128xbf16>
    %43 = vector.shape_cast %40 : vector<2x2x128xbf16> to vector<1x2x2x128xbf16>
    tpu.vector_store %arg4[%c0_30, %c0_31, %c0_32, %c0_33], %43 {strides = array<i32>} : memref<1x2x2x128xbf16, #tpu.memory_space<vmem>>, vector<1x2x2x128xbf16>,
    return
  }
  func.func @transform_0(%arg0: i32) -> (i32, i32, i32, i32) {
    %c0_i32 = arith.constant 0 : i32
    %c0_i32_0 = arith.constant 0 : i32
    %c0_i32_1 = arith.constant 0 : i32
    %c0_i32_2 = arith.constant 0 : i32
    return %arg0, %c0_i32, %c0_i32_0, %c0_i32_1 : i32, i32, i32, i32
  }
  func.func @transform_1(%arg0: i32) -> (i32, i32) {
    %c0_i32 = arith.constant 0 : i32
    %c0_i32_0 = arith.constant 0 : i32
    %c0_i32_1 = arith.constant 0 : i32
    return %c0_i32, %c0_i32_0 : i32, i32
  }
  func.func @transform_2(%arg0: i32) -> (i32, i32) {
    %c0_i32 = arith.constant 0 : i32
    %c0_i32_0 = arith.constant 0 : i32
    %c0_i32_1 = arith.constant 0 : i32
    return %c0_i32, %c0_i32_0 : i32, i32
  }
  func.func @transform_3(%arg0: i32) -> (i32, i32, i32, i32) {
    %c0_i32 = arith.constant 0 : i32
    %c0_i32_0 = arith.constant 0 : i32
    %c0_i32_1 = arith.constant 0 : i32
    %c0_i32_2 = arith.constant 0 : i32
    return %arg0, %c0_i32, %c0_i32_0, %c0_i32_1 : i32, i32, i32, i32
  }
}

module attributes {stable_mosaic.version = 11 : i64} {
  func.func @_classifier_kernel(%arg0: i32, %arg1: memref<2x512xbf16, #tpu.memory_space<vmem>>, %arg2: memref<512x256xbf16, #tpu.memory_space<vmem>>, %arg3: memref<1x256xf32, #tpu.memory_space<vmem>>, %arg4: memref<256x10xbf16, #tpu.memory_space<vmem>>, %arg5: memref<1x10xf32, #tpu.memory_space<vmem>>, %arg6: memref<2x10xf32, #tpu.memory_space<vmem>>) attributes {dimension_semantics = [#tpu.dimension_semantics<parallel>], iteration_bounds = array<i64: 1>, scalar_prefetch = 0 : i64, scratch_operands = 0 : i64, tpu.core_type = #tpu.core_type<tc>, window_params = [{transform_indices = @transform_0, window_bounds = array<i64: 2, 512>}, {pipeline_mode = #tpu.pipeline_mode<synchronous>, transform_indices = @transform_1, window_bounds = array<i64: 512, 256>}, {pipeline_mode = #tpu.pipeline_mode<synchronous>, transform_indices = @transform_2, window_bounds = array<i64: 1, 256>}, {pipeline_mode = #tpu.pipeline_mode<synchronous>, transform_indices = @transform_3, window_bounds = array<i64: 256, 10>}, {pipeline_mode = #tpu.pipeline_mode<synchronous>, transform_indices = @transform_4, window_bounds = array<i64: 1, 10>}, {transform_indices = @transform_5, window_bounds = array<i64: 2, 10>}]} {
    %c0 = arith.constant 0 : index
    %c0_0 = arith.constant 0 : index
    %0 = vector.load %arg1[%c0, %c0_0] : memref<2x512xbf16, #tpu.memory_space<vmem>>, vector<2x512xbf16>
    %c0_1 = arith.constant 0 : index
    %c0_2 = arith.constant 0 : index
    %1 = vector.load %arg2[%c0_1, %c0_2] : memref<512x256xbf16, #tpu.memory_space<vmem>>, vector<512x256xbf16>
    %cst = arith.constant dense<0.000000e+00> : vector<2x256xf32>
    %2 = tpu.matmul %0, %1, %cst {dimension_numbers = #tpu.dot_dimension_numbers<[1], [0], [0], [1], [0, 0, 1, 1], [], []>} : vector<2x512xbf16>, vector<512x256xbf16>, vector<2x256xf32> -> vector<2x256xf32>
    %c0_3 = arith.constant 0 : index
    %c0_4 = arith.constant 0 : index
    %3 = vector.load %arg3[%c0_3, %c0_4] : memref<1x256xf32, #tpu.memory_space<vmem>>, vector<1x256xf32>
    %4 = vector.broadcast %3 : vector<1x256xf32> to vector<2x256xf32>
    %5 = arith.addf %2, %4 : vector<2x256xf32>
    %cst_5 = arith.constant 0.000000e+00 : f32
    %6 = vector.broadcast %cst_5 : f32 to vector<2x256xf32>
    %7 = arith.maximumf %5, %6 : vector<2x256xf32>
    %8 = arith.truncf %7 : vector<2x256xf32> to vector<2x256xbf16>
    %c0_6 = arith.constant 0 : index
    %c0_7 = arith.constant 0 : index
    %9 = vector.load %arg4[%c0_6, %c0_7] : memref<256x10xbf16, #tpu.memory_space<vmem>>, vector<256x10xbf16>
    %cst_8 = arith.constant dense<0.000000e+00> : vector<2x10xf32>
    %10 = tpu.matmul %8, %9, %cst_8 {dimension_numbers = #tpu.dot_dimension_numbers<[1], [0], [0], [1], [0, 0, 1, 1], [], []>} : vector<2x256xbf16>, vector<256x10xbf16>, vector<2x10xf32> -> vector<2x10xf32>
    %c0_9 = arith.constant 0 : index
    %c0_10 = arith.constant 0 : index
    %11 = vector.load %arg5[%c0_9, %c0_10] : memref<1x10xf32, #tpu.memory_space<vmem>>, vector<1x10xf32>
    %12 = vector.broadcast %11 : vector<1x10xf32> to vector<2x10xf32>
    %13 = arith.addf %10, %12 : vector<2x10xf32>
    %c0_11 = arith.constant 0 : index
    %c0_12 = arith.constant 0 : index
    %14 = vector.load %arg6[%c0_11, %c0_12] : memref<2x10xf32, #tpu.memory_space<vmem>>, vector<2x10xf32>
    tpu.vector_store %arg6[%c0_11, %c0_12], %13 {strides = array<i32>} : memref<2x10xf32, #tpu.memory_space<vmem>>, vector<2x10xf32>,
    return
  }
  func.func @transform_0(%arg0: i32) -> (i32, i32) {
    %c0_i32 = arith.constant 0 : i32
    %c0_i32_0 = arith.constant 0 : i32
    return %arg0, %c0_i32 : i32, i32
  }
  func.func @transform_1(%arg0: i32) -> (i32, i32) {
    %c0_i32 = arith.constant 0 : i32
    %c0_i32_0 = arith.constant 0 : i32
    %c0_i32_1 = arith.constant 0 : i32
    return %c0_i32, %c0_i32_0 : i32, i32
  }
  func.func @transform_2(%arg0: i32) -> (i32, i32) {
    %c0_i32 = arith.constant 0 : i32
    %c0_i32_0 = arith.constant 0 : i32
    %c0_i32_1 = arith.constant 0 : i32
    return %c0_i32, %c0_i32_0 : i32, i32
  }
  func.func @transform_3(%arg0: i32) -> (i32, i32) {
    %c0_i32 = arith.constant 0 : i32
    %c0_i32_0 = arith.constant 0 : i32
    %c0_i32_1 = arith.constant 0 : i32
    return %c0_i32, %c0_i32_0 : i32, i32
  }
  func.func @transform_4(%arg0: i32) -> (i32, i32) {
    %c0_i32 = arith.constant 0 : i32
    %c0_i32_0 = arith.constant 0 : i32
    %c0_i32_1 = arith.constant 0 : i32
    return %c0_i32, %c0_i32_0 : i32, i32
  }
  func.func @transform_5(%arg0: i32) -> (i32, i32) {
    %c0_i32 = arith.constant 0 : i32
    %c0_i32_0 = arith.constant 0 : i32
    return %arg0, %c0_i32 : i32, i32
  }
}

</mosaic_0001>

<llo_original>
// kernel: simple_cnn_forward.7
$region0: #{simple_cnn_forward.7}
  #allocation0 [shape = 'u32[]', space=smem, size = 0x4, offset = 0x4, fixed_abs, tag = 'smem constant byte address 0x4 - core index']
  #allocation1 [shape = 'u32[144,128]{1,0:T(1,128)}', space=vmem, size = 0x12000, scoped, tag = 'internal scratch']
  %s0 = inlined_call_operand.vmem [shape: bf16[2,512], index: 0, kind: input, shape index: {}]
  %s1 = inlined_call_operand.vmem [shape: bf16[512,256], index: 1, kind: input, shape index: {}]
  %s2 = inlined_call_operand.vmem [shape: f32[1,256], index: 2, kind: input, shape index: {}]
  %s3 = inlined_call_operand.vmem [shape: bf16[256,10], index: 3, kind: input, shape index: {}]
  %s4 = inlined_call_operand.vmem [shape: f32[1,10], index: 4, kind: input, shape index: {}]
  %s5 = inlined_call_operand.hbm [shape: f32[2,10], index: 5, kind: output, shape index: {}]
  %s6 = sld [smem:[#allocation0]]
  $region30: #{simple_cnn_forward.7} parent=0
    _
  %s8 = ssub.s32 1, %s6
  %s9 = scalar_select 0, %s8, %s6
  $region1: #{simple_cnn_forward.7} parent=0
    #allocation2 [shape = 'u8[1024]{0}', space=vmem, size = 0x400, scoped, tag = 'output window, operand 0, single buffered']
    #allocation3 [shape = 's32[1]{0}', space=sflag, size = 0x4, scoped, tag = 'scoped memory for simple_cnn_forward.7']
    %10 = vsyncpa [#allocation3], 0
    // Predicated region
    $region2: #{simple_cnn_forward.7} parent=1 // pred_check
      _
    $region3: #{simple_cnn_forward.7} parent=1 // pred_check_branch
      %12 = sbr.rel (0) target = $region5
    $region4: #{simple_cnn_forward.7} parent=1 // pred_region
      _
    $region5: #{simple_cnn_forward.7} parent=1 // pred_fallthru
      _
    // Predicated region
    $region6: #{simple_cnn_forward.7} parent=1 // pred_check
      _
    $region7: #{simple_cnn_forward.7} parent=1 // pred_check_branch
      %14 = sbr.rel (0) target = $region9
    $region8: #{simple_cnn_forward.7} parent=1 // pred_region
      _
    $region9: #{simple_cnn_forward.7} parent=1 // pred_fallthru
      _
    // Predicated region
    $region10: #{simple_cnn_forward.7} parent=1 // pred_check
      _
    $region11: #{simple_cnn_forward.7} parent=1 // pred_check_branch
      %16 = sbr.rel (0) target = $region13
    $region12: #{simple_cnn_forward.7} parent=1 // pred_region
      _
    $region13: #{simple_cnn_forward.7} parent=1 // pred_fallthru
      _
    // Predicated region
    $region14: #{simple_cnn_forward.7} parent=1 // pred_check
      _
    $region15: #{simple_cnn_forward.7} parent=1 // pred_check_branch
      %18 = sbr.rel (0) target = $region17
    $region16: #{simple_cnn_forward.7} parent=1 // pred_region
      _
    $region17: #{simple_cnn_forward.7} parent=1 // pred_fallthru
      _
    // Predicated region
    $region18: #{simple_cnn_forward.7} parent=1 // pred_check
      _
    $region19: #{simple_cnn_forward.7} parent=1 // pred_check_branch
      %20 = sbr.rel (0) target = $region21
    $region20: #{simple_cnn_forward.7} parent=1 // pred_region
      _
    $region21: #{simple_cnn_forward.7} parent=1 // pred_fallthru
      _
    %v22 = vld [vmem:[%s0] sm:$0xf]
    %v23 = vld [vmem:[%s1] sm:$0xff]
    %v24 = vld [vmem:[%s1 + $0x8] sm:$0xff]
    %v25 = vld [vmem:[%s1 + $0x10] sm:$0xff]
    %v26 = vld [vmem:[%s1 + $0x18] sm:$0xff]
    %v27 = vld [vmem:[%s1 + $0x20] sm:$0xff]
    %v28 = vld [vmem:[%s1 + $0x28] sm:$0xff]
    %v29 = vld [vmem:[%s1 + $0x30] sm:$0xff]
    %v30 = vld [vmem:[%s1 + $0x38] sm:$0xff]
    %v31 = vld [vmem:[%s1 + $0x40] sm:$0xff]
    %v32 = vld [vmem:[%s1 + $0x48] sm:$0xff]
    %v33 = vld [vmem:[%s1 + $0x50] sm:$0xff]
    %v34 = vld [vmem:[%s1 + $0x58] sm:$0xff]
    %v35 = vld [vmem:[%s1 + $0x60] sm:$0xff]
    %v36 = vld [vmem:[%s1 + $0x68] sm:$0xff]
    %v37 = vld [vmem:[%s1 + $0x70] sm:$0xff]
    %v38 = vld [vmem:[%s1 + $0x78] sm:$0xff]
    %v39 = vld [vmem:[%s1 + $0x80] sm:$0xff]
    %v40 = vld [vmem:[%s1 + $0x88] sm:$0xff]
    %v41 = vld [vmem:[%s1 + $0x90] sm:$0xff]
    %v42 = vld [vmem:[%s1 + $0x98] sm:$0xff]
    %v43 = vld [vmem:[%s1 + $0xa0] sm:$0xff]
    %v44 = vld [vmem:[%s1 + $0xa8] sm:$0xff]
    %v45 = vld [vmem:[%s1 + $0xb0] sm:$0xff]
    %v46 = vld [vmem:[%s1 + $0xb8] sm:$0xff]
    %v47 = vld [vmem:[%s1 + $0xc0] sm:$0xff]
    %v48 = vld [vmem:[%s1 + $0xc8] sm:$0xff]
    %v49 = vld [vmem:[%s1 + $0xd0] sm:$0xff]
    %v50 = vld [vmem:[%s1 + $0xd8] sm:$0xff]
    %v51 = vld [vmem:[%s1 + $0xe0] sm:$0xff]
    %v52 = vld [vmem:[%s1 + $0xe8] sm:$0xff]
    %v53 = vld [vmem:[%s1 + $0xf0] sm:$0xff]
    %v54 = vld [vmem:[%s1 + $0xf8] sm:$0xff]
    %v55 = vld [vmem:[%s1 + $0x100] sm:$0xff]
    %v56 = vld [vmem:[%s1 + $0x108] sm:$0xff]
    %v57 = vld [vmem:[%s1 + $0x110] sm:$0xff]
    %v58 = vld [vmem:[%s1 + $0x118] sm:$0xff]
    %v59 = vld [vmem:[%s1 + $0x120] sm:$0xff]
    %v60 = vld [vmem:[%s1 + $0x128] sm:$0xff]
    %v61 = vld [vmem:[%s1 + $0x130] sm:$0xff]
    %v62 = vld [vmem:[%s1 + $0x138] sm:$0xff]
    %v63 = vld [vmem:[%s1 + $0x140] sm:$0xff]
    %v64 = vld [vmem:[%s1 + $0x148] sm:$0xff]
    %v65 = vld [vmem:[%s1 + $0x150] sm:$0xff]
    %v66 = vld [vmem:[%s1 + $0x158] sm:$0xff]
    %v67 = vld [vmem:[%s1 + $0x160] sm:$0xff]
    %v68 = vld [vmem:[%s1 + $0x168] sm:$0xff]
    %v69 = vld [vmem:[%s1 + $0x170] sm:$0xff]
    %v70 = vld [vmem:[%s1 + $0x178] sm:$0xff]
    %v71 = vld [vmem:[%s1 + $0x180] sm:$0xff]
    %v72 = vld [vmem:[%s1 + $0x188] sm:$0xff]
    %v73 = vld [vmem:[%s1 + $0x190] sm:$0xff]
    %v74 = vld [vmem:[%s1 + $0x198] sm:$0xff]
    %v75 = vld [vmem:[%s1 + $0x1a0] sm:$0xff]
    %v76 = vld [vmem:[%s1 + $0x1a8] sm:$0xff]
    %v77 = vld [vmem:[%s1 + $0x1b0] sm:$0xff]
    %v78 = vld [vmem:[%s1 + $0x1b8] sm:$0xff]
    %v79 = vld [vmem:[%s1 + $0x1c0] sm:$0xff]
    %v80 = vld [vmem:[%s1 + $0x1c8] sm:$0xff]
    %v81 = vld [vmem:[%s1 + $0x1d0] sm:$0xff]
    %v82 = vld [vmem:[%s1 + $0x1d8] sm:$0xff]
    %v83 = vld [vmem:[%s1 + $0x1e0] sm:$0xff]
    %v84 = vld [vmem:[%s1 + $0x1e8] sm:$0xff]
    %v85 = vld [vmem:[%s1 + $0x1f0] sm:$0xff]
    %v86 = vld [vmem:[%s1 + $0x1f8] sm:$0xff]
    %v87 = vld [vmem:[%s2] sm:$0x3]
    %v89 = vlaneseq
    %v90 = vshrl.u32 %v89, 7
    %v91 = vsub.s32 0, %v90
    %v92 = vrot.slane %v87, %v91
    %v93 = vlaneseq
    %v94 = vshrl.u32 %v93, 7
    %v95 = vsub.s32 1, %v94
    %v96 = vrot.slane %v87, %v95
    %v101 = vunpack.c.l.s4 1966171168
    %v102 = vunpack.c.0.s8 %v101
    %v103 = vlaneseq
    %v104 = vshrl.u32 %v103, 7
    %v105 = vsub.s32 %v102, %v104
    %v106 = vrot.slane %v22, %v105
    %v107 = vcombine.high %v106, %v106
    %v109 = vunpack.c.l.s4 1966171168
    %v110 = vunpack.c.0.s8 %v109
    %v111 = vlaneseq
    %v112 = vshrl.u32 %v111, 7
    %v113 = vsub.s32 %v110, %v112
    %v114 = vrot.slane %v106, %v113
    %v116 = vunpack.c.l.s4 1966171168
    %v117 = vunpack.c.0.s8 %v116
    %v118 = vlaneseq
    %v119 = vshrl.u32 %v118, 7
    %v120 = vsub.s32 %v117, %v119
    %v121 = vrot.slane %v107, %v120
    %v122 = vcombine.high %v114, %v114
    %v123 = vcombine.high %v121, %v121
    %v192 = vunpack.c.l.b16 %v23
    %v193 = vunpack.c.h.b16 %v23
    %v194 = vunpack.c.l.b16 %v24
    %v195 = vunpack.c.h.b16 %v24
    %v196 = vunpack.c.l.b16 %v25
    %v197 = vunpack.c.h.b16 %v25
    %v198 = vunpack.c.l.b16 %v26
    %v199 = vunpack.c.h.b16 %v26
    %v200 = vunpack.c.l.b16 %v27
    %v201 = vunpack.c.h.b16 %v27
    %v202 = vunpack.c.l.b16 %v28
    %v203 = vunpack.c.h.b16 %v28
    %v204 = vunpack.c.l.b16 %v29
    %v205 = vunpack.c.h.b16 %v29
    %v206 = vunpack.c.l.b16 %v30
    %v207 = vunpack.c.h.b16 %v30
    %v208 = vunpack.c.l.b16 %v31
    %v209 = vunpack.c.h.b16 %v31
    %v210 = vunpack.c.l.b16 %v32
    %v211 = vunpack.c.h.b16 %v32
    %v212 = vunpack.c.l.b16 %v33
    %v213 = vunpack.c.h.b16 %v33
    %v214 = vunpack.c.l.b16 %v34
    %v215 = vunpack.c.h.b16 %v34
    %v216 = vunpack.c.l.b16 %v35
    %v217 = vunpack.c.h.b16 %v35
    %v218 = vunpack.c.l.b16 %v36
    %v219 = vunpack.c.h.b16 %v36
    %v220 = vunpack.c.l.b16 %v37
    %v221 = vunpack.c.h.b16 %v37
    %v222 = vunpack.c.l.b16 %v38
    %v223 = vunpack.c.h.b16 %v38
    %v224 = vunpack.c.l.b16 %v39
    %v225 = vunpack.c.h.b16 %v39
    %v226 = vunpack.c.l.b16 %v40
    %v227 = vunpack.c.h.b16 %v40
    %v228 = vunpack.c.l.b16 %v41
    %v229 = vunpack.c.h.b16 %v41
    %v230 = vunpack.c.l.b16 %v42
    %v231 = vunpack.c.h.b16 %v42
    %v232 = vunpack.c.l.b16 %v43
    %v233 = vunpack.c.h.b16 %v43
    %v234 = vunpack.c.l.b16 %v44
    %v235 = vunpack.c.h.b16 %v44
    %v236 = vunpack.c.l.b16 %v45
    %v237 = vunpack.c.h.b16 %v45
    %v238 = vunpack.c.l.b16 %v46
    %v239 = vunpack.c.h.b16 %v46
    %v240 = vunpack.c.l.b16 %v47
    %v241 = vunpack.c.h.b16 %v47
    %v242 = vunpack.c.l.b16 %v48
    %v243 = vunpack.c.h.b16 %v48
    %v244 = vunpack.c.l.b16 %v49
    %v245 = vunpack.c.h.b16 %v49
    %v246 = vunpack.c.l.b16 %v50
    %v247 = vunpack.c.h.b16 %v50
    %v248 = vunpack.c.l.b16 %v51
    %v249 = vunpack.c.h.b16 %v51
    %v250 = vunpack.c.l.b16 %v52
    %v251 = vunpack.c.h.b16 %v52
    %v252 = vunpack.c.l.b16 %v53
    %v253 = vunpack.c.h.b16 %v53
    %v254 = vunpack.c.l.b16 %v54
    %v255 = vunpack.c.h.b16 %v54
    %v256 = vunpack.c.l.b16 %v55
    %v257 = vunpack.c.h.b16 %v55
    %v258 = vunpack.c.l.b16 %v56
    %v259 = vunpack.c.h.b16 %v56
    %v260 = vunpack.c.l.b16 %v57
    %v261 = vunpack.c.h.b16 %v57
    %v262 = vunpack.c.l.b16 %v58
    %v263 = vunpack.c.h.b16 %v58
    %v264 = vunpack.c.l.b16 %v59
    %v265 = vunpack.c.h.b16 %v59
    %v266 = vunpack.c.l.b16 %v60
    %v267 = vunpack.c.h.b16 %v60
    %v268 = vunpack.c.l.b16 %v61
    %v269 = vunpack.c.h.b16 %v61
    %v270 = vunpack.c.l.b16 %v62
    %v271 = vunpack.c.h.b16 %v62
    %v272 = vunpack.c.l.b16 %v63
    %v273 = vunpack.c.h.b16 %v63
    %v274 = vunpack.c.l.b16 %v64
    %v275 = vunpack.c.h.b16 %v64
    %v276 = vunpack.c.l.b16 %v65
    %v277 = vunpack.c.h.b16 %v65
    %v278 = vunpack.c.l.b16 %v66
    %v279 = vunpack.c.h.b16 %v66
    %v280 = vunpack.c.l.b16 %v67
    %v281 = vunpack.c.h.b16 %v67
    %v282 = vunpack.c.l.b16 %v68
    %v283 = vunpack.c.h.b16 %v68
    %v284 = vunpack.c.l.b16 %v69
    %v285 = vunpack.c.h.b16 %v69
    %v286 = vunpack.c.l.b16 %v70
    %v287 = vunpack.c.h.b16 %v70
    %v288 = vunpack.c.l.b16 %v71
    %v289 = vunpack.c.h.b16 %v71
    %v290 = vunpack.c.l.b16 %v72
    %v291 = vunpack.c.h.b16 %v72
    %v292 = vunpack.c.l.b16 %v73
    %v293 = vunpack.c.h.b16 %v73
    %v294 = vunpack.c.l.b16 %v74
    %v295 = vunpack.c.h.b16 %v74
    %v296 = vunpack.c.l.b16 %v75
    %v297 = vunpack.c.h.b16 %v75
    %v298 = vunpack.c.l.b16 %v76
    %v299 = vunpack.c.h.b16 %v76
    %v300 = vunpack.c.l.b16 %v77
    %v301 = vunpack.c.h.b16 %v77
    %v302 = vunpack.c.l.b16 %v78
    %v303 = vunpack.c.h.b16 %v78
    %v304 = vunpack.c.l.b16 %v79
    %v305 = vunpack.c.h.b16 %v79
    %v306 = vunpack.c.l.b16 %v80
    %v307 = vunpack.c.h.b16 %v80
    %v308 = vunpack.c.l.b16 %v81
    %v309 = vunpack.c.h.b16 %v81
    %v310 = vunpack.c.l.b16 %v82
    %v311 = vunpack.c.h.b16 %v82
    %v312 = vunpack.c.l.b16 %v83
    %v313 = vunpack.c.h.b16 %v83
    %v314 = vunpack.c.l.b16 %v84
    %v315 = vunpack.c.h.b16 %v84
    %v316 = vunpack.c.l.b16 %v85
    %v317 = vunpack.c.h.b16 %v85
    %v318 = vunpack.c.l.b16 %v86
    %v319 = vunpack.c.h.b16 %v86
    %v320 = vpack.c.b16 %v194, %v192
    %v321 = vpack.c.b16 %v195, %v193
    %v322 = vpack.c.b16 %v198, %v196
    %v323 = vpack.c.b16 %v199, %v197
    %v324 = vpack.c.b16 %v202, %v200
    %v325 = vpack.c.b16 %v203, %v201
    %v326 = vpack.c.b16 %v206, %v204
    %v327 = vpack.c.b16 %v207, %v205
    %v328 = vpack.c.b16 %v210, %v208
    %v329 = vpack.c.b16 %v211, %v209
    %v330 = vpack.c.b16 %v214, %v212
    %v331 = vpack.c.b16 %v215, %v213
    %v332 = vpack.c.b16 %v218, %v216
    %v333 = vpack.c.b16 %v219, %v217
    %v334 = vpack.c.b16 %v222, %v220
    %v335 = vpack.c.b16 %v223, %v221
    %v336 = vpack.c.b16 %v226, %v224
    %v337 = vpack.c.b16 %v227, %v225
    %v338 = vpack.c.b16 %v230, %v228
    %v339 = vpack.c.b16 %v231, %v229
    %v340 = vpack.c.b16 %v234, %v232
    %v341 = vpack.c.b16 %v235, %v233
    %v342 = vpack.c.b16 %v238, %v236
    %v343 = vpack.c.b16 %v239, %v237
    %v344 = vpack.c.b16 %v242, %v240
    %v345 = vpack.c.b16 %v243, %v241
    %v346 = vpack.c.b16 %v246, %v244
    %v347 = vpack.c.b16 %v247, %v245
    %v348 = vpack.c.b16 %v250, %v248
    %v349 = vpack.c.b16 %v251, %v249
    %v350 = vpack.c.b16 %v254, %v252
    %v351 = vpack.c.b16 %v255, %v253
    %v352 = vpack.c.b16 %v258, %v256
    %v353 = vpack.c.b16 %v259, %v257
    %v354 = vpack.c.b16 %v262, %v260
    %v355 = vpack.c.b16 %v263, %v261
    %v356 = vpack.c.b16 %v266, %v264
    %v357 = vpack.c.b16 %v267, %v265
    %v358 = vpack.c.b16 %v270, %v268
    %v359 = vpack.c.b16 %v271, %v269
    %v360 = vpack.c.b16 %v274, %v272
    %v361 = vpack.c.b16 %v275, %v273
    %v362 = vpack.c.b16 %v278, %v276
    %v363 = vpack.c.b16 %v279, %v277
    %v364 = vpack.c.b16 %v282, %v280
    %v365 = vpack.c.b16 %v283, %v281
    %v366 = vpack.c.b16 %v286, %v284
    %v367 = vpack.c.b16 %v287, %v285
    %v368 = vpack.c.b16 %v290, %v288
    %v369 = vpack.c.b16 %v291, %v289
    %v370 = vpack.c.b16 %v294, %v292
    %v371 = vpack.c.b16 %v295, %v293
    %v372 = vpack.c.b16 %v298, %v296
    %v373 = vpack.c.b16 %v299, %v297
    %v374 = vpack.c.b16 %v302, %v300
    %v375 = vpack.c.b16 %v303, %v301
    %v376 = vpack.c.b16 %v306, %v304
    %v377 = vpack.c.b16 %v307, %v305
    %v378 = vpack.c.b16 %v310, %v308
    %v379 = vpack.c.b16 %v311, %v309
    %v380 = vpack.c.b16 %v314, %v312
    %v381 = vpack.c.b16 %v315, %v313
    %v382 = vpack.c.b16 %v318, %v316
    %v383 = vpack.c.b16 %v319, %v317
    %448 = vmatprep.subr.bf16.mxu0 %v335
    %449 = vmatpush1.bf16.msra.mxu0 %v334
    %450 = vmatprep.subr.bf16.mxu0 %v333
    %451 = vmatpush1.bf16.msra.mxu0 %v332
    %452 = vmatprep.subr.bf16.mxu0 %v331
    %453 = vmatpush1.bf16.msra.mxu0 %v330
    %454 = vmatprep.subr.bf16.mxu0 %v329
    %455 = vmatpush1.bf16.msra.mxu0 %v328
    %456 = vmatprep.subr.bf16.mxu0 %v327
    %457 = vmatpush1.bf16.msra.mxu0 %v326
    %458 = vmatprep.subr.bf16.mxu0 %v325
    %459 = vmatpush1.bf16.msra.mxu0 %v324
    %460 = vmatprep.subr.bf16.mxu0 %v323
    %461 = vmatpush1.bf16.msra.mxu0 %v322
    %462 = vmatprep.subr.bf16.mxu0 %v321
    %463 = vmatpush1.bf16.msra.mxu0 %v320
    %464 = vmatprep.subr.bf16.mxu0 %v351
    %465 = vmatpush2.bf16.msra.mxu0 %v350
    %466 = vmatprep.subr.bf16.mxu0 %v349
    %467 = vmatpush2.bf16.msra.mxu0 %v348
    %468 = vmatprep.subr.bf16.mxu0 %v347
    %469 = vmatpush2.bf16.msra.mxu0 %v346
    %470 = vmatprep.subr.bf16.mxu0 %v345
    %471 = vmatpush2.bf16.msra.mxu0 %v344
    %472 = vmatprep.subr.bf16.mxu0 %v343
    %473 = vmatpush2.bf16.msra.mxu0 %v342
    %474 = vmatprep.subr.bf16.mxu0 %v341
    %475 = vmatpush2.bf16.msra.mxu0 %v340
    %476 = vmatprep.subr.bf16.mxu0 %v339
    %477 = vmatpush2.bf16.msra.mxu0 %v338
    %478 = vmatprep.subr.bf16.mxu0 %v337
    %479 = vmatpush2.bf16.msra.mxu0 %v336
    %480 = vmatprep.mubr.bf16.mxu0 %v121
    %481 = vmatmul.mubr.bf16.gmra.mxu0 %v114
    %v482 = vpop.f32.mrf.mxu0
    %v483 = vadd.f32 %v92, %v482
    %v484 = vpop.f32.mrf.mxu0
    %v485 = vadd.f32 %v96, %v484
    %v486 = vpop.f32.mrf.mxu0
    %v487 = vpop.f32.mrf.mxu0
    %488 = vdwg.mxu0
    %489 = vmatprep.subr.bf16.mxu0 %v367
    %490 = vmatpush1.bf16.msra.mxu0 %v366
    %491 = vmatprep.subr.bf16.mxu0 %v365
    %492 = vmatpush1.bf16.msra.mxu0 %v364
    %493 = vmatprep.subr.bf16.mxu0 %v363
    %494 = vmatpush1.bf16.msra.mxu0 %v362
    %495 = vmatprep.subr.bf16.mxu0 %v361
    %496 = vmatpush1.bf16.msra.mxu0 %v360
    %497 = vmatprep.subr.bf16.mxu0 %v359
    %498 = vmatpush1.bf16.msra.mxu0 %v358
    %499 = vmatprep.subr.bf16.mxu0 %v357
    %500 = vmatpush1.bf16.msra.mxu0 %v356
    %501 = vmatprep.subr.bf16.mxu0 %v355
    %502 = vmatpush1.bf16.msra.mxu0 %v354
    %503 = vmatprep.subr.bf16.mxu0 %v353
    %504 = vmatpush1.bf16.msra.mxu0 %v352
    %505 = vmatprep.subr.bf16.mxu0 %v383
    %506 = vmatpush2.bf16.msra.mxu0 %v382
    %507 = vmatprep.subr.bf16.mxu0 %v381
    %508 = vmatpush2.bf16.msra.mxu0 %v380
    %509 = vmatprep.subr.bf16.mxu0 %v379
    %510 = vmatpush2.bf16.msra.mxu0 %v378
    %511 = vmatprep.subr.bf16.mxu0 %v377
    %512 = vmatpush2.bf16.msra.mxu0 %v376
    %513 = vmatprep.subr.bf16.mxu0 %v375
    %514 = vmatpush2.bf16.msra.mxu0 %v374
    %515 = vmatprep.subr.bf16.mxu0 %v373
    %516 = vmatpush2.bf16.msra.mxu0 %v372
    %517 = vmatprep.subr.bf16.mxu0 %v371
    %518 = vmatpush2.bf16.msra.mxu0 %v370
    %519 = vmatprep.subr.bf16.mxu0 %v369
    %520 = vmatpush2.bf16.msra.mxu0 %v368
    %521 = vmatprep.mubr.bf16.mxu0 %v123
    %522 = vmatmul.mubr.bf16.gmra.mxu0 %v122
    %v523 = vpop.f32.mrf.mxu0
    %v524 = vadd.f32 %v483, %v523
    %v525 = vpop.f32.mrf.mxu0
    %v526 = vadd.f32 %v485, %v525
    %v527 = vpop.f32.mrf.mxu0
    %v528 = vpop.f32.mrf.mxu0
    %529 = vdwg.mxu0
    %v530 = vmax.f32 %v524, 0.0
    %v531 = vmax.f32 %v526, 0.0
    %v532 = vpack.c.bf16 %v530, %v530
    %v533 = vpack.c.bf16 %v531, %v531
    %v534 = vld [vmem:[%s3] sm:$0xf]
    %v535 = vld [vmem:[%s3 + $0x4] sm:$0xf]
    %v536 = vld [vmem:[%s3 + $0x8] sm:$0xf]
    %v537 = vld [vmem:[%s3 + $0xc] sm:$0xf]
    %v538 = vld [vmem:[%s3 + $0x10] sm:$0xf]
    %v539 = vld [vmem:[%s3 + $0x14] sm:$0xf]
    %v540 = vld [vmem:[%s3 + $0x18] sm:$0xf]
    %v541 = vld [vmem:[%s3 + $0x1c] sm:$0xf]
    %v542 = vld [vmem:[%s3 + $0x20] sm:$0xf]
    %v543 = vld [vmem:[%s3 + $0x24] sm:$0xf]
    %v544 = vld [vmem:[%s3 + $0x28] sm:$0xf]
    %v545 = vld [vmem:[%s3 + $0x2c] sm:$0xf]
    %v546 = vld [vmem:[%s3 + $0x30] sm:$0xf]
    %v547 = vld [vmem:[%s3 + $0x34] sm:$0xf]
    %v548 = vld [vmem:[%s3 + $0x38] sm:$0xf]
    %v549 = vld [vmem:[%s3 + $0x3c] sm:$0xf]
    %v550 = vld [vmem:[%s3 + $0x40] sm:$0xf]
    %v551 = vld [vmem:[%s3 + $0x44] sm:$0xf]
    %v552 = vld [vmem:[%s3 + $0x48] sm:$0xf]
    %v553 = vld [vmem:[%s3 + $0x4c] sm:$0xf]
    %v554 = vld [vmem:[%s3 + $0x50] sm:$0xf]
    %v555 = vld [vmem:[%s3 + $0x54] sm:$0xf]
    %v556 = vld [vmem:[%s3 + $0x58] sm:$0xf]
    %v557 = vld [vmem:[%s3 + $0x5c] sm:$0xf]
    %v558 = vld [vmem:[%s3 + $0x60] sm:$0xf]
    %v559 = vld [vmem:[%s3 + $0x64] sm:$0xf]
    %v560 = vld [vmem:[%s3 + $0x68] sm:$0xf]
    %v561 = vld [vmem:[%s3 + $0x6c] sm:$0xf]
    %v562 = vld [vmem:[%s3 + $0x70] sm:$0xf]
    %v563 = vld [vmem:[%s3 + $0x74] sm:$0xf]
    %v564 = vld [vmem:[%s3 + $0x78] sm:$0xf]
    %v565 = vld [vmem:[%s3 + $0x7c] sm:$0xf]
    %v566 = vld [vmem:[%s4] sm:$0x1]
    %v568 = vlaneseq
    %v569 = vshrl.u32 %v568, 7
    %v570 = vsub.s32 0, %v569
    %v571 = vrot.slane %v566, %v570
    %v605 = vunpack.c.l.b16 %v534
    %v606 = vunpack.c.l.b16 %v535
    %v607 = vunpack.c.l.b16 %v536
    %v608 = vunpack.c.l.b16 %v537
    %v609 = vunpack.c.l.b16 %v538
    %v610 = vunpack.c.l.b16 %v539
    %v611 = vunpack.c.l.b16 %v540
    %v612 = vunpack.c.l.b16 %v541
    %v613 = vunpack.c.l.b16 %v542
    %v614 = vunpack.c.l.b16 %v543
    %v615 = vunpack.c.l.b16 %v544
    %v616 = vunpack.c.l.b16 %v545
    %v617 = vunpack.c.l.b16 %v546
    %v618 = vunpack.c.l.b16 %v547
    %v619 = vunpack.c.l.b16 %v548
    %v620 = vunpack.c.l.b16 %v549
    %v621 = vunpack.c.l.b16 %v550
    %v622 = vunpack.c.l.b16 %v551
    %v623 = vunpack.c.l.b16 %v552
    %v624 = vunpack.c.l.b16 %v553
    %v625 = vunpack.c.l.b16 %v554
    %v626 = vunpack.c.l.b16 %v555
    %v627 = vunpack.c.l.b16 %v556
    %v628 = vunpack.c.l.b16 %v557
    %v629 = vunpack.c.l.b16 %v558
    %v630 = vunpack.c.l.b16 %v559
    %v631 = vunpack.c.l.b16 %v560
    %v632 = vunpack.c.l.b16 %v561
    %v633 = vunpack.c.l.b16 %v562
    %v634 = vunpack.c.l.b16 %v563
    %v635 = vunpack.c.l.b16 %v564
    %v636 = vunpack.c.l.b16 %v565
    %v637 = vpack.c.b16 %v606, %v605
    %v638 = vpack.c.b16 %v608, %v607
    %v639 = vpack.c.b16 %v610, %v609
    %v640 = vpack.c.b16 %v612, %v611
    %v641 = vpack.c.b16 %v614, %v613
    %v642 = vpack.c.b16 %v616, %v615
    %v643 = vpack.c.b16 %v618, %v617
    %v644 = vpack.c.b16 %v620, %v619
    %v645 = vpack.c.b16 %v622, %v621
    %v646 = vpack.c.b16 %v624, %v623
    %v647 = vpack.c.b16 %v626, %v625
    %v648 = vpack.c.b16 %v628, %v627
    %v649 = vpack.c.b16 %v630, %v629
    %v650 = vpack.c.b16 %v632, %v631
    %v651 = vpack.c.b16 %v634, %v633
    %v652 = vpack.c.b16 %v636, %v635
    %669 = vmatprep.subr.bf16.mxu0 0
    %670 = vmatpush1.bf16.msra.mxu0 %v644
    %671 = vmatprep.subr.bf16.mxu0 0
    %672 = vmatpush1.bf16.msra.mxu0 %v643
    %673 = vmatprep.subr.bf16.mxu0 0
    %674 = vmatpush1.bf16.msra.mxu0 %v642
    %675 = vmatprep.subr.bf16.mxu0 0
    %676 = vmatpush1.bf16.msra.mxu0 %v641
    %677 = vmatprep.subr.bf16.mxu0 0
    %678 = vmatpush1.bf16.msra.mxu0 %v640
    %679 = vmatprep.subr.bf16.mxu0 0
    %680 = vmatpush1.bf16.msra.mxu0 %v639
    %681 = vmatprep.subr.bf16.mxu0 0
    %682 = vmatpush1.bf16.msra.mxu0 %v638
    %683 = vmatprep.subr.bf16.mxu0 0
    %684 = vmatpush1.bf16.msra.mxu0 %v637
    %685 = vmatprep.subr.bf16.mxu0 0
    %686 = vmatpush2.bf16.msra.mxu0 %v652
    %687 = vmatprep.subr.bf16.mxu0 0
    %688 = vmatpush2.bf16.msra.mxu0 %v651
    %689 = vmatprep.subr.bf16.mxu0 0
    %690 = vmatpush2.bf16.msra.mxu0 %v650
    %691 = vmatprep.subr.bf16.mxu0 0
    %692 = vmatpush2.bf16.msra.mxu0 %v649
    %693 = vmatprep.subr.bf16.mxu0 0
    %694 = vmatpush2.bf16.msra.mxu0 %v648
    %695 = vmatprep.subr.bf16.mxu0 0
    %696 = vmatpush2.bf16.msra.mxu0 %v647
    %697 = vmatprep.subr.bf16.mxu0 0
    %698 = vmatpush2.bf16.msra.mxu0 %v646
    %699 = vmatprep.subr.bf16.mxu0 0
    %700 = vmatpush2.bf16.msra.mxu0 %v645
    %701 = vmatprep.mubr.bf16.mxu0 %v533
    %702 = vmatmul.mubr.bf16.gmra.mxu0 %v532
    %v703 = vpop.f32.mrf.mxu0
    %v704 = vadd.f32 %v571, %v703
    %v705 = vpop.f32.mrf.mxu0
    %v706 = vpop.f32.mrf.mxu0
    %v707 = vpop.f32.mrf.mxu0
    %708 = vdwg.mxu0
    %vm709 = vcmask 74752
    %710 = vst.msk [vmem:[#allocation2] sm:$0x3] %vm709, %v704
    // Predicated region
    $region22: #{simple_cnn_forward.7} parent=1 // pred_check
      _
    $region23: #{simple_cnn_forward.7} parent=1 // pred_check_branch
      %712 = sbr.rel (0) target = $region25
    $region24: #{simple_cnn_forward.7} parent=1 // pred_region
      %s714 = ssub.s32 32, 32
      %715 = vsyncadd [#allocation3], %s714
      %s717 = sshll.u32 [#allocation2], 4
      %s718 = int_to_ptr.vmem [resolvable:$true] %s717
      %720 = dma.vmem_to_hbm [thread:$0]  %s718, 32, %s5, [#allocation3]
    $region25: #{simple_cnn_forward.7} parent=1 // pred_fallthru
      _
    // Predicated region
    $region26: #{simple_cnn_forward.7} parent=1 // pred_check
      _
    $region27: #{simple_cnn_forward.7} parent=1 // pred_check_branch
      %722 = sbr.rel (0) target = $region29
    $region28: #{simple_cnn_forward.7} parent=1 // pred_region
      %723 = dma.done [#allocation3], 32
    $region29: #{simple_cnn_forward.7} parent=1 // pred_fallthru
      _
    %724 = vsyncpa [#allocation3], 1

// kernel: simple_cnn_forward.6
$region0: #{simple_cnn_forward.6}
  #allocation0 [shape = 'u32[]', space=smem, size = 0x4, offset = 0x4, fixed_abs, tag = 'smem constant byte address 0x4 - core index']
  #allocation1 [shape = 'u32[144,128]{1,0:T(1,128)}', space=vmem, size = 0x12000, scoped, tag = 'internal scratch']
  #allocation2 [shape = 'bf16[4,4,1152]{2,1,0:T(4,128)(2,1)}', space=vmem, size = 0x9000, scoped, tag = 'scratch operand']
  %s0 = inlined_call_operand.vmem [shape: bf16[2,6,6,128], index: 0, kind: input, shape index: {}]
  %s1 = inlined_call_operand.vmem [shape: bf16[1152,128], index: 1, kind: input, shape index: {}]
  %s2 = inlined_call_operand.vmem [shape: f32[1,128], index: 2, kind: input, shape index: {}]
  %s3 = inlined_call_operand.vmem [shape: bf16[2,2,2,128], index: 3, kind: output, shape index: {}]
  %s4 = sld [smem:[#allocation0]]
  $region45: #{simple_cnn_forward.6} parent=0
    _
  %s6 = ssub.s32 1, %s4
  %s7 = scalar_select 0, %s6, %s4
  loop: start=0, step=1, limit=4
  $region2: #{simple_cnn_forward.6} parent=0 // loop_pre_header
    _
  $region3: #{simple_cnn_forward.6} parent=0 // loop_header
    %s9 = sphi 0, %s13
    %p10 = scmp.ge.s32.totalorder %s9, 4
    %s19 = sphi 0, %s21
    %s22 = sphi 0, %s19
    %s23 = sphi 0, %s22
    %s39 = sphi 0, %s23
    %s43 = sphi 0, %s43
    %s45 = sphi 0, %s43
    %s46 = sphi 0, %s45
    %s60 = sphi 0, %s46
    %s64 = sphi 0, %s64
    %s66 = sphi 0, %s64
    %s67 = sphi 0, %s66
    %s81 = sphi 0, %s67
    %s87 = sphi 0, %s89
    %s90 = sphi 0, %s87
    %s91 = sphi 0, %s90
    %s107 = sphi 0, %s91
  $region4: #{simple_cnn_forward.6} parent=0 // loop_header_branch
    %12 = sbr.rel (%p10) target = $region8
  $region5: #{simple_cnn_forward.6} parent=0 // loop_body
    %s14 = ssub.s32 %s9, 1
    %s15 = ssub.s32 %s9, 2
    %s16 = sadd.s32 %s9, 1
    %s17 = ssub.s32 %s9, %s16
    %p18 = scmp.eq.s32.totalorder %s17, 0
    %s20 = sadd.s32 %s19, 1
    %s21 = scalar_select %p18, %s19, %s20
    %p24 = pneg %p18
    %p25 = scmp.eq.s32.totalorder %s9, 1
    %p26 = por %p24, %p25
    %p27 = scmp.ne.s32.totalorder %s19, %s22
    %p28 = scmp.eq.s32.totalorder %s9, 0
    %p29 = por %p27, %p28
    %p30 = scmp.ne.s32.totalorder %s19, %s22
    %p31 = scmp.eq.s32.totalorder %s14, 1
    %p32 = por %p30, %p31
    %p33 = scmp.ne.s32.totalorder %s22, %s23
    %p34 = scmp.eq.s32.totalorder %s14, 0
    %p35 = por %p33, %p34
    %p36 = scmp.ne.s32.totalorder %s22, %s23
    %p37 = scmp.eq.s32.totalorder %s15, 1
    %p38 = por %p36, %p37
    %p40 = scmp.ne.s32.totalorder %s23, %s39
    %p41 = scmp.eq.s32.totalorder %s15, 0
    %p42 = por %p40, %p41
    %s44 = sadd.s32 %s43, 1
    %p47 = scmp.eq.s32.totalorder %s9, 1
    %p48 = scmp.ne.s32.totalorder %s43, %s45
    %p49 = scmp.eq.s32.totalorder %s9, 0
    %p50 = por %p48, %p49
    %p51 = scmp.ne.s32.totalorder %s43, %s45
    %p52 = scmp.eq.s32.totalorder %s14, 1
    %p53 = por %p51, %p52
    %p54 = scmp.ne.s32.totalorder %s45, %s46
    %p55 = scmp.eq.s32.totalorder %s14, 0
    %p56 = por %p54, %p55
    %p57 = scmp.ne.s32.totalorder %s45, %s46
    %p58 = scmp.eq.s32.totalorder %s15, 1
    %p59 = por %p57, %p58
    %p61 = scmp.ne.s32.totalorder %s46, %s60
    %p62 = scmp.eq.s32.totalorder %s15, 0
    %p63 = por %p61, %p62
    %s65 = sadd.s32 %s64, 1
    %p68 = scmp.eq.s32.totalorder %s9, 1
    %p69 = scmp.ne.s32.totalorder %s64, %s66
    %p70 = scmp.eq.s32.totalorder %s9, 0
    %p71 = por %p69, %p70
    %p72 = scmp.ne.s32.totalorder %s64, %s66
    %p73 = scmp.eq.s32.totalorder %s14, 1
    %p74 = por %p72, %p73
    %p75 = scmp.ne.s32.totalorder %s66, %s67
    %p76 = scmp.eq.s32.totalorder %s14, 0
    %p77 = por %p75, %p76
    %p78 = scmp.ne.s32.totalorder %s66, %s67
    %p79 = scmp.eq.s32.totalorder %s15, 1
    %p80 = por %p78, %p79
    %p82 = scmp.ne.s32.totalorder %s67, %s81
    %p83 = scmp.eq.s32.totalorder %s15, 0
    %p84 = por %p82, %p83
    %s85 = ssub.s32 %s9, %s16
    %p86 = scmp.eq.s32.totalorder %s85, 0
    %s88 = sadd.s32 %s87, 1
    %s89 = scalar_select %p86, %s87, %s88
    %p92 = pneg %p86
    %p93 = scmp.eq.s32.totalorder %s9, 1
    %p94 = por %p92, %p93
    %p95 = scmp.ne.s32.totalorder %s87, %s90
    %p96 = scmp.eq.s32.totalorder %s9, 0
    %p97 = por %p95, %p96
    %p98 = scmp.ne.s32.totalorder %s87, %s90
    %p99 = scmp.eq.s32.totalorder %s14, 1
    %p100 = por %p98, %p99
    %p101 = scmp.ne.s32.totalorder %s90, %s91
    %p102 = scmp.eq.s32.totalorder %s14, 0
    %p103 = por %p101, %p102
    %p104 = scmp.ne.s32.totalorder %s90, %s91
    %p105 = scmp.eq.s32.totalorder %s15, 1
    %p106 = por %p104, %p105
    %p108 = scmp.ne.s32.totalorder %s91, %s107
    %p109 = scmp.eq.s32.totalorder %s15, 0
    %p110 = por %p108, %p109
    %p111 = scmp.le.s32.totalorder 1, %s9
    %p112 = scmp.lt.s32.totalorder %s9, 3
    %p113 = pnand %p111, %p112
    %p114 = pneg %p113
    // Predicated region
    $region9: #{simple_cnn_forward.6} parent=5 // pred_check
      _
    $region10: #{simple_cnn_forward.6} parent=5 // pred_check_branch
      %116 = sbr.rel (%p113) target = $region12
    $region11: #{simple_cnn_forward.6} parent=5 // pred_region
      %s117 = ssub.s32 %s9, 1
      // Predicated region
      $region13: #{simple_cnn_forward.6} parent=11 // pred_check
        %p118 = pneg %p56
      $region14: #{simple_cnn_forward.6} parent=11 // pred_check_branch
        %120 = sbr.rel (%p118) target = $region16
      $region15: #{simple_cnn_forward.6} parent=11 // pred_region
        _
      $region16: #{simple_cnn_forward.6} parent=11 // pred_fallthru
        _
      // Predicated region
      $region17: #{simple_cnn_forward.6} parent=11 // pred_check
        %p121 = pneg %p77
      $region18: #{simple_cnn_forward.6} parent=11 // pred_check_branch
        %123 = sbr.rel (%p121) target = $region20
      $region19: #{simple_cnn_forward.6} parent=11 // pred_region
        _
      $region20: #{simple_cnn_forward.6} parent=11 // pred_fallthru
        _
    $region12: #{simple_cnn_forward.6} parent=5 // pred_fallthru
      _
    %p124 = scmp.lt.s32.totalorder %s9, 2
    // Predicated region
    $region21: #{simple_cnn_forward.6} parent=5 // pred_check
      %p125 = pneg %p124
    $region22: #{simple_cnn_forward.6} parent=5 // pred_check_branch
      %127 = sbr.rel (%p125) target = $region24
    $region23: #{simple_cnn_forward.6} parent=5 // pred_region
      // Predicated region
      $region25: #{simple_cnn_forward.6} parent=23 // pred_check
        %p128 = pneg %p29
      $region26: #{simple_cnn_forward.6} parent=23 // pred_check_branch
        %130 = sbr.rel (%p128) target = $region28
      $region27: #{simple_cnn_forward.6} parent=23 // pred_region
        %p131 = scmp.lt.s32.totalorder %s9, 1
        %s132 = scalar_select %p131, %s9, 1
        %s133 = smul.addr %s132, 6
        %s134 = smul.addr %s133, 4
        %s135 = scalar_lea.vmem %s0, %s134
      $region28: #{simple_cnn_forward.6} parent=23 // pred_fallthru
        _
    $region24: #{simple_cnn_forward.6} parent=5 // pred_fallthru
      _
    %p136 = scmp.le.s32.totalorder 1, %s9
    %p137 = scmp.lt.s32.totalorder %s9, 3
    %p138 = pnand %p136, %p137
    %p139 = pneg %p138
    // Predicated region
    $region29: #{simple_cnn_forward.6} parent=5 // pred_check
      _
    $region30: #{simple_cnn_forward.6} parent=5 // pred_check_branch
      %141 = sbr.rel (%p138) target = $region32
    $region31: #{simple_cnn_forward.6} parent=5 // pred_region
      %s142 = ssub.s32 %s9, 1
      %p143 = scmp.lt.s32.totalorder %s14, 1
      %s144 = scalar_select %p143, %s14, 1
      %s145 = smul.addr %s144, 6
      %s146 = smul.addr %s145, 4
      %s147 = scalar_lea.vmem %s0, %s146
      %p148 = pneg %p35
      %p149 = pneg %p32
      %p150 = pneg %p56
      %p151 = pneg %p53
      %p152 = pneg %p77
      %p153 = pneg %p74
      %p154 = pneg %p103
      %p155 = pneg %p100
      %p156 = scmp.lt.s32.totalorder %s14, 1
      %s157 = scalar_select %p156, %s14, 1
      %s158 = smul.addr %s157, 2
      %s159 = scalar_lea.vmem %s3, %s158
      %p160 = scmp.lt.s32.totalorder %s14, 1
      %s161 = scalar_select %p160, %s14, 1
      %s162 = smul.addr %s161, 6
      %s163 = smul.addr %s162, 4
      %s164 = scalar_lea.vmem %s0, %s163
      %p165 = scmp.lt.s32.totalorder %s14, 1
      %s166 = scalar_select %p165, %s14, 1
      %s167 = smul.addr %s166, 2
      %s168 = scalar_lea.vmem %s3, %s167
      %v170 = vld [vmem:[%s164] sm:$0x7]
      %v171 = vld [vmem:[%s164 + $0x4] sm:$0x7]
      %v172 = vld [vmem:[%s164 + $0x8] sm:$0x7]
      %v173 = vld [vmem:[%s164 + $0xc] sm:$0x7]
      %v174 = vld [vmem:[%s164 + $0x10] sm:$0x7]
      %v175 = vld [vmem:[%s164 + $0x14] sm:$0x7]
      %176 = vst [vmem:[#allocation2] sm:$0x3] %v170
      %177 = vst [vmem:[#allocation2 + $0x12] sm:$0x3] %v171
      %178 = vst [vmem:[#allocation2 + $0x24] sm:$0x3] %v172
      %179 = vst [vmem:[#allocation2 + $0x36] sm:$0x3] %v173
      %v185 = vunpack.c.l.s4 1983009808
      %v186 = vunpack.c.0.s8 %v185
      %v187 = vlaneseq
      %v188 = vshrl.u32 %v187, 7
      %v189 = vsub.s32 %v186, %v188
      %v190 = vrot.slane %v170, %v189
      %v191 = vcombine.high %v190, %v190
      %v193 = vunpack.c.l.s4 1983009808
      %v194 = vunpack.c.0.s8 %v193
      %v195 = vlaneseq
      %v196 = vshrl.u32 %v195, 7
      %v197 = vsub.s32 %v194, %v196
      %v198 = vrot.slane %v171, %v197
      %v199 = vcombine.high %v198, %v198
      %v201 = vunpack.c.l.s4 1983009808
      %v202 = vunpack.c.0.s8 %v201
      %v203 = vlaneseq
      %v204 = vshrl.u32 %v203, 7
      %v205 = vsub.s32 %v202, %v204
      %v206 = vrot.slane %v172, %v205
      %v207 = vcombine.high %v206, %v206
      %v209 = vunpack.c.l.s4 1983009808
      %v210 = vunpack.c.0.s8 %v209
      %v211 = vlaneseq
      %v212 = vshrl.u32 %v211, 7
      %v213 = vsub.s32 %v210, %v212
      %v214 = vrot.slane %v173, %v213
      %v215 = vcombine.high %v214, %v214
      %vm216 = vsmask.f32 1280
      %vm217 = vsmask.f32 3336
      %vm218 = vmor %vm216, %vm217
      %vm219 = vsmask.f32 5392
      %vm220 = vmor %vm218, %vm219
      %vm221 = vsmask.f32 7448
      %vm222 = vmor %vm220, %vm221
      %v224 = vshrl.u32 %v190, 16
      %v226 = vrot.slane %v224, 6
      %v227 = vshll.u32 %v190, 16
      %v229 = vrot.slane %v227, 7
      %v230 = vor.u32 %v226, %v229
      %v231 = vrot.slane %v230, 2
      %v233 = vshll.u32 %v191, 16
      %v235 = vrot.slane %v233, 7
      %v236 = vsel %vm222, %v231, %v235
      %v238 = vshrl.u32 %v198, 16
      %v240 = vrot.slane %v238, 6
      %v241 = vshll.u32 %v198, 16
      %v243 = vrot.slane %v241, 7
      %v244 = vor.u32 %v240, %v243
      %v245 = vrot.slane %v244, 2
      %v247 = vshll.u32 %v199, 16
      %v249 = vrot.slane %v247, 7
      %v250 = vsel %vm222, %v245, %v249
      %v252 = vshrl.u32 %v206, 16
      %v254 = vrot.slane %v252, 6
      %v255 = vshll.u32 %v206, 16
      %v257 = vrot.slane %v255, 7
      %v258 = vor.u32 %v254, %v257
      %v259 = vrot.slane %v258, 2
      %v261 = vshll.u32 %v207, 16
      %v263 = vrot.slane %v261, 7
      %v264 = vsel %vm222, %v259, %v263
      %v266 = vshrl.u32 %v214, 16
      %v268 = vrot.slane %v266, 6
      %v269 = vshll.u32 %v214, 16
      %v271 = vrot.slane %v269, 7
      %v272 = vor.u32 %v268, %v271
      %v273 = vrot.slane %v272, 2
      %v275 = vshll.u32 %v215, 16
      %v277 = vrot.slane %v275, 7
      %v278 = vsel %vm222, %v273, %v277
      %283 = vst [vmem:[#allocation2 + $0x2] sm:$0x3] %v236
      %284 = vst [vmem:[#allocation2 + $0x14] sm:$0x3] %v250
      %285 = vst [vmem:[#allocation2 + $0x26] sm:$0x3] %v264
      %286 = vst [vmem:[#allocation2 + $0x38] sm:$0x3] %v278
      %vm287 = vcmask 1040384
      %vm288 = vcmask 1042434
      %vm289 = vmor %vm287, %vm288
      %vm290 = vcmask 1044484
      %vm291 = vmor %vm289, %vm290
      %vm292 = vcmask 1046534
      %vm293 = vmor %vm291, %vm292
      %v294 = vrot.slane %v190, 7
      %v295 = vrot.slane %v294, 2
      %v296 = vrot.slane %v191, 7
      %v297 = vsel %vm293, %v295, %v296
      %v298 = vrot.slane %v198, 7
      %v299 = vrot.slane %v298, 2
      %v300 = vrot.slane %v199, 7
      %v301 = vsel %vm293, %v299, %v300
      %v302 = vrot.slane %v206, 7
      %v303 = vrot.slane %v302, 2
      %v304 = vrot.slane %v207, 7
      %v305 = vsel %vm293, %v303, %v304
      %v306 = vrot.slane %v214, 7
      %v307 = vrot.slane %v306, 2
      %v308 = vrot.slane %v215, 7
      %v309 = vsel %vm293, %v307, %v308
      %314 = vst [vmem:[#allocation2 + $0x4] sm:$0x3] %v297
      %315 = vst [vmem:[#allocation2 + $0x16] sm:$0x3] %v301
      %316 = vst [vmem:[#allocation2 + $0x28] sm:$0x3] %v305
      %317 = vst [vmem:[#allocation2 + $0x3a] sm:$0x3] %v309
      %318 = vst [vmem:[#allocation2 + $0x6] sm:$0x3] %v171
      %319 = vst [vmem:[#allocation2 + $0x18] sm:$0x3] %v172
      %320 = vst [vmem:[#allocation2 + $0x2a] sm:$0x3] %v173
      %321 = vst [vmem:[#allocation2 + $0x3c] sm:$0x3] %v174
      %v324 = vunpack.c.l.s4 1983009808
      %v325 = vunpack.c.0.s8 %v324
      %v326 = vlaneseq
      %v327 = vshrl.u32 %v326, 7
      %v328 = vsub.s32 %v325, %v327
      %v329 = vrot.slane %v174, %v328
      %v330 = vcombine.high %v329, %v329
      %v332 = vshrl.u32 %v329, 16
      %v334 = vrot.slane %v332, 6
      %v335 = vshll.u32 %v329, 16
      %v337 = vrot.slane %v335, 7
      %v338 = vor.u32 %v334, %v337
      %v339 = vrot.slane %v338, 2
      %v341 = vshll.u32 %v330, 16
      %v343 = vrot.slane %v341, 7
      %v344 = vsel %vm222, %v339, %v343
      %346 = vst [vmem:[#allocation2 + $0x8] sm:$0x3] %v250
      %347 = vst [vmem:[#allocation2 + $0x1a] sm:$0x3] %v264
      %348 = vst [vmem:[#allocation2 + $0x2c] sm:$0x3] %v278
      %349 = vst [vmem:[#allocation2 + $0x3e] sm:$0x3] %v344
      %v350 = vrot.slane %v329, 7
      %v351 = vrot.slane %v350, 2
      %v352 = vrot.slane %v330, 7
      %v353 = vsel %vm293, %v351, %v352
      %355 = vst [vmem:[#allocation2 + $0xa] sm:$0x3] %v301
      %356 = vst [vmem:[#allocation2 + $0x1c] sm:$0x3] %v305
      %357 = vst [vmem:[#allocation2 + $0x2e] sm:$0x3] %v309
      %358 = vst [vmem:[#allocation2 + $0x40] sm:$0x3] %v353
      %359 = vst [vmem:[#allocation2 + $0xc] sm:$0x3] %v172
      %360 = vst [vmem:[#allocation2 + $0x1e] sm:$0x3] %v173
      %361 = vst [vmem:[#allocation2 + $0x30] sm:$0x3] %v174
      %362 = vst [vmem:[#allocation2 + $0x42] sm:$0x3] %v175
      %v365 = vunpack.c.l.s4 1983009808
      %v366 = vunpack.c.0.s8 %v365
      %v367 = vlaneseq
      %v368 = vshrl.u32 %v367, 7
      %v369 = vsub.s32 %v366, %v368
      %v370 = vrot.slane %v175, %v369
      %v371 = vcombine.high %v370, %v370
      %v373 = vshrl.u32 %v370, 16
      %v375 = vrot.slane %v373, 6
      %v376 = vshll.u32 %v370, 16
      %v378 = vrot.slane %v376, 7
      %v379 = vor.u32 %v375, %v378
      %v380 = vrot.slane %v379, 2
      %v382 = vshll.u32 %v371, 16
      %v384 = vrot.slane %v382, 7
      %v385 = vsel %vm222, %v380, %v384
      %387 = vst [vmem:[#allocation2 + $0xe] sm:$0x3] %v264
      %388 = vst [vmem:[#allocation2 + $0x20] sm:$0x3] %v278
      %389 = vst [vmem:[#allocation2 + $0x32] sm:$0x3] %v344
      %390 = vst [vmem:[#allocation2 + $0x44] sm:$0x3] %v385
      %v391 = vrot.slane %v370, 7
      %v392 = vrot.slane %v391, 2
      %v393 = vrot.slane %v371, 7
      %v394 = vsel %vm293, %v392, %v393
      %396 = vst [vmem:[#allocation2 + $0x10] sm:$0x3] %v305
      %397 = vst [vmem:[#allocation2 + $0x22] sm:$0x3] %v309
      %398 = vst [vmem:[#allocation2 + $0x34] sm:$0x3] %v353
      %399 = vst [vmem:[#allocation2 + $0x46] sm:$0x3] %v394
      %v400 = vld [vmem:[#allocation2] sm:$0xff]
      %v401 = vld [vmem:[#allocation2 + $0x8] sm:$0xff]
      %v402 = vld [vmem:[#allocation2 + $0x10] sm:$0x3]
      %v403 = vld [vmem:[#allocation2 + $0x12] sm:$0xff]
      %v404 = vld [vmem:[#allocation2 + $0x1a] sm:$0xff]
      %v405 = vld [vmem:[#allocation2 + $0x22] sm:$0x3]
      %v406 = vld [vmem:[#allocation2 + $0x24] sm:$0xff]
      %v407 = vld [vmem:[#allocation2 + $0x2c] sm:$0xff]
      %v408 = vld [vmem:[#allocation2 + $0x34] sm:$0x3]
      %v409 = vld [vmem:[#allocation2 + $0x36] sm:$0xff]
      %v410 = vld [vmem:[#allocation2 + $0x3e] sm:$0xff]
      %v411 = vld [vmem:[#allocation2 + $0x46] sm:$0x3]
      %v412 = vld [vmem:[%s1] sm:$0xf]
      %v413 = vld [vmem:[%s1 + $0x4] sm:$0xf]
      %v414 = vld [vmem:[%s1 + $0x8] sm:$0xf]
      %v415 = vld [vmem:[%s1 + $0xc] sm:$0xf]
      %v416 = vld [vmem:[%s1 + $0x10] sm:$0xf]
      %v417 = vld [vmem:[%s1 + $0x14] sm:$0xf]
      %v418 = vld [vmem:[%s1 + $0x18] sm:$0xf]
      %v419 = vld [vmem:[%s1 + $0x1c] sm:$0xf]
      %v420 = vld [vmem:[%s1 + $0x20] sm:$0xf]
      %v421 = vld [vmem:[%s1 + $0x24] sm:$0xf]
      %v422 = vld [vmem:[%s1 + $0x28] sm:$0xf]
      %v423 = vld [vmem:[%s1 + $0x2c] sm:$0xf]
      %v424 = vld [vmem:[%s1 + $0x30] sm:$0xf]
      %v425 = vld [vmem:[%s1 + $0x34] sm:$0xf]
      %v426 = vld [vmem:[%s1 + $0x38] sm:$0xf]
      %v427 = vld [vmem:[%s1 + $0x3c] sm:$0xf]
      %v428 = vld [vmem:[%s1 + $0x40] sm:$0xf]
      %v429 = vld [vmem:[%s1 + $0x44] sm:$0xf]
      %v430 = vld [vmem:[%s1 + $0x48] sm:$0xf]
      %v431 = vld [vmem:[%s1 + $0x4c] sm:$0xf]
      %v432 = vld [vmem:[%s1 + $0x50] sm:$0xf]
      %v433 = vld [vmem:[%s1 + $0x54] sm:$0xf]
      %v434 = vld [vmem:[%s1 + $0x58] sm:$0xf]
      %v435 = vld [vmem:[%s1 + $0x5c] sm:$0xf]
      %v436 = vld [vmem:[%s1 + $0x60] sm:$0xf]
      %v437 = vld [vmem:[%s1 + $0x64] sm:$0xf]
      %v438 = vld [vmem:[%s1 + $0x68] sm:$0xf]
      %v439 = vld [vmem:[%s1 + $0x6c] sm:$0xf]
      %v440 = vld [vmem:[%s1 + $0x70] sm:$0xf]
      %v441 = vld [vmem:[%s1 + $0x74] sm:$0xf]
      %v442 = vld [vmem:[%s1 + $0x78] sm:$0xf]
      %v443 = vld [vmem:[%s1 + $0x7c] sm:$0xf]
      %v444 = vld [vmem:[%s1 + $0x80] sm:$0xf]
      %v445 = vld [vmem:[%s1 + $0x84] sm:$0xf]
      %v446 = vld [vmem:[%s1 + $0x88] sm:$0xf]
      %v447 = vld [vmem:[%s1 + $0x8c] sm:$0xf]
      %v448 = vld [vmem:[%s1 + $0x90] sm:$0xf]
      %v449 = vld [vmem:[%s1 + $0x94] sm:$0xf]
      %v450 = vld [vmem:[%s1 + $0x98] sm:$0xf]
      %v451 = vld [vmem:[%s1 + $0x9c] sm:$0xf]
      %v452 = vld [vmem:[%s1 + $0xa0] sm:$0xf]
      %v453 = vld [vmem:[%s1 + $0xa4] sm:$0xf]
      %v454 = vld [vmem:[%s1 + $0xa8] sm:$0xf]
      %v455 = vld [vmem:[%s1 + $0xac] sm:$0xf]
      %v456 = vld [vmem:[%s1 + $0xb0] sm:$0xf]
      %v457 = vld [vmem:[%s1 + $0xb4] sm:$0xf]
      %v458 = vld [vmem:[%s1 + $0xb8] sm:$0xf]
      %v459 = vld [vmem:[%s1 + $0xbc] sm:$0xf]
      %v460 = vld [vmem:[%s1 + $0xc0] sm:$0xf]
      %v461 = vld [vmem:[%s1 + $0xc4] sm:$0xf]
      %v462 = vld [vmem:[%s1 + $0xc8] sm:$0xf]
      %v463 = vld [vmem:[%s1 + $0xcc] sm:$0xf]
      %v464 = vld [vmem:[%s1 + $0xd0] sm:$0xf]
      %v465 = vld [vmem:[%s1 + $0xd4] sm:$0xf]
      %v466 = vld [vmem:[%s1 + $0xd8] sm:$0xf]
      %v467 = vld [vmem:[%s1 + $0xdc] sm:$0xf]
      %v468 = vld [vmem:[%s1 + $0xe0] sm:$0xf]
      %v469 = vld [vmem:[%s1 + $0xe4] sm:$0xf]
      %v470 = vld [vmem:[%s1 + $0xe8] sm:$0xf]
      %v471 = vld [vmem:[%s1 + $0xec] sm:$0xf]
      %v472 = vld [vmem:[%s1 + $0xf0] sm:$0xf]
      %v473 = vld [vmem:[%s1 + $0xf4] sm:$0xf]
      %v474 = vld [vmem:[%s1 + $0xf8] sm:$0xf]
      %v475 = vld [vmem:[%s1 + $0xfc] sm:$0xf]
      %v476 = vld [vmem:[%s1 + $0x100] sm:$0xf]
      %v477 = vld [vmem:[%s1 + $0x104] sm:$0xf]
      %v478 = vld [vmem:[%s1 + $0x108] sm:$0xf]
      %v479 = vld [vmem:[%s1 + $0x10c] sm:$0xf]
      %v480 = vld [vmem:[%s1 + $0x110] sm:$0xf]
      %v481 = vld [vmem:[%s1 + $0x114] sm:$0xf]
      %v482 = vld [vmem:[%s1 + $0x118] sm:$0xf]
      %v483 = vld [vmem:[%s1 + $0x11c] sm:$0xf]
      %v484 = vld [vmem:[%s1 + $0x120] sm:$0xf]
      %v485 = vld [vmem:[%s1 + $0x124] sm:$0xf]
      %v486 = vld [vmem:[%s1 + $0x128] sm:$0xf]
      %v487 = vld [vmem:[%s1 + $0x12c] sm:$0xf]
      %v488 = vld [vmem:[%s1 + $0x130] sm:$0xf]
      %v489 = vld [vmem:[%s1 + $0x134] sm:$0xf]
      %v490 = vld [vmem:[%s1 + $0x138] sm:$0xf]
      %v491 = vld [vmem:[%s1 + $0x13c] sm:$0xf]
      %v492 = vld [vmem:[%s1 + $0x140] sm:$0xf]
      %v493 = vld [vmem:[%s1 + $0x144] sm:$0xf]
      %v494 = vld [vmem:[%s1 + $0x148] sm:$0xf]
      %v495 = vld [vmem:[%s1 + $0x14c] sm:$0xf]
      %v496 = vld [vmem:[%s1 + $0x150] sm:$0xf]
      %v497 = vld [vmem:[%s1 + $0x154] sm:$0xf]
      %v498 = vld [vmem:[%s1 + $0x158] sm:$0xf]
      %v499 = vld [vmem:[%s1 + $0x15c] sm:$0xf]
      %v500 = vld [vmem:[%s1 + $0x160] sm:$0xf]
      %v501 = vld [vmem:[%s1 + $0x164] sm:$0xf]
      %v502 = vld [vmem:[%s1 + $0x168] sm:$0xf]
      %v503 = vld [vmem:[%s1 + $0x16c] sm:$0xf]
      %v504 = vld [vmem:[%s1 + $0x170] sm:$0xf]
      %v505 = vld [vmem:[%s1 + $0x174] sm:$0xf]
      %v506 = vld [vmem:[%s1 + $0x178] sm:$0xf]
      %v507 = vld [vmem:[%s1 + $0x17c] sm:$0xf]
      %v508 = vld [vmem:[%s1 + $0x180] sm:$0xf]
      %v509 = vld [vmem:[%s1 + $0x184] sm:$0xf]
      %v510 = vld [vmem:[%s1 + $0x188] sm:$0xf]
      %v511 = vld [vmem:[%s1 + $0x18c] sm:$0xf]
      %v512 = vld [vmem:[%s1 + $0x190] sm:$0xf]
      %v513 = vld [vmem:[%s1 + $0x194] sm:$0xf]
      %v514 = vld [vmem:[%s1 + $0x198] sm:$0xf]
      %v515 = vld [vmem:[%s1 + $0x19c] sm:$0xf]
      %v516 = vld [vmem:[%s1 + $0x1a0] sm:$0xf]
      %v517 = vld [vmem:[%s1 + $0x1a4] sm:$0xf]
      %v518 = vld [vmem:[%s1 + $0x1a8] sm:$0xf]
      %v519 = vld [vmem:[%s1 + $0x1ac] sm:$0xf]
      %v520 = vld [vmem:[%s1 + $0x1b0] sm:$0xf]
      %v521 = vld [vmem:[%s1 + $0x1b4] sm:$0xf]
      %v522 = vld [vmem:[%s1 + $0x1b8] sm:$0xf]
      %v523 = vld [vmem:[%s1 + $0x1bc] sm:$0xf]
      %v524 = vld [vmem:[%s1 + $0x1c0] sm:$0xf]
      %v525 = vld [vmem:[%s1 + $0x1c4] sm:$0xf]
      %v526 = vld [vmem:[%s1 + $0x1c8] sm:$0xf]
      %v527 = vld [vmem:[%s1 + $0x1cc] sm:$0xf]
      %v528 = vld [vmem:[%s1 + $0x1d0] sm:$0xf]
      %v529 = vld [vmem:[%s1 + $0x1d4] sm:$0xf]
      %v530 = vld [vmem:[%s1 + $0x1d8] sm:$0xf]
      %v531 = vld [vmem:[%s1 + $0x1dc] sm:$0xf]
      %v532 = vld [vmem:[%s1 + $0x1e0] sm:$0xf]
      %v533 = vld [vmem:[%s1 + $0x1e4] sm:$0xf]
      %v534 = vld [vmem:[%s1 + $0x1e8] sm:$0xf]
      %v535 = vld [vmem:[%s1 + $0x1ec] sm:$0xf]
      %v536 = vld [vmem:[%s1 + $0x1f0] sm:$0xf]
      %v537 = vld [vmem:[%s1 + $0x1f4] sm:$0xf]
      %v538 = vld [vmem:[%s1 + $0x1f8] sm:$0xf]
      %v539 = vld [vmem:[%s1 + $0x1fc] sm:$0xf]
      %v540 = vld [vmem:[%s1 + $0x200] sm:$0xf]
      %v541 = vld [vmem:[%s1 + $0x204] sm:$0xf]
      %v542 = vld [vmem:[%s1 + $0x208] sm:$0xf]
      %v543 = vld [vmem:[%s1 + $0x20c] sm:$0xf]
      %v544 = vld [vmem:[%s1 + $0x210] sm:$0xf]
      %v545 = vld [vmem:[%s1 + $0x214] sm:$0xf]
      %v546 = vld [vmem:[%s1 + $0x218] sm:$0xf]
      %v547 = vld [vmem:[%s1 + $0x21c] sm:$0xf]
      %v548 = vld [vmem:[%s1 + $0x220] sm:$0xf]
      %v549 = vld [vmem:[%s1 + $0x224] sm:$0xf]
      %v550 = vld [vmem:[%s1 + $0x228] sm:$0xf]
      %v551 = vld [vmem:[%s1 + $0x22c] sm:$0xf]
      %v552 = vld [vmem:[%s1 + $0x230] sm:$0xf]
      %v553 = vld [vmem:[%s1 + $0x234] sm:$0xf]
      %v554 = vld [vmem:[%s1 + $0x238] sm:$0xf]
      %v555 = vld [vmem:[%s1 + $0x23c] sm:$0xf]
      %v568 = vcombine.low %v400, %v403
      %v569 = vcombine.high %v400, %v403
      %v570 = vcombine.low %v406, %v409
      %v571 = vcombine.high %v406, %v409
      %v573 = vunpack.c.l.s4 1983009808
      %v574 = vunpack.c.0.s8 %v573
      %v575 = vlaneseq
      %v576 = vshrl.u32 %v575, 7
      %v577 = vsub.s32 %v574, %v576
      %v578 = vrot.slane %v568, %v577
      %v580 = vunpack.c.l.s4 1983009808
      %v581 = vunpack.c.0.s8 %v580
      %v582 = vlaneseq
      %v583 = vshrl.u32 %v582, 7
      %v584 = vsub.s32 %v581, %v583
      %v585 = vrot.slane %v569, %v584
      %v587 = vunpack.c.l.s4 1983009808
      %v588 = vunpack.c.0.s8 %v587
      %v589 = vlaneseq
      %v590 = vshrl.u32 %v589, 7
      %v591 = vsub.s32 %v588, %v590
      %v592 = vrot.slane %v570, %v591
      %v594 = vunpack.c.l.s4 1983009808
      %v595 = vunpack.c.0.s8 %v594
      %v596 = vlaneseq
      %v597 = vshrl.u32 %v596, 7
      %v598 = vsub.s32 %v595, %v597
      %v599 = vrot.slane %v571, %v598
      %v600 = vcombine.low %v578, %v592
      %v601 = vcombine.high %v578, %v592
      %v602 = vcombine.low %v585, %v599
      %v603 = vcombine.high %v585, %v599
      %v604 = vcombine.low %v401, %v404
      %v605 = vcombine.high %v401, %v404
      %v606 = vcombine.low %v407, %v410
      %v607 = vcombine.high %v407, %v410
      %v609 = vunpack.c.l.s4 1983009808
      %v610 = vunpack.c.0.s8 %v609
      %v611 = vlaneseq
      %v612 = vshrl.u32 %v611, 7
      %v613 = vsub.s32 %v610, %v612
      %v614 = vrot.slane %v604, %v613
      %v616 = vunpack.c.l.s4 1983009808
      %v617 = vunpack.c.0.s8 %v616
      %v618 = vlaneseq
      %v619 = vshrl.u32 %v618, 7
      %v620 = vsub.s32 %v617, %v619
      %v621 = vrot.slane %v605, %v620
      %v623 = vunpack.c.l.s4 1983009808
      %v624 = vunpack.c.0.s8 %v623
      %v625 = vlaneseq
      %v626 = vshrl.u32 %v625, 7
      %v627 = vsub.s32 %v624, %v626
      %v628 = vrot.slane %v606, %v627
      %v630 = vunpack.c.l.s4 1983009808
      %v631 = vunpack.c.0.s8 %v630
      %v632 = vlaneseq
      %v633 = vshrl.u32 %v632, 7
      %v634 = vsub.s32 %v631, %v633
      %v635 = vrot.slane %v607, %v634
      %v636 = vcombine.low %v614, %v628
      %v637 = vcombine.high %v614, %v628
      %v638 = vcombine.low %v621, %v635
      %v639 = vcombine.high %v621, %v635
      %v640 = vcombine.low %v402, %v405
      %v641 = vcombine.low %v408, %v411
      %v643 = vunpack.c.l.s4 1983009808
      %v644 = vunpack.c.0.s8 %v643
      %v645 = vlaneseq
      %v646 = vshrl.u32 %v645, 7
      %v647 = vsub.s32 %v644, %v646
      %v648 = vrot.slane %v640, %v647
      %v650 = vunpack.c.l.s4 1983009808
      %v651 = vunpack.c.0.s8 %v650
      %v652 = vlaneseq
      %v653 = vshrl.u32 %v652, 7
      %v654 = vsub.s32 %v651, %v653
      %v655 = vrot.slane %v641, %v654
      %v656 = vcombine.low %v648, %v655
      %v810 = vunpack.c.l.b16 %v412
      %v811 = vunpack.c.l.b16 %v413
      %v812 = vunpack.c.l.b16 %v414
      %v813 = vunpack.c.l.b16 %v415
      %v814 = vunpack.c.l.b16 %v416
      %v815 = vunpack.c.l.b16 %v417
      %v816 = vunpack.c.l.b16 %v418
      %v817 = vunpack.c.l.b16 %v419
      %v818 = vunpack.c.l.b16 %v420
      %v819 = vunpack.c.l.b16 %v421
      %v820 = vunpack.c.l.b16 %v422
      %v821 = vunpack.c.l.b16 %v423
      %v822 = vunpack.c.l.b16 %v424
      %v823 = vunpack.c.l.b16 %v425
      %v824 = vunpack.c.l.b16 %v426
      %v825 = vunpack.c.l.b16 %v427
      %v826 = vunpack.c.l.b16 %v428
      %v827 = vunpack.c.l.b16 %v429
      %v828 = vunpack.c.l.b16 %v430
      %v829 = vunpack.c.l.b16 %v431
      %v830 = vunpack.c.l.b16 %v432
      %v831 = vunpack.c.l.b16 %v433
      %v832 = vunpack.c.l.b16 %v434
      %v833 = vunpack.c.l.b16 %v435
      %v834 = vunpack.c.l.b16 %v436
      %v835 = vunpack.c.l.b16 %v437
      %v836 = vunpack.c.l.b16 %v438
      %v837 = vunpack.c.l.b16 %v439
      %v838 = vunpack.c.l.b16 %v440
      %v839 = vunpack.c.l.b16 %v441
      %v840 = vunpack.c.l.b16 %v442
      %v841 = vunpack.c.l.b16 %v443
      %v842 = vunpack.c.l.b16 %v444
      %v843 = vunpack.c.l.b16 %v445
      %v844 = vunpack.c.l.b16 %v446
      %v845 = vunpack.c.l.b16 %v447
      %v846 = vunpack.c.l.b16 %v448
      %v847 = vunpack.c.l.b16 %v449
      %v848 = vunpack.c.l.b16 %v450
      %v849 = vunpack.c.l.b16 %v451
      %v850 = vunpack.c.l.b16 %v452
      %v851 = vunpack.c.l.b16 %v453
      %v852 = vunpack.c.l.b16 %v454
      %v853 = vunpack.c.l.b16 %v455
      %v854 = vunpack.c.l.b16 %v456
      %v855 = vunpack.c.l.b16 %v457
      %v856 = vunpack.c.l.b16 %v458
      %v857 = vunpack.c.l.b16 %v459
      %v858 = vunpack.c.l.b16 %v460
      %v859 = vunpack.c.l.b16 %v461
      %v860 = vunpack.c.l.b16 %v462
      %v861 = vunpack.c.l.b16 %v463
      %v862 = vunpack.c.l.b16 %v464
      %v863 = vunpack.c.l.b16 %v465
      %v864 = vunpack.c.l.b16 %v466
      %v865 = vunpack.c.l.b16 %v467
      %v866 = vunpack.c.l.b16 %v468
      %v867 = vunpack.c.l.b16 %v469
      %v868 = vunpack.c.l.b16 %v470
      %v869 = vunpack.c.l.b16 %v471
      %v870 = vunpack.c.l.b16 %v472
      %v871 = vunpack.c.l.b16 %v473
      %v872 = vunpack.c.l.b16 %v474
      %v873 = vunpack.c.l.b16 %v475
      %v874 = vunpack.c.l.b16 %v476
      %v875 = vunpack.c.l.b16 %v477
      %v876 = vunpack.c.l.b16 %v478
      %v877 = vunpack.c.l.b16 %v479
      %v878 = vunpack.c.l.b16 %v480
      %v879 = vunpack.c.l.b16 %v481
      %v880 = vunpack.c.l.b16 %v482
      %v881 = vunpack.c.l.b16 %v483
      %v882 = vunpack.c.l.b16 %v484
      %v883 = vunpack.c.l.b16 %v485
      %v884 = vunpack.c.l.b16 %v486
      %v885 = vunpack.c.l.b16 %v487
      %v886 = vunpack.c.l.b16 %v488
      %v887 = vunpack.c.l.b16 %v489
      %v888 = vunpack.c.l.b16 %v490
      %v889 = vunpack.c.l.b16 %v491
      %v890 = vunpack.c.l.b16 %v492
      %v891 = vunpack.c.l.b16 %v493
      %v892 = vunpack.c.l.b16 %v494
      %v893 = vunpack.c.l.b16 %v495
      %v894 = vunpack.c.l.b16 %v496
      %v895 = vunpack.c.l.b16 %v497
      %v896 = vunpack.c.l.b16 %v498
      %v897 = vunpack.c.l.b16 %v499
      %v898 = vunpack.c.l.b16 %v500
      %v899 = vunpack.c.l.b16 %v501
      %v900 = vunpack.c.l.b16 %v502
      %v901 = vunpack.c.l.b16 %v503
      %v902 = vunpack.c.l.b16 %v504
      %v903 = vunpack.c.l.b16 %v505
      %v904 = vunpack.c.l.b16 %v506
      %v905 = vunpack.c.l.b16 %v507
      %v906 = vunpack.c.l.b16 %v508
      %v907 = vunpack.c.l.b16 %v509
      %v908 = vunpack.c.l.b16 %v510
      %v909 = vunpack.c.l.b16 %v511
      %v910 = vunpack.c.l.b16 %v512
      %v911 = vunpack.c.l.b16 %v513
      %v912 = vunpack.c.l.b16 %v514
      %v913 = vunpack.c.l.b16 %v515
      %v914 = vunpack.c.l.b16 %v516
      %v915 = vunpack.c.l.b16 %v517
      %v916 = vunpack.c.l.b16 %v518
      %v917 = vunpack.c.l.b16 %v519
      %v918 = vunpack.c.l.b16 %v520
      %v919 = vunpack.c.l.b16 %v521
      %v920 = vunpack.c.l.b16 %v522
      %v921 = vunpack.c.l.b16 %v523
      %v922 = vunpack.c.l.b16 %v524
      %v923 = vunpack.c.l.b16 %v525
      %v924 = vunpack.c.l.b16 %v526
      %v925 = vunpack.c.l.b16 %v527
      %v926 = vunpack.c.l.b16 %v528
      %v927 = vunpack.c.l.b16 %v529
      %v928 = vunpack.c.l.b16 %v530
      %v929 = vunpack.c.l.b16 %v531
      %v930 = vunpack.c.l.b16 %v532
      %v931 = vunpack.c.l.b16 %v533
      %v932 = vunpack.c.l.b16 %v534
      %v933 = vunpack.c.l.b16 %v535
      %v934 = vunpack.c.l.b16 %v536
      %v935 = vunpack.c.l.b16 %v537
      %v936 = vunpack.c.l.b16 %v538
      %v937 = vunpack.c.l.b16 %v539
      %v938 = vunpack.c.l.b16 %v540
      %v939 = vunpack.c.l.b16 %v541
      %v940 = vunpack.c.l.b16 %v542
      %v941 = vunpack.c.l.b16 %v543
      %v942 = vunpack.c.l.b16 %v544
      %v943 = vunpack.c.l.b16 %v545
      %v944 = vunpack.c.l.b16 %v546
      %v945 = vunpack.c.l.b16 %v547
      %v946 = vunpack.c.l.b16 %v548
      %v947 = vunpack.c.l.b16 %v549
      %v948 = vunpack.c.l.b16 %v550
      %v949 = vunpack.c.l.b16 %v551
      %v950 = vunpack.c.l.b16 %v552
      %v951 = vunpack.c.l.b16 %v553
      %v952 = vunpack.c.l.b16 %v554
      %v953 = vunpack.c.l.b16 %v555
      %v954 = vpack.c.b16 %v811, %v810
      %v955 = vpack.c.b16 %v813, %v812
      %v956 = vpack.c.b16 %v815, %v814
      %v957 = vpack.c.b16 %v817, %v816
      %v958 = vpack.c.b16 %v819, %v818
      %v959 = vpack.c.b16 %v821, %v820
      %v960 = vpack.c.b16 %v823, %v822
      %v961 = vpack.c.b16 %v825, %v824
      %v962 = vpack.c.b16 %v827, %v826
      %v963 = vpack.c.b16 %v829, %v828
      %v964 = vpack.c.b16 %v831, %v830
      %v965 = vpack.c.b16 %v833, %v832
      %v966 = vpack.c.b16 %v835, %v834
      %v967 = vpack.c.b16 %v837, %v836
      %v968 = vpack.c.b16 %v839, %v838
      %v969 = vpack.c.b16 %v841, %v840
      %v970 = vpack.c.b16 %v843, %v842
      %v971 = vpack.c.b16 %v845, %v844
      %v972 = vpack.c.b16 %v847, %v846
      %v973 = vpack.c.b16 %v849, %v848
      %v974 = vpack.c.b16 %v851, %v850
      %v975 = vpack.c.b16 %v853, %v852
      %v976 = vpack.c.b16 %v855, %v854
      %v977 = vpack.c.b16 %v857, %v856
      %v978 = vpack.c.b16 %v859, %v858
      %v979 = vpack.c.b16 %v861, %v860
      %v980 = vpack.c.b16 %v863, %v862
      %v981 = vpack.c.b16 %v865, %v864
      %v982 = vpack.c.b16 %v867, %v866
      %v983 = vpack.c.b16 %v869, %v868
      %v984 = vpack.c.b16 %v871, %v870
      %v985 = vpack.c.b16 %v873, %v872
      %v986 = vpack.c.b16 %v875, %v874
      %v987 = vpack.c.b16 %v877, %v876
      %v988 = vpack.c.b16 %v879, %v878
      %v989 = vpack.c.b16 %v881, %v880
      %v990 = vpack.c.b16 %v883, %v882
      %v991 = vpack.c.b16 %v885, %v884
      %v992 = vpack.c.b16 %v887, %v886
      %v993 = vpack.c.b16 %v889, %v888
      %v994 = vpack.c.b16 %v891, %v890
      %v995 = vpack.c.b16 %v893, %v892
      %v996 = vpack.c.b16 %v895, %v894
      %v997 = vpack.c.b16 %v897, %v896
      %v998 = vpack.c.b16 %v899, %v898
      %v999 = vpack.c.b16 %v901, %v900
      %v1000 = vpack.c.b16 %v903, %v902
      %v1001 = vpack.c.b16 %v905, %v904
      %v1002 = vpack.c.b16 %v907, %v906
      %v1003 = vpack.c.b16 %v909, %v908
      %v1004 = vpack.c.b16 %v911, %v910
      %v1005 = vpack.c.b16 %v913, %v912
      %v1006 = vpack.c.b16 %v915, %v914
      %v1007 = vpack.c.b16 %v917, %v916
      %v1008 = vpack.c.b16 %v919, %v918
      %v1009 = vpack.c.b16 %v921, %v920
      %v1010 = vpack.c.b16 %v923, %v922
      %v1011 = vpack.c.b16 %v925, %v924
      %v1012 = vpack.c.b16 %v927, %v926
      %v1013 = vpack.c.b16 %v929, %v928
      %v1014 = vpack.c.b16 %v931, %v930
      %v1015 = vpack.c.b16 %v933, %v932
      %v1016 = vpack.c.b16 %v935, %v934
      %v1017 = vpack.c.b16 %v937, %v936
      %v1018 = vpack.c.b16 %v939, %v938
      %v1019 = vpack.c.b16 %v941, %v940
      %v1020 = vpack.c.b16 %v943, %v942
      %v1021 = vpack.c.b16 %v945, %v944
      %v1022 = vpack.c.b16 %v947, %v946
      %v1023 = vpack.c.b16 %v949, %v948
      %v1024 = vpack.c.b16 %v951, %v950
      %v1025 = vpack.c.b16 %v953, %v952
      %1098 = vmatprep.subr.bf16.mxu0 0
      %1099 = vmatpush1.bf16.msra.mxu0 %v961
      %1100 = vmatprep.subr.bf16.mxu0 0
      %1101 = vmatpush1.bf16.msra.mxu0 %v960
      %1102 = vmatprep.subr.bf16.mxu0 0
      %1103 = vmatpush1.bf16.msra.mxu0 %v959
      %1104 = vmatprep.subr.bf16.mxu0 0
      %1105 = vmatpush1.bf16.msra.mxu0 %v958
      %1106 = vmatprep.subr.bf16.mxu0 0
      %1107 = vmatpush1.bf16.msra.mxu0 %v957
      %1108 = vmatprep.subr.bf16.mxu0 0
      %1109 = vmatpush1.bf16.msra.mxu0 %v956
      %1110 = vmatprep.subr.bf16.mxu0 0
      %1111 = vmatpush1.bf16.msra.mxu0 %v955
      %1112 = vmatprep.subr.bf16.mxu0 0
      %1113 = vmatpush1.bf16.msra.mxu0 %v954
      %1114 = vmatprep.subr.bf16.mxu0 0
      %1115 = vmatpush2.bf16.msra.mxu0 %v969
      %1116 = vmatprep.subr.bf16.mxu0 0
      %1117 = vmatpush2.bf16.msra.mxu0 %v968
      %1118 = vmatprep.subr.bf16.mxu0 0
      %1119 = vmatpush2.bf16.msra.mxu0 %v967
      %1120 = vmatprep.subr.bf16.mxu0 0
      %1121 = vmatpush2.bf16.msra.mxu0 %v966
      %1122 = vmatprep.subr.bf16.mxu0 0
      %1123 = vmatpush2.bf16.msra.mxu0 %v965
      %1124 = vmatprep.subr.bf16.mxu0 0
      %1125 = vmatpush2.bf16.msra.mxu0 %v964
      %1126 = vmatprep.subr.bf16.mxu0 0
      %1127 = vmatpush2.bf16.msra.mxu0 %v963
      %1128 = vmatprep.subr.bf16.mxu0 0
      %1129 = vmatpush2.bf16.msra.mxu0 %v962
      %1130 = vmatprep.mubr.bf16.mxu0 %v601
      %1131 = vmatmul.mubr.bf16.gmra.mxu0 %v600
      %v1132 = vpop.f32.mrf.mxu0
      %v1133 = vadd.f32 0.0, %v1132
      %v1134 = vpop.f32.mrf.mxu0
      %v1135 = vpop.f32.mrf.mxu0
      %v1136 = vadd.f32 0.0, %v1135
      %v1137 = vpop.f32.mrf.mxu0
      %1138 = vdwg.mxu0
      %1139 = vmatprep.subr.bf16.mxu0 0
      %1140 = vmatpush1.bf16.msra.mxu0 %v977
      %1141 = vmatprep.subr.bf16.mxu0 0
      %1142 = vmatpush1.bf16.msra.mxu0 %v976
      %1143 = vmatprep.subr.bf16.mxu0 0
      %1144 = vmatpush1.bf16.msra.mxu0 %v975
      %1145 = vmatprep.subr.bf16.mxu0 0
      %1146 = vmatpush1.bf16.msra.mxu0 %v974
      %1147 = vmatprep.subr.bf16.mxu0 0
      %1148 = vmatpush1.bf16.msra.mxu0 %v973
      %1149 = vmatprep.subr.bf16.mxu0 0
      %1150 = vmatpush1.bf16.msra.mxu0 %v972
      %1151 = vmatprep.subr.bf16.mxu0 0
      %1152 = vmatpush1.bf16.msra.mxu0 %v971
      %1153 = vmatprep.subr.bf16.mxu0 0
      %1154 = vmatpush1.bf16.msra.mxu0 %v970
      %1155 = vmatprep.subr.bf16.mxu0 0
      %1156 = vmatpush2.bf16.msra.mxu0 %v985
      %1157 = vmatprep.subr.bf16.mxu0 0
      %1158 = vmatpush2.bf16.msra.mxu0 %v984
      %1159 = vmatprep.subr.bf16.mxu0 0
      %1160 = vmatpush2.bf16.msra.mxu0 %v983
      %1161 = vmatprep.subr.bf16.mxu0 0
      %1162 = vmatpush2.bf16.msra.mxu0 %v982
      %1163 = vmatprep.subr.bf16.mxu0 0
      %1164 = vmatpush2.bf16.msra.mxu0 %v981
      %1165 = vmatprep.subr.bf16.mxu0 0
      %1166 = vmatpush2.bf16.msra.mxu0 %v980
      %1167 = vmatprep.subr.bf16.mxu0 0
      %1168 = vmatpush2.bf16.msra.mxu0 %v979
      %1169 = vmatprep.subr.bf16.mxu0 0
      %1170 = vmatpush2.bf16.msra.mxu0 %v978
      %1171 = vmatprep.mubr.bf16.mxu0 %v603
      %1172 = vmatmul.mubr.bf16.gmra.mxu0 %v602
      %v1173 = vpop.f32.mrf.mxu0
      %v1174 = vadd.f32 %v1133, %v1173
      %v1175 = vpop.f32.mrf.mxu0
      %v1176 = vpop.f32.mrf.mxu0
      %v1177 = vadd.f32 %v1136, %v1176
      %v1178 = vpop.f32.mrf.mxu0
      %1179 = vdwg.mxu0
      %1180 = vmatprep.subr.bf16.mxu0 0
      %1181 = vmatpush1.bf16.msra.mxu0 %v993
      %1182 = vmatprep.subr.bf16.mxu0 0
      %1183 = vmatpush1.bf16.msra.mxu0 %v992
      %1184 = vmatprep.subr.bf16.mxu0 0
      %1185 = vmatpush1.bf16.msra.mxu0 %v991
      %1186 = vmatprep.subr.bf16.mxu0 0
      %1187 = vmatpush1.bf16.msra.mxu0 %v990
      %1188 = vmatprep.subr.bf16.mxu0 0
      %1189 = vmatpush1.bf16.msra.mxu0 %v989
      %1190 = vmatprep.subr.bf16.mxu0 0
      %1191 = vmatpush1.bf16.msra.mxu0 %v988
      %1192 = vmatprep.subr.bf16.mxu0 0
      %1193 = vmatpush1.bf16.msra.mxu0 %v987
      %1194 = vmatprep.subr.bf16.mxu0 0
      %1195 = vmatpush1.bf16.msra.mxu0 %v986
      %1196 = vmatprep.subr.bf16.mxu0 0
      %1197 = vmatpush2.bf16.msra.mxu0 %v1001
      %1198 = vmatprep.subr.bf16.mxu0 0
      %1199 = vmatpush2.bf16.msra.mxu0 %v1000
      %1200 = vmatprep.subr.bf16.mxu0 0
      %1201 = vmatpush2.bf16.msra.mxu0 %v999
      %1202 = vmatprep.subr.bf16.mxu0 0
      %1203 = vmatpush2.bf16.msra.mxu0 %v998
      %1204 = vmatprep.subr.bf16.mxu0 0
      %1205 = vmatpush2.bf16.msra.mxu0 %v997
      %1206 = vmatprep.subr.bf16.mxu0 0
      %1207 = vmatpush2.bf16.msra.mxu0 %v996
      %1208 = vmatprep.subr.bf16.mxu0 0
      %1209 = vmatpush2.bf16.msra.mxu0 %v995
      %1210 = vmatprep.subr.bf16.mxu0 0
      %1211 = vmatpush2.bf16.msra.mxu0 %v994
      %1212 = vmatprep.mubr.bf16.mxu0 %v637
      %1213 = vmatmul.mubr.bf16.gmra.mxu0 %v636
      %v1214 = vpop.f32.mrf.mxu0
      %v1215 = vadd.f32 %v1174, %v1214
      %v1216 = vpop.f32.mrf.mxu0
      %v1217 = vpop.f32.mrf.mxu0
      %v1218 = vadd.f32 %v1177, %v1217
      %v1219 = vpop.f32.mrf.mxu0
      %1220 = vdwg.mxu0
      %1221 = vmatprep.subr.bf16.mxu0 0
      %1222 = vmatpush1.bf16.msra.mxu0 %v1009
      %1223 = vmatprep.subr.bf16.mxu0 0
      %1224 = vmatpush1.bf16.msra.mxu0 %v1008
      %1225 = vmatprep.subr.bf16.mxu0 0
      %1226 = vmatpush1.bf16.msra.mxu0 %v1007
      %1227 = vmatprep.subr.bf16.mxu0 0
      %1228 = vmatpush1.bf16.msra.mxu0 %v1006
      %1229 = vmatprep.subr.bf16.mxu0 0
      %1230 = vmatpush1.bf16.msra.mxu0 %v1005
      %1231 = vmatprep.subr.bf16.mxu0 0
      %1232 = vmatpush1.bf16.msra.mxu0 %v1004
      %1233 = vmatprep.subr.bf16.mxu0 0
      %1234 = vmatpush1.bf16.msra.mxu0 %v1003
      %1235 = vmatprep.subr.bf16.mxu0 0
      %1236 = vmatpush1.bf16.msra.mxu0 %v1002
      %1237 = vmatprep.subr.bf16.mxu0 0
      %1238 = vmatpush2.bf16.msra.mxu0 %v1017
      %1239 = vmatprep.subr.bf16.mxu0 0
      %1240 = vmatpush2.bf16.msra.mxu0 %v1016
      %1241 = vmatprep.subr.bf16.mxu0 0
      %1242 = vmatpush2.bf16.msra.mxu0 %v1015
      %1243 = vmatprep.subr.bf16.mxu0 0
      %1244 = vmatpush2.bf16.msra.mxu0 %v1014
      %1245 = vmatprep.subr.bf16.mxu0 0
      %1246 = vmatpush2.bf16.msra.mxu0 %v1013
      %1247 = vmatprep.subr.bf16.mxu0 0
      %1248 = vmatpush2.bf16.msra.mxu0 %v1012
      %1249 = vmatprep.subr.bf16.mxu0 0
      %1250 = vmatpush2.bf16.msra.mxu0 %v1011
      %1251 = vmatprep.subr.bf16.mxu0 0
      %1252 = vmatpush2.bf16.msra.mxu0 %v1010
      %1253 = vmatprep.mubr.bf16.mxu0 %v639
      %1254 = vmatmul.mubr.bf16.gmra.mxu0 %v638
      %v1255 = vpop.f32.mrf.mxu0
      %v1256 = vadd.f32 %v1215, %v1255
      %v1257 = vpop.f32.mrf.mxu0
      %v1258 = vpop.f32.mrf.mxu0
      %v1259 = vadd.f32 %v1218, %v1258
      %v1260 = vpop.f32.mrf.mxu0
      %1261 = vdwg.mxu0
      %1262 = vmatprep.subr.bf16.mxu0 0
      %1263 = vmatpush1.bf16.msra.mxu0 %v1025
      %1264 = vmatprep.subr.bf16.mxu0 0
      %1265 = vmatpush1.bf16.msra.mxu0 %v1024
      %1266 = vmatprep.subr.bf16.mxu0 0
      %1267 = vmatpush1.bf16.msra.mxu0 %v1023
      %1268 = vmatprep.subr.bf16.mxu0 0
      %1269 = vmatpush1.bf16.msra.mxu0 %v1022
      %1270 = vmatprep.subr.bf16.mxu0 0
      %1271 = vmatpush1.bf16.msra.mxu0 %v1021
      %1272 = vmatprep.subr.bf16.mxu0 0
      %1273 = vmatpush1.bf16.msra.mxu0 %v1020
      %1274 = vmatprep.subr.bf16.mxu0 0
      %1275 = vmatpush1.bf16.msra.mxu0 %v1019
      %1276 = vmatprep.subr.bf16.mxu0 0
      %1277 = vmatpush1.bf16.msra.mxu0 %v1018
      %1278 = vmatprep.subr.bf16.mxu0 0
      %1279 = vmatpush2.bf16.msra.mxu0 0
      %1280 = vmatprep.subr.bf16.mxu0 0
      %1281 = vmatpush2.bf16.msra.mxu0 0
      %1282 = vmatprep.subr.bf16.mxu0 0
      %1283 = vmatpush2.bf16.msra.mxu0 0
      %1284 = vmatprep.subr.bf16.mxu0 0
      %1285 = vmatpush2.bf16.msra.mxu0 0
      %1286 = vmatprep.subr.bf16.mxu0 0
      %1287 = vmatpush2.bf16.msra.mxu0 0
      %1288 = vmatprep.subr.bf16.mxu0 0
      %1289 = vmatpush2.bf16.msra.mxu0 0
      %1290 = vmatprep.subr.bf16.mxu0 0
      %1291 = vmatpush2.bf16.msra.mxu0 0
      %1292 = vmatprep.subr.bf16.mxu0 0
      %1293 = vmatpush2.bf16.msra.mxu0 0
      %1294 = vmatprep.mubr.bf16.mxu0 0
      %1295 = vmatmul.mubr.bf16.gmra.mxu0 %v656
      %v1296 = vpop.f32.mrf.mxu0
      %v1297 = vadd.f32 %v1256, %v1296
      %v1298 = vpop.f32.mrf.mxu0
      %v1299 = vpop.f32.mrf.mxu0
      %v1300 = vadd.f32 %v1259, %v1299
      %v1301 = vpop.f32.mrf.mxu0
      %1302 = vdwg.mxu0
      %v1305 = vcombine.high %v1297, %v1297
      %v1307 = vunpack.c.l.s4 1983009808
      %v1308 = vunpack.c.0.s8 %v1307
      %v1309 = vlaneseq
      %v1310 = vshrl.u32 %v1309, 7
      %v1311 = vsub.s32 %v1308, %v1310
      %v1312 = vrot.slane %v1297, %v1311
      %v1314 = vunpack.c.l.s4 1983009808
      %v1315 = vunpack.c.0.s8 %v1314
      %v1316 = vlaneseq
      %v1317 = vshrl.u32 %v1316, 7
      %v1318 = vsub.s32 %v1315, %v1317
      %v1319 = vrot.slane %v1305, %v1318
      %v1320 = vcombine.high %v1312, %v1312
      %v1321 = vcombine.high %v1319, %v1319
      %v1322 = vcombine.high %v1300, %v1300
      %v1324 = vunpack.c.l.s4 1983009808
      %v1325 = vunpack.c.0.s8 %v1324
      %v1326 = vlaneseq
      %v1327 = vshrl.u32 %v1326, 7
      %v1328 = vsub.s32 %v1325, %v1327
      %v1329 = vrot.slane %v1300, %v1328
      %v1331 = vunpack.c.l.s4 1983009808
      %v1332 = vunpack.c.0.s8 %v1331
      %v1333 = vlaneseq
      %v1334 = vshrl.u32 %v1333, 7
      %v1335 = vsub.s32 %v1332, %v1334
      %v1336 = vrot.slane %v1322, %v1335
      %v1337 = vcombine.high %v1329, %v1329
      %v1338 = vcombine.high %v1336, %v1336
      %v1347 = vrot.slane %v1312, 7
      %v1348 = vrot.slane %v1347, 2
      %v1349 = vrot.slane %v1320, 7
      %v1350 = vrot.slane %v1349, 2
      %v1351 = vrot.slane %v1319, 7
      %v1352 = vrot.slane %v1351, 2
      %v1353 = vrot.slane %v1321, 7
      %v1354 = vrot.slane %v1353, 2
      %v1355 = vrot.slane %v1329, 7
      %v1356 = vrot.slane %v1355, 2
      %v1357 = vrot.slane %v1337, 7
      %v1358 = vrot.slane %v1357, 2
      %v1359 = vrot.slane %v1336, 7
      %v1360 = vrot.slane %v1359, 2
      %v1361 = vrot.slane %v1338, 7
      %v1362 = vrot.slane %v1361, 2
      %v1371 = vmax.f32 %v1312, %v1348
      %v1372 = vmax.f32 %v1320, %v1350
      %v1373 = vmax.f32 %v1319, %v1352
      %v1374 = vmax.f32 %v1321, %v1354
      %v1375 = vmax.f32 %v1329, %v1356
      %v1376 = vmax.f32 %v1337, %v1358
      %v1377 = vmax.f32 %v1336, %v1360
      %v1378 = vmax.f32 %v1338, %v1362
      %v1379 = vmax.f32 %v1371, %v1373
      %v1380 = vmax.f32 %v1372, %v1374
      %v1381 = vmax.f32 %v1375, %v1377
      %v1382 = vmax.f32 %v1376, %v1378
      %v1383 = vld [vmem:[%s2] sm:$0x1]
      %v1385 = vlaneseq
      %v1386 = vshrl.u32 %v1385, 7
      %v1387 = vsub.s32 0, %v1386
      %v1388 = vrot.slane %v1383, %v1387
      %v1390 = vunpack.c.l.s4 1983009808
      %v1391 = vunpack.c.0.s8 %v1390
      %v1392 = vlaneseq
      %v1393 = vshrl.u32 %v1392, 7
      %v1394 = vsub.s32 %v1391, %v1393
      %v1395 = vrot.slane %v1388, %v1394
      %v1396 = vrot.slane %v1395, 1
      %v1399 = vadd.f32 %v1379, %v1395
      %v1400 = vadd.f32 %v1380, %v1396
      %v1401 = vadd.f32 %v1381, %v1395
      %v1402 = vadd.f32 %v1382, %v1396
      %v1403 = vmax.f32 %v1399, 0.0
      %v1404 = vmax.f32 %v1400, 0.0
      %v1405 = vmax.f32 %v1401, 0.0
      %v1406 = vmax.f32 %v1402, 0.0
      %v1407 = vpack.c.bf16 %v1403, %v1403
      %v1408 = vpack.c.bf16 %v1404, %v1404
      %v1409 = vpack.c.bf16 %v1405, %v1405
      %v1410 = vpack.c.bf16 %v1406, %v1406
      %v1416 = vunpack.c.l.s4 1966171168
      %v1417 = vunpack.c.0.s8 %v1416
      %v1418 = vlaneseq
      %v1419 = vshrl.u32 %v1418, 7
      %v1420 = vsub.s32 %v1417, %v1419
      %v1421 = vrot.slane %v1407, %v1420
      %v1423 = vunpack.c.l.s4 1966171168
      %v1424 = vunpack.c.0.s8 %v1423
      %v1425 = vlaneseq
      %v1426 = vshrl.u32 %v1425, 7
      %v1427 = vsub.s32 %v1424, %v1426
      %v1428 = vrot.slane %v1421, %v1427
      %v1430 = vunpack.c.l.s4 1966171168
      %v1431 = vunpack.c.0.s8 %v1430
      %v1432 = vlaneseq
      %v1433 = vshrl.u32 %v1432, 7
      %v1434 = vsub.s32 %v1431, %v1433
      %v1435 = vrot.slane %v1408, %v1434
      %v1437 = vunpack.c.l.s4 1966171168
      %v1438 = vunpack.c.0.s8 %v1437
      %v1439 = vlaneseq
      %v1440 = vshrl.u32 %v1439, 7
      %v1441 = vsub.s32 %v1438, %v1440
      %v1442 = vrot.slane %v1435, %v1441
      %v1444 = vunpack.c.l.s4 1966171168
      %v1445 = vunpack.c.0.s8 %v1444
      %v1446 = vlaneseq
      %v1447 = vshrl.u32 %v1446, 7
      %v1448 = vsub.s32 %v1445, %v1447
      %v1449 = vrot.slane %v1409, %v1448
      %v1451 = vunpack.c.l.s4 1966171168
      %v1452 = vunpack.c.0.s8 %v1451
      %v1453 = vlaneseq
      %v1454 = vshrl.u32 %v1453, 7
      %v1455 = vsub.s32 %v1452, %v1454
      %v1456 = vrot.slane %v1449, %v1455
      %v1458 = vunpack.c.l.s4 1966171168
      %v1459 = vunpack.c.0.s8 %v1458
      %v1460 = vlaneseq
      %v1461 = vshrl.u32 %v1460, 7
      %v1462 = vsub.s32 %v1459, %v1461
      %v1463 = vrot.slane %v1410, %v1462
      %v1465 = vunpack.c.l.s4 1966171168
      %v1466 = vunpack.c.0.s8 %v1465
      %v1467 = vlaneseq
      %v1468 = vshrl.u32 %v1467, 7
      %v1469 = vsub.s32 %v1466, %v1468
      %v1470 = vrot.slane %v1463, %v1469
      %v1472 = vunpack.c.l.s4 1935823168
      %v1473 = vunpack.c.0.s8 %v1472
      %v1474 = vlaneseq
      %v1475 = vshrl.u32 %v1474, 7
      %v1476 = vsub.s32 %v1473, %v1475
      %v1477 = vrot.slane %v1428, %v1476
      %v1479 = vunpack.c.l.s4 1935823168
      %v1480 = vunpack.c.0.s8 %v1479
      %v1481 = vlaneseq
      %v1482 = vshrl.u32 %v1481, 7
      %v1483 = vsub.s32 %v1480, %v1482
      %v1484 = vrot.slane %v1477, %v1483
      %v1486 = vunpack.c.l.s4 1935823168
      %v1487 = vunpack.c.0.s8 %v1486
      %v1488 = vlaneseq
      %v1489 = vshrl.u32 %v1488, 7
      %v1490 = vsub.s32 %v1487, %v1489
      %v1491 = vrot.slane %v1442, %v1490
      %v1493 = vunpack.c.l.s4 1935823168
      %v1494 = vunpack.c.0.s8 %v1493
      %v1495 = vlaneseq
      %v1496 = vshrl.u32 %v1495, 7
      %v1497 = vsub.s32 %v1494, %v1496
      %v1498 = vrot.slane %v1491, %v1497
      %v1500 = vunpack.c.l.s4 1935823168
      %v1501 = vunpack.c.0.s8 %v1500
      %v1502 = vlaneseq
      %v1503 = vshrl.u32 %v1502, 7
      %v1504 = vsub.s32 %v1501, %v1503
      %v1505 = vrot.slane %v1456, %v1504
      %v1507 = vunpack.c.l.s4 1935823168
      %v1508 = vunpack.c.0.s8 %v1507
      %v1509 = vlaneseq
      %v1510 = vshrl.u32 %v1509, 7
      %v1511 = vsub.s32 %v1508, %v1510
      %v1512 = vrot.slane %v1505, %v1511
      %v1514 = vunpack.c.l.s4 1935823168
      %v1515 = vunpack.c.0.s8 %v1514
      %v1516 = vlaneseq
      %v1517 = vshrl.u32 %v1516, 7
      %v1518 = vsub.s32 %v1515, %v1517
      %v1519 = vrot.slane %v1470, %v1518
      %v1521 = vunpack.c.l.s4 1935823168
      %v1522 = vunpack.c.0.s8 %v1521
      %v1523 = vlaneseq
      %v1524 = vshrl.u32 %v1523, 7
      %v1525 = vsub.s32 %v1522, %v1524
      %v1526 = vrot.slane %v1519, %v1525
      %v1527 = vunpack.c.l.b16 %v1484
      %v1528 = vunpack.c.l.b16 %v1498
      %v1529 = vunpack.c.l.b16 %v1512
      %v1530 = vunpack.c.l.b16 %v1526
      %v1531 = vrot.slane %v1528, 7
      %vm1532 = vcmask 1041409
      %v1533 = vsel %vm1532, %v1531, %v1527
      %v1534 = vrot.slane %v1530, 7
      %v1535 = vsel %vm1532, %v1534, %v1529
      %v1536 = vpack.c.b16 %v1533, %v1533
      %v1537 = vpack.c.b16 %v1535, %v1535
      %v1539 = vunpack.c.l.s4 1966171168
      %v1540 = vunpack.c.0.s8 %v1539
      %v1541 = vlaneseq
      %v1542 = vshrl.u32 %v1541, 7
      %v1543 = vsub.s32 %v1540, %v1542
      %v1544 = vrot.slane %v1536, %v1543
      %v1546 = vunpack.c.l.s4 1966171168
      %v1547 = vunpack.c.0.s8 %v1546
      %v1548 = vlaneseq
      %v1549 = vshrl.u32 %v1548, 7
      %v1550 = vsub.s32 %v1547, %v1549
      %v1551 = vrot.slane %v1544, %v1550
      %v1553 = vunpack.c.l.s4 1966171168
      %v1554 = vunpack.c.0.s8 %v1553
      %v1555 = vlaneseq
      %v1556 = vshrl.u32 %v1555, 7
      %v1557 = vsub.s32 %v1554, %v1556
      %v1558 = vrot.slane %v1537, %v1557
      %v1560 = vunpack.c.l.s4 1966171168
      %v1561 = vunpack.c.0.s8 %v1560
      %v1562 = vlaneseq
      %v1563 = vshrl.u32 %v1562, 7
      %v1564 = vsub.s32 %v1561, %v1563
      %v1565 = vrot.slane %v1558, %v1564
      %1568 = vst [vmem:[%s168] sm:$0x1] %v1551
      %1569 = vst [vmem:[%s168 + $0x1] sm:$0x1] %v1565
      %p1570 = scmp.lt.s32.totalorder %s14, 1
      %s1571 = scalar_select %p1570, %s14, 1
      %s1572 = smul.addr %s1571, 2
      %s1573 = scalar_lea.vmem %s3, %s1572
      // Predicated region
      $region33: #{simple_cnn_forward.6} parent=31 // pred_check
        %p1574 = pneg %p100
      $region34: #{simple_cnn_forward.6} parent=31 // pred_check_branch
        %1576 = sbr.rel (%p1574) target = $region36
      $region35: #{simple_cnn_forward.6} parent=31 // pred_region
        _
      $region36: #{simple_cnn_forward.6} parent=31 // pred_fallthru
        _
    $region32: #{simple_cnn_forward.6} parent=5 // pred_fallthru
      _
    %p1577 = scmp.le.s32.totalorder 2, %s9
    // Predicated region
    $region37: #{simple_cnn_forward.6} parent=5 // pred_check
      %p1578 = pneg %p1577
    $region38: #{simple_cnn_forward.6} parent=5 // pred_check_branch
      %1580 = sbr.rel (%p1578) target = $region40
    $region39: #{simple_cnn_forward.6} parent=5 // pred_region
      %s1581 = ssub.s32 %s9, 2
      // Predicated region
      $region41: #{simple_cnn_forward.6} parent=39 // pred_check
        %p1582 = pneg %p106
      $region42: #{simple_cnn_forward.6} parent=39 // pred_check_branch
        %1584 = sbr.rel (%p1582) target = $region44
      $region43: #{simple_cnn_forward.6} parent=39 // pred_region
        %p1585 = scmp.lt.s32.totalorder %s15, 1
        %s1586 = scalar_select %p1585, %s15, 1
        %s1587 = smul.addr %s1586, 2
        %s1588 = scalar_lea.vmem %s3, %s1587
      $region44: #{simple_cnn_forward.6} parent=39 // pred_fallthru
        _
    $region40: #{simple_cnn_forward.6} parent=5 // pred_fallthru
      _
  $region6: #{simple_cnn_forward.6} parent=0 // loop_footer
    %s13 = sadd.s32 1, %s9
  $region7: #{simple_cnn_forward.6} parent=0 // loop_footer_branch
    %8 = sbr.rel target = $region3
  $region8: #{simple_cnn_forward.6} parent=0 // loop_exit
    _

// kernel: simple_cnn_forward.5
$region0: #{simple_cnn_forward.5}
  #allocation0 [shape = 'u32[]', space=smem, size = 0x4, offset = 0x4, fixed_abs, tag = 'smem constant byte address 0x4 - core index']
  #allocation1 [shape = 'u32[144,128]{1,0:T(1,128)}', space=vmem, size = 0x12000, scoped, tag = 'internal scratch']
  #allocation2 [shape = 'bf16[8,8,1152]{2,1,0:T(8,128)(2,1)}', space=vmem, size = 0x24000, scoped, tag = 'scratch operand']
  %s0 = inlined_call_operand.vmem [shape: bf16[2,10,10,128], index: 0, kind: input, shape index: {}]
  %s1 = inlined_call_operand.vmem [shape: bf16[1152,128], index: 1, kind: input, shape index: {}]
  %s2 = inlined_call_operand.vmem [shape: f32[1,128], index: 2, kind: input, shape index: {}]
  %s3 = inlined_call_operand.vmem [shape: bf16[2,4,4,128], index: 3, kind: output, shape index: {}]
  %s4 = sld [smem:[#allocation0]]
  $region45: #{simple_cnn_forward.5} parent=0
    _
  %s6 = ssub.s32 1, %s4
  %s7 = scalar_select 0, %s6, %s4
  loop: start=0, step=1, limit=4
  $region2: #{simple_cnn_forward.5} parent=0 // loop_pre_header
    _
  $region3: #{simple_cnn_forward.5} parent=0 // loop_header
    %s9 = sphi 0, %s13
    %p10 = scmp.ge.s32.totalorder %s9, 4
    %s19 = sphi 0, %s21
    %s22 = sphi 0, %s19
    %s23 = sphi 0, %s22
    %s39 = sphi 0, %s23
    %s43 = sphi 0, %s43
    %s45 = sphi 0, %s43
    %s46 = sphi 0, %s45
    %s60 = sphi 0, %s46
    %s64 = sphi 0, %s64
    %s66 = sphi 0, %s64
    %s67 = sphi 0, %s66
    %s81 = sphi 0, %s67
    %s87 = sphi 0, %s89
    %s90 = sphi 0, %s87
    %s91 = sphi 0, %s90
    %s107 = sphi 0, %s91
  $region4: #{simple_cnn_forward.5} parent=0 // loop_header_branch
    %12 = sbr.rel (%p10) target = $region8
  $region5: #{simple_cnn_forward.5} parent=0 // loop_body
    %s14 = ssub.s32 %s9, 1
    %s15 = ssub.s32 %s9, 2
    %s16 = sadd.s32 %s9, 1
    %s17 = ssub.s32 %s9, %s16
    %p18 = scmp.eq.s32.totalorder %s17, 0
    %s20 = sadd.s32 %s19, 1
    %s21 = scalar_select %p18, %s19, %s20
    %p24 = pneg %p18
    %p25 = scmp.eq.s32.totalorder %s9, 1
    %p26 = por %p24, %p25
    %p27 = scmp.ne.s32.totalorder %s19, %s22
    %p28 = scmp.eq.s32.totalorder %s9, 0
    %p29 = por %p27, %p28
    %p30 = scmp.ne.s32.totalorder %s19, %s22
    %p31 = scmp.eq.s32.totalorder %s14, 1
    %p32 = por %p30, %p31
    %p33 = scmp.ne.s32.totalorder %s22, %s23
    %p34 = scmp.eq.s32.totalorder %s14, 0
    %p35 = por %p33, %p34
    %p36 = scmp.ne.s32.totalorder %s22, %s23
    %p37 = scmp.eq.s32.totalorder %s15, 1
    %p38 = por %p36, %p37
    %p40 = scmp.ne.s32.totalorder %s23, %s39
    %p41 = scmp.eq.s32.totalorder %s15, 0
    %p42 = por %p40, %p41
    %s44 = sadd.s32 %s43, 1
    %p47 = scmp.eq.s32.totalorder %s9, 1
    %p48 = scmp.ne.s32.totalorder %s43, %s45
    %p49 = scmp.eq.s32.totalorder %s9, 0
    %p50 = por %p48, %p49
    %p51 = scmp.ne.s32.totalorder %s43, %s45
    %p52 = scmp.eq.s32.totalorder %s14, 1
    %p53 = por %p51, %p52
    %p54 = scmp.ne.s32.totalorder %s45, %s46
    %p55 = scmp.eq.s32.totalorder %s14, 0
    %p56 = por %p54, %p55
    %p57 = scmp.ne.s32.totalorder %s45, %s46
    %p58 = scmp.eq.s32.totalorder %s15, 1
    %p59 = por %p57, %p58
    %p61 = scmp.ne.s32.totalorder %s46, %s60
    %p62 = scmp.eq.s32.totalorder %s15, 0
    %p63 = por %p61, %p62
    %s65 = sadd.s32 %s64, 1
    %p68 = scmp.eq.s32.totalorder %s9, 1
    %p69 = scmp.ne.s32.totalorder %s64, %s66
    %p70 = scmp.eq.s32.totalorder %s9, 0
    %p71 = por %p69, %p70
    %p72 = scmp.ne.s32.totalorder %s64, %s66
    %p73 = scmp.eq.s32.totalorder %s14, 1
    %p74 = por %p72, %p73
    %p75 = scmp.ne.s32.totalorder %s66, %s67
    %p76 = scmp.eq.s32.totalorder %s14, 0
    %p77 = por %p75, %p76
    %p78 = scmp.ne.s32.totalorder %s66, %s67
    %p79 = scmp.eq.s32.totalorder %s15, 1
    %p80 = por %p78, %p79
    %p82 = scmp.ne.s32.totalorder %s67, %s81
    %p83 = scmp.eq.s32.totalorder %s15, 0
    %p84 = por %p82, %p83
    %s85 = ssub.s32 %s9, %s16
    %p86 = scmp.eq.s32.totalorder %s85, 0
    %s88 = sadd.s32 %s87, 1
    %s89 = scalar_select %p86, %s87, %s88
    %p92 = pneg %p86
    %p93 = scmp.eq.s32.totalorder %s9, 1
    %p94 = por %p92, %p93
    %p95 = scmp.ne.s32.totalorder %s87, %s90
    %p96 = scmp.eq.s32.totalorder %s9, 0
    %p97 = por %p95, %p96
    %p98 = scmp.ne.s32.totalorder %s87, %s90
    %p99 = scmp.eq.s32.totalorder %s14, 1
    %p100 = por %p98, %p99
    %p101 = scmp.ne.s32.totalorder %s90, %s91
    %p102 = scmp.eq.s32.totalorder %s14, 0
    %p103 = por %p101, %p102
    %p104 = scmp.ne.s32.totalorder %s90, %s91
    %p105 = scmp.eq.s32.totalorder %s15, 1
    %p106 = por %p104, %p105
    %p108 = scmp.ne.s32.totalorder %s91, %s107
    %p109 = scmp.eq.s32.totalorder %s15, 0
    %p110 = por %p108, %p109
    %p111 = scmp.le.s32.totalorder 1, %s9
    %p112 = scmp.lt.s32.totalorder %s9, 3
    %p113 = pnand %p111, %p112
    %p114 = pneg %p113
    // Predicated region
    $region9: #{simple_cnn_forward.5} parent=5 // pred_check
      _
    $region10: #{simple_cnn_forward.5} parent=5 // pred_check_branch
      %116 = sbr.rel (%p113) target = $region12
    $region11: #{simple_cnn_forward.5} parent=5 // pred_region
      %s117 = ssub.s32 %s9, 1
      // Predicated region
      $region13: #{simple_cnn_forward.5} parent=11 // pred_check
        %p118 = pneg %p56
      $region14: #{simple_cnn_forward.5} parent=11 // pred_check_branch
        %120 = sbr.rel (%p118) target = $region16
      $region15: #{simple_cnn_forward.5} parent=11 // pred_region
        _
      $region16: #{simple_cnn_forward.5} parent=11 // pred_fallthru
        _
      // Predicated region
      $region17: #{simple_cnn_forward.5} parent=11 // pred_check
        %p121 = pneg %p77
      $region18: #{simple_cnn_forward.5} parent=11 // pred_check_branch
        %123 = sbr.rel (%p121) target = $region20
      $region19: #{simple_cnn_forward.5} parent=11 // pred_region
        _
      $region20: #{simple_cnn_forward.5} parent=11 // pred_fallthru
        _
    $region12: #{simple_cnn_forward.5} parent=5 // pred_fallthru
      _
    %p124 = scmp.lt.s32.totalorder %s9, 2
    // Predicated region
    $region21: #{simple_cnn_forward.5} parent=5 // pred_check
      %p125 = pneg %p124
    $region22: #{simple_cnn_forward.5} parent=5 // pred_check_branch
      %127 = sbr.rel (%p125) target = $region24
    $region23: #{simple_cnn_forward.5} parent=5 // pred_region
      // Predicated region
      $region25: #{simple_cnn_forward.5} parent=23 // pred_check
        %p128 = pneg %p29
      $region26: #{simple_cnn_forward.5} parent=23 // pred_check_branch
        %130 = sbr.rel (%p128) target = $region28
      $region27: #{simple_cnn_forward.5} parent=23 // pred_region
        %p131 = scmp.lt.s32.totalorder %s9, 1
        %s132 = scalar_select %p131, %s9, 1
        %s133 = smul.addr %s132, 20
        %s134 = smul.addr %s133, 4
        %s135 = scalar_lea.vmem %s0, %s134
      $region28: #{simple_cnn_forward.5} parent=23 // pred_fallthru
        _
    $region24: #{simple_cnn_forward.5} parent=5 // pred_fallthru
      _
    %p136 = scmp.le.s32.totalorder 1, %s9
    %p137 = scmp.lt.s32.totalorder %s9, 3
    %p138 = pnand %p136, %p137
    %p139 = pneg %p138
    // Predicated region
    $region29: #{simple_cnn_forward.5} parent=5 // pred_check
      _
    $region30: #{simple_cnn_forward.5} parent=5 // pred_check_branch
      %141 = sbr.rel (%p138) target = $region32
    $region31: #{simple_cnn_forward.5} parent=5 // pred_region
      %s142 = ssub.s32 %s9, 1
      %p143 = scmp.lt.s32.totalorder %s14, 1
      %s144 = scalar_select %p143, %s14, 1
      %s145 = smul.addr %s144, 20
      %s146 = smul.addr %s145, 4
      %s147 = scalar_lea.vmem %s0, %s146
      %p148 = pneg %p35
      %p149 = pneg %p32
      %p150 = pneg %p56
      %p151 = pneg %p53
      %p152 = pneg %p77
      %p153 = pneg %p74
      %p154 = pneg %p103
      %p155 = pneg %p100
      %p156 = scmp.lt.s32.totalorder %s14, 1
      %s157 = scalar_select %p156, %s14, 1
      %s158 = smul.addr %s157, 4
      %s159 = smul.addr %s158, 2
      %s160 = scalar_lea.vmem %s3, %s159
      %p161 = scmp.lt.s32.totalorder %s14, 1
      %s162 = scalar_select %p161, %s14, 1
      %s163 = smul.addr %s162, 20
      %s164 = smul.addr %s163, 4
      %s165 = scalar_lea.vmem %s0, %s164
      %p166 = scmp.lt.s32.totalorder %s14, 1
      %s167 = scalar_select %p166, %s14, 1
      %s168 = smul.addr %s167, 4
      %s169 = smul.addr %s168, 2
      %s170 = scalar_lea.vmem %s3, %s169
      %v172 = vld [vmem:[%s165] sm:$0xf]
      %v173 = vld [vmem:[%s165 + $0x4] sm:$0x1]
      %v174 = vld [vmem:[%s165 + $0x8] sm:$0xf]
      %v175 = vld [vmem:[%s165 + $0xc] sm:$0x1]
      %v176 = vld [vmem:[%s165 + $0x10] sm:$0xf]
      %v177 = vld [vmem:[%s165 + $0x14] sm:$0x1]
      %v178 = vld [vmem:[%s165 + $0x18] sm:$0xf]
      %v179 = vld [vmem:[%s165 + $0x1c] sm:$0x1]
      %v180 = vld [vmem:[%s165 + $0x20] sm:$0xf]
      %v181 = vld [vmem:[%s165 + $0x24] sm:$0x1]
      %v182 = vld [vmem:[%s165 + $0x28] sm:$0xf]
      %v183 = vld [vmem:[%s165 + $0x2c] sm:$0x1]
      %v184 = vld [vmem:[%s165 + $0x30] sm:$0xf]
      %v185 = vld [vmem:[%s165 + $0x34] sm:$0x1]
      %v186 = vld [vmem:[%s165 + $0x38] sm:$0xf]
      %v187 = vld [vmem:[%s165 + $0x3c] sm:$0x1]
      %v188 = vld [vmem:[%s165 + $0x40] sm:$0xf]
      %v189 = vld [vmem:[%s165 + $0x44] sm:$0x1]
      %v190 = vld [vmem:[%s165 + $0x48] sm:$0xf]
      %v191 = vld [vmem:[%s165 + $0x4c] sm:$0x1]
      %192 = vst [vmem:[#allocation2] sm:$0xf] %v172
      %193 = vst [vmem:[#allocation2 + $0x24] sm:$0xf] %v174
      %194 = vst [vmem:[#allocation2 + $0x48] sm:$0xf] %v176
      %195 = vst [vmem:[#allocation2 + $0x6c] sm:$0xf] %v178
      %196 = vst [vmem:[#allocation2 + $0x90] sm:$0xf] %v180
      %197 = vst [vmem:[#allocation2 + $0xb4] sm:$0xf] %v182
      %198 = vst [vmem:[#allocation2 + $0xd8] sm:$0xf] %v184
      %199 = vst [vmem:[#allocation2 + $0xfc] sm:$0xf] %v186
      %vm200 = vsmask.f32 3328
      %vm201 = vsmask.f32 7440
      %vm202 = vmor %vm200, %vm201
      %v204 = vshrl.u32 %v172, 16
      %v206 = vrot.slane %v204, 4
      %v207 = vshll.u32 %v172, 16
      %v209 = vrot.slane %v207, 5
      %v210 = vor.u32 %v206, %v209
      %v211 = vrot.slane %v210, 4
      %v213 = vshll.u32 %v173, 16
      %v215 = vrot.slane %v213, 5
      %v216 = vsel %vm202, %v211, %v215
      %v218 = vshrl.u32 %v174, 16
      %v220 = vrot.slane %v218, 4
      %v221 = vshll.u32 %v174, 16
      %v223 = vrot.slane %v221, 5
      %v224 = vor.u32 %v220, %v223
      %v225 = vrot.slane %v224, 4
      %v227 = vshll.u32 %v175, 16
      %v229 = vrot.slane %v227, 5
      %v230 = vsel %vm202, %v225, %v229
      %v232 = vshrl.u32 %v176, 16
      %v234 = vrot.slane %v232, 4
      %v235 = vshll.u32 %v176, 16
      %v237 = vrot.slane %v235, 5
      %v238 = vor.u32 %v234, %v237
      %v239 = vrot.slane %v238, 4
      %v241 = vshll.u32 %v177, 16
      %v243 = vrot.slane %v241, 5
      %v244 = vsel %vm202, %v239, %v243
      %v246 = vshrl.u32 %v178, 16
      %v248 = vrot.slane %v246, 4
      %v249 = vshll.u32 %v178, 16
      %v251 = vrot.slane %v249, 5
      %v252 = vor.u32 %v248, %v251
      %v253 = vrot.slane %v252, 4
      %v255 = vshll.u32 %v179, 16
      %v257 = vrot.slane %v255, 5
      %v258 = vsel %vm202, %v253, %v257
      %v260 = vshrl.u32 %v180, 16
      %v262 = vrot.slane %v260, 4
      %v263 = vshll.u32 %v180, 16
      %v265 = vrot.slane %v263, 5
      %v266 = vor.u32 %v262, %v265
      %v267 = vrot.slane %v266, 4
      %v269 = vshll.u32 %v181, 16
      %v271 = vrot.slane %v269, 5
      %v272 = vsel %vm202, %v267, %v271
      %v274 = vshrl.u32 %v182, 16
      %v276 = vrot.slane %v274, 4
      %v277 = vshll.u32 %v182, 16
      %v279 = vrot.slane %v277, 5
      %v280 = vor.u32 %v276, %v279
      %v281 = vrot.slane %v280, 4
      %v283 = vshll.u32 %v183, 16
      %v285 = vrot.slane %v283, 5
      %v286 = vsel %vm202, %v281, %v285
      %v288 = vshrl.u32 %v184, 16
      %v290 = vrot.slane %v288, 4
      %v291 = vshll.u32 %v184, 16
      %v293 = vrot.slane %v291, 5
      %v294 = vor.u32 %v290, %v293
      %v295 = vrot.slane %v294, 4
      %v297 = vshll.u32 %v185, 16
      %v299 = vrot.slane %v297, 5
      %v300 = vsel %vm202, %v295, %v299
      %v302 = vshrl.u32 %v186, 16
      %v304 = vrot.slane %v302, 4
      %v305 = vshll.u32 %v186, 16
      %v307 = vrot.slane %v305, 5
      %v308 = vor.u32 %v304, %v307
      %v309 = vrot.slane %v308, 4
      %v311 = vshll.u32 %v187, 16
      %v313 = vrot.slane %v311, 5
      %v314 = vsel %vm202, %v309, %v313
      %323 = vst [vmem:[#allocation2 + $0x4] sm:$0xf] %v216
      %324 = vst [vmem:[#allocation2 + $0x28] sm:$0xf] %v230
      %325 = vst [vmem:[#allocation2 + $0x4c] sm:$0xf] %v244
      %326 = vst [vmem:[#allocation2 + $0x70] sm:$0xf] %v258
      %327 = vst [vmem:[#allocation2 + $0x94] sm:$0xf] %v272
      %328 = vst [vmem:[#allocation2 + $0xb8] sm:$0xf] %v286
      %329 = vst [vmem:[#allocation2 + $0xdc] sm:$0xf] %v300
      %330 = vst [vmem:[#allocation2 + $0x100] sm:$0xf] %v314
      %vm347 = vcmask 1042432
      %vm348 = vcmask 1046532
      %vm349 = vmor %vm347, %vm348
      %v350 = vrot.slane %v172, 5
      %v351 = vrot.slane %v350, 4
      %v352 = vrot.slane %v173, 5
      %v353 = vsel %vm349, %v351, %v352
      %v354 = vrot.slane %v174, 5
      %v355 = vrot.slane %v354, 4
      %v356 = vrot.slane %v175, 5
      %v357 = vsel %vm349, %v355, %v356
      %v358 = vrot.slane %v176, 5
      %v359 = vrot.slane %v358, 4
      %v360 = vrot.slane %v177, 5
      %v361 = vsel %vm349, %v359, %v360
      %v362 = vrot.slane %v178, 5
      %v363 = vrot.slane %v362, 4
      %v364 = vrot.slane %v179, 5
      %v365 = vsel %vm349, %v363, %v364
      %v366 = vrot.slane %v180, 5
      %v367 = vrot.slane %v366, 4
      %v368 = vrot.slane %v181, 5
      %v369 = vsel %vm349, %v367, %v368
      %v370 = vrot.slane %v182, 5
      %v371 = vrot.slane %v370, 4
      %v372 = vrot.slane %v183, 5
      %v373 = vsel %vm349, %v371, %v372
      %v374 = vrot.slane %v184, 5
      %v375 = vrot.slane %v374, 4
      %v376 = vrot.slane %v185, 5
      %v377 = vsel %vm349, %v375, %v376
      %v378 = vrot.slane %v186, 5
      %v379 = vrot.slane %v378, 4
      %v380 = vrot.slane %v187, 5
      %v381 = vsel %vm349, %v379, %v380
      %390 = vst [vmem:[#allocation2 + $0x8] sm:$0xf] %v353
      %391 = vst [vmem:[#allocation2 + $0x2c] sm:$0xf] %v357
      %392 = vst [vmem:[#allocation2 + $0x50] sm:$0xf] %v361
      %393 = vst [vmem:[#allocation2 + $0x74] sm:$0xf] %v365
      %394 = vst [vmem:[#allocation2 + $0x98] sm:$0xf] %v369
      %395 = vst [vmem:[#allocation2 + $0xbc] sm:$0xf] %v373
      %396 = vst [vmem:[#allocation2 + $0xe0] sm:$0xf] %v377
      %397 = vst [vmem:[#allocation2 + $0x104] sm:$0xf] %v381
      %398 = vst [vmem:[#allocation2 + $0xc] sm:$0xf] %v174
      %399 = vst [vmem:[#allocation2 + $0x30] sm:$0xf] %v176
      %400 = vst [vmem:[#allocation2 + $0x54] sm:$0xf] %v178
      %401 = vst [vmem:[#allocation2 + $0x78] sm:$0xf] %v180
      %402 = vst [vmem:[#allocation2 + $0x9c] sm:$0xf] %v182
      %403 = vst [vmem:[#allocation2 + $0xc0] sm:$0xf] %v184
      %404 = vst [vmem:[#allocation2 + $0xe4] sm:$0xf] %v186
      %405 = vst [vmem:[#allocation2 + $0x108] sm:$0xf] %v188
      %v407 = vshrl.u32 %v188, 16
      %v409 = vrot.slane %v407, 4
      %v410 = vshll.u32 %v188, 16
      %v412 = vrot.slane %v410, 5
      %v413 = vor.u32 %v409, %v412
      %v414 = vrot.slane %v413, 4
      %v416 = vshll.u32 %v189, 16
      %v418 = vrot.slane %v416, 5
      %v419 = vsel %vm202, %v414, %v418
      %421 = vst [vmem:[#allocation2 + $0x10] sm:$0xf] %v230
      %422 = vst [vmem:[#allocation2 + $0x34] sm:$0xf] %v244
      %423 = vst [vmem:[#allocation2 + $0x58] sm:$0xf] %v258
      %424 = vst [vmem:[#allocation2 + $0x7c] sm:$0xf] %v272
      %425 = vst [vmem:[#allocation2 + $0xa0] sm:$0xf] %v286
      %426 = vst [vmem:[#allocation2 + $0xc4] sm:$0xf] %v300
      %427 = vst [vmem:[#allocation2 + $0xe8] sm:$0xf] %v314
      %428 = vst [vmem:[#allocation2 + $0x10c] sm:$0xf] %v419
      %v431 = vrot.slane %v188, 5
      %v432 = vrot.slane %v431, 4
      %v433 = vrot.slane %v189, 5
      %v434 = vsel %vm349, %v432, %v433
      %436 = vst [vmem:[#allocation2 + $0x14] sm:$0xf] %v357
      %437 = vst [vmem:[#allocation2 + $0x38] sm:$0xf] %v361
      %438 = vst [vmem:[#allocation2 + $0x5c] sm:$0xf] %v365
      %439 = vst [vmem:[#allocation2 + $0x80] sm:$0xf] %v369
      %440 = vst [vmem:[#allocation2 + $0xa4] sm:$0xf] %v373
      %441 = vst [vmem:[#allocation2 + $0xc8] sm:$0xf] %v377
      %442 = vst [vmem:[#allocation2 + $0xec] sm:$0xf] %v381
      %443 = vst [vmem:[#allocation2 + $0x110] sm:$0xf] %v434
      %444 = vst [vmem:[#allocation2 + $0x18] sm:$0xf] %v176
      %445 = vst [vmem:[#allocation2 + $0x3c] sm:$0xf] %v178
      %446 = vst [vmem:[#allocation2 + $0x60] sm:$0xf] %v180
      %447 = vst [vmem:[#allocation2 + $0x84] sm:$0xf] %v182
      %448 = vst [vmem:[#allocation2 + $0xa8] sm:$0xf] %v184
      %449 = vst [vmem:[#allocation2 + $0xcc] sm:$0xf] %v186
      %450 = vst [vmem:[#allocation2 + $0xf0] sm:$0xf] %v188
      %451 = vst [vmem:[#allocation2 + $0x114] sm:$0xf] %v190
      %v453 = vshrl.u32 %v190, 16
      %v455 = vrot.slane %v453, 4
      %v456 = vshll.u32 %v190, 16
      %v458 = vrot.slane %v456, 5
      %v459 = vor.u32 %v455, %v458
      %v460 = vrot.slane %v459, 4
      %v462 = vshll.u32 %v191, 16
      %v464 = vrot.slane %v462, 5
      %v465 = vsel %vm202, %v460, %v464
      %467 = vst [vmem:[#allocation2 + $0x1c] sm:$0xf] %v244
      %468 = vst [vmem:[#allocation2 + $0x40] sm:$0xf] %v258
      %469 = vst [vmem:[#allocation2 + $0x64] sm:$0xf] %v272
      %470 = vst [vmem:[#allocation2 + $0x88] sm:$0xf] %v286
      %471 = vst [vmem:[#allocation2 + $0xac] sm:$0xf] %v300
      %472 = vst [vmem:[#allocation2 + $0xd0] sm:$0xf] %v314
      %473 = vst [vmem:[#allocation2 + $0xf4] sm:$0xf] %v419
      %474 = vst [vmem:[#allocation2 + $0x118] sm:$0xf] %v465
      %v477 = vrot.slane %v190, 5
      %v478 = vrot.slane %v477, 4
      %v479 = vrot.slane %v191, 5
      %v480 = vsel %vm349, %v478, %v479
      %482 = vst [vmem:[#allocation2 + $0x20] sm:$0xf] %v361
      %483 = vst [vmem:[#allocation2 + $0x44] sm:$0xf] %v365
      %484 = vst [vmem:[#allocation2 + $0x68] sm:$0xf] %v369
      %485 = vst [vmem:[#allocation2 + $0x8c] sm:$0xf] %v373
      %486 = vst [vmem:[#allocation2 + $0xb0] sm:$0xf] %v377
      %487 = vst [vmem:[#allocation2 + $0xd4] sm:$0xf] %v381
      %488 = vst [vmem:[#allocation2 + $0xf8] sm:$0xf] %v434
      %489 = vst [vmem:[#allocation2 + $0x11c] sm:$0xf] %v480
      %v490 = vld [vmem:[#allocation2] sm:$0xff]
      %v491 = vld [vmem:[#allocation2 + $0x8] sm:$0xff]
      %v492 = vld [vmem:[#allocation2 + $0x10] sm:$0xff]
      %v493 = vld [vmem:[#allocation2 + $0x18] sm:$0xff]
      %v494 = vld [vmem:[#allocation2 + $0x20] sm:$0xf]
      %v495 = vld [vmem:[#allocation2 + $0x24] sm:$0xff]
      %v496 = vld [vmem:[#allocation2 + $0x2c] sm:$0xff]
      %v497 = vld [vmem:[#allocation2 + $0x34] sm:$0xff]
      %v498 = vld [vmem:[#allocation2 + $0x3c] sm:$0xff]
      %v499 = vld [vmem:[#allocation2 + $0x44] sm:$0xf]
      %v500 = vld [vmem:[#allocation2 + $0x48] sm:$0xff]
      %v501 = vld [vmem:[#allocation2 + $0x50] sm:$0xff]
      %v502 = vld [vmem:[#allocation2 + $0x58] sm:$0xff]
      %v503 = vld [vmem:[#allocation2 + $0x60] sm:$0xff]
      %v504 = vld [vmem:[#allocation2 + $0x68] sm:$0xf]
      %v505 = vld [vmem:[#allocation2 + $0x6c] sm:$0xff]
      %v506 = vld [vmem:[#allocation2 + $0x74] sm:$0xff]
      %v507 = vld [vmem:[#allocation2 + $0x7c] sm:$0xff]
      %v508 = vld [vmem:[#allocation2 + $0x84] sm:$0xff]
      %v509 = vld [vmem:[#allocation2 + $0x8c] sm:$0xf]
      %v510 = vld [vmem:[#allocation2 + $0x90] sm:$0xff]
      %v511 = vld [vmem:[#allocation2 + $0x98] sm:$0xff]
      %v512 = vld [vmem:[#allocation2 + $0xa0] sm:$0xff]
      %v513 = vld [vmem:[#allocation2 + $0xa8] sm:$0xff]
      %v514 = vld [vmem:[#allocation2 + $0xb0] sm:$0xf]
      %v515 = vld [vmem:[#allocation2 + $0xb4] sm:$0xff]
      %v516 = vld [vmem:[#allocation2 + $0xbc] sm:$0xff]
      %v517 = vld [vmem:[#allocation2 + $0xc4] sm:$0xff]
      %v518 = vld [vmem:[#allocation2 + $0xcc] sm:$0xff]
      %v519 = vld [vmem:[#allocation2 + $0xd4] sm:$0xf]
      %v520 = vld [vmem:[#allocation2 + $0xd8] sm:$0xff]
      %v521 = vld [vmem:[#allocation2 + $0xe0] sm:$0xff]
      %v522 = vld [vmem:[#allocation2 + $0xe8] sm:$0xff]
      %v523 = vld [vmem:[#allocation2 + $0xf0] sm:$0xff]
      %v524 = vld [vmem:[#allocation2 + $0xf8] sm:$0xf]
      %v525 = vld [vmem:[#allocation2 + $0xfc] sm:$0xff]
      %v526 = vld [vmem:[#allocation2 + $0x104] sm:$0xff]
      %v527 = vld [vmem:[#allocation2 + $0x10c] sm:$0xff]
      %v528 = vld [vmem:[#allocation2 + $0x114] sm:$0xff]
      %v529 = vld [vmem:[#allocation2 + $0x11c] sm:$0xf]
      %v530 = vld [vmem:[%s1] sm:$0xf]
      %v531 = vld [vmem:[%s1 + $0x4] sm:$0xf]
      %v532 = vld [vmem:[%s1 + $0x8] sm:$0xf]
      %v533 = vld [vmem:[%s1 + $0xc] sm:$0xf]
      %v534 = vld [vmem:[%s1 + $0x10] sm:$0xf]
      %v535 = vld [vmem:[%s1 + $0x14] sm:$0xf]
      %v536 = vld [vmem:[%s1 + $0x18] sm:$0xf]
      %v537 = vld [vmem:[%s1 + $0x1c] sm:$0xf]
      %v538 = vld [vmem:[%s1 + $0x20] sm:$0xf]
      %v539 = vld [vmem:[%s1 + $0x24] sm:$0xf]
      %v540 = vld [vmem:[%s1 + $0x28] sm:$0xf]
      %v541 = vld [vmem:[%s1 + $0x2c] sm:$0xf]
      %v542 = vld [vmem:[%s1 + $0x30] sm:$0xf]
      %v543 = vld [vmem:[%s1 + $0x34] sm:$0xf]
      %v544 = vld [vmem:[%s1 + $0x38] sm:$0xf]
      %v545 = vld [vmem:[%s1 + $0x3c] sm:$0xf]
      %v546 = vld [vmem:[%s1 + $0x40] sm:$0xf]
      %v547 = vld [vmem:[%s1 + $0x44] sm:$0xf]
      %v548 = vld [vmem:[%s1 + $0x48] sm:$0xf]
      %v549 = vld [vmem:[%s1 + $0x4c] sm:$0xf]
      %v550 = vld [vmem:[%s1 + $0x50] sm:$0xf]
      %v551 = vld [vmem:[%s1 + $0x54] sm:$0xf]
      %v552 = vld [vmem:[%s1 + $0x58] sm:$0xf]
      %v553 = vld [vmem:[%s1 + $0x5c] sm:$0xf]
      %v554 = vld [vmem:[%s1 + $0x60] sm:$0xf]
      %v555 = vld [vmem:[%s1 + $0x64] sm:$0xf]
      %v556 = vld [vmem:[%s1 + $0x68] sm:$0xf]
      %v557 = vld [vmem:[%s1 + $0x6c] sm:$0xf]
      %v558 = vld [vmem:[%s1 + $0x70] sm:$0xf]
      %v559 = vld [vmem:[%s1 + $0x74] sm:$0xf]
      %v560 = vld [vmem:[%s1 + $0x78] sm:$0xf]
      %v561 = vld [vmem:[%s1 + $0x7c] sm:$0xf]
      %v562 = vld [vmem:[%s1 + $0x80] sm:$0xf]
      %v563 = vld [vmem:[%s1 + $0x84] sm:$0xf]
      %v564 = vld [vmem:[%s1 + $0x88] sm:$0xf]
      %v565 = vld [vmem:[%s1 + $0x8c] sm:$0xf]
      %v566 = vld [vmem:[%s1 + $0x90] sm:$0xf]
      %v567 = vld [vmem:[%s1 + $0x94] sm:$0xf]
      %v568 = vld [vmem:[%s1 + $0x98] sm:$0xf]
      %v569 = vld [vmem:[%s1 + $0x9c] sm:$0xf]
      %v570 = vld [vmem:[%s1 + $0xa0] sm:$0xf]
      %v571 = vld [vmem:[%s1 + $0xa4] sm:$0xf]
      %v572 = vld [vmem:[%s1 + $0xa8] sm:$0xf]
      %v573 = vld [vmem:[%s1 + $0xac] sm:$0xf]
      %v574 = vld [vmem:[%s1 + $0xb0] sm:$0xf]
      %v575 = vld [vmem:[%s1 + $0xb4] sm:$0xf]
      %v576 = vld [vmem:[%s1 + $0xb8] sm:$0xf]
      %v577 = vld [vmem:[%s1 + $0xbc] sm:$0xf]
      %v578 = vld [vmem:[%s1 + $0xc0] sm:$0xf]
      %v579 = vld [vmem:[%s1 + $0xc4] sm:$0xf]
      %v580 = vld [vmem:[%s1 + $0xc8] sm:$0xf]
      %v581 = vld [vmem:[%s1 + $0xcc] sm:$0xf]
      %v582 = vld [vmem:[%s1 + $0xd0] sm:$0xf]
      %v583 = vld [vmem:[%s1 + $0xd4] sm:$0xf]
      %v584 = vld [vmem:[%s1 + $0xd8] sm:$0xf]
      %v585 = vld [vmem:[%s1 + $0xdc] sm:$0xf]
      %v586 = vld [vmem:[%s1 + $0xe0] sm:$0xf]
      %v587 = vld [vmem:[%s1 + $0xe4] sm:$0xf]
      %v588 = vld [vmem:[%s1 + $0xe8] sm:$0xf]
      %v589 = vld [vmem:[%s1 + $0xec] sm:$0xf]
      %v590 = vld [vmem:[%s1 + $0xf0] sm:$0xf]
      %v591 = vld [vmem:[%s1 + $0xf4] sm:$0xf]
      %v592 = vld [vmem:[%s1 + $0xf8] sm:$0xf]
      %v593 = vld [vmem:[%s1 + $0xfc] sm:$0xf]
      %v594 = vld [vmem:[%s1 + $0x100] sm:$0xf]
      %v595 = vld [vmem:[%s1 + $0x104] sm:$0xf]
      %v596 = vld [vmem:[%s1 + $0x108] sm:$0xf]
      %v597 = vld [vmem:[%s1 + $0x10c] sm:$0xf]
      %v598 = vld [vmem:[%s1 + $0x110] sm:$0xf]
      %v599 = vld [vmem:[%s1 + $0x114] sm:$0xf]
      %v600 = vld [vmem:[%s1 + $0x118] sm:$0xf]
      %v601 = vld [vmem:[%s1 + $0x11c] sm:$0xf]
      %v602 = vld [vmem:[%s1 + $0x120] sm:$0xf]
      %v603 = vld [vmem:[%s1 + $0x124] sm:$0xf]
      %v604 = vld [vmem:[%s1 + $0x128] sm:$0xf]
      %v605 = vld [vmem:[%s1 + $0x12c] sm:$0xf]
      %v606 = vld [vmem:[%s1 + $0x130] sm:$0xf]
      %v607 = vld [vmem:[%s1 + $0x134] sm:$0xf]
      %v608 = vld [vmem:[%s1 + $0x138] sm:$0xf]
      %v609 = vld [vmem:[%s1 + $0x13c] sm:$0xf]
      %v610 = vld [vmem:[%s1 + $0x140] sm:$0xf]
      %v611 = vld [vmem:[%s1 + $0x144] sm:$0xf]
      %v612 = vld [vmem:[%s1 + $0x148] sm:$0xf]
      %v613 = vld [vmem:[%s1 + $0x14c] sm:$0xf]
      %v614 = vld [vmem:[%s1 + $0x150] sm:$0xf]
      %v615 = vld [vmem:[%s1 + $0x154] sm:$0xf]
      %v616 = vld [vmem:[%s1 + $0x158] sm:$0xf]
      %v617 = vld [vmem:[%s1 + $0x15c] sm:$0xf]
      %v618 = vld [vmem:[%s1 + $0x160] sm:$0xf]
      %v619 = vld [vmem:[%s1 + $0x164] sm:$0xf]
      %v620 = vld [vmem:[%s1 + $0x168] sm:$0xf]
      %v621 = vld [vmem:[%s1 + $0x16c] sm:$0xf]
      %v622 = vld [vmem:[%s1 + $0x170] sm:$0xf]
      %v623 = vld [vmem:[%s1 + $0x174] sm:$0xf]
      %v624 = vld [vmem:[%s1 + $0x178] sm:$0xf]
      %v625 = vld [vmem:[%s1 + $0x17c] sm:$0xf]
      %v626 = vld [vmem:[%s1 + $0x180] sm:$0xf]
      %v627 = vld [vmem:[%s1 + $0x184] sm:$0xf]
      %v628 = vld [vmem:[%s1 + $0x188] sm:$0xf]
      %v629 = vld [vmem:[%s1 + $0x18c] sm:$0xf]
      %v630 = vld [vmem:[%s1 + $0x190] sm:$0xf]
      %v631 = vld [vmem:[%s1 + $0x194] sm:$0xf]
      %v632 = vld [vmem:[%s1 + $0x198] sm:$0xf]
      %v633 = vld [vmem:[%s1 + $0x19c] sm:$0xf]
      %v634 = vld [vmem:[%s1 + $0x1a0] sm:$0xf]
      %v635 = vld [vmem:[%s1 + $0x1a4] sm:$0xf]
      %v636 = vld [vmem:[%s1 + $0x1a8] sm:$0xf]
      %v637 = vld [vmem:[%s1 + $0x1ac] sm:$0xf]
      %v638 = vld [vmem:[%s1 + $0x1b0] sm:$0xf]
      %v639 = vld [vmem:[%s1 + $0x1b4] sm:$0xf]
      %v640 = vld [vmem:[%s1 + $0x1b8] sm:$0xf]
      %v641 = vld [vmem:[%s1 + $0x1bc] sm:$0xf]
      %v642 = vld [vmem:[%s1 + $0x1c0] sm:$0xf]
      %v643 = vld [vmem:[%s1 + $0x1c4] sm:$0xf]
      %v644 = vld [vmem:[%s1 + $0x1c8] sm:$0xf]
      %v645 = vld [vmem:[%s1 + $0x1cc] sm:$0xf]
      %v646 = vld [vmem:[%s1 + $0x1d0] sm:$0xf]
      %v647 = vld [vmem:[%s1 + $0x1d4] sm:$0xf]
      %v648 = vld [vmem:[%s1 + $0x1d8] sm:$0xf]
      %v649 = vld [vmem:[%s1 + $0x1dc] sm:$0xf]
      %v650 = vld [vmem:[%s1 + $0x1e0] sm:$0xf]
      %v651 = vld [vmem:[%s1 + $0x1e4] sm:$0xf]
      %v652 = vld [vmem:[%s1 + $0x1e8] sm:$0xf]
      %v653 = vld [vmem:[%s1 + $0x1ec] sm:$0xf]
      %v654 = vld [vmem:[%s1 + $0x1f0] sm:$0xf]
      %v655 = vld [vmem:[%s1 + $0x1f4] sm:$0xf]
      %v656 = vld [vmem:[%s1 + $0x1f8] sm:$0xf]
      %v657 = vld [vmem:[%s1 + $0x1fc] sm:$0xf]
      %v658 = vld [vmem:[%s1 + $0x200] sm:$0xf]
      %v659 = vld [vmem:[%s1 + $0x204] sm:$0xf]
      %v660 = vld [vmem:[%s1 + $0x208] sm:$0xf]
      %v661 = vld [vmem:[%s1 + $0x20c] sm:$0xf]
      %v662 = vld [vmem:[%s1 + $0x210] sm:$0xf]
      %v663 = vld [vmem:[%s1 + $0x214] sm:$0xf]
      %v664 = vld [vmem:[%s1 + $0x218] sm:$0xf]
      %v665 = vld [vmem:[%s1 + $0x21c] sm:$0xf]
      %v666 = vld [vmem:[%s1 + $0x220] sm:$0xf]
      %v667 = vld [vmem:[%s1 + $0x224] sm:$0xf]
      %v668 = vld [vmem:[%s1 + $0x228] sm:$0xf]
      %v669 = vld [vmem:[%s1 + $0x22c] sm:$0xf]
      %v670 = vld [vmem:[%s1 + $0x230] sm:$0xf]
      %v671 = vld [vmem:[%s1 + $0x234] sm:$0xf]
      %v672 = vld [vmem:[%s1 + $0x238] sm:$0xf]
      %v673 = vld [vmem:[%s1 + $0x23c] sm:$0xf]
      %v714 = vunpack.c.l.b16 %v490
      %v715 = vunpack.c.h.b16 %v490
      %v716 = vunpack.c.l.b16 %v491
      %v717 = vunpack.c.h.b16 %v491
      %v718 = vunpack.c.l.b16 %v492
      %v719 = vunpack.c.h.b16 %v492
      %v720 = vunpack.c.l.b16 %v493
      %v721 = vunpack.c.h.b16 %v493
      %v722 = vunpack.c.l.b16 %v494
      %v723 = vunpack.c.l.b16 %v495
      %v724 = vunpack.c.h.b16 %v495
      %v725 = vunpack.c.l.b16 %v496
      %v726 = vunpack.c.h.b16 %v496
      %v727 = vunpack.c.l.b16 %v497
      %v728 = vunpack.c.h.b16 %v497
      %v729 = vunpack.c.l.b16 %v498
      %v730 = vunpack.c.h.b16 %v498
      %v731 = vunpack.c.l.b16 %v499
      %v732 = vunpack.c.l.b16 %v500
      %v733 = vunpack.c.h.b16 %v500
      %v734 = vunpack.c.l.b16 %v501
      %v735 = vunpack.c.h.b16 %v501
      %v736 = vunpack.c.l.b16 %v502
      %v737 = vunpack.c.h.b16 %v502
      %v738 = vunpack.c.l.b16 %v503
      %v739 = vunpack.c.h.b16 %v503
      %v740 = vunpack.c.l.b16 %v504
      %v741 = vunpack.c.l.b16 %v505
      %v742 = vunpack.c.h.b16 %v505
      %v743 = vunpack.c.l.b16 %v506
      %v744 = vunpack.c.h.b16 %v506
      %v745 = vunpack.c.l.b16 %v507
      %v746 = vunpack.c.h.b16 %v507
      %v747 = vunpack.c.l.b16 %v508
      %v748 = vunpack.c.h.b16 %v508
      %v749 = vunpack.c.l.b16 %v509
      %v750 = vunpack.c.l.b16 %v510
      %v751 = vunpack.c.h.b16 %v510
      %v752 = vunpack.c.l.b16 %v511
      %v753 = vunpack.c.h.b16 %v511
      %v754 = vunpack.c.l.b16 %v512
      %v755 = vunpack.c.h.b16 %v512
      %v756 = vunpack.c.l.b16 %v513
      %v757 = vunpack.c.h.b16 %v513
      %v758 = vunpack.c.l.b16 %v514
      %v759 = vunpack.c.l.b16 %v515
      %v760 = vunpack.c.h.b16 %v515
      %v761 = vunpack.c.l.b16 %v516
      %v762 = vunpack.c.h.b16 %v516
      %v763 = vunpack.c.l.b16 %v517
      %v764 = vunpack.c.h.b16 %v517
      %v765 = vunpack.c.l.b16 %v518
      %v766 = vunpack.c.h.b16 %v518
      %v767 = vunpack.c.l.b16 %v519
      %v768 = vunpack.c.l.b16 %v520
      %v769 = vunpack.c.h.b16 %v520
      %v770 = vunpack.c.l.b16 %v521
      %v771 = vunpack.c.h.b16 %v521
      %v772 = vunpack.c.l.b16 %v522
      %v773 = vunpack.c.h.b16 %v522
      %v774 = vunpack.c.l.b16 %v523
      %v775 = vunpack.c.h.b16 %v523
      %v776 = vunpack.c.l.b16 %v524
      %v777 = vunpack.c.l.b16 %v525
      %v778 = vunpack.c.h.b16 %v525
      %v779 = vunpack.c.l.b16 %v526
      %v780 = vunpack.c.h.b16 %v526
      %v781 = vunpack.c.l.b16 %v527
      %v782 = vunpack.c.h.b16 %v527
      %v783 = vunpack.c.l.b16 %v528
      %v784 = vunpack.c.h.b16 %v528
      %v785 = vunpack.c.l.b16 %v529
      %v786 = vpack.c.b16 %v723, %v714
      %v787 = vpack.c.b16 %v724, %v715
      %v788 = vpack.c.b16 %v725, %v716
      %v789 = vpack.c.b16 %v726, %v717
      %v790 = vpack.c.b16 %v727, %v718
      %v791 = vpack.c.b16 %v728, %v719
      %v792 = vpack.c.b16 %v729, %v720
      %v793 = vpack.c.b16 %v730, %v721
      %v794 = vpack.c.b16 %v731, %v722
      %v795 = vpack.c.b16 %v741, %v732
      %v796 = vpack.c.b16 %v742, %v733
      %v797 = vpack.c.b16 %v743, %v734
      %v798 = vpack.c.b16 %v744, %v735
      %v799 = vpack.c.b16 %v745, %v736
      %v800 = vpack.c.b16 %v746, %v737
      %v801 = vpack.c.b16 %v747, %v738
      %v802 = vpack.c.b16 %v748, %v739
      %v803 = vpack.c.b16 %v749, %v740
      %v804 = vpack.c.b16 %v759, %v750
      %v805 = vpack.c.b16 %v760, %v751
      %v806 = vpack.c.b16 %v761, %v752
      %v807 = vpack.c.b16 %v762, %v753
      %v808 = vpack.c.b16 %v763, %v754
      %v809 = vpack.c.b16 %v764, %v755
      %v810 = vpack.c.b16 %v765, %v756
      %v811 = vpack.c.b16 %v766, %v757
      %v812 = vpack.c.b16 %v767, %v758
      %v813 = vpack.c.b16 %v777, %v768
      %v814 = vpack.c.b16 %v778, %v769
      %v815 = vpack.c.b16 %v779, %v770
      %v816 = vpack.c.b16 %v780, %v771
      %v817 = vpack.c.b16 %v781, %v772
      %v818 = vpack.c.b16 %v782, %v773
      %v819 = vpack.c.b16 %v783, %v774
      %v820 = vpack.c.b16 %v784, %v775
      %v821 = vpack.c.b16 %v785, %v776
      %v1002 = vunpack.c.l.b16 %v530
      %v1003 = vunpack.c.l.b16 %v531
      %v1004 = vunpack.c.l.b16 %v532
      %v1005 = vunpack.c.l.b16 %v533
      %v1006 = vunpack.c.l.b16 %v534
      %v1007 = vunpack.c.l.b16 %v535
      %v1008 = vunpack.c.l.b16 %v536
      %v1009 = vunpack.c.l.b16 %v537
      %v1010 = vunpack.c.l.b16 %v538
      %v1011 = vunpack.c.l.b16 %v539
      %v1012 = vunpack.c.l.b16 %v540
      %v1013 = vunpack.c.l.b16 %v541
      %v1014 = vunpack.c.l.b16 %v542
      %v1015 = vunpack.c.l.b16 %v543
      %v1016 = vunpack.c.l.b16 %v544
      %v1017 = vunpack.c.l.b16 %v545
      %v1018 = vunpack.c.l.b16 %v546
      %v1019 = vunpack.c.l.b16 %v547
      %v1020 = vunpack.c.l.b16 %v548
      %v1021 = vunpack.c.l.b16 %v549
      %v1022 = vunpack.c.l.b16 %v550
      %v1023 = vunpack.c.l.b16 %v551
      %v1024 = vunpack.c.l.b16 %v552
      %v1025 = vunpack.c.l.b16 %v553
      %v1026 = vunpack.c.l.b16 %v554
      %v1027 = vunpack.c.l.b16 %v555
      %v1028 = vunpack.c.l.b16 %v556
      %v1029 = vunpack.c.l.b16 %v557
      %v1030 = vunpack.c.l.b16 %v558
      %v1031 = vunpack.c.l.b16 %v559
      %v1032 = vunpack.c.l.b16 %v560
      %v1033 = vunpack.c.l.b16 %v561
      %v1034 = vunpack.c.l.b16 %v562
      %v1035 = vunpack.c.l.b16 %v563
      %v1036 = vunpack.c.l.b16 %v564
      %v1037 = vunpack.c.l.b16 %v565
      %v1038 = vunpack.c.l.b16 %v566
      %v1039 = vunpack.c.l.b16 %v567
      %v1040 = vunpack.c.l.b16 %v568
      %v1041 = vunpack.c.l.b16 %v569
      %v1042 = vunpack.c.l.b16 %v570
      %v1043 = vunpack.c.l.b16 %v571
      %v1044 = vunpack.c.l.b16 %v572
      %v1045 = vunpack.c.l.b16 %v573
      %v1046 = vunpack.c.l.b16 %v574
      %v1047 = vunpack.c.l.b16 %v575
      %v1048 = vunpack.c.l.b16 %v576
      %v1049 = vunpack.c.l.b16 %v577
      %v1050 = vunpack.c.l.b16 %v578
      %v1051 = vunpack.c.l.b16 %v579
      %v1052 = vunpack.c.l.b16 %v580
      %v1053 = vunpack.c.l.b16 %v581
      %v1054 = vunpack.c.l.b16 %v582
      %v1055 = vunpack.c.l.b16 %v583
      %v1056 = vunpack.c.l.b16 %v584
      %v1057 = vunpack.c.l.b16 %v585
      %v1058 = vunpack.c.l.b16 %v586
      %v1059 = vunpack.c.l.b16 %v587
      %v1060 = vunpack.c.l.b16 %v588
      %v1061 = vunpack.c.l.b16 %v589
      %v1062 = vunpack.c.l.b16 %v590
      %v1063 = vunpack.c.l.b16 %v591
      %v1064 = vunpack.c.l.b16 %v592
      %v1065 = vunpack.c.l.b16 %v593
      %v1066 = vunpack.c.l.b16 %v594
      %v1067 = vunpack.c.l.b16 %v595
      %v1068 = vunpack.c.l.b16 %v596
      %v1069 = vunpack.c.l.b16 %v597
      %v1070 = vunpack.c.l.b16 %v598
      %v1071 = vunpack.c.l.b16 %v599
      %v1072 = vunpack.c.l.b16 %v600
      %v1073 = vunpack.c.l.b16 %v601
      %v1074 = vunpack.c.l.b16 %v602
      %v1075 = vunpack.c.l.b16 %v603
      %v1076 = vunpack.c.l.b16 %v604
      %v1077 = vunpack.c.l.b16 %v605
      %v1078 = vunpack.c.l.b16 %v606
      %v1079 = vunpack.c.l.b16 %v607
      %v1080 = vunpack.c.l.b16 %v608
      %v1081 = vunpack.c.l.b16 %v609
      %v1082 = vunpack.c.l.b16 %v610
      %v1083 = vunpack.c.l.b16 %v611
      %v1084 = vunpack.c.l.b16 %v612
      %v1085 = vunpack.c.l.b16 %v613
      %v1086 = vunpack.c.l.b16 %v614
      %v1087 = vunpack.c.l.b16 %v615
      %v1088 = vunpack.c.l.b16 %v616
      %v1089 = vunpack.c.l.b16 %v617
      %v1090 = vunpack.c.l.b16 %v618
      %v1091 = vunpack.c.l.b16 %v619
      %v1092 = vunpack.c.l.b16 %v620
      %v1093 = vunpack.c.l.b16 %v621
      %v1094 = vunpack.c.l.b16 %v622
      %v1095 = vunpack.c.l.b16 %v623
      %v1096 = vunpack.c.l.b16 %v624
      %v1097 = vunpack.c.l.b16 %v625
      %v1098 = vunpack.c.l.b16 %v626
      %v1099 = vunpack.c.l.b16 %v627
      %v1100 = vunpack.c.l.b16 %v628
      %v1101 = vunpack.c.l.b16 %v629
      %v1102 = vunpack.c.l.b16 %v630
      %v1103 = vunpack.c.l.b16 %v631
      %v1104 = vunpack.c.l.b16 %v632
      %v1105 = vunpack.c.l.b16 %v633
      %v1106 = vunpack.c.l.b16 %v634
      %v1107 = vunpack.c.l.b16 %v635
      %v1108 = vunpack.c.l.b16 %v636
      %v1109 = vunpack.c.l.b16 %v637
      %v1110 = vunpack.c.l.b16 %v638
      %v1111 = vunpack.c.l.b16 %v639
      %v1112 = vunpack.c.l.b16 %v640
      %v1113 = vunpack.c.l.b16 %v641
      %v1114 = vunpack.c.l.b16 %v642
      %v1115 = vunpack.c.l.b16 %v643
      %v1116 = vunpack.c.l.b16 %v644
      %v1117 = vunpack.c.l.b16 %v645
      %v1118 = vunpack.c.l.b16 %v646
      %v1119 = vunpack.c.l.b16 %v647
      %v1120 = vunpack.c.l.b16 %v648
      %v1121 = vunpack.c.l.b16 %v649
      %v1122 = vunpack.c.l.b16 %v650
      %v1123 = vunpack.c.l.b16 %v651
      %v1124 = vunpack.c.l.b16 %v652
      %v1125 = vunpack.c.l.b16 %v653
      %v1126 = vunpack.c.l.b16 %v654
      %v1127 = vunpack.c.l.b16 %v655
      %v1128 = vunpack.c.l.b16 %v656
      %v1129 = vunpack.c.l.b16 %v657
      %v1130 = vunpack.c.l.b16 %v658
      %v1131 = vunpack.c.l.b16 %v659
      %v1132 = vunpack.c.l.b16 %v660
      %v1133 = vunpack.c.l.b16 %v661
      %v1134 = vunpack.c.l.b16 %v662
      %v1135 = vunpack.c.l.b16 %v663
      %v1136 = vunpack.c.l.b16 %v664
      %v1137 = vunpack.c.l.b16 %v665
      %v1138 = vunpack.c.l.b16 %v666
      %v1139 = vunpack.c.l.b16 %v667
      %v1140 = vunpack.c.l.b16 %v668
      %v1141 = vunpack.c.l.b16 %v669
      %v1142 = vunpack.c.l.b16 %v670
      %v1143 = vunpack.c.l.b16 %v671
      %v1144 = vunpack.c.l.b16 %v672
      %v1145 = vunpack.c.l.b16 %v673
      %v1146 = vpack.c.b16 %v1003, %v1002
      %v1147 = vpack.c.b16 %v1005, %v1004
      %v1148 = vpack.c.b16 %v1007, %v1006
      %v1149 = vpack.c.b16 %v1009, %v1008
      %v1150 = vpack.c.b16 %v1011, %v1010
      %v1151 = vpack.c.b16 %v1013, %v1012
      %v1152 = vpack.c.b16 %v1015, %v1014
      %v1153 = vpack.c.b16 %v1017, %v1016
      %v1154 = vpack.c.b16 %v1019, %v1018
      %v1155 = vpack.c.b16 %v1021, %v1020
      %v1156 = vpack.c.b16 %v1023, %v1022
      %v1157 = vpack.c.b16 %v1025, %v1024
      %v1158 = vpack.c.b16 %v1027, %v1026
      %v1159 = vpack.c.b16 %v1029, %v1028
      %v1160 = vpack.c.b16 %v1031, %v1030
      %v1161 = vpack.c.b16 %v1033, %v1032
      %v1162 = vpack.c.b16 %v1035, %v1034
      %v1163 = vpack.c.b16 %v1037, %v1036
      %v1164 = vpack.c.b16 %v1039, %v1038
      %v1165 = vpack.c.b16 %v1041, %v1040
      %v1166 = vpack.c.b16 %v1043, %v1042
      %v1167 = vpack.c.b16 %v1045, %v1044
      %v1168 = vpack.c.b16 %v1047, %v1046
      %v1169 = vpack.c.b16 %v1049, %v1048
      %v1170 = vpack.c.b16 %v1051, %v1050
      %v1171 = vpack.c.b16 %v1053, %v1052
      %v1172 = vpack.c.b16 %v1055, %v1054
      %v1173 = vpack.c.b16 %v1057, %v1056
      %v1174 = vpack.c.b16 %v1059, %v1058
      %v1175 = vpack.c.b16 %v1061, %v1060
      %v1176 = vpack.c.b16 %v1063, %v1062
      %v1177 = vpack.c.b16 %v1065, %v1064
      %v1178 = vpack.c.b16 %v1067, %v1066
      %v1179 = vpack.c.b16 %v1069, %v1068
      %v1180 = vpack.c.b16 %v1071, %v1070
      %v1181 = vpack.c.b16 %v1073, %v1072
      %v1182 = vpack.c.b16 %v1075, %v1074
      %v1183 = vpack.c.b16 %v1077, %v1076
      %v1184 = vpack.c.b16 %v1079, %v1078
      %v1185 = vpack.c.b16 %v1081, %v1080
      %v1186 = vpack.c.b16 %v1083, %v1082
      %v1187 = vpack.c.b16 %v1085, %v1084
      %v1188 = vpack.c.b16 %v1087, %v1086
      %v1189 = vpack.c.b16 %v1089, %v1088
      %v1190 = vpack.c.b16 %v1091, %v1090
      %v1191 = vpack.c.b16 %v1093, %v1092
      %v1192 = vpack.c.b16 %v1095, %v1094
      %v1193 = vpack.c.b16 %v1097, %v1096
      %v1194 = vpack.c.b16 %v1099, %v1098
      %v1195 = vpack.c.b16 %v1101, %v1100
      %v1196 = vpack.c.b16 %v1103, %v1102
      %v1197 = vpack.c.b16 %v1105, %v1104
      %v1198 = vpack.c.b16 %v1107, %v1106
      %v1199 = vpack.c.b16 %v1109, %v1108
      %v1200 = vpack.c.b16 %v1111, %v1110
      %v1201 = vpack.c.b16 %v1113, %v1112
      %v1202 = vpack.c.b16 %v1115, %v1114
      %v1203 = vpack.c.b16 %v1117, %v1116
      %v1204 = vpack.c.b16 %v1119, %v1118
      %v1205 = vpack.c.b16 %v1121, %v1120
      %v1206 = vpack.c.b16 %v1123, %v1122
      %v1207 = vpack.c.b16 %v1125, %v1124
      %v1208 = vpack.c.b16 %v1127, %v1126
      %v1209 = vpack.c.b16 %v1129, %v1128
      %v1210 = vpack.c.b16 %v1131, %v1130
      %v1211 = vpack.c.b16 %v1133, %v1132
      %v1212 = vpack.c.b16 %v1135, %v1134
      %v1213 = vpack.c.b16 %v1137, %v1136
      %v1214 = vpack.c.b16 %v1139, %v1138
      %v1215 = vpack.c.b16 %v1141, %v1140
      %v1216 = vpack.c.b16 %v1143, %v1142
      %v1217 = vpack.c.b16 %v1145, %v1144
      %1290 = vmatprep.subr.bf16.mxu0 0
      %1291 = vmatpush1.bf16.msra.mxu0 %v1153
      %1292 = vmatprep.subr.bf16.mxu0 0
      %1293 = vmatpush1.bf16.msra.mxu0 %v1152
      %1294 = vmatprep.subr.bf16.mxu0 0
      %1295 = vmatpush1.bf16.msra.mxu0 %v1151
      %1296 = vmatprep.subr.bf16.mxu0 0
      %1297 = vmatpush1.bf16.msra.mxu0 %v1150
      %1298 = vmatprep.subr.bf16.mxu0 0
      %1299 = vmatpush1.bf16.msra.mxu0 %v1149
      %1300 = vmatprep.subr.bf16.mxu0 0
      %1301 = vmatpush1.bf16.msra.mxu0 %v1148
      %1302 = vmatprep.subr.bf16.mxu0 0
      %1303 = vmatpush1.bf16.msra.mxu0 %v1147
      %1304 = vmatprep.subr.bf16.mxu0 0
      %1305 = vmatpush1.bf16.msra.mxu0 %v1146
      %1306 = vmatprep.subr.bf16.mxu0 0
      %1307 = vmatpush2.bf16.msra.mxu0 %v1161
      %1308 = vmatprep.subr.bf16.mxu0 0
      %1309 = vmatpush2.bf16.msra.mxu0 %v1160
      %1310 = vmatprep.subr.bf16.mxu0 0
      %1311 = vmatpush2.bf16.msra.mxu0 %v1159
      %1312 = vmatprep.subr.bf16.mxu0 0
      %1313 = vmatpush2.bf16.msra.mxu0 %v1158
      %1314 = vmatprep.subr.bf16.mxu0 0
      %1315 = vmatpush2.bf16.msra.mxu0 %v1157
      %1316 = vmatprep.subr.bf16.mxu0 0
      %1317 = vmatpush2.bf16.msra.mxu0 %v1156
      %1318 = vmatprep.subr.bf16.mxu0 0
      %1319 = vmatpush2.bf16.msra.mxu0 %v1155
      %1320 = vmatprep.subr.bf16.mxu0 0
      %1321 = vmatpush2.bf16.msra.mxu0 %v1154
      %1322 = vmatprep.mubr.bf16.mxu0 %v787
      %1323 = vmatmul.mubr.bf16.gmra.mxu0 %v786
      %v1324 = vpop.f32.mrf.mxu0
      %v1325 = vadd.f32 0.0, %v1324
      %v1326 = vpop.f32.mrf.mxu0
      %v1327 = vpop.f32.mrf.mxu0
      %v1328 = vadd.f32 0.0, %v1327
      %v1329 = vpop.f32.mrf.mxu0
      %1330 = vmatprep.mubr.bf16.mxu0 %v796
      %1331 = vmatmul.mubr.bf16.gmra.mxu0 %v795
      %v1332 = vpop.f32.mrf.mxu0
      %v1333 = vadd.f32 0.0, %v1332
      %v1334 = vpop.f32.mrf.mxu0
      %v1335 = vpop.f32.mrf.mxu0
      %v1336 = vadd.f32 0.0, %v1335
      %v1337 = vpop.f32.mrf.mxu0
      %1338 = vmatprep.mubr.bf16.mxu0 %v805
      %1339 = vmatmul.mubr.bf16.gmra.mxu0 %v804
      %v1340 = vpop.f32.mrf.mxu0
      %v1341 = vadd.f32 0.0, %v1340
      %v1342 = vpop.f32.mrf.mxu0
      %v1343 = vpop.f32.mrf.mxu0
      %v1344 = vadd.f32 0.0, %v1343
      %v1345 = vpop.f32.mrf.mxu0
      %1346 = vmatprep.mubr.bf16.mxu0 %v814
      %1347 = vmatmul.mubr.bf16.gmra.mxu0 %v813
      %v1348 = vpop.f32.mrf.mxu0
      %v1349 = vadd.f32 0.0, %v1348
      %v1350 = vpop.f32.mrf.mxu0
      %v1351 = vpop.f32.mrf.mxu0
      %v1352 = vadd.f32 0.0, %v1351
      %v1353 = vpop.f32.mrf.mxu0
      %1354 = vdwg.mxu0
      %1355 = vmatprep.subr.bf16.mxu0 0
      %1356 = vmatpush1.bf16.msra.mxu0 %v1169
      %1357 = vmatprep.subr.bf16.mxu0 0
      %1358 = vmatpush1.bf16.msra.mxu0 %v1168
      %1359 = vmatprep.subr.bf16.mxu0 0
      %1360 = vmatpush1.bf16.msra.mxu0 %v1167
      %1361 = vmatprep.subr.bf16.mxu0 0
      %1362 = vmatpush1.bf16.msra.mxu0 %v1166
      %1363 = vmatprep.subr.bf16.mxu0 0
      %1364 = vmatpush1.bf16.msra.mxu0 %v1165
      %1365 = vmatprep.subr.bf16.mxu0 0
      %1366 = vmatpush1.bf16.msra.mxu0 %v1164
      %1367 = vmatprep.subr.bf16.mxu0 0
      %1368 = vmatpush1.bf16.msra.mxu0 %v1163
      %1369 = vmatprep.subr.bf16.mxu0 0
      %1370 = vmatpush1.bf16.msra.mxu0 %v1162
      %1371 = vmatprep.subr.bf16.mxu0 0
      %1372 = vmatpush2.bf16.msra.mxu0 %v1177
      %1373 = vmatprep.subr.bf16.mxu0 0
      %1374 = vmatpush2.bf16.msra.mxu0 %v1176
      %1375 = vmatprep.subr.bf16.mxu0 0
      %1376 = vmatpush2.bf16.msra.mxu0 %v1175
      %1377 = vmatprep.subr.bf16.mxu0 0
      %1378 = vmatpush2.bf16.msra.mxu0 %v1174
      %1379 = vmatprep.subr.bf16.mxu0 0
      %1380 = vmatpush2.bf16.msra.mxu0 %v1173
      %1381 = vmatprep.subr.bf16.mxu0 0
      %1382 = vmatpush2.bf16.msra.mxu0 %v1172
      %1383 = vmatprep.subr.bf16.mxu0 0
      %1384 = vmatpush2.bf16.msra.mxu0 %v1171
      %1385 = vmatprep.subr.bf16.mxu0 0
      %1386 = vmatpush2.bf16.msra.mxu0 %v1170
      %1387 = vmatprep.mubr.bf16.mxu0 %v789
      %1388 = vmatmul.mubr.bf16.gmra.mxu0 %v788
      %v1389 = vpop.f32.mrf.mxu0
      %v1390 = vadd.f32 %v1325, %v1389
      %v1391 = vpop.f32.mrf.mxu0
      %v1392 = vpop.f32.mrf.mxu0
      %v1393 = vadd.f32 %v1328, %v1392
      %v1394 = vpop.f32.mrf.mxu0
      %1395 = vmatprep.mubr.bf16.mxu0 %v798
      %1396 = vmatmul.mubr.bf16.gmra.mxu0 %v797
      %v1397 = vpop.f32.mrf.mxu0
      %v1398 = vadd.f32 %v1333, %v1397
      %v1399 = vpop.f32.mrf.mxu0
      %v1400 = vpop.f32.mrf.mxu0
      %v1401 = vadd.f32 %v1336, %v1400
      %v1402 = vpop.f32.mrf.mxu0
      %1403 = vmatprep.mubr.bf16.mxu0 %v807
      %1404 = vmatmul.mubr.bf16.gmra.mxu0 %v806
      %v1405 = vpop.f32.mrf.mxu0
      %v1406 = vadd.f32 %v1341, %v1405
      %v1407 = vpop.f32.mrf.mxu0
      %v1408 = vpop.f32.mrf.mxu0
      %v1409 = vadd.f32 %v1344, %v1408
      %v1410 = vpop.f32.mrf.mxu0
      %1411 = vmatprep.mubr.bf16.mxu0 %v816
      %1412 = vmatmul.mubr.bf16.gmra.mxu0 %v815
      %v1413 = vpop.f32.mrf.mxu0
      %v1414 = vadd.f32 %v1349, %v1413
      %v1415 = vpop.f32.mrf.mxu0
      %v1416 = vpop.f32.mrf.mxu0
      %v1417 = vadd.f32 %v1352, %v1416
      %v1418 = vpop.f32.mrf.mxu0
      %1419 = vdwg.mxu0
      %1420 = vmatprep.subr.bf16.mxu0 0
      %1421 = vmatpush1.bf16.msra.mxu0 %v1185
      %1422 = vmatprep.subr.bf16.mxu0 0
      %1423 = vmatpush1.bf16.msra.mxu0 %v1184
      %1424 = vmatprep.subr.bf16.mxu0 0
      %1425 = vmatpush1.bf16.msra.mxu0 %v1183
      %1426 = vmatprep.subr.bf16.mxu0 0
      %1427 = vmatpush1.bf16.msra.mxu0 %v1182
      %1428 = vmatprep.subr.bf16.mxu0 0
      %1429 = vmatpush1.bf16.msra.mxu0 %v1181
      %1430 = vmatprep.subr.bf16.mxu0 0
      %1431 = vmatpush1.bf16.msra.mxu0 %v1180
      %1432 = vmatprep.subr.bf16.mxu0 0
      %1433 = vmatpush1.bf16.msra.mxu0 %v1179
      %1434 = vmatprep.subr.bf16.mxu0 0
      %1435 = vmatpush1.bf16.msra.mxu0 %v1178
      %1436 = vmatprep.subr.bf16.mxu0 0
      %1437 = vmatpush2.bf16.msra.mxu0 %v1193
      %1438 = vmatprep.subr.bf16.mxu0 0
      %1439 = vmatpush2.bf16.msra.mxu0 %v1192
      %1440 = vmatprep.subr.bf16.mxu0 0
      %1441 = vmatpush2.bf16.msra.mxu0 %v1191
      %1442 = vmatprep.subr.bf16.mxu0 0
      %1443 = vmatpush2.bf16.msra.mxu0 %v1190
      %1444 = vmatprep.subr.bf16.mxu0 0
      %1445 = vmatpush2.bf16.msra.mxu0 %v1189
      %1446 = vmatprep.subr.bf16.mxu0 0
      %1447 = vmatpush2.bf16.msra.mxu0 %v1188
      %1448 = vmatprep.subr.bf16.mxu0 0
      %1449 = vmatpush2.bf16.msra.mxu0 %v1187
      %1450 = vmatprep.subr.bf16.mxu0 0
      %1451 = vmatpush2.bf16.msra.mxu0 %v1186
      %1452 = vmatprep.mubr.bf16.mxu0 %v791
      %1453 = vmatmul.mubr.bf16.gmra.mxu0 %v790
      %v1454 = vpop.f32.mrf.mxu0
      %v1455 = vadd.f32 %v1390, %v1454
      %v1456 = vpop.f32.mrf.mxu0
      %v1457 = vpop.f32.mrf.mxu0
      %v1458 = vadd.f32 %v1393, %v1457
      %v1459 = vpop.f32.mrf.mxu0
      %1460 = vmatprep.mubr.bf16.mxu0 %v800
      %1461 = vmatmul.mubr.bf16.gmra.mxu0 %v799
      %v1462 = vpop.f32.mrf.mxu0
      %v1463 = vadd.f32 %v1398, %v1462
      %v1464 = vpop.f32.mrf.mxu0
      %v1465 = vpop.f32.mrf.mxu0
      %v1466 = vadd.f32 %v1401, %v1465
      %v1467 = vpop.f32.mrf.mxu0
      %1468 = vmatprep.mubr.bf16.mxu0 %v809
      %1469 = vmatmul.mubr.bf16.gmra.mxu0 %v808
      %v1470 = vpop.f32.mrf.mxu0
      %v1471 = vadd.f32 %v1406, %v1470
      %v1472 = vpop.f32.mrf.mxu0
      %v1473 = vpop.f32.mrf.mxu0
      %v1474 = vadd.f32 %v1409, %v1473
      %v1475 = vpop.f32.mrf.mxu0
      %1476 = vmatprep.mubr.bf16.mxu0 %v818
      %1477 = vmatmul.mubr.bf16.gmra.mxu0 %v817
      %v1478 = vpop.f32.mrf.mxu0
      %v1479 = vadd.f32 %v1414, %v1478
      %v1480 = vpop.f32.mrf.mxu0
      %v1481 = vpop.f32.mrf.mxu0
      %v1482 = vadd.f32 %v1417, %v1481
      %v1483 = vpop.f32.mrf.mxu0
      %1484 = vdwg.mxu0
      %1485 = vmatprep.subr.bf16.mxu0 0
      %1486 = vmatpush1.bf16.msra.mxu0 %v1201
      %1487 = vmatprep.subr.bf16.mxu0 0
      %1488 = vmatpush1.bf16.msra.mxu0 %v1200
      %1489 = vmatprep.subr.bf16.mxu0 0
      %1490 = vmatpush1.bf16.msra.mxu0 %v1199
      %1491 = vmatprep.subr.bf16.mxu0 0
      %1492 = vmatpush1.bf16.msra.mxu0 %v1198
      %1493 = vmatprep.subr.bf16.mxu0 0
      %1494 = vmatpush1.bf16.msra.mxu0 %v1197
      %1495 = vmatprep.subr.bf16.mxu0 0
      %1496 = vmatpush1.bf16.msra.mxu0 %v1196
      %1497 = vmatprep.subr.bf16.mxu0 0
      %1498 = vmatpush1.bf16.msra.mxu0 %v1195
      %1499 = vmatprep.subr.bf16.mxu0 0
      %1500 = vmatpush1.bf16.msra.mxu0 %v1194
      %1501 = vmatprep.subr.bf16.mxu0 0
      %1502 = vmatpush2.bf16.msra.mxu0 %v1209
      %1503 = vmatprep.subr.bf16.mxu0 0
      %1504 = vmatpush2.bf16.msra.mxu0 %v1208
      %1505 = vmatprep.subr.bf16.mxu0 0
      %1506 = vmatpush2.bf16.msra.mxu0 %v1207
      %1507 = vmatprep.subr.bf16.mxu0 0
      %1508 = vmatpush2.bf16.msra.mxu0 %v1206
      %1509 = vmatprep.subr.bf16.mxu0 0
      %1510 = vmatpush2.bf16.msra.mxu0 %v1205
      %1511 = vmatprep.subr.bf16.mxu0 0
      %1512 = vmatpush2.bf16.msra.mxu0 %v1204
      %1513 = vmatprep.subr.bf16.mxu0 0
      %1514 = vmatpush2.bf16.msra.mxu0 %v1203
      %1515 = vmatprep.subr.bf16.mxu0 0
      %1516 = vmatpush2.bf16.msra.mxu0 %v1202
      %1517 = vmatprep.mubr.bf16.mxu0 %v793
      %1518 = vmatmul.mubr.bf16.gmra.mxu0 %v792
      %v1519 = vpop.f32.mrf.mxu0
      %v1520 = vadd.f32 %v1455, %v1519
      %v1521 = vpop.f32.mrf.mxu0
      %v1522 = vpop.f32.mrf.mxu0
      %v1523 = vadd.f32 %v1458, %v1522
      %v1524 = vpop.f32.mrf.mxu0
      %1525 = vmatprep.mubr.bf16.mxu0 %v802
      %1526 = vmatmul.mubr.bf16.gmra.mxu0 %v801
      %v1527 = vpop.f32.mrf.mxu0
      %v1528 = vadd.f32 %v1463, %v1527
      %v1529 = vpop.f32.mrf.mxu0
      %v1530 = vpop.f32.mrf.mxu0
      %v1531 = vadd.f32 %v1466, %v1530
      %v1532 = vpop.f32.mrf.mxu0
      %1533 = vmatprep.mubr.bf16.mxu0 %v811
      %1534 = vmatmul.mubr.bf16.gmra.mxu0 %v810
      %v1535 = vpop.f32.mrf.mxu0
      %v1536 = vadd.f32 %v1471, %v1535
      %v1537 = vpop.f32.mrf.mxu0
      %v1538 = vpop.f32.mrf.mxu0
      %v1539 = vadd.f32 %v1474, %v1538
      %v1540 = vpop.f32.mrf.mxu0
      %1541 = vmatprep.mubr.bf16.mxu0 %v820
      %1542 = vmatmul.mubr.bf16.gmra.mxu0 %v819
      %v1543 = vpop.f32.mrf.mxu0
      %v1544 = vadd.f32 %v1479, %v1543
      %v1545 = vpop.f32.mrf.mxu0
      %v1546 = vpop.f32.mrf.mxu0
      %v1547 = vadd.f32 %v1482, %v1546
      %v1548 = vpop.f32.mrf.mxu0
      %1549 = vdwg.mxu0
      %1550 = vmatprep.subr.bf16.mxu0 0
      %1551 = vmatpush1.bf16.msra.mxu0 %v1217
      %1552 = vmatprep.subr.bf16.mxu0 0
      %1553 = vmatpush1.bf16.msra.mxu0 %v1216
      %1554 = vmatprep.subr.bf16.mxu0 0
      %1555 = vmatpush1.bf16.msra.mxu0 %v1215
      %1556 = vmatprep.subr.bf16.mxu0 0
      %1557 = vmatpush1.bf16.msra.mxu0 %v1214
      %1558 = vmatprep.subr.bf16.mxu0 0
      %1559 = vmatpush1.bf16.msra.mxu0 %v1213
      %1560 = vmatprep.subr.bf16.mxu0 0
      %1561 = vmatpush1.bf16.msra.mxu0 %v1212
      %1562 = vmatprep.subr.bf16.mxu0 0
      %1563 = vmatpush1.bf16.msra.mxu0 %v1211
      %1564 = vmatprep.subr.bf16.mxu0 0
      %1565 = vmatpush1.bf16.msra.mxu0 %v1210
      %1566 = vmatprep.subr.bf16.mxu0 0
      %1567 = vmatpush2.bf16.msra.mxu0 0
      %1568 = vmatprep.subr.bf16.mxu0 0
      %1569 = vmatpush2.bf16.msra.mxu0 0
      %1570 = vmatprep.subr.bf16.mxu0 0
      %1571 = vmatpush2.bf16.msra.mxu0 0
      %1572 = vmatprep.subr.bf16.mxu0 0
      %1573 = vmatpush2.bf16.msra.mxu0 0
      %1574 = vmatprep.subr.bf16.mxu0 0
      %1575 = vmatpush2.bf16.msra.mxu0 0
      %1576 = vmatprep.subr.bf16.mxu0 0
      %1577 = vmatpush2.bf16.msra.mxu0 0
      %1578 = vmatprep.subr.bf16.mxu0 0
      %1579 = vmatpush2.bf16.msra.mxu0 0
      %1580 = vmatprep.subr.bf16.mxu0 0
      %1581 = vmatpush2.bf16.msra.mxu0 0
      %1582 = vmatprep.mubr.bf16.mxu0 0
      %1583 = vmatmul.mubr.bf16.gmra.mxu0 %v794
      %v1584 = vpop.f32.mrf.mxu0
      %v1585 = vadd.f32 %v1520, %v1584
      %v1586 = vpop.f32.mrf.mxu0
      %v1587 = vpop.f32.mrf.mxu0
      %v1588 = vadd.f32 %v1523, %v1587
      %v1589 = vpop.f32.mrf.mxu0
      %1590 = vmatprep.mubr.bf16.mxu0 0
      %1591 = vmatmul.mubr.bf16.gmra.mxu0 %v803
      %v1592 = vpop.f32.mrf.mxu0
      %v1593 = vadd.f32 %v1528, %v1592
      %v1594 = vpop.f32.mrf.mxu0
      %v1595 = vpop.f32.mrf.mxu0
      %v1596 = vadd.f32 %v1531, %v1595
      %v1597 = vpop.f32.mrf.mxu0
      %1598 = vmatprep.mubr.bf16.mxu0 0
      %1599 = vmatmul.mubr.bf16.gmra.mxu0 %v812
      %v1600 = vpop.f32.mrf.mxu0
      %v1601 = vadd.f32 %v1536, %v1600
      %v1602 = vpop.f32.mrf.mxu0
      %v1603 = vpop.f32.mrf.mxu0
      %v1604 = vadd.f32 %v1539, %v1603
      %v1605 = vpop.f32.mrf.mxu0
      %1606 = vmatprep.mubr.bf16.mxu0 0
      %1607 = vmatmul.mubr.bf16.gmra.mxu0 %v821
      %v1608 = vpop.f32.mrf.mxu0
      %v1609 = vadd.f32 %v1544, %v1608
      %v1610 = vpop.f32.mrf.mxu0
      %v1611 = vpop.f32.mrf.mxu0
      %v1612 = vadd.f32 %v1547, %v1611
      %v1613 = vpop.f32.mrf.mxu0
      %1614 = vdwg.mxu0
      %v1623 = vcombine.high %v1585, %v1585
      %v1625 = vunpack.c.l.s4 1983009808
      %v1626 = vunpack.c.0.s8 %v1625
      %v1627 = vlaneseq
      %v1628 = vshrl.u32 %v1627, 7
      %v1629 = vsub.s32 %v1626, %v1628
      %v1630 = vrot.slane %v1585, %v1629
      %v1632 = vunpack.c.l.s4 1983009808
      %v1633 = vunpack.c.0.s8 %v1632
      %v1634 = vlaneseq
      %v1635 = vshrl.u32 %v1634, 7
      %v1636 = vsub.s32 %v1633, %v1635
      %v1637 = vrot.slane %v1623, %v1636
      %v1638 = vcombine.high %v1630, %v1630
      %v1639 = vcombine.high %v1637, %v1637
      %v1640 = vcombine.high %v1588, %v1588
      %v1642 = vunpack.c.l.s4 1983009808
      %v1643 = vunpack.c.0.s8 %v1642
      %v1644 = vlaneseq
      %v1645 = vshrl.u32 %v1644, 7
      %v1646 = vsub.s32 %v1643, %v1645
      %v1647 = vrot.slane %v1588, %v1646
      %v1649 = vunpack.c.l.s4 1983009808
      %v1650 = vunpack.c.0.s8 %v1649
      %v1651 = vlaneseq
      %v1652 = vshrl.u32 %v1651, 7
      %v1653 = vsub.s32 %v1650, %v1652
      %v1654 = vrot.slane %v1640, %v1653
      %v1655 = vcombine.high %v1647, %v1647
      %v1656 = vcombine.high %v1654, %v1654
      %v1657 = vcombine.high %v1593, %v1593
      %v1659 = vunpack.c.l.s4 1983009808
      %v1660 = vunpack.c.0.s8 %v1659
      %v1661 = vlaneseq
      %v1662 = vshrl.u32 %v1661, 7
      %v1663 = vsub.s32 %v1660, %v1662
      %v1664 = vrot.slane %v1593, %v1663
      %v1666 = vunpack.c.l.s4 1983009808
      %v1667 = vunpack.c.0.s8 %v1666
      %v1668 = vlaneseq
      %v1669 = vshrl.u32 %v1668, 7
      %v1670 = vsub.s32 %v1667, %v1669
      %v1671 = vrot.slane %v1657, %v1670
      %v1672 = vcombine.high %v1664, %v1664
      %v1673 = vcombine.high %v1671, %v1671
      %v1674 = vcombine.high %v1596, %v1596
      %v1676 = vunpack.c.l.s4 1983009808
      %v1677 = vunpack.c.0.s8 %v1676
      %v1678 = vlaneseq
      %v1679 = vshrl.u32 %v1678, 7
      %v1680 = vsub.s32 %v1677, %v1679
      %v1681 = vrot.slane %v1596, %v1680
      %v1683 = vunpack.c.l.s4 1983009808
      %v1684 = vunpack.c.0.s8 %v1683
      %v1685 = vlaneseq
      %v1686 = vshrl.u32 %v1685, 7
      %v1687 = vsub.s32 %v1684, %v1686
      %v1688 = vrot.slane %v1674, %v1687
      %v1689 = vcombine.high %v1681, %v1681
      %v1690 = vcombine.high %v1688, %v1688
      %v1691 = vcombine.high %v1601, %v1601
      %v1693 = vunpack.c.l.s4 1983009808
      %v1694 = vunpack.c.0.s8 %v1693
      %v1695 = vlaneseq
      %v1696 = vshrl.u32 %v1695, 7
      %v1697 = vsub.s32 %v1694, %v1696
      %v1698 = vrot.slane %v1601, %v1697
      %v1700 = vunpack.c.l.s4 1983009808
      %v1701 = vunpack.c.0.s8 %v1700
      %v1702 = vlaneseq
      %v1703 = vshrl.u32 %v1702, 7
      %v1704 = vsub.s32 %v1701, %v1703
      %v1705 = vrot.slane %v1691, %v1704
      %v1706 = vcombine.high %v1698, %v1698
      %v1707 = vcombine.high %v1705, %v1705
      %v1708 = vcombine.high %v1604, %v1604
      %v1710 = vunpack.c.l.s4 1983009808
      %v1711 = vunpack.c.0.s8 %v1710
      %v1712 = vlaneseq
      %v1713 = vshrl.u32 %v1712, 7
      %v1714 = vsub.s32 %v1711, %v1713
      %v1715 = vrot.slane %v1604, %v1714
      %v1717 = vunpack.c.l.s4 1983009808
      %v1718 = vunpack.c.0.s8 %v1717
      %v1719 = vlaneseq
      %v1720 = vshrl.u32 %v1719, 7
      %v1721 = vsub.s32 %v1718, %v1720
      %v1722 = vrot.slane %v1708, %v1721
      %v1723 = vcombine.high %v1715, %v1715
      %v1724 = vcombine.high %v1722, %v1722
      %v1725 = vcombine.high %v1609, %v1609
      %v1727 = vunpack.c.l.s4 1983009808
      %v1728 = vunpack.c.0.s8 %v1727
      %v1729 = vlaneseq
      %v1730 = vshrl.u32 %v1729, 7
      %v1731 = vsub.s32 %v1728, %v1730
      %v1732 = vrot.slane %v1609, %v1731
      %v1734 = vunpack.c.l.s4 1983009808
      %v1735 = vunpack.c.0.s8 %v1734
      %v1736 = vlaneseq
      %v1737 = vshrl.u32 %v1736, 7
      %v1738 = vsub.s32 %v1735, %v1737
      %v1739 = vrot.slane %v1725, %v1738
      %v1740 = vcombine.high %v1732, %v1732
      %v1741 = vcombine.high %v1739, %v1739
      %v1742 = vcombine.high %v1612, %v1612
      %v1744 = vunpack.c.l.s4 1983009808
      %v1745 = vunpack.c.0.s8 %v1744
      %v1746 = vlaneseq
      %v1747 = vshrl.u32 %v1746, 7
      %v1748 = vsub.s32 %v1745, %v1747
      %v1749 = vrot.slane %v1612, %v1748
      %v1751 = vunpack.c.l.s4 1983009808
      %v1752 = vunpack.c.0.s8 %v1751
      %v1753 = vlaneseq
      %v1754 = vshrl.u32 %v1753, 7
      %v1755 = vsub.s32 %v1752, %v1754
      %v1756 = vrot.slane %v1742, %v1755
      %v1757 = vcombine.high %v1749, %v1749
      %v1758 = vcombine.high %v1756, %v1756
      %v1791 = vrot.slane %v1630, 7
      %v1792 = vrot.slane %v1791, 2
      %v1793 = vrot.slane %v1638, 7
      %v1794 = vrot.slane %v1793, 2
      %v1795 = vrot.slane %v1637, 7
      %v1796 = vrot.slane %v1795, 2
      %v1797 = vrot.slane %v1639, 7
      %v1798 = vrot.slane %v1797, 2
      %v1799 = vrot.slane %v1647, 7
      %v1800 = vrot.slane %v1799, 2
      %v1801 = vrot.slane %v1655, 7
      %v1802 = vrot.slane %v1801, 2
      %v1803 = vrot.slane %v1654, 7
      %v1804 = vrot.slane %v1803, 2
      %v1805 = vrot.slane %v1656, 7
      %v1806 = vrot.slane %v1805, 2
      %v1807 = vrot.slane %v1664, 7
      %v1808 = vrot.slane %v1807, 2
      %v1809 = vrot.slane %v1672, 7
      %v1810 = vrot.slane %v1809, 2
      %v1811 = vrot.slane %v1671, 7
      %v1812 = vrot.slane %v1811, 2
      %v1813 = vrot.slane %v1673, 7
      %v1814 = vrot.slane %v1813, 2
      %v1815 = vrot.slane %v1681, 7
      %v1816 = vrot.slane %v1815, 2
      %v1817 = vrot.slane %v1689, 7
      %v1818 = vrot.slane %v1817, 2
      %v1819 = vrot.slane %v1688, 7
      %v1820 = vrot.slane %v1819, 2
      %v1821 = vrot.slane %v1690, 7
      %v1822 = vrot.slane %v1821, 2
      %v1823 = vrot.slane %v1698, 7
      %v1824 = vrot.slane %v1823, 2
      %v1825 = vrot.slane %v1706, 7
      %v1826 = vrot.slane %v1825, 2
      %v1827 = vrot.slane %v1705, 7
      %v1828 = vrot.slane %v1827, 2
      %v1829 = vrot.slane %v1707, 7
      %v1830 = vrot.slane %v1829, 2
      %v1831 = vrot.slane %v1715, 7
      %v1832 = vrot.slane %v1831, 2
      %v1833 = vrot.slane %v1723, 7
      %v1834 = vrot.slane %v1833, 2
      %v1835 = vrot.slane %v1722, 7
      %v1836 = vrot.slane %v1835, 2
      %v1837 = vrot.slane %v1724, 7
      %v1838 = vrot.slane %v1837, 2
      %v1839 = vrot.slane %v1732, 7
      %v1840 = vrot.slane %v1839, 2
      %v1841 = vrot.slane %v1740, 7
      %v1842 = vrot.slane %v1841, 2
      %v1843 = vrot.slane %v1739, 7
      %v1844 = vrot.slane %v1843, 2
      %v1845 = vrot.slane %v1741, 7
      %v1846 = vrot.slane %v1845, 2
      %v1847 = vrot.slane %v1749, 7
      %v1848 = vrot.slane %v1847, 2
      %v1849 = vrot.slane %v1757, 7
      %v1850 = vrot.slane %v1849, 2
      %v1851 = vrot.slane %v1756, 7
      %v1852 = vrot.slane %v1851, 2
      %v1853 = vrot.slane %v1758, 7
      %v1854 = vrot.slane %v1853, 2
      %v1887 = vmax.f32 %v1630, %v1792
      %v1888 = vmax.f32 %v1638, %v1794
      %v1889 = vmax.f32 %v1637, %v1796
      %v1890 = vmax.f32 %v1639, %v1798
      %v1891 = vmax.f32 %v1647, %v1800
      %v1892 = vmax.f32 %v1655, %v1802
      %v1893 = vmax.f32 %v1654, %v1804
      %v1894 = vmax.f32 %v1656, %v1806
      %v1895 = vmax.f32 %v1664, %v1808
      %v1896 = vmax.f32 %v1672, %v1810
      %v1897 = vmax.f32 %v1671, %v1812
      %v1898 = vmax.f32 %v1673, %v1814
      %v1899 = vmax.f32 %v1681, %v1816
      %v1900 = vmax.f32 %v1689, %v1818
      %v1901 = vmax.f32 %v1688, %v1820
      %v1902 = vmax.f32 %v1690, %v1822
      %v1903 = vmax.f32 %v1698, %v1824
      %v1904 = vmax.f32 %v1706, %v1826
      %v1905 = vmax.f32 %v1705, %v1828
      %v1906 = vmax.f32 %v1707, %v1830
      %v1907 = vmax.f32 %v1715, %v1832
      %v1908 = vmax.f32 %v1723, %v1834
      %v1909 = vmax.f32 %v1722, %v1836
      %v1910 = vmax.f32 %v1724, %v1838
      %v1911 = vmax.f32 %v1732, %v1840
      %v1912 = vmax.f32 %v1740, %v1842
      %v1913 = vmax.f32 %v1739, %v1844
      %v1914 = vmax.f32 %v1741, %v1846
      %v1915 = vmax.f32 %v1749, %v1848
      %v1916 = vmax.f32 %v1757, %v1850
      %v1917 = vmax.f32 %v1756, %v1852
      %v1918 = vmax.f32 %v1758, %v1854
      %v1919 = vmax.f32 %v1887, %v1891
      %v1920 = vmax.f32 %v1888, %v1892
      %v1921 = vmax.f32 %v1889, %v1893
      %v1922 = vmax.f32 %v1890, %v1894
      %v1923 = vmax.f32 %v1895, %v1899
      %v1924 = vmax.f32 %v1896, %v1900
      %v1925 = vmax.f32 %v1897, %v1901
      %v1926 = vmax.f32 %v1898, %v1902
      %v1927 = vmax.f32 %v1903, %v1907
      %v1928 = vmax.f32 %v1904, %v1908
      %v1929 = vmax.f32 %v1905, %v1909
      %v1930 = vmax.f32 %v1906, %v1910
      %v1931 = vmax.f32 %v1911, %v1915
      %v1932 = vmax.f32 %v1912, %v1916
      %v1933 = vmax.f32 %v1913, %v1917
      %v1934 = vmax.f32 %v1914, %v1918
      %v1935 = vld [vmem:[%s2] sm:$0x1]
      %v1937 = vlaneseq
      %v1938 = vshrl.u32 %v1937, 7
      %v1939 = vsub.s32 0, %v1938
      %v1940 = vrot.slane %v1935, %v1939
      %v1942 = vunpack.c.l.s4 1983009808
      %v1943 = vunpack.c.0.s8 %v1942
      %v1944 = vlaneseq
      %v1945 = vshrl.u32 %v1944, 7
      %v1946 = vsub.s32 %v1943, %v1945
      %v1947 = vrot.slane %v1940, %v1946
      %v1948 = vcombine.high %v1947, %v1947
      %v1949 = vrot.slane %v1947, 1
      %v1950 = vrot.slane %v1948, 1
      %v1955 = vadd.f32 %v1919, %v1947
      %v1956 = vadd.f32 %v1920, %v1949
      %v1957 = vadd.f32 %v1921, %v1948
      %v1958 = vadd.f32 %v1922, %v1950
      %v1959 = vadd.f32 %v1923, %v1947
      %v1960 = vadd.f32 %v1924, %v1949
      %v1961 = vadd.f32 %v1925, %v1948
      %v1962 = vadd.f32 %v1926, %v1950
      %v1963 = vadd.f32 %v1927, %v1947
      %v1964 = vadd.f32 %v1928, %v1949
      %v1965 = vadd.f32 %v1929, %v1948
      %v1966 = vadd.f32 %v1930, %v1950
      %v1967 = vadd.f32 %v1931, %v1947
      %v1968 = vadd.f32 %v1932, %v1949
      %v1969 = vadd.f32 %v1933, %v1948
      %v1970 = vadd.f32 %v1934, %v1950
      %v1971 = vmax.f32 %v1955, 0.0
      %v1972 = vmax.f32 %v1956, 0.0
      %v1973 = vmax.f32 %v1957, 0.0
      %v1974 = vmax.f32 %v1958, 0.0
      %v1975 = vmax.f32 %v1959, 0.0
      %v1976 = vmax.f32 %v1960, 0.0
      %v1977 = vmax.f32 %v1961, 0.0
      %v1978 = vmax.f32 %v1962, 0.0
      %v1979 = vmax.f32 %v1963, 0.0
      %v1980 = vmax.f32 %v1964, 0.0
      %v1981 = vmax.f32 %v1965, 0.0
      %v1982 = vmax.f32 %v1966, 0.0
      %v1983 = vmax.f32 %v1967, 0.0
      %v1984 = vmax.f32 %v1968, 0.0
      %v1985 = vmax.f32 %v1969, 0.0
      %v1986 = vmax.f32 %v1970, 0.0
      %v1987 = vpack.c.bf16 %v1971, %v1971
      %v1988 = vpack.c.bf16 %v1972, %v1972
      %v1989 = vpack.c.bf16 %v1973, %v1973
      %v1990 = vpack.c.bf16 %v1974, %v1974
      %v1991 = vpack.c.bf16 %v1975, %v1975
      %v1992 = vpack.c.bf16 %v1976, %v1976
      %v1993 = vpack.c.bf16 %v1977, %v1977
      %v1994 = vpack.c.bf16 %v1978, %v1978
      %v1995 = vpack.c.bf16 %v1979, %v1979
      %v1996 = vpack.c.bf16 %v1980, %v1980
      %v1997 = vpack.c.bf16 %v1981, %v1981
      %v1998 = vpack.c.bf16 %v1982, %v1982
      %v1999 = vpack.c.bf16 %v1983, %v1983
      %v2000 = vpack.c.bf16 %v1984, %v1984
      %v2001 = vpack.c.bf16 %v1985, %v1985
      %v2002 = vpack.c.bf16 %v1986, %v1986
      %v2020 = vunpack.c.l.s4 1983009808
      %v2021 = vunpack.c.0.s8 %v2020
      %v2022 = vlaneseq
      %v2023 = vshrl.u32 %v2022, 7
      %v2024 = vsub.s32 %v2021, %v2023
      %v2025 = vrot.slane %v1987, %v2024
      %v2027 = vunpack.c.l.s4 1983009808
      %v2028 = vunpack.c.0.s8 %v2027
      %v2029 = vlaneseq
      %v2030 = vshrl.u32 %v2029, 7
      %v2031 = vsub.s32 %v2028, %v2030
      %v2032 = vrot.slane %v1988, %v2031
      %v2034 = vunpack.c.l.s4 1983009808
      %v2035 = vunpack.c.0.s8 %v2034
      %v2036 = vlaneseq
      %v2037 = vshrl.u32 %v2036, 7
      %v2038 = vsub.s32 %v2035, %v2037
      %v2039 = vrot.slane %v1989, %v2038
      %v2041 = vunpack.c.l.s4 1983009808
      %v2042 = vunpack.c.0.s8 %v2041
      %v2043 = vlaneseq
      %v2044 = vshrl.u32 %v2043, 7
      %v2045 = vsub.s32 %v2042, %v2044
      %v2046 = vrot.slane %v1990, %v2045
      %v2048 = vunpack.c.l.s4 1983009808
      %v2049 = vunpack.c.0.s8 %v2048
      %v2050 = vlaneseq
      %v2051 = vshrl.u32 %v2050, 7
      %v2052 = vsub.s32 %v2049, %v2051
      %v2053 = vrot.slane %v1991, %v2052
      %v2055 = vunpack.c.l.s4 1983009808
      %v2056 = vunpack.c.0.s8 %v2055
      %v2057 = vlaneseq
      %v2058 = vshrl.u32 %v2057, 7
      %v2059 = vsub.s32 %v2056, %v2058
      %v2060 = vrot.slane %v1992, %v2059
      %v2062 = vunpack.c.l.s4 1983009808
      %v2063 = vunpack.c.0.s8 %v2062
      %v2064 = vlaneseq
      %v2065 = vshrl.u32 %v2064, 7
      %v2066 = vsub.s32 %v2063, %v2065
      %v2067 = vrot.slane %v1993, %v2066
      %v2069 = vunpack.c.l.s4 1983009808
      %v2070 = vunpack.c.0.s8 %v2069
      %v2071 = vlaneseq
      %v2072 = vshrl.u32 %v2071, 7
      %v2073 = vsub.s32 %v2070, %v2072
      %v2074 = vrot.slane %v1994, %v2073
      %v2076 = vunpack.c.l.s4 1983009808
      %v2077 = vunpack.c.0.s8 %v2076
      %v2078 = vlaneseq
      %v2079 = vshrl.u32 %v2078, 7
      %v2080 = vsub.s32 %v2077, %v2079
      %v2081 = vrot.slane %v1995, %v2080
      %v2083 = vunpack.c.l.s4 1983009808
      %v2084 = vunpack.c.0.s8 %v2083
      %v2085 = vlaneseq
      %v2086 = vshrl.u32 %v2085, 7
      %v2087 = vsub.s32 %v2084, %v2086
      %v2088 = vrot.slane %v1996, %v2087
      %v2090 = vunpack.c.l.s4 1983009808
      %v2091 = vunpack.c.0.s8 %v2090
      %v2092 = vlaneseq
      %v2093 = vshrl.u32 %v2092, 7
      %v2094 = vsub.s32 %v2091, %v2093
      %v2095 = vrot.slane %v1997, %v2094
      %v2097 = vunpack.c.l.s4 1983009808
      %v2098 = vunpack.c.0.s8 %v2097
      %v2099 = vlaneseq
      %v2100 = vshrl.u32 %v2099, 7
      %v2101 = vsub.s32 %v2098, %v2100
      %v2102 = vrot.slane %v1998, %v2101
      %v2104 = vunpack.c.l.s4 1983009808
      %v2105 = vunpack.c.0.s8 %v2104
      %v2106 = vlaneseq
      %v2107 = vshrl.u32 %v2106, 7
      %v2108 = vsub.s32 %v2105, %v2107
      %v2109 = vrot.slane %v1999, %v2108
      %v2111 = vunpack.c.l.s4 1983009808
      %v2112 = vunpack.c.0.s8 %v2111
      %v2113 = vlaneseq
      %v2114 = vshrl.u32 %v2113, 7
      %v2115 = vsub.s32 %v2112, %v2114
      %v2116 = vrot.slane %v2000, %v2115
      %v2118 = vunpack.c.l.s4 1983009808
      %v2119 = vunpack.c.0.s8 %v2118
      %v2120 = vlaneseq
      %v2121 = vshrl.u32 %v2120, 7
      %v2122 = vsub.s32 %v2119, %v2121
      %v2123 = vrot.slane %v2001, %v2122
      %v2125 = vunpack.c.l.s4 1983009808
      %v2126 = vunpack.c.0.s8 %v2125
      %v2127 = vlaneseq
      %v2128 = vshrl.u32 %v2127, 7
      %v2129 = vsub.s32 %v2126, %v2128
      %v2130 = vrot.slane %v2002, %v2129
      %v2132 = vunpack.c.l.s4 1983009808
      %v2133 = vunpack.c.0.s8 %v2132
      %v2134 = vlaneseq
      %v2135 = vshrl.u32 %v2134, 7
      %v2136 = vsub.s32 %v2133, %v2135
      %v2137 = vrot.slane %v2025, %v2136
      %v2139 = vunpack.c.l.s4 1983009808
      %v2140 = vunpack.c.0.s8 %v2139
      %v2141 = vlaneseq
      %v2142 = vshrl.u32 %v2141, 7
      %v2143 = vsub.s32 %v2140, %v2142
      %v2144 = vrot.slane %v2032, %v2143
      %v2146 = vunpack.c.l.s4 1983009808
      %v2147 = vunpack.c.0.s8 %v2146
      %v2148 = vlaneseq
      %v2149 = vshrl.u32 %v2148, 7
      %v2150 = vsub.s32 %v2147, %v2149
      %v2151 = vrot.slane %v2039, %v2150
      %v2153 = vunpack.c.l.s4 1983009808
      %v2154 = vunpack.c.0.s8 %v2153
      %v2155 = vlaneseq
      %v2156 = vshrl.u32 %v2155, 7
      %v2157 = vsub.s32 %v2154, %v2156
      %v2158 = vrot.slane %v2046, %v2157
      %v2160 = vunpack.c.l.s4 1983009808
      %v2161 = vunpack.c.0.s8 %v2160
      %v2162 = vlaneseq
      %v2163 = vshrl.u32 %v2162, 7
      %v2164 = vsub.s32 %v2161, %v2163
      %v2165 = vrot.slane %v2053, %v2164
      %v2167 = vunpack.c.l.s4 1983009808
      %v2168 = vunpack.c.0.s8 %v2167
      %v2169 = vlaneseq
      %v2170 = vshrl.u32 %v2169, 7
      %v2171 = vsub.s32 %v2168, %v2170
      %v2172 = vrot.slane %v2060, %v2171
      %v2174 = vunpack.c.l.s4 1983009808
      %v2175 = vunpack.c.0.s8 %v2174
      %v2176 = vlaneseq
      %v2177 = vshrl.u32 %v2176, 7
      %v2178 = vsub.s32 %v2175, %v2177
      %v2179 = vrot.slane %v2067, %v2178
      %v2181 = vunpack.c.l.s4 1983009808
      %v2182 = vunpack.c.0.s8 %v2181
      %v2183 = vlaneseq
      %v2184 = vshrl.u32 %v2183, 7
      %v2185 = vsub.s32 %v2182, %v2184
      %v2186 = vrot.slane %v2074, %v2185
      %v2188 = vunpack.c.l.s4 1983009808
      %v2189 = vunpack.c.0.s8 %v2188
      %v2190 = vlaneseq
      %v2191 = vshrl.u32 %v2190, 7
      %v2192 = vsub.s32 %v2189, %v2191
      %v2193 = vrot.slane %v2081, %v2192
      %v2195 = vunpack.c.l.s4 1983009808
      %v2196 = vunpack.c.0.s8 %v2195
      %v2197 = vlaneseq
      %v2198 = vshrl.u32 %v2197, 7
      %v2199 = vsub.s32 %v2196, %v2198
      %v2200 = vrot.slane %v2088, %v2199
      %v2202 = vunpack.c.l.s4 1983009808
      %v2203 = vunpack.c.0.s8 %v2202
      %v2204 = vlaneseq
      %v2205 = vshrl.u32 %v2204, 7
      %v2206 = vsub.s32 %v2203, %v2205
      %v2207 = vrot.slane %v2095, %v2206
      %v2209 = vunpack.c.l.s4 1983009808
      %v2210 = vunpack.c.0.s8 %v2209
      %v2211 = vlaneseq
      %v2212 = vshrl.u32 %v2211, 7
      %v2213 = vsub.s32 %v2210, %v2212
      %v2214 = vrot.slane %v2102, %v2213
      %v2216 = vunpack.c.l.s4 1983009808
      %v2217 = vunpack.c.0.s8 %v2216
      %v2218 = vlaneseq
      %v2219 = vshrl.u32 %v2218, 7
      %v2220 = vsub.s32 %v2217, %v2219
      %v2221 = vrot.slane %v2109, %v2220
      %v2223 = vunpack.c.l.s4 1983009808
      %v2224 = vunpack.c.0.s8 %v2223
      %v2225 = vlaneseq
      %v2226 = vshrl.u32 %v2225, 7
      %v2227 = vsub.s32 %v2224, %v2226
      %v2228 = vrot.slane %v2116, %v2227
      %v2230 = vunpack.c.l.s4 1983009808
      %v2231 = vunpack.c.0.s8 %v2230
      %v2232 = vlaneseq
      %v2233 = vshrl.u32 %v2232, 7
      %v2234 = vsub.s32 %v2231, %v2233
      %v2235 = vrot.slane %v2123, %v2234
      %v2237 = vunpack.c.l.s4 1983009808
      %v2238 = vunpack.c.0.s8 %v2237
      %v2239 = vlaneseq
      %v2240 = vshrl.u32 %v2239, 7
      %v2241 = vsub.s32 %v2238, %v2240
      %v2242 = vrot.slane %v2130, %v2241
      %v2243 = vunpack.c.l.b16 %v2137
      %v2244 = vunpack.c.l.b16 %v2144
      %v2245 = vunpack.c.l.b16 %v2151
      %v2246 = vunpack.c.l.b16 %v2158
      %v2247 = vunpack.c.l.b16 %v2165
      %v2248 = vunpack.c.l.b16 %v2172
      %v2249 = vunpack.c.l.b16 %v2179
      %v2250 = vunpack.c.l.b16 %v2186
      %v2251 = vunpack.c.l.b16 %v2193
      %v2252 = vunpack.c.l.b16 %v2200
      %v2253 = vunpack.c.l.b16 %v2207
      %v2254 = vunpack.c.l.b16 %v2214
      %v2255 = vunpack.c.l.b16 %v2221
      %v2256 = vunpack.c.l.b16 %v2228
      %v2257 = vunpack.c.l.b16 %v2235
      %v2258 = vunpack.c.l.b16 %v2242
      %v2259 = vrot.slane %v2244, 7
      %vm2260 = vcmask 1041409
      %v2261 = vsel %vm2260, %v2259, %v2243
      %v2262 = vrot.slane %v2245, 6
      %vm2263 = vcmask 1042434
      %v2264 = vsel %vm2263, %v2262, %v2261
      %v2265 = vrot.slane %v2246, 5
      %vm2266 = vcmask 1043459
      %v2267 = vsel %vm2266, %v2265, %v2264
      %v2268 = vrot.slane %v2248, 7
      %v2269 = vsel %vm2260, %v2268, %v2247
      %v2270 = vrot.slane %v2249, 6
      %v2271 = vsel %vm2263, %v2270, %v2269
      %v2272 = vrot.slane %v2250, 5
      %v2273 = vsel %vm2266, %v2272, %v2271
      %v2274 = vrot.slane %v2252, 7
      %v2275 = vsel %vm2260, %v2274, %v2251
      %v2276 = vrot.slane %v2253, 6
      %v2277 = vsel %vm2263, %v2276, %v2275
      %v2278 = vrot.slane %v2254, 5
      %v2279 = vsel %vm2266, %v2278, %v2277
      %v2280 = vrot.slane %v2256, 7
      %v2281 = vsel %vm2260, %v2280, %v2255
      %v2282 = vrot.slane %v2257, 6
      %v2283 = vsel %vm2263, %v2282, %v2281
      %v2284 = vrot.slane %v2258, 5
      %v2285 = vsel %vm2266, %v2284, %v2283
      %v2286 = vpack.c.b16 %v2267, %v2267
      %v2287 = vpack.c.b16 %v2273, %v2273
      %v2288 = vpack.c.b16 %v2279, %v2279
      %v2289 = vpack.c.b16 %v2285, %v2285
      %v2291 = vunpack.c.l.s4 1983009808
      %v2292 = vunpack.c.0.s8 %v2291
      %v2293 = vlaneseq
      %v2294 = vshrl.u32 %v2293, 7
      %v2295 = vsub.s32 %v2292, %v2294
      %v2296 = vrot.slane %v2286, %v2295
      %v2298 = vunpack.c.l.s4 1983009808
      %v2299 = vunpack.c.0.s8 %v2298
      %v2300 = vlaneseq
      %v2301 = vshrl.u32 %v2300, 7
      %v2302 = vsub.s32 %v2299, %v2301
      %v2303 = vrot.slane %v2287, %v2302
      %v2305 = vunpack.c.l.s4 1983009808
      %v2306 = vunpack.c.0.s8 %v2305
      %v2307 = vlaneseq
      %v2308 = vshrl.u32 %v2307, 7
      %v2309 = vsub.s32 %v2306, %v2308
      %v2310 = vrot.slane %v2288, %v2309
      %v2312 = vunpack.c.l.s4 1983009808
      %v2313 = vunpack.c.0.s8 %v2312
      %v2314 = vlaneseq
      %v2315 = vshrl.u32 %v2314, 7
      %v2316 = vsub.s32 %v2313, %v2315
      %v2317 = vrot.slane %v2289, %v2316
      %2322 = vst [vmem:[%s170] sm:$0x3] %v2296
      %2323 = vst [vmem:[%s170 + $0x2] sm:$0x3] %v2303
      %2324 = vst [vmem:[%s170 + $0x4] sm:$0x3] %v2310
      %2325 = vst [vmem:[%s170 + $0x6] sm:$0x3] %v2317
      %p2326 = scmp.lt.s32.totalorder %s14, 1
      %s2327 = scalar_select %p2326, %s14, 1
      %s2328 = smul.addr %s2327, 4
      %s2329 = smul.addr %s2328, 2
      %s2330 = scalar_lea.vmem %s3, %s2329
      // Predicated region
      $region33: #{simple_cnn_forward.5} parent=31 // pred_check
        %p2331 = pneg %p100
      $region34: #{simple_cnn_forward.5} parent=31 // pred_check_branch
        %2333 = sbr.rel (%p2331) target = $region36
      $region35: #{simple_cnn_forward.5} parent=31 // pred_region
        _
      $region36: #{simple_cnn_forward.5} parent=31 // pred_fallthru
        _
    $region32: #{simple_cnn_forward.5} parent=5 // pred_fallthru
      _
    %p2334 = scmp.le.s32.totalorder 2, %s9
    // Predicated region
    $region37: #{simple_cnn_forward.5} parent=5 // pred_check
      %p2335 = pneg %p2334
    $region38: #{simple_cnn_forward.5} parent=5 // pred_check_branch
      %2337 = sbr.rel (%p2335) target = $region40
    $region39: #{simple_cnn_forward.5} parent=5 // pred_region
      %s2338 = ssub.s32 %s9, 2
      // Predicated region
      $region41: #{simple_cnn_forward.5} parent=39 // pred_check
        %p2339 = pneg %p106
      $region42: #{simple_cnn_forward.5} parent=39 // pred_check_branch
        %2341 = sbr.rel (%p2339) target = $region44
      $region43: #{simple_cnn_forward.5} parent=39 // pred_region
        %p2342 = scmp.lt.s32.totalorder %s15, 1
        %s2343 = scalar_select %p2342, %s15, 1
        %s2344 = smul.addr %s2343, 4
        %s2345 = smul.addr %s2344, 2
        %s2346 = scalar_lea.vmem %s3, %s2345
      $region44: #{simple_cnn_forward.5} parent=39 // pred_fallthru
        _
    $region40: #{simple_cnn_forward.5} parent=5 // pred_fallthru
      _
  $region6: #{simple_cnn_forward.5} parent=0 // loop_footer
    %s13 = sadd.s32 1, %s9
  $region7: #{simple_cnn_forward.5} parent=0 // loop_footer_branch
    %8 = sbr.rel target = $region3
  $region8: #{simple_cnn_forward.5} parent=0 // loop_exit
    _

// kernel: simple_cnn_forward.4
$region0: #{simple_cnn_forward.4}
  #allocation0 [shape = 'u32[]', space=smem, size = 0x4, offset = 0x4, fixed_abs, tag = 'smem constant byte address 0x4 - core index']
  #allocation1 [shape = 'u32[144,128]{1,0:T(1,128)}', space=vmem, size = 0x12000, scoped, tag = 'internal scratch']
  #allocation2 [shape = 'bf16[16,16,72]{2,1,0:T(8,128)(2,1)}', space=vmem, size = 0x10000, scoped, tag = 'scratch operand']
  %s0 = inlined_call_operand.vmem [shape: bf16[2,18,18,8], index: 0, kind: input, shape index: {}]
  %s1 = inlined_call_operand.vmem [shape: bf16[72,128], index: 1, kind: input, shape index: {}]
  %s2 = inlined_call_operand.vmem [shape: f32[1,128], index: 2, kind: input, shape index: {}]
  %s3 = inlined_call_operand.vmem [shape: bf16[2,8,8,128], index: 3, kind: output, shape index: {}]
  %s4 = sld [smem:[#allocation0]]
  $region45: #{simple_cnn_forward.4} parent=0
    _
  %s6 = ssub.s32 1, %s4
  %s7 = scalar_select 0, %s6, %s4
  loop: start=0, step=1, limit=4
  $region2: #{simple_cnn_forward.4} parent=0 // loop_pre_header
    _
  $region3: #{simple_cnn_forward.4} parent=0 // loop_header
    %s9 = sphi 0, %s13
    %p10 = scmp.ge.s32.totalorder %s9, 4
    %s19 = sphi 0, %s21
    %s22 = sphi 0, %s19
    %s23 = sphi 0, %s22
    %s39 = sphi 0, %s23
    %s43 = sphi 0, %s43
    %s45 = sphi 0, %s43
    %s46 = sphi 0, %s45
    %s60 = sphi 0, %s46
    %s64 = sphi 0, %s64
    %s66 = sphi 0, %s64
    %s67 = sphi 0, %s66
    %s81 = sphi 0, %s67
    %s87 = sphi 0, %s89
    %s90 = sphi 0, %s87
    %s91 = sphi 0, %s90
    %s107 = sphi 0, %s91
  $region4: #{simple_cnn_forward.4} parent=0 // loop_header_branch
    %12 = sbr.rel (%p10) target = $region8
  $region5: #{simple_cnn_forward.4} parent=0 // loop_body
    %s14 = ssub.s32 %s9, 1
    %s15 = ssub.s32 %s9, 2
    %s16 = sadd.s32 %s9, 1
    %s17 = ssub.s32 %s9, %s16
    %p18 = scmp.eq.s32.totalorder %s17, 0
    %s20 = sadd.s32 %s19, 1
    %s21 = scalar_select %p18, %s19, %s20
    %p24 = pneg %p18
    %p25 = scmp.eq.s32.totalorder %s9, 1
    %p26 = por %p24, %p25
    %p27 = scmp.ne.s32.totalorder %s19, %s22
    %p28 = scmp.eq.s32.totalorder %s9, 0
    %p29 = por %p27, %p28
    %p30 = scmp.ne.s32.totalorder %s19, %s22
    %p31 = scmp.eq.s32.totalorder %s14, 1
    %p32 = por %p30, %p31
    %p33 = scmp.ne.s32.totalorder %s22, %s23
    %p34 = scmp.eq.s32.totalorder %s14, 0
    %p35 = por %p33, %p34
    %p36 = scmp.ne.s32.totalorder %s22, %s23
    %p37 = scmp.eq.s32.totalorder %s15, 1
    %p38 = por %p36, %p37
    %p40 = scmp.ne.s32.totalorder %s23, %s39
    %p41 = scmp.eq.s32.totalorder %s15, 0
    %p42 = por %p40, %p41
    %s44 = sadd.s32 %s43, 1
    %p47 = scmp.eq.s32.totalorder %s9, 1
    %p48 = scmp.ne.s32.totalorder %s43, %s45
    %p49 = scmp.eq.s32.totalorder %s9, 0
    %p50 = por %p48, %p49
    %p51 = scmp.ne.s32.totalorder %s43, %s45
    %p52 = scmp.eq.s32.totalorder %s14, 1
    %p53 = por %p51, %p52
    %p54 = scmp.ne.s32.totalorder %s45, %s46
    %p55 = scmp.eq.s32.totalorder %s14, 0
    %p56 = por %p54, %p55
    %p57 = scmp.ne.s32.totalorder %s45, %s46
    %p58 = scmp.eq.s32.totalorder %s15, 1
    %p59 = por %p57, %p58
    %p61 = scmp.ne.s32.totalorder %s46, %s60
    %p62 = scmp.eq.s32.totalorder %s15, 0
    %p63 = por %p61, %p62
    %s65 = sadd.s32 %s64, 1
    %p68 = scmp.eq.s32.totalorder %s9, 1
    %p69 = scmp.ne.s32.totalorder %s64, %s66
    %p70 = scmp.eq.s32.totalorder %s9, 0
    %p71 = por %p69, %p70
    %p72 = scmp.ne.s32.totalorder %s64, %s66
    %p73 = scmp.eq.s32.totalorder %s14, 1
    %p74 = por %p72, %p73
    %p75 = scmp.ne.s32.totalorder %s66, %s67
    %p76 = scmp.eq.s32.totalorder %s14, 0
    %p77 = por %p75, %p76
    %p78 = scmp.ne.s32.totalorder %s66, %s67
    %p79 = scmp.eq.s32.totalorder %s15, 1
    %p80 = por %p78, %p79
    %p82 = scmp.ne.s32.totalorder %s67, %s81
    %p83 = scmp.eq.s32.totalorder %s15, 0
    %p84 = por %p82, %p83
    %s85 = ssub.s32 %s9, %s16
    %p86 = scmp.eq.s32.totalorder %s85, 0
    %s88 = sadd.s32 %s87, 1
    %s89 = scalar_select %p86, %s87, %s88
    %p92 = pneg %p86
    %p93 = scmp.eq.s32.totalorder %s9, 1
    %p94 = por %p92, %p93
    %p95 = scmp.ne.s32.totalorder %s87, %s90
    %p96 = scmp.eq.s32.totalorder %s9, 0
    %p97 = por %p95, %p96
    %p98 = scmp.ne.s32.totalorder %s87, %s90
    %p99 = scmp.eq.s32.totalorder %s14, 1
    %p100 = por %p98, %p99
    %p101 = scmp.ne.s32.totalorder %s90, %s91
    %p102 = scmp.eq.s32.totalorder %s14, 0
    %p103 = por %p101, %p102
    %p104 = scmp.ne.s32.totalorder %s90, %s91
    %p105 = scmp.eq.s32.totalorder %s15, 1
    %p106 = por %p104, %p105
    %p108 = scmp.ne.s32.totalorder %s91, %s107
    %p109 = scmp.eq.s32.totalorder %s15, 0
    %p110 = por %p108, %p109
    %p111 = scmp.le.s32.totalorder 1, %s9
    %p112 = scmp.lt.s32.totalorder %s9, 3
    %p113 = pnand %p111, %p112
    %p114 = pneg %p113
    // Predicated region
    $region9: #{simple_cnn_forward.4} parent=5 // pred_check
      _
    $region10: #{simple_cnn_forward.4} parent=5 // pred_check_branch
      %116 = sbr.rel (%p113) target = $region12
    $region11: #{simple_cnn_forward.4} parent=5 // pred_region
      %s117 = ssub.s32 %s9, 1
      // Predicated region
      $region13: #{simple_cnn_forward.4} parent=11 // pred_check
        %p118 = pneg %p56
      $region14: #{simple_cnn_forward.4} parent=11 // pred_check_branch
        %120 = sbr.rel (%p118) target = $region16
      $region15: #{simple_cnn_forward.4} parent=11 // pred_region
        _
      $region16: #{simple_cnn_forward.4} parent=11 // pred_fallthru
        _
      // Predicated region
      $region17: #{simple_cnn_forward.4} parent=11 // pred_check
        %p121 = pneg %p77
      $region18: #{simple_cnn_forward.4} parent=11 // pred_check_branch
        %123 = sbr.rel (%p121) target = $region20
      $region19: #{simple_cnn_forward.4} parent=11 // pred_region
        _
      $region20: #{simple_cnn_forward.4} parent=11 // pred_fallthru
        _
    $region12: #{simple_cnn_forward.4} parent=5 // pred_fallthru
      _
    %p124 = scmp.lt.s32.totalorder %s9, 2
    // Predicated region
    $region21: #{simple_cnn_forward.4} parent=5 // pred_check
      %p125 = pneg %p124
    $region22: #{simple_cnn_forward.4} parent=5 // pred_check_branch
      %127 = sbr.rel (%p125) target = $region24
    $region23: #{simple_cnn_forward.4} parent=5 // pred_region
      // Predicated region
      $region25: #{simple_cnn_forward.4} parent=23 // pred_check
        %p128 = pneg %p29
      $region26: #{simple_cnn_forward.4} parent=23 // pred_check_branch
        %130 = sbr.rel (%p128) target = $region28
      $region27: #{simple_cnn_forward.4} parent=23 // pred_region
        %p131 = scmp.lt.s32.totalorder %s9, 1
        %s132 = scalar_select %p131, %s9, 1
        %s133 = smul.addr %s132, 54
        %s134 = smul.addr %s133, 4
        %s135 = scalar_lea.vmem %s0, %s134
      $region28: #{simple_cnn_forward.4} parent=23 // pred_fallthru
        _
    $region24: #{simple_cnn_forward.4} parent=5 // pred_fallthru
      _
    %p136 = scmp.le.s32.totalorder 1, %s9
    %p137 = scmp.lt.s32.totalorder %s9, 3
    %p138 = pnand %p136, %p137
    %p139 = pneg %p138
    // Predicated region
    $region29: #{simple_cnn_forward.4} parent=5 // pred_check
      _
    $region30: #{simple_cnn_forward.4} parent=5 // pred_check_branch
      %141 = sbr.rel (%p138) target = $region32
    $region31: #{simple_cnn_forward.4} parent=5 // pred_region
      %s142 = ssub.s32 %s9, 1
      %p143 = scmp.lt.s32.totalorder %s14, 1
      %s144 = scalar_select %p143, %s14, 1
      %s145 = smul.addr %s144, 54
      %s146 = smul.addr %s145, 4
      %s147 = scalar_lea.vmem %s0, %s146
      %p148 = pneg %p35
      %p149 = pneg %p32
      %p150 = pneg %p56
      %p151 = pneg %p53
      %p152 = pneg %p77
      %p153 = pneg %p74
      %p154 = pneg %p103
      %p155 = pneg %p100
      %p156 = scmp.lt.s32.totalorder %s14, 1
      %s157 = scalar_select %p156, %s14, 1
      %s158 = smul.addr %s157, 8
      %s159 = smul.addr %s158, 4
      %s160 = scalar_lea.vmem %s3, %s159
      %p161 = scmp.lt.s32.totalorder %s14, 1
      %s162 = scalar_select %p161, %s14, 1
      %s163 = smul.addr %s162, 54
      %s164 = smul.addr %s163, 4
      %s165 = scalar_lea.vmem %s0, %s164
      %p166 = scmp.lt.s32.totalorder %s14, 1
      %s167 = scalar_select %p166, %s14, 1
      %s168 = smul.addr %s167, 8
      %s169 = smul.addr %s168, 4
      %s170 = scalar_lea.vmem %s3, %s169
      %v172 = vld [vmem:[%s165] sm:$0xf]
      %v173 = vld [vmem:[%s165 + $0x4] sm:$0xf]
      %v174 = vld [vmem:[%s165 + $0x8] sm:$0x1]
      %v175 = vld [vmem:[%s165 + $0xc] sm:$0xf]
      %v176 = vld [vmem:[%s165 + $0x10] sm:$0xf]
      %v177 = vld [vmem:[%s165 + $0x14] sm:$0x1]
      %v178 = vld [vmem:[%s165 + $0x18] sm:$0xf]
      %v179 = vld [vmem:[%s165 + $0x1c] sm:$0xf]
      %v180 = vld [vmem:[%s165 + $0x20] sm:$0x1]
      %v181 = vld [vmem:[%s165 + $0x24] sm:$0xf]
      %v182 = vld [vmem:[%s165 + $0x28] sm:$0xf]
      %v183 = vld [vmem:[%s165 + $0x2c] sm:$0x1]
      %v184 = vld [vmem:[%s165 + $0x30] sm:$0xf]
      %v185 = vld [vmem:[%s165 + $0x34] sm:$0xf]
      %v186 = vld [vmem:[%s165 + $0x38] sm:$0x1]
      %v187 = vld [vmem:[%s165 + $0x3c] sm:$0xf]
      %v188 = vld [vmem:[%s165 + $0x40] sm:$0xf]
      %v189 = vld [vmem:[%s165 + $0x44] sm:$0x1]
      %v190 = vld [vmem:[%s165 + $0x48] sm:$0xf]
      %v191 = vld [vmem:[%s165 + $0x4c] sm:$0xf]
      %v192 = vld [vmem:[%s165 + $0x50] sm:$0x1]
      %v193 = vld [vmem:[%s165 + $0x54] sm:$0xf]
      %v194 = vld [vmem:[%s165 + $0x58] sm:$0xf]
      %v195 = vld [vmem:[%s165 + $0x5c] sm:$0x1]
      %v196 = vld [vmem:[%s165 + $0x60] sm:$0xf]
      %v197 = vld [vmem:[%s165 + $0x64] sm:$0xf]
      %v198 = vld [vmem:[%s165 + $0x68] sm:$0x1]
      %v199 = vld [vmem:[%s165 + $0x6c] sm:$0xf]
      %v200 = vld [vmem:[%s165 + $0x70] sm:$0xf]
      %v201 = vld [vmem:[%s165 + $0x74] sm:$0x1]
      %v202 = vld [vmem:[%s165 + $0x78] sm:$0xf]
      %v203 = vld [vmem:[%s165 + $0x7c] sm:$0xf]
      %v204 = vld [vmem:[%s165 + $0x80] sm:$0x1]
      %v205 = vld [vmem:[%s165 + $0x84] sm:$0xf]
      %v206 = vld [vmem:[%s165 + $0x88] sm:$0xf]
      %v207 = vld [vmem:[%s165 + $0x8c] sm:$0x1]
      %v208 = vld [vmem:[%s165 + $0x90] sm:$0xf]
      %v209 = vld [vmem:[%s165 + $0x94] sm:$0xf]
      %v210 = vld [vmem:[%s165 + $0x98] sm:$0x1]
      %v211 = vld [vmem:[%s165 + $0x9c] sm:$0xf]
      %v212 = vld [vmem:[%s165 + $0xa0] sm:$0xf]
      %v213 = vld [vmem:[%s165 + $0xa4] sm:$0x1]
      %v214 = vld [vmem:[%s165 + $0xa8] sm:$0xf]
      %v215 = vld [vmem:[%s165 + $0xac] sm:$0xf]
      %v216 = vld [vmem:[%s165 + $0xb0] sm:$0x1]
      %v217 = vld [vmem:[%s165 + $0xb4] sm:$0xf]
      %v218 = vld [vmem:[%s165 + $0xb8] sm:$0xf]
      %v219 = vld [vmem:[%s165 + $0xbc] sm:$0x1]
      %v220 = vld [vmem:[%s165 + $0xc0] sm:$0xf]
      %v221 = vld [vmem:[%s165 + $0xc4] sm:$0xf]
      %v222 = vld [vmem:[%s165 + $0xc8] sm:$0x1]
      %v223 = vld [vmem:[%s165 + $0xcc] sm:$0xf]
      %v224 = vld [vmem:[%s165 + $0xd0] sm:$0xf]
      %v225 = vld [vmem:[%s165 + $0xd4] sm:$0x1]
      %vm226 = vcmask 60416
      %227 = vst.msk [vmem:[#allocation2] sm:$0xf] %vm226, %v172
      %228 = vst.msk [vmem:[#allocation2 + $0x4] sm:$0xf] %vm226, %v173
      %229 = vst.msk [vmem:[#allocation2 + $0x8] sm:$0xf] %vm226, %v175
      %230 = vst.msk [vmem:[#allocation2 + $0xc] sm:$0xf] %vm226, %v176
      %231 = vst.msk [vmem:[#allocation2 + $0x10] sm:$0xf] %vm226, %v178
      %232 = vst.msk [vmem:[#allocation2 + $0x14] sm:$0xf] %vm226, %v179
      %233 = vst.msk [vmem:[#allocation2 + $0x18] sm:$0xf] %vm226, %v181
      %234 = vst.msk [vmem:[#allocation2 + $0x1c] sm:$0xf] %vm226, %v182
      %235 = vst.msk [vmem:[#allocation2 + $0x20] sm:$0xf] %vm226, %v184
      %236 = vst.msk [vmem:[#allocation2 + $0x24] sm:$0xf] %vm226, %v185
      %237 = vst.msk [vmem:[#allocation2 + $0x28] sm:$0xf] %vm226, %v187
      %238 = vst.msk [vmem:[#allocation2 + $0x2c] sm:$0xf] %vm226, %v188
      %239 = vst.msk [vmem:[#allocation2 + $0x30] sm:$0xf] %vm226, %v190
      %240 = vst.msk [vmem:[#allocation2 + $0x34] sm:$0xf] %vm226, %v191
      %241 = vst.msk [vmem:[#allocation2 + $0x38] sm:$0xf] %vm226, %v193
      %242 = vst.msk [vmem:[#allocation2 + $0x3c] sm:$0xf] %vm226, %v194
      %243 = vst.msk [vmem:[#allocation2 + $0x40] sm:$0xf] %vm226, %v196
      %244 = vst.msk [vmem:[#allocation2 + $0x44] sm:$0xf] %vm226, %v197
      %245 = vst.msk [vmem:[#allocation2 + $0x48] sm:$0xf] %vm226, %v199
      %246 = vst.msk [vmem:[#allocation2 + $0x4c] sm:$0xf] %vm226, %v200
      %247 = vst.msk [vmem:[#allocation2 + $0x50] sm:$0xf] %vm226, %v202
      %248 = vst.msk [vmem:[#allocation2 + $0x54] sm:$0xf] %vm226, %v203
      %249 = vst.msk [vmem:[#allocation2 + $0x58] sm:$0xf] %vm226, %v205
      %250 = vst.msk [vmem:[#allocation2 + $0x5c] sm:$0xf] %vm226, %v206
      %251 = vst.msk [vmem:[#allocation2 + $0x60] sm:$0xf] %vm226, %v208
      %252 = vst.msk [vmem:[#allocation2 + $0x64] sm:$0xf] %vm226, %v209
      %253 = vst.msk [vmem:[#allocation2 + $0x68] sm:$0xf] %vm226, %v211
      %254 = vst.msk [vmem:[#allocation2 + $0x6c] sm:$0xf] %vm226, %v212
      %255 = vst.msk [vmem:[#allocation2 + $0x70] sm:$0xf] %vm226, %v214
      %256 = vst.msk [vmem:[#allocation2 + $0x74] sm:$0xf] %vm226, %v215
      %257 = vst.msk [vmem:[#allocation2 + $0x78] sm:$0xf] %vm226, %v217
      %258 = vst.msk [vmem:[#allocation2 + $0x7c] sm:$0xf] %vm226, %v218
      %vm259 = vsmask.f32 3328
      %vm260 = vsmask.f32 7440
      %vm261 = vmor %vm259, %vm260
      %v263 = vshrl.u32 %v172, 16
      %v265 = vrot.slane %v263, 4
      %v266 = vshll.u32 %v172, 16
      %v268 = vrot.slane %v266, 5
      %v269 = vor.u32 %v265, %v268
      %v270 = vrot.slane %v269, 4
      %v272 = vshll.u32 %v173, 16
      %v274 = vrot.slane %v272, 5
      %v275 = vsel %vm261, %v270, %v274
      %v276 = vshrl.u32 %v173, 16
      %v278 = vrot.slane %v276, 4
      %v279 = vor.u32 %v278, %v274
      %v280 = vrot.slane %v279, 4
      %v282 = vshll.u32 %v174, 16
      %v284 = vrot.slane %v282, 5
      %v285 = vsel %vm261, %v280, %v284
      %v287 = vshrl.u32 %v175, 16
      %v289 = vrot.slane %v287, 4
      %v290 = vshll.u32 %v175, 16
      %v292 = vrot.slane %v290, 5
      %v293 = vor.u32 %v289, %v292
      %v294 = vrot.slane %v293, 4
      %v296 = vshll.u32 %v176, 16
      %v298 = vrot.slane %v296, 5
      %v299 = vsel %vm261, %v294, %v298
      %v300 = vshrl.u32 %v176, 16
      %v302 = vrot.slane %v300, 4
      %v303 = vor.u32 %v302, %v298
      %v304 = vrot.slane %v303, 4
      %v306 = vshll.u32 %v177, 16
      %v308 = vrot.slane %v306, 5
      %v309 = vsel %vm261, %v304, %v308
      %v311 = vshrl.u32 %v178, 16
      %v313 = vrot.slane %v311, 4
      %v314 = vshll.u32 %v178, 16
      %v316 = vrot.slane %v314, 5
      %v317 = vor.u32 %v313, %v316
      %v318 = vrot.slane %v317, 4
      %v320 = vshll.u32 %v179, 16
      %v322 = vrot.slane %v320, 5
      %v323 = vsel %vm261, %v318, %v322
      %v324 = vshrl.u32 %v179, 16
      %v326 = vrot.slane %v324, 4
      %v327 = vor.u32 %v326, %v322
      %v328 = vrot.slane %v327, 4
      %v330 = vshll.u32 %v180, 16
      %v332 = vrot.slane %v330, 5
      %v333 = vsel %vm261, %v328, %v332
      %v335 = vshrl.u32 %v181, 16
      %v337 = vrot.slane %v335, 4
      %v338 = vshll.u32 %v181, 16
      %v340 = vrot.slane %v338, 5
      %v341 = vor.u32 %v337, %v340
      %v342 = vrot.slane %v341, 4
      %v344 = vshll.u32 %v182, 16
      %v346 = vrot.slane %v344, 5
      %v347 = vsel %vm261, %v342, %v346
      %v348 = vshrl.u32 %v182, 16
      %v350 = vrot.slane %v348, 4
      %v351 = vor.u32 %v350, %v346
      %v352 = vrot.slane %v351, 4
      %v354 = vshll.u32 %v183, 16
      %v356 = vrot.slane %v354, 5
      %v357 = vsel %vm261, %v352, %v356
      %v359 = vshrl.u32 %v184, 16
      %v361 = vrot.slane %v359, 4
      %v362 = vshll.u32 %v184, 16
      %v364 = vrot.slane %v362, 5
      %v365 = vor.u32 %v361, %v364
      %v366 = vrot.slane %v365, 4
      %v368 = vshll.u32 %v185, 16
      %v370 = vrot.slane %v368, 5
      %v371 = vsel %vm261, %v366, %v370
      %v372 = vshrl.u32 %v185, 16
      %v374 = vrot.slane %v372, 4
      %v375 = vor.u32 %v374, %v370
      %v376 = vrot.slane %v375, 4
      %v378 = vshll.u32 %v186, 16
      %v380 = vrot.slane %v378, 5
      %v381 = vsel %vm261, %v376, %v380
      %v383 = vshrl.u32 %v187, 16
      %v385 = vrot.slane %v383, 4
      %v386 = vshll.u32 %v187, 16
      %v388 = vrot.slane %v386, 5
      %v389 = vor.u32 %v385, %v388
      %v390 = vrot.slane %v389, 4
      %v392 = vshll.u32 %v188, 16
      %v394 = vrot.slane %v392, 5
      %v395 = vsel %vm261, %v390, %v394
      %v396 = vshrl.u32 %v188, 16
      %v398 = vrot.slane %v396, 4
      %v399 = vor.u32 %v398, %v394
      %v400 = vrot.slane %v399, 4
      %v402 = vshll.u32 %v189, 16
      %v404 = vrot.slane %v402, 5
      %v405 = vsel %vm261, %v400, %v404
      %v407 = vshrl.u32 %v190, 16
      %v409 = vrot.slane %v407, 4
      %v410 = vshll.u32 %v190, 16
      %v412 = vrot.slane %v410, 5
      %v413 = vor.u32 %v409, %v412
      %v414 = vrot.slane %v413, 4
      %v416 = vshll.u32 %v191, 16
      %v418 = vrot.slane %v416, 5
      %v419 = vsel %vm261, %v414, %v418
      %v420 = vshrl.u32 %v191, 16
      %v422 = vrot.slane %v420, 4
      %v423 = vor.u32 %v422, %v418
      %v424 = vrot.slane %v423, 4
      %v426 = vshll.u32 %v192, 16
      %v428 = vrot.slane %v426, 5
      %v429 = vsel %vm261, %v424, %v428
      %v431 = vshrl.u32 %v193, 16
      %v433 = vrot.slane %v431, 4
      %v434 = vshll.u32 %v193, 16
      %v436 = vrot.slane %v434, 5
      %v437 = vor.u32 %v433, %v436
      %v438 = vrot.slane %v437, 4
      %v440 = vshll.u32 %v194, 16
      %v442 = vrot.slane %v440, 5
      %v443 = vsel %vm261, %v438, %v442
      %v444 = vshrl.u32 %v194, 16
      %v446 = vrot.slane %v444, 4
      %v447 = vor.u32 %v446, %v442
      %v448 = vrot.slane %v447, 4
      %v450 = vshll.u32 %v195, 16
      %v452 = vrot.slane %v450, 5
      %v453 = vsel %vm261, %v448, %v452
      %v455 = vshrl.u32 %v196, 16
      %v457 = vrot.slane %v455, 4
      %v458 = vshll.u32 %v196, 16
      %v460 = vrot.slane %v458, 5
      %v461 = vor.u32 %v457, %v460
      %v462 = vrot.slane %v461, 4
      %v464 = vshll.u32 %v197, 16
      %v466 = vrot.slane %v464, 5
      %v467 = vsel %vm261, %v462, %v466
      %v468 = vshrl.u32 %v197, 16
      %v470 = vrot.slane %v468, 4
      %v471 = vor.u32 %v470, %v466
      %v472 = vrot.slane %v471, 4
      %v474 = vshll.u32 %v198, 16
      %v476 = vrot.slane %v474, 5
      %v477 = vsel %vm261, %v472, %v476
      %v479 = vshrl.u32 %v199, 16
      %v481 = vrot.slane %v479, 4
      %v482 = vshll.u32 %v199, 16
      %v484 = vrot.slane %v482, 5
      %v485 = vor.u32 %v481, %v484
      %v486 = vrot.slane %v485, 4
      %v488 = vshll.u32 %v200, 16
      %v490 = vrot.slane %v488, 5
      %v491 = vsel %vm261, %v486, %v490
      %v492 = vshrl.u32 %v200, 16
      %v494 = vrot.slane %v492, 4
      %v495 = vor.u32 %v494, %v490
      %v496 = vrot.slane %v495, 4
      %v498 = vshll.u32 %v201, 16
      %v500 = vrot.slane %v498, 5
      %v501 = vsel %vm261, %v496, %v500
      %v503 = vshrl.u32 %v202, 16
      %v505 = vrot.slane %v503, 4
      %v506 = vshll.u32 %v202, 16
      %v508 = vrot.slane %v506, 5
      %v509 = vor.u32 %v505, %v508
      %v510 = vrot.slane %v509, 4
      %v512 = vshll.u32 %v203, 16
      %v514 = vrot.slane %v512, 5
      %v515 = vsel %vm261, %v510, %v514
      %v516 = vshrl.u32 %v203, 16
      %v518 = vrot.slane %v516, 4
      %v519 = vor.u32 %v518, %v514
      %v520 = vrot.slane %v519, 4
      %v522 = vshll.u32 %v204, 16
      %v524 = vrot.slane %v522, 5
      %v525 = vsel %vm261, %v520, %v524
      %v527 = vshrl.u32 %v205, 16
      %v529 = vrot.slane %v527, 4
      %v530 = vshll.u32 %v205, 16
      %v532 = vrot.slane %v530, 5
      %v533 = vor.u32 %v529, %v532
      %v534 = vrot.slane %v533, 4
      %v536 = vshll.u32 %v206, 16
      %v538 = vrot.slane %v536, 5
      %v539 = vsel %vm261, %v534, %v538
      %v540 = vshrl.u32 %v206, 16
      %v542 = vrot.slane %v540, 4
      %v543 = vor.u32 %v542, %v538
      %v544 = vrot.slane %v543, 4
      %v546 = vshll.u32 %v207, 16
      %v548 = vrot.slane %v546, 5
      %v549 = vsel %vm261, %v544, %v548
      %v551 = vshrl.u32 %v208, 16
      %v553 = vrot.slane %v551, 4
      %v554 = vshll.u32 %v208, 16
      %v556 = vrot.slane %v554, 5
      %v557 = vor.u32 %v553, %v556
      %v558 = vrot.slane %v557, 4
      %v560 = vshll.u32 %v209, 16
      %v562 = vrot.slane %v560, 5
      %v563 = vsel %vm261, %v558, %v562
      %v564 = vshrl.u32 %v209, 16
      %v566 = vrot.slane %v564, 4
      %v567 = vor.u32 %v566, %v562
      %v568 = vrot.slane %v567, 4
      %v570 = vshll.u32 %v210, 16
      %v572 = vrot.slane %v570, 5
      %v573 = vsel %vm261, %v568, %v572
      %v575 = vshrl.u32 %v211, 16
      %v577 = vrot.slane %v575, 4
      %v578 = vshll.u32 %v211, 16
      %v580 = vrot.slane %v578, 5
      %v581 = vor.u32 %v577, %v580
      %v582 = vrot.slane %v581, 4
      %v584 = vshll.u32 %v212, 16
      %v586 = vrot.slane %v584, 5
      %v587 = vsel %vm261, %v582, %v586
      %v588 = vshrl.u32 %v212, 16
      %v590 = vrot.slane %v588, 4
      %v591 = vor.u32 %v590, %v586
      %v592 = vrot.slane %v591, 4
      %v594 = vshll.u32 %v213, 16
      %v596 = vrot.slane %v594, 5
      %v597 = vsel %vm261, %v592, %v596
      %v599 = vshrl.u32 %v214, 16
      %v601 = vrot.slane %v599, 4
      %v602 = vshll.u32 %v214, 16
      %v604 = vrot.slane %v602, 5
      %v605 = vor.u32 %v601, %v604
      %v606 = vrot.slane %v605, 4
      %v608 = vshll.u32 %v215, 16
      %v610 = vrot.slane %v608, 5
      %v611 = vsel %vm261, %v606, %v610
      %v612 = vshrl.u32 %v215, 16
      %v614 = vrot.slane %v612, 4
      %v615 = vor.u32 %v614, %v610
      %v616 = vrot.slane %v615, 4
      %v618 = vshll.u32 %v216, 16
      %v620 = vrot.slane %v618, 5
      %v621 = vsel %vm261, %v616, %v620
      %v623 = vshrl.u32 %v217, 16
      %v625 = vrot.slane %v623, 4
      %v626 = vshll.u32 %v217, 16
      %v628 = vrot.slane %v626, 5
      %v629 = vor.u32 %v625, %v628
      %v630 = vrot.slane %v629, 4
      %v632 = vshll.u32 %v218, 16
      %v634 = vrot.slane %v632, 5
      %v635 = vsel %vm261, %v630, %v634
      %v636 = vshrl.u32 %v218, 16
      %v638 = vrot.slane %v636, 4
      %v639 = vor.u32 %v638, %v634
      %v640 = vrot.slane %v639, 4
      %v642 = vshll.u32 %v219, 16
      %v644 = vrot.slane %v642, 5
      %v645 = vsel %vm261, %v640, %v644
      %646 = vrot.lane.b32.xlu0 %v275, 8
      %v647 = vpop.permute.xlu0 %646
      %648 = vrot.lane.b32.xlu0 %v285, 8
      %v649 = vpop.permute.xlu0 %648
      %650 = vrot.lane.b32.xlu0 %v299, 8
      %v651 = vpop.permute.xlu0 %650
      %652 = vrot.lane.b32.xlu0 %v309, 8
      %v653 = vpop.permute.xlu0 %652
      %654 = vrot.lane.b32.xlu0 %v323, 8
      %v655 = vpop.permute.xlu0 %654
      %656 = vrot.lane.b32.xlu0 %v333, 8
      %v657 = vpop.permute.xlu0 %656
      %658 = vrot.lane.b32.xlu0 %v347, 8
      %v659 = vpop.permute.xlu0 %658
      %660 = vrot.lane.b32.xlu0 %v357, 8
      %v661 = vpop.permute.xlu0 %660
      %662 = vrot.lane.b32.xlu0 %v371, 8
      %v663 = vpop.permute.xlu0 %662
      %664 = vrot.lane.b32.xlu0 %v381, 8
      %v665 = vpop.permute.xlu0 %664
      %666 = vrot.lane.b32.xlu0 %v395, 8
      %v667 = vpop.permute.xlu0 %666
      %668 = vrot.lane.b32.xlu0 %v405, 8
      %v669 = vpop.permute.xlu0 %668
      %670 = vrot.lane.b32.xlu0 %v419, 8
      %v671 = vpop.permute.xlu0 %670
      %672 = vrot.lane.b32.xlu0 %v429, 8
      %v673 = vpop.permute.xlu0 %672
      %674 = vrot.lane.b32.xlu0 %v443, 8
      %v675 = vpop.permute.xlu0 %674
      %676 = vrot.lane.b32.xlu0 %v453, 8
      %v677 = vpop.permute.xlu0 %676
      %678 = vrot.lane.b32.xlu0 %v467, 8
      %v679 = vpop.permute.xlu0 %678
      %680 = vrot.lane.b32.xlu0 %v477, 8
      %v681 = vpop.permute.xlu0 %680
      %682 = vrot.lane.b32.xlu0 %v491, 8
      %v683 = vpop.permute.xlu0 %682
      %684 = vrot.lane.b32.xlu0 %v501, 8
      %v685 = vpop.permute.xlu0 %684
      %686 = vrot.lane.b32.xlu0 %v515, 8
      %v687 = vpop.permute.xlu0 %686
      %688 = vrot.lane.b32.xlu0 %v525, 8
      %v689 = vpop.permute.xlu0 %688
      %690 = vrot.lane.b32.xlu0 %v539, 8
      %v691 = vpop.permute.xlu0 %690
      %692 = vrot.lane.b32.xlu0 %v549, 8
      %v693 = vpop.permute.xlu0 %692
      %694 = vrot.lane.b32.xlu0 %v563, 8
      %v695 = vpop.permute.xlu0 %694
      %696 = vrot.lane.b32.xlu0 %v573, 8
      %v697 = vpop.permute.xlu0 %696
      %698 = vrot.lane.b32.xlu0 %v587, 8
      %v699 = vpop.permute.xlu0 %698
      %700 = vrot.lane.b32.xlu0 %v597, 8
      %v701 = vpop.permute.xlu0 %700
      %702 = vrot.lane.b32.xlu0 %v611, 8
      %v703 = vpop.permute.xlu0 %702
      %704 = vrot.lane.b32.xlu0 %v621, 8
      %v705 = vpop.permute.xlu0 %704
      %706 = vrot.lane.b32.xlu0 %v635, 8
      %v707 = vpop.permute.xlu0 %706
      %708 = vrot.lane.b32.xlu0 %v645, 8
      %v709 = vpop.permute.xlu0 %708
      %vm742 = vcmask 126016
      %743 = vst.msk [vmem:[#allocation2] sm:$0xf] %vm742, %v647
      %744 = vst.msk [vmem:[#allocation2 + $0x4] sm:$0xf] %vm742, %v649
      %745 = vst.msk [vmem:[#allocation2 + $0x8] sm:$0xf] %vm742, %v651
      %746 = vst.msk [vmem:[#allocation2 + $0xc] sm:$0xf] %vm742, %v653
      %747 = vst.msk [vmem:[#allocation2 + $0x10] sm:$0xf] %vm742, %v655
      %748 = vst.msk [vmem:[#allocation2 + $0x14] sm:$0xf] %vm742, %v657
      %749 = vst.msk [vmem:[#allocation2 + $0x18] sm:$0xf] %vm742, %v659
      %750 = vst.msk [vmem:[#allocation2 + $0x1c] sm:$0xf] %vm742, %v661
      %751 = vst.msk [vmem:[#allocation2 + $0x20] sm:$0xf] %vm742, %v663
      %752 = vst.msk [vmem:[#allocation2 + $0x24] sm:$0xf] %vm742, %v665
      %753 = vst.msk [vmem:[#allocation2 + $0x28] sm:$0xf] %vm742, %v667
      %754 = vst.msk [vmem:[#allocation2 + $0x2c] sm:$0xf] %vm742, %v669
      %755 = vst.msk [vmem:[#allocation2 + $0x30] sm:$0xf] %vm742, %v671
      %756 = vst.msk [vmem:[#allocation2 + $0x34] sm:$0xf] %vm742, %v673
      %757 = vst.msk [vmem:[#allocation2 + $0x38] sm:$0xf] %vm742, %v675
      %758 = vst.msk [vmem:[#allocation2 + $0x3c] sm:$0xf] %vm742, %v677
      %759 = vst.msk [vmem:[#allocation2 + $0x40] sm:$0xf] %vm742, %v679
      %760 = vst.msk [vmem:[#allocation2 + $0x44] sm:$0xf] %vm742, %v681
      %761 = vst.msk [vmem:[#allocation2 + $0x48] sm:$0xf] %vm742, %v683
      %762 = vst.msk [vmem:[#allocation2 + $0x4c] sm:$0xf] %vm742, %v685
      %763 = vst.msk [vmem:[#allocation2 + $0x50] sm:$0xf] %vm742, %v687
      %764 = vst.msk [vmem:[#allocation2 + $0x54] sm:$0xf] %vm742, %v689
      %765 = vst.msk [vmem:[#allocation2 + $0x58] sm:$0xf] %vm742, %v691
      %766 = vst.msk [vmem:[#allocation2 + $0x5c] sm:$0xf] %vm742, %v693
      %767 = vst.msk [vmem:[#allocation2 + $0x60] sm:$0xf] %vm742, %v695
      %768 = vst.msk [vmem:[#allocation2 + $0x64] sm:$0xf] %vm742, %v697
      %769 = vst.msk [vmem:[#allocation2 + $0x68] sm:$0xf] %vm742, %v699
      %770 = vst.msk [vmem:[#allocation2 + $0x6c] sm:$0xf] %vm742, %v701
      %771 = vst.msk [vmem:[#allocation2 + $0x70] sm:$0xf] %vm742, %v703
      %772 = vst.msk [vmem:[#allocation2 + $0x74] sm:$0xf] %vm742, %v705
      %773 = vst.msk [vmem:[#allocation2 + $0x78] sm:$0xf] %vm742, %v707
      %774 = vst.msk [vmem:[#allocation2 + $0x7c] sm:$0xf] %vm742, %v709
      %vm823 = vcmask 1042432
      %vm824 = vcmask 1046532
      %vm825 = vmor %vm823, %vm824
      %v826 = vrot.slane %v172, 5
      %v827 = vrot.slane %v826, 4
      %v828 = vrot.slane %v173, 5
      %v829 = vsel %vm825, %v827, %v828
      %v830 = vrot.slane %v828, 4
      %v831 = vrot.slane %v174, 5
      %v832 = vsel %vm825, %v830, %v831
      %v833 = vrot.slane %v175, 5
      %v834 = vrot.slane %v833, 4
      %v835 = vrot.slane %v176, 5
      %v836 = vsel %vm825, %v834, %v835
      %v837 = vrot.slane %v835, 4
      %v838 = vrot.slane %v177, 5
      %v839 = vsel %vm825, %v837, %v838
      %v840 = vrot.slane %v178, 5
      %v841 = vrot.slane %v840, 4
      %v842 = vrot.slane %v179, 5
      %v843 = vsel %vm825, %v841, %v842
      %v844 = vrot.slane %v842, 4
      %v845 = vrot.slane %v180, 5
      %v846 = vsel %vm825, %v844, %v845
      %v847 = vrot.slane %v181, 5
      %v848 = vrot.slane %v847, 4
      %v849 = vrot.slane %v182, 5
      %v850 = vsel %vm825, %v848, %v849
      %v851 = vrot.slane %v849, 4
      %v852 = vrot.slane %v183, 5
      %v853 = vsel %vm825, %v851, %v852
      %v854 = vrot.slane %v184, 5
      %v855 = vrot.slane %v854, 4
      %v856 = vrot.slane %v185, 5
      %v857 = vsel %vm825, %v855, %v856
      %v858 = vrot.slane %v856, 4
      %v859 = vrot.slane %v186, 5
      %v860 = vsel %vm825, %v858, %v859
      %v861 = vrot.slane %v187, 5
      %v862 = vrot.slane %v861, 4
      %v863 = vrot.slane %v188, 5
      %v864 = vsel %vm825, %v862, %v863
      %v865 = vrot.slane %v863, 4
      %v866 = vrot.slane %v189, 5
      %v867 = vsel %vm825, %v865, %v866
      %v868 = vrot.slane %v190, 5
      %v869 = vrot.slane %v868, 4
      %v870 = vrot.slane %v191, 5
      %v871 = vsel %vm825, %v869, %v870
      %v872 = vrot.slane %v870, 4
      %v873 = vrot.slane %v192, 5
      %v874 = vsel %vm825, %v872, %v873
      %v875 = vrot.slane %v193, 5
      %v876 = vrot.slane %v875, 4
      %v877 = vrot.slane %v194, 5
      %v878 = vsel %vm825, %v876, %v877
      %v879 = vrot.slane %v877, 4
      %v880 = vrot.slane %v195, 5
      %v881 = vsel %vm825, %v879, %v880
      %v882 = vrot.slane %v196, 5
      %v883 = vrot.slane %v882, 4
      %v884 = vrot.slane %v197, 5
      %v885 = vsel %vm825, %v883, %v884
      %v886 = vrot.slane %v884, 4
      %v887 = vrot.slane %v198, 5
      %v888 = vsel %vm825, %v886, %v887
      %v889 = vrot.slane %v199, 5
      %v890 = vrot.slane %v889, 4
      %v891 = vrot.slane %v200, 5
      %v892 = vsel %vm825, %v890, %v891
      %v893 = vrot.slane %v891, 4
      %v894 = vrot.slane %v201, 5
      %v895 = vsel %vm825, %v893, %v894
      %v896 = vrot.slane %v202, 5
      %v897 = vrot.slane %v896, 4
      %v898 = vrot.slane %v203, 5
      %v899 = vsel %vm825, %v897, %v898
      %v900 = vrot.slane %v898, 4
      %v901 = vrot.slane %v204, 5
      %v902 = vsel %vm825, %v900, %v901
      %v903 = vrot.slane %v205, 5
      %v904 = vrot.slane %v903, 4
      %v905 = vrot.slane %v206, 5
      %v906 = vsel %vm825, %v904, %v905
      %v907 = vrot.slane %v905, 4
      %v908 = vrot.slane %v207, 5
      %v909 = vsel %vm825, %v907, %v908
      %v910 = vrot.slane %v208, 5
      %v911 = vrot.slane %v910, 4
      %v912 = vrot.slane %v209, 5
      %v913 = vsel %vm825, %v911, %v912
      %v914 = vrot.slane %v912, 4
      %v915 = vrot.slane %v210, 5
      %v916 = vsel %vm825, %v914, %v915
      %v917 = vrot.slane %v211, 5
      %v918 = vrot.slane %v917, 4
      %v919 = vrot.slane %v212, 5
      %v920 = vsel %vm825, %v918, %v919
      %v921 = vrot.slane %v919, 4
      %v922 = vrot.slane %v213, 5
      %v923 = vsel %vm825, %v921, %v922
      %v924 = vrot.slane %v214, 5
      %v925 = vrot.slane %v924, 4
      %v926 = vrot.slane %v215, 5
      %v927 = vsel %vm825, %v925, %v926
      %v928 = vrot.slane %v926, 4
      %v929 = vrot.slane %v216, 5
      %v930 = vsel %vm825, %v928, %v929
      %v931 = vrot.slane %v217, 5
      %v932 = vrot.slane %v931, 4
      %v933 = vrot.slane %v218, 5
      %v934 = vsel %vm825, %v932, %v933
      %v935 = vrot.slane %v933, 4
      %v936 = vrot.slane %v219, 5
      %v937 = vsel %vm825, %v935, %v936
      %938 = vrot.lane.b32.xlu0 %v829, 16
      %v939 = vpop.permute.xlu0 %938
      %940 = vrot.lane.b32.xlu0 %v832, 16
      %v941 = vpop.permute.xlu0 %940
      %942 = vrot.lane.b32.xlu0 %v836, 16
      %v943 = vpop.permute.xlu0 %942
      %944 = vrot.lane.b32.xlu0 %v839, 16
      %v945 = vpop.permute.xlu0 %944
      %946 = vrot.lane.b32.xlu0 %v843, 16
      %v947 = vpop.permute.xlu0 %946
      %948 = vrot.lane.b32.xlu0 %v846, 16
      %v949 = vpop.permute.xlu0 %948
      %950 = vrot.lane.b32.xlu0 %v850, 16
      %v951 = vpop.permute.xlu0 %950
      %952 = vrot.lane.b32.xlu0 %v853, 16
      %v953 = vpop.permute.xlu0 %952
      %954 = vrot.lane.b32.xlu0 %v857, 16
      %v955 = vpop.permute.xlu0 %954
      %956 = vrot.lane.b32.xlu0 %v860, 16
      %v957 = vpop.permute.xlu0 %956
      %958 = vrot.lane.b32.xlu0 %v864, 16
      %v959 = vpop.permute.xlu0 %958
      %960 = vrot.lane.b32.xlu0 %v867, 16
      %v961 = vpop.permute.xlu0 %960
      %962 = vrot.lane.b32.xlu0 %v871, 16
      %v963 = vpop.permute.xlu0 %962
      %964 = vrot.lane.b32.xlu0 %v874, 16
      %v965 = vpop.permute.xlu0 %964
      %966 = vrot.lane.b32.xlu0 %v878, 16
      %v967 = vpop.permute.xlu0 %966
      %968 = vrot.lane.b32.xlu0 %v881, 16
      %v969 = vpop.permute.xlu0 %968
      %970 = vrot.lane.b32.xlu0 %v885, 16
      %v971 = vpop.permute.xlu0 %970
      %972 = vrot.lane.b32.xlu0 %v888, 16
      %v973 = vpop.permute.xlu0 %972
      %974 = vrot.lane.b32.xlu0 %v892, 16
      %v975 = vpop.permute.xlu0 %974
      %976 = vrot.lane.b32.xlu0 %v895, 16
      %v977 = vpop.permute.xlu0 %976
      %978 = vrot.lane.b32.xlu0 %v899, 16
      %v979 = vpop.permute.xlu0 %978
      %980 = vrot.lane.b32.xlu0 %v902, 16
      %v981 = vpop.permute.xlu0 %980
      %982 = vrot.lane.b32.xlu0 %v906, 16
      %v983 = vpop.permute.xlu0 %982
      %984 = vrot.lane.b32.xlu0 %v909, 16
      %v985 = vpop.permute.xlu0 %984
      %986 = vrot.lane.b32.xlu0 %v913, 16
      %v987 = vpop.permute.xlu0 %986
      %988 = vrot.lane.b32.xlu0 %v916, 16
      %v989 = vpop.permute.xlu0 %988
      %990 = vrot.lane.b32.xlu0 %v920, 16
      %v991 = vpop.permute.xlu0 %990
      %992 = vrot.lane.b32.xlu0 %v923, 16
      %v993 = vpop.permute.xlu0 %992
      %994 = vrot.lane.b32.xlu0 %v927, 16
      %v995 = vpop.permute.xlu0 %994
      %996 = vrot.lane.b32.xlu0 %v930, 16
      %v997 = vpop.permute.xlu0 %996
      %998 = vrot.lane.b32.xlu0 %v934, 16
      %v999 = vpop.permute.xlu0 %998
      %1000 = vrot.lane.b32.xlu0 %v937, 16
      %v1001 = vpop.permute.xlu0 %1000
      %vm1034 = vcmask 191616
      %1035 = vst.msk [vmem:[#allocation2] sm:$0xf] %vm1034, %v939
      %1036 = vst.msk [vmem:[#allocation2 + $0x4] sm:$0xf] %vm1034, %v941
      %1037 = vst.msk [vmem:[#allocation2 + $0x8] sm:$0xf] %vm1034, %v943
      %1038 = vst.msk [vmem:[#allocation2 + $0xc] sm:$0xf] %vm1034, %v945
      %1039 = vst.msk [vmem:[#allocation2 + $0x10] sm:$0xf] %vm1034, %v947
      %1040 = vst.msk [vmem:[#allocation2 + $0x14] sm:$0xf] %vm1034, %v949
      %1041 = vst.msk [vmem:[#allocation2 + $0x18] sm:$0xf] %vm1034, %v951
      %1042 = vst.msk [vmem:[#allocation2 + $0x1c] sm:$0xf] %vm1034, %v953
      %1043 = vst.msk [vmem:[#allocation2 + $0x20] sm:$0xf] %vm1034, %v955
      %1044 = vst.msk [vmem:[#allocation2 + $0x24] sm:$0xf] %vm1034, %v957
      %1045 = vst.msk [vmem:[#allocation2 + $0x28] sm:$0xf] %vm1034, %v959
      %1046 = vst.msk [vmem:[#allocation2 + $0x2c] sm:$0xf] %vm1034, %v961
      %1047 = vst.msk [vmem:[#allocation2 + $0x30] sm:$0xf] %vm1034, %v963
      %1048 = vst.msk [vmem:[#allocation2 + $0x34] sm:$0xf] %vm1034, %v965
      %1049 = vst.msk [vmem:[#allocation2 + $0x38] sm:$0xf] %vm1034, %v967
      %1050 = vst.msk [vmem:[#allocation2 + $0x3c] sm:$0xf] %vm1034, %v969
      %1051 = vst.msk [vmem:[#allocation2 + $0x40] sm:$0xf] %vm1034, %v971
      %1052 = vst.msk [vmem:[#allocation2 + $0x44] sm:$0xf] %vm1034, %v973
      %1053 = vst.msk [vmem:[#allocation2 + $0x48] sm:$0xf] %vm1034, %v975
      %1054 = vst.msk [vmem:[#allocation2 + $0x4c] sm:$0xf] %vm1034, %v977
      %1055 = vst.msk [vmem:[#allocation2 + $0x50] sm:$0xf] %vm1034, %v979
      %1056 = vst.msk [vmem:[#allocation2 + $0x54] sm:$0xf] %vm1034, %v981
      %1057 = vst.msk [vmem:[#allocation2 + $0x58] sm:$0xf] %vm1034, %v983
      %1058 = vst.msk [vmem:[#allocation2 + $0x5c] sm:$0xf] %vm1034, %v985
      %1059 = vst.msk [vmem:[#allocation2 + $0x60] sm:$0xf] %vm1034, %v987
      %1060 = vst.msk [vmem:[#allocation2 + $0x64] sm:$0xf] %vm1034, %v989
      %1061 = vst.msk [vmem:[#allocation2 + $0x68] sm:$0xf] %vm1034, %v991
      %1062 = vst.msk [vmem:[#allocation2 + $0x6c] sm:$0xf] %vm1034, %v993
      %1063 = vst.msk [vmem:[#allocation2 + $0x70] sm:$0xf] %vm1034, %v995
      %1064 = vst.msk [vmem:[#allocation2 + $0x74] sm:$0xf] %vm1034, %v997
      %1065 = vst.msk [vmem:[#allocation2 + $0x78] sm:$0xf] %vm1034, %v999
      %1066 = vst.msk [vmem:[#allocation2 + $0x7c] sm:$0xf] %vm1034, %v1001
      %1069 = vrot.lane.b32.xlu0 %v175, 24
      %v1070 = vpop.permute.xlu0 %1069
      %1071 = vrot.lane.b32.xlu0 %v176, 24
      %v1072 = vpop.permute.xlu0 %1071
      %1073 = vrot.lane.b32.xlu0 %v178, 24
      %v1074 = vpop.permute.xlu0 %1073
      %1075 = vrot.lane.b32.xlu0 %v179, 24
      %v1076 = vpop.permute.xlu0 %1075
      %1077 = vrot.lane.b32.xlu0 %v181, 24
      %v1078 = vpop.permute.xlu0 %1077
      %1079 = vrot.lane.b32.xlu0 %v182, 24
      %v1080 = vpop.permute.xlu0 %1079
      %1081 = vrot.lane.b32.xlu0 %v184, 24
      %v1082 = vpop.permute.xlu0 %1081
      %1083 = vrot.lane.b32.xlu0 %v185, 24
      %v1084 = vpop.permute.xlu0 %1083
      %1085 = vrot.lane.b32.xlu0 %v187, 24
      %v1086 = vpop.permute.xlu0 %1085
      %1087 = vrot.lane.b32.xlu0 %v188, 24
      %v1088 = vpop.permute.xlu0 %1087
      %1089 = vrot.lane.b32.xlu0 %v190, 24
      %v1090 = vpop.permute.xlu0 %1089
      %1091 = vrot.lane.b32.xlu0 %v191, 24
      %v1092 = vpop.permute.xlu0 %1091
      %1093 = vrot.lane.b32.xlu0 %v193, 24
      %v1094 = vpop.permute.xlu0 %1093
      %1095 = vrot.lane.b32.xlu0 %v194, 24
      %v1096 = vpop.permute.xlu0 %1095
      %1097 = vrot.lane.b32.xlu0 %v196, 24
      %v1098 = vpop.permute.xlu0 %1097
      %1099 = vrot.lane.b32.xlu0 %v197, 24
      %v1100 = vpop.permute.xlu0 %1099
      %1101 = vrot.lane.b32.xlu0 %v199, 24
      %v1102 = vpop.permute.xlu0 %1101
      %1103 = vrot.lane.b32.xlu0 %v200, 24
      %v1104 = vpop.permute.xlu0 %1103
      %1105 = vrot.lane.b32.xlu0 %v202, 24
      %v1106 = vpop.permute.xlu0 %1105
      %1107 = vrot.lane.b32.xlu0 %v203, 24
      %v1108 = vpop.permute.xlu0 %1107
      %1109 = vrot.lane.b32.xlu0 %v205, 24
      %v1110 = vpop.permute.xlu0 %1109
      %1111 = vrot.lane.b32.xlu0 %v206, 24
      %v1112 = vpop.permute.xlu0 %1111
      %1113 = vrot.lane.b32.xlu0 %v208, 24
      %v1114 = vpop.permute.xlu0 %1113
      %1115 = vrot.lane.b32.xlu0 %v209, 24
      %v1116 = vpop.permute.xlu0 %1115
      %1117 = vrot.lane.b32.xlu0 %v211, 24
      %v1118 = vpop.permute.xlu0 %1117
      %1119 = vrot.lane.b32.xlu0 %v212, 24
      %v1120 = vpop.permute.xlu0 %1119
      %1121 = vrot.lane.b32.xlu0 %v214, 24
      %v1122 = vpop.permute.xlu0 %1121
      %1123 = vrot.lane.b32.xlu0 %v215, 24
      %v1124 = vpop.permute.xlu0 %1123
      %1125 = vrot.lane.b32.xlu0 %v217, 24
      %v1126 = vpop.permute.xlu0 %1125
      %1127 = vrot.lane.b32.xlu0 %v218, 24
      %v1128 = vpop.permute.xlu0 %1127
      %1129 = vrot.lane.b32.xlu0 %v220, 24
      %v1130 = vpop.permute.xlu0 %1129
      %1131 = vrot.lane.b32.xlu0 %v221, 24
      %v1132 = vpop.permute.xlu0 %1131
      %vm1165 = vcmask 257216
      %1166 = vst.msk [vmem:[#allocation2] sm:$0xf] %vm1165, %v1070
      %1167 = vst.msk [vmem:[#allocation2 + $0x4] sm:$0xf] %vm1165, %v1072
      %1168 = vst.msk [vmem:[#allocation2 + $0x8] sm:$0xf] %vm1165, %v1074
      %1169 = vst.msk [vmem:[#allocation2 + $0xc] sm:$0xf] %vm1165, %v1076
      %1170 = vst.msk [vmem:[#allocation2 + $0x10] sm:$0xf] %vm1165, %v1078
      %1171 = vst.msk [vmem:[#allocation2 + $0x14] sm:$0xf] %vm1165, %v1080
      %1172 = vst.msk [vmem:[#allocation2 + $0x18] sm:$0xf] %vm1165, %v1082
      %1173 = vst.msk [vmem:[#allocation2 + $0x1c] sm:$0xf] %vm1165, %v1084
      %1174 = vst.msk [vmem:[#allocation2 + $0x20] sm:$0xf] %vm1165, %v1086
      %1175 = vst.msk [vmem:[#allocation2 + $0x24] sm:$0xf] %vm1165, %v1088
      %1176 = vst.msk [vmem:[#allocation2 + $0x28] sm:$0xf] %vm1165, %v1090
      %1177 = vst.msk [vmem:[#allocation2 + $0x2c] sm:$0xf] %vm1165, %v1092
      %1178 = vst.msk [vmem:[#allocation2 + $0x30] sm:$0xf] %vm1165, %v1094
      %1179 = vst.msk [vmem:[#allocation2 + $0x34] sm:$0xf] %vm1165, %v1096
      %1180 = vst.msk [vmem:[#allocation2 + $0x38] sm:$0xf] %vm1165, %v1098
      %1181 = vst.msk [vmem:[#allocation2 + $0x3c] sm:$0xf] %vm1165, %v1100
      %1182 = vst.msk [vmem:[#allocation2 + $0x40] sm:$0xf] %vm1165, %v1102
      %1183 = vst.msk [vmem:[#allocation2 + $0x44] sm:$0xf] %vm1165, %v1104
      %1184 = vst.msk [vmem:[#allocation2 + $0x48] sm:$0xf] %vm1165, %v1106
      %1185 = vst.msk [vmem:[#allocation2 + $0x4c] sm:$0xf] %vm1165, %v1108
      %1186 = vst.msk [vmem:[#allocation2 + $0x50] sm:$0xf] %vm1165, %v1110
      %1187 = vst.msk [vmem:[#allocation2 + $0x54] sm:$0xf] %vm1165, %v1112
      %1188 = vst.msk [vmem:[#allocation2 + $0x58] sm:$0xf] %vm1165, %v1114
      %1189 = vst.msk [vmem:[#allocation2 + $0x5c] sm:$0xf] %vm1165, %v1116
      %1190 = vst.msk [vmem:[#allocation2 + $0x60] sm:$0xf] %vm1165, %v1118
      %1191 = vst.msk [vmem:[#allocation2 + $0x64] sm:$0xf] %vm1165, %v1120
      %1192 = vst.msk [vmem:[#allocation2 + $0x68] sm:$0xf] %vm1165, %v1122
      %1193 = vst.msk [vmem:[#allocation2 + $0x6c] sm:$0xf] %vm1165, %v1124
      %1194 = vst.msk [vmem:[#allocation2 + $0x70] sm:$0xf] %vm1165, %v1126
      %1195 = vst.msk [vmem:[#allocation2 + $0x74] sm:$0xf] %vm1165, %v1128
      %1196 = vst.msk [vmem:[#allocation2 + $0x78] sm:$0xf] %vm1165, %v1130
      %1197 = vst.msk [vmem:[#allocation2 + $0x7c] sm:$0xf] %vm1165, %v1132
      %v1199 = vshrl.u32 %v220, 16
      %v1201 = vrot.slane %v1199, 4
      %v1202 = vshll.u32 %v220, 16
      %v1204 = vrot.slane %v1202, 5
      %v1205 = vor.u32 %v1201, %v1204
      %v1206 = vrot.slane %v1205, 4
      %v1208 = vshll.u32 %v221, 16
      %v1210 = vrot.slane %v1208, 5
      %v1211 = vsel %vm261, %v1206, %v1210
      %v1212 = vshrl.u32 %v221, 16
      %v1214 = vrot.slane %v1212, 4
      %v1215 = vor.u32 %v1214, %v1210
      %v1216 = vrot.slane %v1215, 4
      %v1218 = vshll.u32 %v222, 16
      %v1220 = vrot.slane %v1218, 5
      %v1221 = vsel %vm261, %v1216, %v1220
      %1222 = vrot.lane.b32.xlu0 %v299, 32
      %v1223 = vpop.permute.xlu0 %1222
      %1224 = vrot.lane.b32.xlu0 %v309, 32
      %v1225 = vpop.permute.xlu0 %1224
      %1226 = vrot.lane.b32.xlu0 %v323, 32
      %v1227 = vpop.permute.xlu0 %1226
      %1228 = vrot.lane.b32.xlu0 %v333, 32
      %v1229 = vpop.permute.xlu0 %1228
      %1230 = vrot.lane.b32.xlu0 %v347, 32
      %v1231 = vpop.permute.xlu0 %1230
      %1232 = vrot.lane.b32.xlu0 %v357, 32
      %v1233 = vpop.permute.xlu0 %1232
      %1234 = vrot.lane.b32.xlu0 %v371, 32
      %v1235 = vpop.permute.xlu0 %1234
      %1236 = vrot.lane.b32.xlu0 %v381, 32
      %v1237 = vpop.permute.xlu0 %1236
      %1238 = vrot.lane.b32.xlu0 %v395, 32
      %v1239 = vpop.permute.xlu0 %1238
      %1240 = vrot.lane.b32.xlu0 %v405, 32
      %v1241 = vpop.permute.xlu0 %1240
      %1242 = vrot.lane.b32.xlu0 %v419, 32
      %v1243 = vpop.permute.xlu0 %1242
      %1244 = vrot.lane.b32.xlu0 %v429, 32
      %v1245 = vpop.permute.xlu0 %1244
      %1246 = vrot.lane.b32.xlu0 %v443, 32
      %v1247 = vpop.permute.xlu0 %1246
      %1248 = vrot.lane.b32.xlu0 %v453, 32
      %v1249 = vpop.permute.xlu0 %1248
      %1250 = vrot.lane.b32.xlu0 %v467, 32
      %v1251 = vpop.permute.xlu0 %1250
      %1252 = vrot.lane.b32.xlu0 %v477, 32
      %v1253 = vpop.permute.xlu0 %1252
      %1254 = vrot.lane.b32.xlu0 %v491, 32
      %v1255 = vpop.permute.xlu0 %1254
      %1256 = vrot.lane.b32.xlu0 %v501, 32
      %v1257 = vpop.permute.xlu0 %1256
      %1258 = vrot.lane.b32.xlu0 %v515, 32
      %v1259 = vpop.permute.xlu0 %1258
      %1260 = vrot.lane.b32.xlu0 %v525, 32
      %v1261 = vpop.permute.xlu0 %1260
      %1262 = vrot.lane.b32.xlu0 %v539, 32
      %v1263 = vpop.permute.xlu0 %1262
      %1264 = vrot.lane.b32.xlu0 %v549, 32
      %v1265 = vpop.permute.xlu0 %1264
      %1266 = vrot.lane.b32.xlu0 %v563, 32
      %v1267 = vpop.permute.xlu0 %1266
      %1268 = vrot.lane.b32.xlu0 %v573, 32
      %v1269 = vpop.permute.xlu0 %1268
      %1270 = vrot.lane.b32.xlu0 %v587, 32
      %v1271 = vpop.permute.xlu0 %1270
      %1272 = vrot.lane.b32.xlu0 %v597, 32
      %v1273 = vpop.permute.xlu0 %1272
      %1274 = vrot.lane.b32.xlu0 %v611, 32
      %v1275 = vpop.permute.xlu0 %1274
      %1276 = vrot.lane.b32.xlu0 %v621, 32
      %v1277 = vpop.permute.xlu0 %1276
      %1278 = vrot.lane.b32.xlu0 %v635, 32
      %v1279 = vpop.permute.xlu0 %1278
      %1280 = vrot.lane.b32.xlu0 %v645, 32
      %v1281 = vpop.permute.xlu0 %1280
      %1282 = vrot.lane.b32.xlu0 %v1211, 32
      %v1283 = vpop.permute.xlu0 %1282
      %1284 = vrot.lane.b32.xlu0 %v1221, 32
      %v1285 = vpop.permute.xlu0 %1284
      %vm1318 = vcmask 322816
      %1319 = vst.msk [vmem:[#allocation2] sm:$0xf] %vm1318, %v1223
      %1320 = vst.msk [vmem:[#allocation2 + $0x4] sm:$0xf] %vm1318, %v1225
      %1321 = vst.msk [vmem:[#allocation2 + $0x8] sm:$0xf] %vm1318, %v1227
      %1322 = vst.msk [vmem:[#allocation2 + $0xc] sm:$0xf] %vm1318, %v1229
      %1323 = vst.msk [vmem:[#allocation2 + $0x10] sm:$0xf] %vm1318, %v1231
      %1324 = vst.msk [vmem:[#allocation2 + $0x14] sm:$0xf] %vm1318, %v1233
      %1325 = vst.msk [vmem:[#allocation2 + $0x18] sm:$0xf] %vm1318, %v1235
      %1326 = vst.msk [vmem:[#allocation2 + $0x1c] sm:$0xf] %vm1318, %v1237
      %1327 = vst.msk [vmem:[#allocation2 + $0x20] sm:$0xf] %vm1318, %v1239
      %1328 = vst.msk [vmem:[#allocation2 + $0x24] sm:$0xf] %vm1318, %v1241
      %1329 = vst.msk [vmem:[#allocation2 + $0x28] sm:$0xf] %vm1318, %v1243
      %1330 = vst.msk [vmem:[#allocation2 + $0x2c] sm:$0xf] %vm1318, %v1245
      %1331 = vst.msk [vmem:[#allocation2 + $0x30] sm:$0xf] %vm1318, %v1247
      %1332 = vst.msk [vmem:[#allocation2 + $0x34] sm:$0xf] %vm1318, %v1249
      %1333 = vst.msk [vmem:[#allocation2 + $0x38] sm:$0xf] %vm1318, %v1251
      %1334 = vst.msk [vmem:[#allocation2 + $0x3c] sm:$0xf] %vm1318, %v1253
      %1335 = vst.msk [vmem:[#allocation2 + $0x40] sm:$0xf] %vm1318, %v1255
      %1336 = vst.msk [vmem:[#allocation2 + $0x44] sm:$0xf] %vm1318, %v1257
      %1337 = vst.msk [vmem:[#allocation2 + $0x48] sm:$0xf] %vm1318, %v1259
      %1338 = vst.msk [vmem:[#allocation2 + $0x4c] sm:$0xf] %vm1318, %v1261
      %1339 = vst.msk [vmem:[#allocation2 + $0x50] sm:$0xf] %vm1318, %v1263
      %1340 = vst.msk [vmem:[#allocation2 + $0x54] sm:$0xf] %vm1318, %v1265
      %1341 = vst.msk [vmem:[#allocation2 + $0x58] sm:$0xf] %vm1318, %v1267
      %1342 = vst.msk [vmem:[#allocation2 + $0x5c] sm:$0xf] %vm1318, %v1269
      %1343 = vst.msk [vmem:[#allocation2 + $0x60] sm:$0xf] %vm1318, %v1271
      %1344 = vst.msk [vmem:[#allocation2 + $0x64] sm:$0xf] %vm1318, %v1273
      %1345 = vst.msk [vmem:[#allocation2 + $0x68] sm:$0xf] %vm1318, %v1275
      %1346 = vst.msk [vmem:[#allocation2 + $0x6c] sm:$0xf] %vm1318, %v1277
      %1347 = vst.msk [vmem:[#allocation2 + $0x70] sm:$0xf] %vm1318, %v1279
      %1348 = vst.msk [vmem:[#allocation2 + $0x74] sm:$0xf] %vm1318, %v1281
      %1349 = vst.msk [vmem:[#allocation2 + $0x78] sm:$0xf] %vm1318, %v1283
      %1350 = vst.msk [vmem:[#allocation2 + $0x7c] sm:$0xf] %vm1318, %v1285
      %v1352 = vrot.slane %v220, 5
      %v1353 = vrot.slane %v1352, 4
      %v1354 = vrot.slane %v221, 5
      %v1355 = vsel %vm825, %v1353, %v1354
      %v1356 = vrot.slane %v1354, 4
      %v1357 = vrot.slane %v222, 5
      %v1358 = vsel %vm825, %v1356, %v1357
      %1359 = vrot.lane.b32.xlu0 %v836, 40
      %v1360 = vpop.permute.xlu0 %1359
      %1361 = vrot.lane.b32.xlu0 %v839, 40
      %v1362 = vpop.permute.xlu0 %1361
      %1363 = vrot.lane.b32.xlu0 %v843, 40
      %v1364 = vpop.permute.xlu0 %1363
      %1365 = vrot.lane.b32.xlu0 %v846, 40
      %v1366 = vpop.permute.xlu0 %1365
      %1367 = vrot.lane.b32.xlu0 %v850, 40
      %v1368 = vpop.permute.xlu0 %1367
      %1369 = vrot.lane.b32.xlu0 %v853, 40
      %v1370 = vpop.permute.xlu0 %1369
      %1371 = vrot.lane.b32.xlu0 %v857, 40
      %v1372 = vpop.permute.xlu0 %1371
      %1373 = vrot.lane.b32.xlu0 %v860, 40
      %v1374 = vpop.permute.xlu0 %1373
      %1375 = vrot.lane.b32.xlu0 %v864, 40
      %v1376 = vpop.permute.xlu0 %1375
      %1377 = vrot.lane.b32.xlu0 %v867, 40
      %v1378 = vpop.permute.xlu0 %1377
      %1379 = vrot.lane.b32.xlu0 %v871, 40
      %v1380 = vpop.permute.xlu0 %1379
      %1381 = vrot.lane.b32.xlu0 %v874, 40
      %v1382 = vpop.permute.xlu0 %1381
      %1383 = vrot.lane.b32.xlu0 %v878, 40
      %v1384 = vpop.permute.xlu0 %1383
      %1385 = vrot.lane.b32.xlu0 %v881, 40
      %v1386 = vpop.permute.xlu0 %1385
      %1387 = vrot.lane.b32.xlu0 %v885, 40
      %v1388 = vpop.permute.xlu0 %1387
      %1389 = vrot.lane.b32.xlu0 %v888, 40
      %v1390 = vpop.permute.xlu0 %1389
      %1391 = vrot.lane.b32.xlu0 %v892, 40
      %v1392 = vpop.permute.xlu0 %1391
      %1393 = vrot.lane.b32.xlu0 %v895, 40
      %v1394 = vpop.permute.xlu0 %1393
      %1395 = vrot.lane.b32.xlu0 %v899, 40
      %v1396 = vpop.permute.xlu0 %1395
      %1397 = vrot.lane.b32.xlu0 %v902, 40
      %v1398 = vpop.permute.xlu0 %1397
      %1399 = vrot.lane.b32.xlu0 %v906, 40
      %v1400 = vpop.permute.xlu0 %1399
      %1401 = vrot.lane.b32.xlu0 %v909, 40
      %v1402 = vpop.permute.xlu0 %1401
      %1403 = vrot.lane.b32.xlu0 %v913, 40
      %v1404 = vpop.permute.xlu0 %1403
      %1405 = vrot.lane.b32.xlu0 %v916, 40
      %v1406 = vpop.permute.xlu0 %1405
      %1407 = vrot.lane.b32.xlu0 %v920, 40
      %v1408 = vpop.permute.xlu0 %1407
      %1409 = vrot.lane.b32.xlu0 %v923, 40
      %v1410 = vpop.permute.xlu0 %1409
      %1411 = vrot.lane.b32.xlu0 %v927, 40
      %v1412 = vpop.permute.xlu0 %1411
      %1413 = vrot.lane.b32.xlu0 %v930, 40
      %v1414 = vpop.permute.xlu0 %1413
      %1415 = vrot.lane.b32.xlu0 %v934, 40
      %v1416 = vpop.permute.xlu0 %1415
      %1417 = vrot.lane.b32.xlu0 %v937, 40
      %v1418 = vpop.permute.xlu0 %1417
      %1419 = vrot.lane.b32.xlu0 %v1355, 40
      %v1420 = vpop.permute.xlu0 %1419
      %1421 = vrot.lane.b32.xlu0 %v1358, 40
      %v1422 = vpop.permute.xlu0 %1421
      %vm1455 = vcmask 388416
      %1456 = vst.msk [vmem:[#allocation2] sm:$0xf] %vm1455, %v1360
      %1457 = vst.msk [vmem:[#allocation2 + $0x4] sm:$0xf] %vm1455, %v1362
      %1458 = vst.msk [vmem:[#allocation2 + $0x8] sm:$0xf] %vm1455, %v1364
      %1459 = vst.msk [vmem:[#allocation2 + $0xc] sm:$0xf] %vm1455, %v1366
      %1460 = vst.msk [vmem:[#allocation2 + $0x10] sm:$0xf] %vm1455, %v1368
      %1461 = vst.msk [vmem:[#allocation2 + $0x14] sm:$0xf] %vm1455, %v1370
      %1462 = vst.msk [vmem:[#allocation2 + $0x18] sm:$0xf] %vm1455, %v1372
      %1463 = vst.msk [vmem:[#allocation2 + $0x1c] sm:$0xf] %vm1455, %v1374
      %1464 = vst.msk [vmem:[#allocation2 + $0x20] sm:$0xf] %vm1455, %v1376
      %1465 = vst.msk [vmem:[#allocation2 + $0x24] sm:$0xf] %vm1455, %v1378
      %1466 = vst.msk [vmem:[#allocation2 + $0x28] sm:$0xf] %vm1455, %v1380
      %1467 = vst.msk [vmem:[#allocation2 + $0x2c] sm:$0xf] %vm1455, %v1382
      %1468 = vst.msk [vmem:[#allocation2 + $0x30] sm:$0xf] %vm1455, %v1384
      %1469 = vst.msk [vmem:[#allocation2 + $0x34] sm:$0xf] %vm1455, %v1386
      %1470 = vst.msk [vmem:[#allocation2 + $0x38] sm:$0xf] %vm1455, %v1388
      %1471 = vst.msk [vmem:[#allocation2 + $0x3c] sm:$0xf] %vm1455, %v1390
      %1472 = vst.msk [vmem:[#allocation2 + $0x40] sm:$0xf] %vm1455, %v1392
      %1473 = vst.msk [vmem:[#allocation2 + $0x44] sm:$0xf] %vm1455, %v1394
      %1474 = vst.msk [vmem:[#allocation2 + $0x48] sm:$0xf] %vm1455, %v1396
      %1475 = vst.msk [vmem:[#allocation2 + $0x4c] sm:$0xf] %vm1455, %v1398
      %1476 = vst.msk [vmem:[#allocation2 + $0x50] sm:$0xf] %vm1455, %v1400
      %1477 = vst.msk [vmem:[#allocation2 + $0x54] sm:$0xf] %vm1455, %v1402
      %1478 = vst.msk [vmem:[#allocation2 + $0x58] sm:$0xf] %vm1455, %v1404
      %1479 = vst.msk [vmem:[#allocation2 + $0x5c] sm:$0xf] %vm1455, %v1406
      %1480 = vst.msk [vmem:[#allocation2 + $0x60] sm:$0xf] %vm1455, %v1408
      %1481 = vst.msk [vmem:[#allocation2 + $0x64] sm:$0xf] %vm1455, %v1410
      %1482 = vst.msk [vmem:[#allocation2 + $0x68] sm:$0xf] %vm1455, %v1412
      %1483 = vst.msk [vmem:[#allocation2 + $0x6c] sm:$0xf] %vm1455, %v1414
      %1484 = vst.msk [vmem:[#allocation2 + $0x70] sm:$0xf] %vm1455, %v1416
      %1485 = vst.msk [vmem:[#allocation2 + $0x74] sm:$0xf] %vm1455, %v1418
      %1486 = vst.msk [vmem:[#allocation2 + $0x78] sm:$0xf] %vm1455, %v1420
      %1487 = vst.msk [vmem:[#allocation2 + $0x7c] sm:$0xf] %vm1455, %v1422
      %1490 = vrot.lane.b32.xlu0 %v178, 48
      %v1491 = vpop.permute.xlu0 %1490
      %1492 = vrot.lane.b32.xlu0 %v179, 48
      %v1493 = vpop.permute.xlu0 %1492
      %1494 = vrot.lane.b32.xlu0 %v181, 48
      %v1495 = vpop.permute.xlu0 %1494
      %1496 = vrot.lane.b32.xlu0 %v182, 48
      %v1497 = vpop.permute.xlu0 %1496
      %1498 = vrot.lane.b32.xlu0 %v184, 48
      %v1499 = vpop.permute.xlu0 %1498
      %1500 = vrot.lane.b32.xlu0 %v185, 48
      %v1501 = vpop.permute.xlu0 %1500
      %1502 = vrot.lane.b32.xlu0 %v187, 48
      %v1503 = vpop.permute.xlu0 %1502
      %1504 = vrot.lane.b32.xlu0 %v188, 48
      %v1505 = vpop.permute.xlu0 %1504
      %1506 = vrot.lane.b32.xlu0 %v190, 48
      %v1507 = vpop.permute.xlu0 %1506
      %1508 = vrot.lane.b32.xlu0 %v191, 48
      %v1509 = vpop.permute.xlu0 %1508
      %1510 = vrot.lane.b32.xlu0 %v193, 48
      %v1511 = vpop.permute.xlu0 %1510
      %1512 = vrot.lane.b32.xlu0 %v194, 48
      %v1513 = vpop.permute.xlu0 %1512
      %1514 = vrot.lane.b32.xlu0 %v196, 48
      %v1515 = vpop.permute.xlu0 %1514
      %1516 = vrot.lane.b32.xlu0 %v197, 48
      %v1517 = vpop.permute.xlu0 %1516
      %1518 = vrot.lane.b32.xlu0 %v199, 48
      %v1519 = vpop.permute.xlu0 %1518
      %1520 = vrot.lane.b32.xlu0 %v200, 48
      %v1521 = vpop.permute.xlu0 %1520
      %1522 = vrot.lane.b32.xlu0 %v202, 48
      %v1523 = vpop.permute.xlu0 %1522
      %1524 = vrot.lane.b32.xlu0 %v203, 48
      %v1525 = vpop.permute.xlu0 %1524
      %1526 = vrot.lane.b32.xlu0 %v205, 48
      %v1527 = vpop.permute.xlu0 %1526
      %1528 = vrot.lane.b32.xlu0 %v206, 48
      %v1529 = vpop.permute.xlu0 %1528
      %1530 = vrot.lane.b32.xlu0 %v208, 48
      %v1531 = vpop.permute.xlu0 %1530
      %1532 = vrot.lane.b32.xlu0 %v209, 48
      %v1533 = vpop.permute.xlu0 %1532
      %1534 = vrot.lane.b32.xlu0 %v211, 48
      %v1535 = vpop.permute.xlu0 %1534
      %1536 = vrot.lane.b32.xlu0 %v212, 48
      %v1537 = vpop.permute.xlu0 %1536
      %1538 = vrot.lane.b32.xlu0 %v214, 48
      %v1539 = vpop.permute.xlu0 %1538
      %1540 = vrot.lane.b32.xlu0 %v215, 48
      %v1541 = vpop.permute.xlu0 %1540
      %1542 = vrot.lane.b32.xlu0 %v217, 48
      %v1543 = vpop.permute.xlu0 %1542
      %1544 = vrot.lane.b32.xlu0 %v218, 48
      %v1545 = vpop.permute.xlu0 %1544
      %1546 = vrot.lane.b32.xlu0 %v220, 48
      %v1547 = vpop.permute.xlu0 %1546
      %1548 = vrot.lane.b32.xlu0 %v221, 48
      %v1549 = vpop.permute.xlu0 %1548
      %1550 = vrot.lane.b32.xlu0 %v223, 48
      %v1551 = vpop.permute.xlu0 %1550
      %1552 = vrot.lane.b32.xlu0 %v224, 48
      %v1553 = vpop.permute.xlu0 %1552
      %vm1586 = vcmask 454016
      %1587 = vst.msk [vmem:[#allocation2] sm:$0xf] %vm1586, %v1491
      %1588 = vst.msk [vmem:[#allocation2 + $0x4] sm:$0xf] %vm1586, %v1493
      %1589 = vst.msk [vmem:[#allocation2 + $0x8] sm:$0xf] %vm1586, %v1495
      %1590 = vst.msk [vmem:[#allocation2 + $0xc] sm:$0xf] %vm1586, %v1497
      %1591 = vst.msk [vmem:[#allocation2 + $0x10] sm:$0xf] %vm1586, %v1499
      %1592 = vst.msk [vmem:[#allocation2 + $0x14] sm:$0xf] %vm1586, %v1501
      %1593 = vst.msk [vmem:[#allocation2 + $0x18] sm:$0xf] %vm1586, %v1503
      %1594 = vst.msk [vmem:[#allocation2 + $0x1c] sm:$0xf] %vm1586, %v1505
      %1595 = vst.msk [vmem:[#allocation2 + $0x20] sm:$0xf] %vm1586, %v1507
      %1596 = vst.msk [vmem:[#allocation2 + $0x24] sm:$0xf] %vm1586, %v1509
      %1597 = vst.msk [vmem:[#allocation2 + $0x28] sm:$0xf] %vm1586, %v1511
      %1598 = vst.msk [vmem:[#allocation2 + $0x2c] sm:$0xf] %vm1586, %v1513
      %1599 = vst.msk [vmem:[#allocation2 + $0x30] sm:$0xf] %vm1586, %v1515
      %1600 = vst.msk [vmem:[#allocation2 + $0x34] sm:$0xf] %vm1586, %v1517
      %1601 = vst.msk [vmem:[#allocation2 + $0x38] sm:$0xf] %vm1586, %v1519
      %1602 = vst.msk [vmem:[#allocation2 + $0x3c] sm:$0xf] %vm1586, %v1521
      %1603 = vst.msk [vmem:[#allocation2 + $0x40] sm:$0xf] %vm1586, %v1523
      %1604 = vst.msk [vmem:[#allocation2 + $0x44] sm:$0xf] %vm1586, %v1525
      %1605 = vst.msk [vmem:[#allocation2 + $0x48] sm:$0xf] %vm1586, %v1527
      %1606 = vst.msk [vmem:[#allocation2 + $0x4c] sm:$0xf] %vm1586, %v1529
      %1607 = vst.msk [vmem:[#allocation2 + $0x50] sm:$0xf] %vm1586, %v1531
      %1608 = vst.msk [vmem:[#allocation2 + $0x54] sm:$0xf] %vm1586, %v1533
      %1609 = vst.msk [vmem:[#allocation2 + $0x58] sm:$0xf] %vm1586, %v1535
      %1610 = vst.msk [vmem:[#allocation2 + $0x5c] sm:$0xf] %vm1586, %v1537
      %1611 = vst.msk [vmem:[#allocation2 + $0x60] sm:$0xf] %vm1586, %v1539
      %1612 = vst.msk [vmem:[#allocation2 + $0x64] sm:$0xf] %vm1586, %v1541
      %1613 = vst.msk [vmem:[#allocation2 + $0x68] sm:$0xf] %vm1586, %v1543
      %1614 = vst.msk [vmem:[#allocation2 + $0x6c] sm:$0xf] %vm1586, %v1545
      %1615 = vst.msk [vmem:[#allocation2 + $0x70] sm:$0xf] %vm1586, %v1547
      %1616 = vst.msk [vmem:[#allocation2 + $0x74] sm:$0xf] %vm1586, %v1549
      %1617 = vst.msk [vmem:[#allocation2 + $0x78] sm:$0xf] %vm1586, %v1551
      %1618 = vst.msk [vmem:[#allocation2 + $0x7c] sm:$0xf] %vm1586, %v1553
      %v1620 = vshrl.u32 %v223, 16
      %v1622 = vrot.slane %v1620, 4
      %v1623 = vshll.u32 %v223, 16
      %v1625 = vrot.slane %v1623, 5
      %v1626 = vor.u32 %v1622, %v1625
      %v1627 = vrot.slane %v1626, 4
      %v1629 = vshll.u32 %v224, 16
      %v1631 = vrot.slane %v1629, 5
      %v1632 = vsel %vm261, %v1627, %v1631
      %v1633 = vshrl.u32 %v224, 16
      %v1635 = vrot.slane %v1633, 4
      %v1636 = vor.u32 %v1635, %v1631
      %v1637 = vrot.slane %v1636, 4
      %v1639 = vshll.u32 %v225, 16
      %v1641 = vrot.slane %v1639, 5
      %v1642 = vsel %vm261, %v1637, %v1641
      %1643 = vrot.lane.b32.xlu0 %v323, 56
      %v1644 = vpop.permute.xlu0 %1643
      %1645 = vrot.lane.b32.xlu0 %v333, 56
      %v1646 = vpop.permute.xlu0 %1645
      %1647 = vrot.lane.b32.xlu0 %v347, 56
      %v1648 = vpop.permute.xlu0 %1647
      %1649 = vrot.lane.b32.xlu0 %v357, 56
      %v1650 = vpop.permute.xlu0 %1649
      %1651 = vrot.lane.b32.xlu0 %v371, 56
      %v1652 = vpop.permute.xlu0 %1651
      %1653 = vrot.lane.b32.xlu0 %v381, 56
      %v1654 = vpop.permute.xlu0 %1653
      %1655 = vrot.lane.b32.xlu0 %v395, 56
      %v1656 = vpop.permute.xlu0 %1655
      %1657 = vrot.lane.b32.xlu0 %v405, 56
      %v1658 = vpop.permute.xlu0 %1657
      %1659 = vrot.lane.b32.xlu0 %v419, 56
      %v1660 = vpop.permute.xlu0 %1659
      %1661 = vrot.lane.b32.xlu0 %v429, 56
      %v1662 = vpop.permute.xlu0 %1661
      %1663 = vrot.lane.b32.xlu0 %v443, 56
      %v1664 = vpop.permute.xlu0 %1663
      %1665 = vrot.lane.b32.xlu0 %v453, 56
      %v1666 = vpop.permute.xlu0 %1665
      %1667 = vrot.lane.b32.xlu0 %v467, 56
      %v1668 = vpop.permute.xlu0 %1667
      %1669 = vrot.lane.b32.xlu0 %v477, 56
      %v1670 = vpop.permute.xlu0 %1669
      %1671 = vrot.lane.b32.xlu0 %v491, 56
      %v1672 = vpop.permute.xlu0 %1671
      %1673 = vrot.lane.b32.xlu0 %v501, 56
      %v1674 = vpop.permute.xlu0 %1673
      %1675 = vrot.lane.b32.xlu0 %v515, 56
      %v1676 = vpop.permute.xlu0 %1675
      %1677 = vrot.lane.b32.xlu0 %v525, 56
      %v1678 = vpop.permute.xlu0 %1677
      %1679 = vrot.lane.b32.xlu0 %v539, 56
      %v1680 = vpop.permute.xlu0 %1679
      %1681 = vrot.lane.b32.xlu0 %v549, 56
      %v1682 = vpop.permute.xlu0 %1681
      %1683 = vrot.lane.b32.xlu0 %v563, 56
      %v1684 = vpop.permute.xlu0 %1683
      %1685 = vrot.lane.b32.xlu0 %v573, 56
      %v1686 = vpop.permute.xlu0 %1685
      %1687 = vrot.lane.b32.xlu0 %v587, 56
      %v1688 = vpop.permute.xlu0 %1687
      %1689 = vrot.lane.b32.xlu0 %v597, 56
      %v1690 = vpop.permute.xlu0 %1689
      %1691 = vrot.lane.b32.xlu0 %v611, 56
      %v1692 = vpop.permute.xlu0 %1691
      %1693 = vrot.lane.b32.xlu0 %v621, 56
      %v1694 = vpop.permute.xlu0 %1693
      %1695 = vrot.lane.b32.xlu0 %v635, 56
      %v1696 = vpop.permute.xlu0 %1695
      %1697 = vrot.lane.b32.xlu0 %v645, 56
      %v1698 = vpop.permute.xlu0 %1697
      %1699 = vrot.lane.b32.xlu0 %v1211, 56
      %v1700 = vpop.permute.xlu0 %1699
      %1701 = vrot.lane.b32.xlu0 %v1221, 56
      %v1702 = vpop.permute.xlu0 %1701
      %1703 = vrot.lane.b32.xlu0 %v1632, 56
      %v1704 = vpop.permute.xlu0 %1703
      %1705 = vrot.lane.b32.xlu0 %v1642, 56
      %v1706 = vpop.permute.xlu0 %1705
      %vm1739 = vcmask 519616
      %1740 = vst.msk [vmem:[#allocation2] sm:$0xf] %vm1739, %v1644
      %1741 = vst.msk [vmem:[#allocation2 + $0x4] sm:$0xf] %vm1739, %v1646
      %1742 = vst.msk [vmem:[#allocation2 + $0x8] sm:$0xf] %vm1739, %v1648
      %1743 = vst.msk [vmem:[#allocation2 + $0xc] sm:$0xf] %vm1739, %v1650
      %1744 = vst.msk [vmem:[#allocation2 + $0x10] sm:$0xf] %vm1739, %v1652
      %1745 = vst.msk [vmem:[#allocation2 + $0x14] sm:$0xf] %vm1739, %v1654
      %1746 = vst.msk [vmem:[#allocation2 + $0x18] sm:$0xf] %vm1739, %v1656
      %1747 = vst.msk [vmem:[#allocation2 + $0x1c] sm:$0xf] %vm1739, %v1658
      %1748 = vst.msk [vmem:[#allocation2 + $0x20] sm:$0xf] %vm1739, %v1660
      %1749 = vst.msk [vmem:[#allocation2 + $0x24] sm:$0xf] %vm1739, %v1662
      %1750 = vst.msk [vmem:[#allocation2 + $0x28] sm:$0xf] %vm1739, %v1664
      %1751 = vst.msk [vmem:[#allocation2 + $0x2c] sm:$0xf] %vm1739, %v1666
      %1752 = vst.msk [vmem:[#allocation2 + $0x30] sm:$0xf] %vm1739, %v1668
      %1753 = vst.msk [vmem:[#allocation2 + $0x34] sm:$0xf] %vm1739, %v1670
      %1754 = vst.msk [vmem:[#allocation2 + $0x38] sm:$0xf] %vm1739, %v1672
      %1755 = vst.msk [vmem:[#allocation2 + $0x3c] sm:$0xf] %vm1739, %v1674
      %1756 = vst.msk [vmem:[#allocation2 + $0x40] sm:$0xf] %vm1739, %v1676
      %1757 = vst.msk [vmem:[#allocation2 + $0x44] sm:$0xf] %vm1739, %v1678
      %1758 = vst.msk [vmem:[#allocation2 + $0x48] sm:$0xf] %vm1739, %v1680
      %1759 = vst.msk [vmem:[#allocation2 + $0x4c] sm:$0xf] %vm1739, %v1682
      %1760 = vst.msk [vmem:[#allocation2 + $0x50] sm:$0xf] %vm1739, %v1684
      %1761 = vst.msk [vmem:[#allocation2 + $0x54] sm:$0xf] %vm1739, %v1686
      %1762 = vst.msk [vmem:[#allocation2 + $0x58] sm:$0xf] %vm1739, %v1688
      %1763 = vst.msk [vmem:[#allocation2 + $0x5c] sm:$0xf] %vm1739, %v1690
      %1764 = vst.msk [vmem:[#allocation2 + $0x60] sm:$0xf] %vm1739, %v1692
      %1765 = vst.msk [vmem:[#allocation2 + $0x64] sm:$0xf] %vm1739, %v1694
      %1766 = vst.msk [vmem:[#allocation2 + $0x68] sm:$0xf] %vm1739, %v1696
      %1767 = vst.msk [vmem:[#allocation2 + $0x6c] sm:$0xf] %vm1739, %v1698
      %1768 = vst.msk [vmem:[#allocation2 + $0x70] sm:$0xf] %vm1739, %v1700
      %1769 = vst.msk [vmem:[#allocation2 + $0x74] sm:$0xf] %vm1739, %v1702
      %1770 = vst.msk [vmem:[#allocation2 + $0x78] sm:$0xf] %vm1739, %v1704
      %1771 = vst.msk [vmem:[#allocation2 + $0x7c] sm:$0xf] %vm1739, %v1706
      %v1773 = vrot.slane %v223, 5
      %v1774 = vrot.slane %v1773, 4
      %v1775 = vrot.slane %v224, 5
      %v1776 = vsel %vm825, %v1774, %v1775
      %v1777 = vrot.slane %v1775, 4
      %v1778 = vrot.slane %v225, 5
      %v1779 = vsel %vm825, %v1777, %v1778
      %1780 = vrot.lane.b32.xlu0 %v843, 64
      %v1781 = vpop.permute.xlu0 %1780
      %1782 = vrot.lane.b32.xlu0 %v846, 64
      %v1783 = vpop.permute.xlu0 %1782
      %1784 = vrot.lane.b32.xlu0 %v850, 64
      %v1785 = vpop.permute.xlu0 %1784
      %1786 = vrot.lane.b32.xlu0 %v853, 64
      %v1787 = vpop.permute.xlu0 %1786
      %1788 = vrot.lane.b32.xlu0 %v857, 64
      %v1789 = vpop.permute.xlu0 %1788
      %1790 = vrot.lane.b32.xlu0 %v860, 64
      %v1791 = vpop.permute.xlu0 %1790
      %1792 = vrot.lane.b32.xlu0 %v864, 64
      %v1793 = vpop.permute.xlu0 %1792
      %1794 = vrot.lane.b32.xlu0 %v867, 64
      %v1795 = vpop.permute.xlu0 %1794
      %1796 = vrot.lane.b32.xlu0 %v871, 64
      %v1797 = vpop.permute.xlu0 %1796
      %1798 = vrot.lane.b32.xlu0 %v874, 64
      %v1799 = vpop.permute.xlu0 %1798
      %1800 = vrot.lane.b32.xlu0 %v878, 64
      %v1801 = vpop.permute.xlu0 %1800
      %1802 = vrot.lane.b32.xlu0 %v881, 64
      %v1803 = vpop.permute.xlu0 %1802
      %1804 = vrot.lane.b32.xlu0 %v885, 64
      %v1805 = vpop.permute.xlu0 %1804
      %1806 = vrot.lane.b32.xlu0 %v888, 64
      %v1807 = vpop.permute.xlu0 %1806
      %1808 = vrot.lane.b32.xlu0 %v892, 64
      %v1809 = vpop.permute.xlu0 %1808
      %1810 = vrot.lane.b32.xlu0 %v895, 64
      %v1811 = vpop.permute.xlu0 %1810
      %1812 = vrot.lane.b32.xlu0 %v899, 64
      %v1813 = vpop.permute.xlu0 %1812
      %1814 = vrot.lane.b32.xlu0 %v902, 64
      %v1815 = vpop.permute.xlu0 %1814
      %1816 = vrot.lane.b32.xlu0 %v906, 64
      %v1817 = vpop.permute.xlu0 %1816
      %1818 = vrot.lane.b32.xlu0 %v909, 64
      %v1819 = vpop.permute.xlu0 %1818
      %1820 = vrot.lane.b32.xlu0 %v913, 64
      %v1821 = vpop.permute.xlu0 %1820
      %1822 = vrot.lane.b32.xlu0 %v916, 64
      %v1823 = vpop.permute.xlu0 %1822
      %1824 = vrot.lane.b32.xlu0 %v920, 64
      %v1825 = vpop.permute.xlu0 %1824
      %1826 = vrot.lane.b32.xlu0 %v923, 64
      %v1827 = vpop.permute.xlu0 %1826
      %1828 = vrot.lane.b32.xlu0 %v927, 64
      %v1829 = vpop.permute.xlu0 %1828
      %1830 = vrot.lane.b32.xlu0 %v930, 64
      %v1831 = vpop.permute.xlu0 %1830
      %1832 = vrot.lane.b32.xlu0 %v934, 64
      %v1833 = vpop.permute.xlu0 %1832
      %1834 = vrot.lane.b32.xlu0 %v937, 64
      %v1835 = vpop.permute.xlu0 %1834
      %1836 = vrot.lane.b32.xlu0 %v1355, 64
      %v1837 = vpop.permute.xlu0 %1836
      %1838 = vrot.lane.b32.xlu0 %v1358, 64
      %v1839 = vpop.permute.xlu0 %1838
      %1840 = vrot.lane.b32.xlu0 %v1776, 64
      %v1841 = vpop.permute.xlu0 %1840
      %1842 = vrot.lane.b32.xlu0 %v1779, 64
      %v1843 = vpop.permute.xlu0 %1842
      %vm1876 = vcmask 585216
      %1877 = vst.msk [vmem:[#allocation2] sm:$0xf] %vm1876, %v1781
      %1878 = vst.msk [vmem:[#allocation2 + $0x4] sm:$0xf] %vm1876, %v1783
      %1879 = vst.msk [vmem:[#allocation2 + $0x8] sm:$0xf] %vm1876, %v1785
      %1880 = vst.msk [vmem:[#allocation2 + $0xc] sm:$0xf] %vm1876, %v1787
      %1881 = vst.msk [vmem:[#allocation2 + $0x10] sm:$0xf] %vm1876, %v1789
      %1882 = vst.msk [vmem:[#allocation2 + $0x14] sm:$0xf] %vm1876, %v1791
      %1883 = vst.msk [vmem:[#allocation2 + $0x18] sm:$0xf] %vm1876, %v1793
      %1884 = vst.msk [vmem:[#allocation2 + $0x1c] sm:$0xf] %vm1876, %v1795
      %1885 = vst.msk [vmem:[#allocation2 + $0x20] sm:$0xf] %vm1876, %v1797
      %1886 = vst.msk [vmem:[#allocation2 + $0x24] sm:$0xf] %vm1876, %v1799
      %1887 = vst.msk [vmem:[#allocation2 + $0x28] sm:$0xf] %vm1876, %v1801
      %1888 = vst.msk [vmem:[#allocation2 + $0x2c] sm:$0xf] %vm1876, %v1803
      %1889 = vst.msk [vmem:[#allocation2 + $0x30] sm:$0xf] %vm1876, %v1805
      %1890 = vst.msk [vmem:[#allocation2 + $0x34] sm:$0xf] %vm1876, %v1807
      %1891 = vst.msk [vmem:[#allocation2 + $0x38] sm:$0xf] %vm1876, %v1809
      %1892 = vst.msk [vmem:[#allocation2 + $0x3c] sm:$0xf] %vm1876, %v1811
      %1893 = vst.msk [vmem:[#allocation2 + $0x40] sm:$0xf] %vm1876, %v1813
      %1894 = vst.msk [vmem:[#allocation2 + $0x44] sm:$0xf] %vm1876, %v1815
      %1895 = vst.msk [vmem:[#allocation2 + $0x48] sm:$0xf] %vm1876, %v1817
      %1896 = vst.msk [vmem:[#allocation2 + $0x4c] sm:$0xf] %vm1876, %v1819
      %1897 = vst.msk [vmem:[#allocation2 + $0x50] sm:$0xf] %vm1876, %v1821
      %1898 = vst.msk [vmem:[#allocation2 + $0x54] sm:$0xf] %vm1876, %v1823
      %1899 = vst.msk [vmem:[#allocation2 + $0x58] sm:$0xf] %vm1876, %v1825
      %1900 = vst.msk [vmem:[#allocation2 + $0x5c] sm:$0xf] %vm1876, %v1827
      %1901 = vst.msk [vmem:[#allocation2 + $0x60] sm:$0xf] %vm1876, %v1829
      %1902 = vst.msk [vmem:[#allocation2 + $0x64] sm:$0xf] %vm1876, %v1831
      %1903 = vst.msk [vmem:[#allocation2 + $0x68] sm:$0xf] %vm1876, %v1833
      %1904 = vst.msk [vmem:[#allocation2 + $0x6c] sm:$0xf] %vm1876, %v1835
      %1905 = vst.msk [vmem:[#allocation2 + $0x70] sm:$0xf] %vm1876, %v1837
      %1906 = vst.msk [vmem:[#allocation2 + $0x74] sm:$0xf] %vm1876, %v1839
      %1907 = vst.msk [vmem:[#allocation2 + $0x78] sm:$0xf] %vm1876, %v1841
      %1908 = vst.msk [vmem:[#allocation2 + $0x7c] sm:$0xf] %vm1876, %v1843
      %v1909 = vld [vmem:[#allocation2] sm:$0xf]
      %v1910 = vld [vmem:[#allocation2 + $0x4] sm:$0xf]
      %v1911 = vld [vmem:[#allocation2 + $0x8] sm:$0xf]
      %v1912 = vld [vmem:[#allocation2 + $0xc] sm:$0xf]
      %v1913 = vld [vmem:[#allocation2 + $0x10] sm:$0xf]
      %v1914 = vld [vmem:[#allocation2 + $0x14] sm:$0xf]
      %v1915 = vld [vmem:[#allocation2 + $0x18] sm:$0xf]
      %v1916 = vld [vmem:[#allocation2 + $0x1c] sm:$0xf]
      %v1917 = vld [vmem:[#allocation2 + $0x20] sm:$0xf]
      %v1918 = vld [vmem:[#allocation2 + $0x24] sm:$0xf]
      %v1919 = vld [vmem:[#allocation2 + $0x28] sm:$0xf]
      %v1920 = vld [vmem:[#allocation2 + $0x2c] sm:$0xf]
      %v1921 = vld [vmem:[#allocation2 + $0x30] sm:$0xf]
      %v1922 = vld [vmem:[#allocation2 + $0x34] sm:$0xf]
      %v1923 = vld [vmem:[#allocation2 + $0x38] sm:$0xf]
      %v1924 = vld [vmem:[#allocation2 + $0x3c] sm:$0xf]
      %v1925 = vld [vmem:[#allocation2 + $0x40] sm:$0xf]
      %v1926 = vld [vmem:[#allocation2 + $0x44] sm:$0xf]
      %v1927 = vld [vmem:[#allocation2 + $0x48] sm:$0xf]
      %v1928 = vld [vmem:[#allocation2 + $0x4c] sm:$0xf]
      %v1929 = vld [vmem:[#allocation2 + $0x50] sm:$0xf]
      %v1930 = vld [vmem:[#allocation2 + $0x54] sm:$0xf]
      %v1931 = vld [vmem:[#allocation2 + $0x58] sm:$0xf]
      %v1932 = vld [vmem:[#allocation2 + $0x5c] sm:$0xf]
      %v1933 = vld [vmem:[#allocation2 + $0x60] sm:$0xf]
      %v1934 = vld [vmem:[#allocation2 + $0x64] sm:$0xf]
      %v1935 = vld [vmem:[#allocation2 + $0x68] sm:$0xf]
      %v1936 = vld [vmem:[#allocation2 + $0x6c] sm:$0xf]
      %v1937 = vld [vmem:[#allocation2 + $0x70] sm:$0xf]
      %v1938 = vld [vmem:[#allocation2 + $0x74] sm:$0xf]
      %v1939 = vld [vmem:[#allocation2 + $0x78] sm:$0xf]
      %v1940 = vld [vmem:[#allocation2 + $0x7c] sm:$0xf]
      %v1941 = vld [vmem:[%s1] sm:$0xf]
      %v1942 = vld [vmem:[%s1 + $0x4] sm:$0xf]
      %v1943 = vld [vmem:[%s1 + $0x8] sm:$0xf]
      %v1944 = vld [vmem:[%s1 + $0xc] sm:$0xf]
      %v1945 = vld [vmem:[%s1 + $0x10] sm:$0xf]
      %v1946 = vld [vmem:[%s1 + $0x14] sm:$0xf]
      %v1947 = vld [vmem:[%s1 + $0x18] sm:$0xf]
      %v1948 = vld [vmem:[%s1 + $0x1c] sm:$0xf]
      %v1949 = vld [vmem:[%s1 + $0x20] sm:$0xf]
      %v1982 = vunpack.c.l.b16 %v1909
      %v1983 = vunpack.c.l.b16 %v1910
      %v1984 = vunpack.c.l.b16 %v1911
      %v1985 = vunpack.c.l.b16 %v1912
      %v1986 = vunpack.c.l.b16 %v1913
      %v1987 = vunpack.c.l.b16 %v1914
      %v1988 = vunpack.c.l.b16 %v1915
      %v1989 = vunpack.c.l.b16 %v1916
      %v1990 = vunpack.c.l.b16 %v1917
      %v1991 = vunpack.c.l.b16 %v1918
      %v1992 = vunpack.c.l.b16 %v1919
      %v1993 = vunpack.c.l.b16 %v1920
      %v1994 = vunpack.c.l.b16 %v1921
      %v1995 = vunpack.c.l.b16 %v1922
      %v1996 = vunpack.c.l.b16 %v1923
      %v1997 = vunpack.c.l.b16 %v1924
      %v1998 = vunpack.c.l.b16 %v1925
      %v1999 = vunpack.c.l.b16 %v1926
      %v2000 = vunpack.c.l.b16 %v1927
      %v2001 = vunpack.c.l.b16 %v1928
      %v2002 = vunpack.c.l.b16 %v1929
      %v2003 = vunpack.c.l.b16 %v1930
      %v2004 = vunpack.c.l.b16 %v1931
      %v2005 = vunpack.c.l.b16 %v1932
      %v2006 = vunpack.c.l.b16 %v1933
      %v2007 = vunpack.c.l.b16 %v1934
      %v2008 = vunpack.c.l.b16 %v1935
      %v2009 = vunpack.c.l.b16 %v1936
      %v2010 = vunpack.c.l.b16 %v1937
      %v2011 = vunpack.c.l.b16 %v1938
      %v2012 = vunpack.c.l.b16 %v1939
      %v2013 = vunpack.c.l.b16 %v1940
      %v2014 = vpack.c.b16 %v1983, %v1982
      %v2015 = vpack.c.b16 %v1985, %v1984
      %v2016 = vpack.c.b16 %v1987, %v1986
      %v2017 = vpack.c.b16 %v1989, %v1988
      %v2018 = vpack.c.b16 %v1991, %v1990
      %v2019 = vpack.c.b16 %v1993, %v1992
      %v2020 = vpack.c.b16 %v1995, %v1994
      %v2021 = vpack.c.b16 %v1997, %v1996
      %v2022 = vpack.c.b16 %v1999, %v1998
      %v2023 = vpack.c.b16 %v2001, %v2000
      %v2024 = vpack.c.b16 %v2003, %v2002
      %v2025 = vpack.c.b16 %v2005, %v2004
      %v2026 = vpack.c.b16 %v2007, %v2006
      %v2027 = vpack.c.b16 %v2009, %v2008
      %v2028 = vpack.c.b16 %v2011, %v2010
      %v2029 = vpack.c.b16 %v2013, %v2012
      %v2039 = vunpack.c.l.b16 %v1941
      %v2040 = vunpack.c.l.b16 %v1942
      %v2041 = vunpack.c.l.b16 %v1943
      %v2042 = vunpack.c.l.b16 %v1944
      %v2043 = vunpack.c.l.b16 %v1945
      %v2044 = vunpack.c.l.b16 %v1946
      %v2045 = vunpack.c.l.b16 %v1947
      %v2046 = vunpack.c.l.b16 %v1948
      %v2047 = vunpack.c.l.b16 %v1949
      %v2048 = vpack.c.b16 %v2040, %v2039
      %v2049 = vpack.c.b16 %v2042, %v2041
      %v2050 = vpack.c.b16 %v2044, %v2043
      %v2051 = vpack.c.b16 %v2046, %v2045
      %v2052 = vpack.c.b16 %v2047, %v2047
      %vm2057 = vcmask 588800
      %v2059 = vsel %vm2057, %v2014, 0
      %v2062 = vsel %vm2057, %v2015, 0
      %v2065 = vsel %vm2057, %v2016, 0
      %v2068 = vsel %vm2057, %v2017, 0
      %v2071 = vsel %vm2057, %v2018, 0
      %v2074 = vsel %vm2057, %v2019, 0
      %v2077 = vsel %vm2057, %v2020, 0
      %v2080 = vsel %vm2057, %v2021, 0
      %v2083 = vsel %vm2057, %v2022, 0
      %v2086 = vsel %vm2057, %v2023, 0
      %v2089 = vsel %vm2057, %v2024, 0
      %v2092 = vsel %vm2057, %v2025, 0
      %v2095 = vsel %vm2057, %v2026, 0
      %v2098 = vsel %vm2057, %v2027, 0
      %v2101 = vsel %vm2057, %v2028, 0
      %v2104 = vsel %vm2057, %v2029, 0
      %vm2106 = vcmask 1043456
      %v2108 = vsel %vm2106, %v2052, 0
      %2110 = vmatprep.subr.bf16.mxu0 0
      %2111 = vmatpush1.bf16.msra.mxu0 0
      %2112 = vmatprep.subr.bf16.mxu0 0
      %2113 = vmatpush1.bf16.msra.mxu0 0
      %2114 = vmatprep.subr.bf16.mxu0 0
      %2115 = vmatpush1.bf16.msra.mxu0 0
      %2116 = vmatprep.subr.bf16.mxu0 0
      %2117 = vmatpush1.bf16.msra.mxu0 %v2108
      %2118 = vmatprep.subr.bf16.mxu0 0
      %2119 = vmatpush1.bf16.msra.mxu0 %v2051
      %2120 = vmatprep.subr.bf16.mxu0 0
      %2121 = vmatpush1.bf16.msra.mxu0 %v2050
      %2122 = vmatprep.subr.bf16.mxu0 0
      %2123 = vmatpush1.bf16.msra.mxu0 %v2049
      %2124 = vmatprep.subr.bf16.mxu0 0
      %2125 = vmatpush1.bf16.msra.mxu0 %v2048
      %2126 = vmatprep.subr.bf16.mxu0 0
      %2127 = vmatpush2.bf16.msra.mxu0 0
      %2128 = vmatprep.subr.bf16.mxu0 0
      %2129 = vmatpush2.bf16.msra.mxu0 0
      %2130 = vmatprep.subr.bf16.mxu0 0
      %2131 = vmatpush2.bf16.msra.mxu0 0
      %2132 = vmatprep.subr.bf16.mxu0 0
      %2133 = vmatpush2.bf16.msra.mxu0 0
      %2134 = vmatprep.subr.bf16.mxu0 0
      %2135 = vmatpush2.bf16.msra.mxu0 0
      %2136 = vmatprep.subr.bf16.mxu0 0
      %2137 = vmatpush2.bf16.msra.mxu0 0
      %2138 = vmatprep.subr.bf16.mxu0 0
      %2139 = vmatpush2.bf16.msra.mxu0 0
      %2140 = vmatprep.subr.bf16.mxu0 0
      %2141 = vmatpush2.bf16.msra.mxu0 0
      %2142 = vmatprep.mubr.bf16.mxu0 0
      %2143 = vmatmul.mubr.bf16.gmra.mxu0 %v2059
      %v2144 = vpop.f32.mrf.mxu0
      %v2145 = vadd.f32 0.0, %v2144
      %v2146 = vpop.f32.mrf.mxu0
      %v2147 = vpop.f32.mrf.mxu0
      %v2148 = vadd.f32 0.0, %v2147
      %v2149 = vpop.f32.mrf.mxu0
      %2150 = vmatprep.mubr.bf16.mxu0 0
      %2151 = vmatmul.mubr.bf16.gmra.mxu0 %v2062
      %v2152 = vpop.f32.mrf.mxu0
      %v2153 = vadd.f32 0.0, %v2152
      %v2154 = vpop.f32.mrf.mxu0
      %v2155 = vpop.f32.mrf.mxu0
      %v2156 = vadd.f32 0.0, %v2155
      %v2157 = vpop.f32.mrf.mxu0
      %2158 = vmatprep.mubr.bf16.mxu0 0
      %2159 = vmatmul.mubr.bf16.gmra.mxu0 %v2065
      %v2160 = vpop.f32.mrf.mxu0
      %v2161 = vadd.f32 0.0, %v2160
      %v2162 = vpop.f32.mrf.mxu0
      %v2163 = vpop.f32.mrf.mxu0
      %v2164 = vadd.f32 0.0, %v2163
      %v2165 = vpop.f32.mrf.mxu0
      %2166 = vmatprep.mubr.bf16.mxu0 0
      %2167 = vmatmul.mubr.bf16.gmra.mxu0 %v2068
      %v2168 = vpop.f32.mrf.mxu0
      %v2169 = vadd.f32 0.0, %v2168
      %v2170 = vpop.f32.mrf.mxu0
      %v2171 = vpop.f32.mrf.mxu0
      %v2172 = vadd.f32 0.0, %v2171
      %v2173 = vpop.f32.mrf.mxu0
      %2174 = vmatprep.mubr.bf16.mxu0 0
      %2175 = vmatmul.mubr.bf16.gmra.mxu0 %v2071
      %v2176 = vpop.f32.mrf.mxu0
      %v2177 = vadd.f32 0.0, %v2176
      %v2178 = vpop.f32.mrf.mxu0
      %v2179 = vpop.f32.mrf.mxu0
      %v2180 = vadd.f32 0.0, %v2179
      %v2181 = vpop.f32.mrf.mxu0
      %2182 = vmatprep.mubr.bf16.mxu0 0
      %2183 = vmatmul.mubr.bf16.gmra.mxu0 %v2074
      %v2184 = vpop.f32.mrf.mxu0
      %v2185 = vadd.f32 0.0, %v2184
      %v2186 = vpop.f32.mrf.mxu0
      %v2187 = vpop.f32.mrf.mxu0
      %v2188 = vadd.f32 0.0, %v2187
      %v2189 = vpop.f32.mrf.mxu0
      %2190 = vmatprep.mubr.bf16.mxu0 0
      %2191 = vmatmul.mubr.bf16.gmra.mxu0 %v2077
      %v2192 = vpop.f32.mrf.mxu0
      %v2193 = vadd.f32 0.0, %v2192
      %v2194 = vpop.f32.mrf.mxu0
      %v2195 = vpop.f32.mrf.mxu0
      %v2196 = vadd.f32 0.0, %v2195
      %v2197 = vpop.f32.mrf.mxu0
      %2198 = vmatprep.mubr.bf16.mxu0 0
      %2199 = vmatmul.mubr.bf16.gmra.mxu0 %v2080
      %v2200 = vpop.f32.mrf.mxu0
      %v2201 = vadd.f32 0.0, %v2200
      %v2202 = vpop.f32.mrf.mxu0
      %v2203 = vpop.f32.mrf.mxu0
      %v2204 = vadd.f32 0.0, %v2203
      %v2205 = vpop.f32.mrf.mxu0
      %2206 = vmatprep.mubr.bf16.mxu0 0
      %2207 = vmatmul.mubr.bf16.gmra.mxu0 %v2083
      %v2208 = vpop.f32.mrf.mxu0
      %v2209 = vadd.f32 0.0, %v2208
      %v2210 = vpop.f32.mrf.mxu0
      %v2211 = vpop.f32.mrf.mxu0
      %v2212 = vadd.f32 0.0, %v2211
      %v2213 = vpop.f32.mrf.mxu0
      %2214 = vmatprep.mubr.bf16.mxu0 0
      %2215 = vmatmul.mubr.bf16.gmra.mxu0 %v2086
      %v2216 = vpop.f32.mrf.mxu0
      %v2217 = vadd.f32 0.0, %v2216
      %v2218 = vpop.f32.mrf.mxu0
      %v2219 = vpop.f32.mrf.mxu0
      %v2220 = vadd.f32 0.0, %v2219
      %v2221 = vpop.f32.mrf.mxu0
      %2222 = vmatprep.mubr.bf16.mxu0 0
      %2223 = vmatmul.mubr.bf16.gmra.mxu0 %v2089
      %v2224 = vpop.f32.mrf.mxu0
      %v2225 = vadd.f32 0.0, %v2224
      %v2226 = vpop.f32.mrf.mxu0
      %v2227 = vpop.f32.mrf.mxu0
      %v2228 = vadd.f32 0.0, %v2227
      %v2229 = vpop.f32.mrf.mxu0
      %2230 = vmatprep.mubr.bf16.mxu0 0
      %2231 = vmatmul.mubr.bf16.gmra.mxu0 %v2092
      %v2232 = vpop.f32.mrf.mxu0
      %v2233 = vadd.f32 0.0, %v2232
      %v2234 = vpop.f32.mrf.mxu0
      %v2235 = vpop.f32.mrf.mxu0
      %v2236 = vadd.f32 0.0, %v2235
      %v2237 = vpop.f32.mrf.mxu0
      %2238 = vmatprep.mubr.bf16.mxu0 0
      %2239 = vmatmul.mubr.bf16.gmra.mxu0 %v2095
      %v2240 = vpop.f32.mrf.mxu0
      %v2241 = vadd.f32 0.0, %v2240
      %v2242 = vpop.f32.mrf.mxu0
      %v2243 = vpop.f32.mrf.mxu0
      %v2244 = vadd.f32 0.0, %v2243
      %v2245 = vpop.f32.mrf.mxu0
      %2246 = vmatprep.mubr.bf16.mxu0 0
      %2247 = vmatmul.mubr.bf16.gmra.mxu0 %v2098
      %v2248 = vpop.f32.mrf.mxu0
      %v2249 = vadd.f32 0.0, %v2248
      %v2250 = vpop.f32.mrf.mxu0
      %v2251 = vpop.f32.mrf.mxu0
      %v2252 = vadd.f32 0.0, %v2251
      %v2253 = vpop.f32.mrf.mxu0
      %2254 = vmatprep.mubr.bf16.mxu0 0
      %2255 = vmatmul.mubr.bf16.gmra.mxu0 %v2101
      %v2256 = vpop.f32.mrf.mxu0
      %v2257 = vadd.f32 0.0, %v2256
      %v2258 = vpop.f32.mrf.mxu0
      %v2259 = vpop.f32.mrf.mxu0
      %v2260 = vadd.f32 0.0, %v2259
      %v2261 = vpop.f32.mrf.mxu0
      %2262 = vmatprep.mubr.bf16.mxu0 0
      %2263 = vmatmul.mubr.bf16.gmra.mxu0 %v2104
      %v2264 = vpop.f32.mrf.mxu0
      %v2265 = vadd.f32 0.0, %v2264
      %v2266 = vpop.f32.mrf.mxu0
      %v2267 = vpop.f32.mrf.mxu0
      %v2268 = vadd.f32 0.0, %v2267
      %v2269 = vpop.f32.mrf.mxu0
      %2270 = vdwg.mxu0
      %v2303 = vcombine.high %v2145, %v2145
      %v2305 = vunpack.c.l.s4 1983009808
      %v2306 = vunpack.c.0.s8 %v2305
      %v2307 = vlaneseq
      %v2308 = vshrl.u32 %v2307, 7
      %v2309 = vsub.s32 %v2306, %v2308
      %v2310 = vrot.slane %v2145, %v2309
      %v2312 = vunpack.c.l.s4 1983009808
      %v2313 = vunpack.c.0.s8 %v2312
      %v2314 = vlaneseq
      %v2315 = vshrl.u32 %v2314, 7
      %v2316 = vsub.s32 %v2313, %v2315
      %v2317 = vrot.slane %v2303, %v2316
      %v2318 = vcombine.high %v2310, %v2310
      %v2319 = vcombine.high %v2317, %v2317
      %v2320 = vcombine.high %v2148, %v2148
      %v2322 = vunpack.c.l.s4 1983009808
      %v2323 = vunpack.c.0.s8 %v2322
      %v2324 = vlaneseq
      %v2325 = vshrl.u32 %v2324, 7
      %v2326 = vsub.s32 %v2323, %v2325
      %v2327 = vrot.slane %v2148, %v2326
      %v2329 = vunpack.c.l.s4 1983009808
      %v2330 = vunpack.c.0.s8 %v2329
      %v2331 = vlaneseq
      %v2332 = vshrl.u32 %v2331, 7
      %v2333 = vsub.s32 %v2330, %v2332
      %v2334 = vrot.slane %v2320, %v2333
      %v2335 = vcombine.high %v2327, %v2327
      %v2336 = vcombine.high %v2334, %v2334
      %v2337 = vcombine.high %v2153, %v2153
      %v2339 = vunpack.c.l.s4 1983009808
      %v2340 = vunpack.c.0.s8 %v2339
      %v2341 = vlaneseq
      %v2342 = vshrl.u32 %v2341, 7
      %v2343 = vsub.s32 %v2340, %v2342
      %v2344 = vrot.slane %v2153, %v2343
      %v2346 = vunpack.c.l.s4 1983009808
      %v2347 = vunpack.c.0.s8 %v2346
      %v2348 = vlaneseq
      %v2349 = vshrl.u32 %v2348, 7
      %v2350 = vsub.s32 %v2347, %v2349
      %v2351 = vrot.slane %v2337, %v2350
      %v2352 = vcombine.high %v2344, %v2344
      %v2353 = vcombine.high %v2351, %v2351
      %v2354 = vcombine.high %v2156, %v2156
      %v2356 = vunpack.c.l.s4 1983009808
      %v2357 = vunpack.c.0.s8 %v2356
      %v2358 = vlaneseq
      %v2359 = vshrl.u32 %v2358, 7
      %v2360 = vsub.s32 %v2357, %v2359
      %v2361 = vrot.slane %v2156, %v2360
      %v2363 = vunpack.c.l.s4 1983009808
      %v2364 = vunpack.c.0.s8 %v2363
      %v2365 = vlaneseq
      %v2366 = vshrl.u32 %v2365, 7
      %v2367 = vsub.s32 %v2364, %v2366
      %v2368 = vrot.slane %v2354, %v2367
      %v2369 = vcombine.high %v2361, %v2361
      %v2370 = vcombine.high %v2368, %v2368
      %v2371 = vcombine.high %v2161, %v2161
      %v2373 = vunpack.c.l.s4 1983009808
      %v2374 = vunpack.c.0.s8 %v2373
      %v2375 = vlaneseq
      %v2376 = vshrl.u32 %v2375, 7
      %v2377 = vsub.s32 %v2374, %v2376
      %v2378 = vrot.slane %v2161, %v2377
      %v2380 = vunpack.c.l.s4 1983009808
      %v2381 = vunpack.c.0.s8 %v2380
      %v2382 = vlaneseq
      %v2383 = vshrl.u32 %v2382, 7
      %v2384 = vsub.s32 %v2381, %v2383
      %v2385 = vrot.slane %v2371, %v2384
      %v2386 = vcombine.high %v2378, %v2378
      %v2387 = vcombine.high %v2385, %v2385
      %v2388 = vcombine.high %v2164, %v2164
      %v2390 = vunpack.c.l.s4 1983009808
      %v2391 = vunpack.c.0.s8 %v2390
      %v2392 = vlaneseq
      %v2393 = vshrl.u32 %v2392, 7
      %v2394 = vsub.s32 %v2391, %v2393
      %v2395 = vrot.slane %v2164, %v2394
      %v2397 = vunpack.c.l.s4 1983009808
      %v2398 = vunpack.c.0.s8 %v2397
      %v2399 = vlaneseq
      %v2400 = vshrl.u32 %v2399, 7
      %v2401 = vsub.s32 %v2398, %v2400
      %v2402 = vrot.slane %v2388, %v2401
      %v2403 = vcombine.high %v2395, %v2395
      %v2404 = vcombine.high %v2402, %v2402
      %v2405 = vcombine.high %v2169, %v2169
      %v2407 = vunpack.c.l.s4 1983009808
      %v2408 = vunpack.c.0.s8 %v2407
      %v2409 = vlaneseq
      %v2410 = vshrl.u32 %v2409, 7
      %v2411 = vsub.s32 %v2408, %v2410
      %v2412 = vrot.slane %v2169, %v2411
      %v2414 = vunpack.c.l.s4 1983009808
      %v2415 = vunpack.c.0.s8 %v2414
      %v2416 = vlaneseq
      %v2417 = vshrl.u32 %v2416, 7
      %v2418 = vsub.s32 %v2415, %v2417
      %v2419 = vrot.slane %v2405, %v2418
      %v2420 = vcombine.high %v2412, %v2412
      %v2421 = vcombine.high %v2419, %v2419
      %v2422 = vcombine.high %v2172, %v2172
      %v2424 = vunpack.c.l.s4 1983009808
      %v2425 = vunpack.c.0.s8 %v2424
      %v2426 = vlaneseq
      %v2427 = vshrl.u32 %v2426, 7
      %v2428 = vsub.s32 %v2425, %v2427
      %v2429 = vrot.slane %v2172, %v2428
      %v2431 = vunpack.c.l.s4 1983009808
      %v2432 = vunpack.c.0.s8 %v2431
      %v2433 = vlaneseq
      %v2434 = vshrl.u32 %v2433, 7
      %v2435 = vsub.s32 %v2432, %v2434
      %v2436 = vrot.slane %v2422, %v2435
      %v2437 = vcombine.high %v2429, %v2429
      %v2438 = vcombine.high %v2436, %v2436
      %v2439 = vcombine.high %v2177, %v2177
      %v2441 = vunpack.c.l.s4 1983009808
      %v2442 = vunpack.c.0.s8 %v2441
      %v2443 = vlaneseq
      %v2444 = vshrl.u32 %v2443, 7
      %v2445 = vsub.s32 %v2442, %v2444
      %v2446 = vrot.slane %v2177, %v2445
      %v2448 = vunpack.c.l.s4 1983009808
      %v2449 = vunpack.c.0.s8 %v2448
      %v2450 = vlaneseq
      %v2451 = vshrl.u32 %v2450, 7
      %v2452 = vsub.s32 %v2449, %v2451
      %v2453 = vrot.slane %v2439, %v2452
      %v2454 = vcombine.high %v2446, %v2446
      %v2455 = vcombine.high %v2453, %v2453
      %v2456 = vcombine.high %v2180, %v2180
      %v2458 = vunpack.c.l.s4 1983009808
      %v2459 = vunpack.c.0.s8 %v2458
      %v2460 = vlaneseq
      %v2461 = vshrl.u32 %v2460, 7
      %v2462 = vsub.s32 %v2459, %v2461
      %v2463 = vrot.slane %v2180, %v2462
      %v2465 = vunpack.c.l.s4 1983009808
      %v2466 = vunpack.c.0.s8 %v2465
      %v2467 = vlaneseq
      %v2468 = vshrl.u32 %v2467, 7
      %v2469 = vsub.s32 %v2466, %v2468
      %v2470 = vrot.slane %v2456, %v2469
      %v2471 = vcombine.high %v2463, %v2463
      %v2472 = vcombine.high %v2470, %v2470
      %v2473 = vcombine.high %v2185, %v2185
      %v2475 = vunpack.c.l.s4 1983009808
      %v2476 = vunpack.c.0.s8 %v2475
      %v2477 = vlaneseq
      %v2478 = vshrl.u32 %v2477, 7
      %v2479 = vsub.s32 %v2476, %v2478
      %v2480 = vrot.slane %v2185, %v2479
      %v2482 = vunpack.c.l.s4 1983009808
      %v2483 = vunpack.c.0.s8 %v2482
      %v2484 = vlaneseq
      %v2485 = vshrl.u32 %v2484, 7
      %v2486 = vsub.s32 %v2483, %v2485
      %v2487 = vrot.slane %v2473, %v2486
      %v2488 = vcombine.high %v2480, %v2480
      %v2489 = vcombine.high %v2487, %v2487
      %v2490 = vcombine.high %v2188, %v2188
      %v2492 = vunpack.c.l.s4 1983009808
      %v2493 = vunpack.c.0.s8 %v2492
      %v2494 = vlaneseq
      %v2495 = vshrl.u32 %v2494, 7
      %v2496 = vsub.s32 %v2493, %v2495
      %v2497 = vrot.slane %v2188, %v2496
      %v2499 = vunpack.c.l.s4 1983009808
      %v2500 = vunpack.c.0.s8 %v2499
      %v2501 = vlaneseq
      %v2502 = vshrl.u32 %v2501, 7
      %v2503 = vsub.s32 %v2500, %v2502
      %v2504 = vrot.slane %v2490, %v2503
      %v2505 = vcombine.high %v2497, %v2497
      %v2506 = vcombine.high %v2504, %v2504
      %v2507 = vcombine.high %v2193, %v2193
      %v2509 = vunpack.c.l.s4 1983009808
      %v2510 = vunpack.c.0.s8 %v2509
      %v2511 = vlaneseq
      %v2512 = vshrl.u32 %v2511, 7
      %v2513 = vsub.s32 %v2510, %v2512
      %v2514 = vrot.slane %v2193, %v2513
      %v2516 = vunpack.c.l.s4 1983009808
      %v2517 = vunpack.c.0.s8 %v2516
      %v2518 = vlaneseq
      %v2519 = vshrl.u32 %v2518, 7
      %v2520 = vsub.s32 %v2517, %v2519
      %v2521 = vrot.slane %v2507, %v2520
      %v2522 = vcombine.high %v2514, %v2514
      %v2523 = vcombine.high %v2521, %v2521
      %v2524 = vcombine.high %v2196, %v2196
      %v2526 = vunpack.c.l.s4 1983009808
      %v2527 = vunpack.c.0.s8 %v2526
      %v2528 = vlaneseq
      %v2529 = vshrl.u32 %v2528, 7
      %v2530 = vsub.s32 %v2527, %v2529
      %v2531 = vrot.slane %v2196, %v2530
      %v2533 = vunpack.c.l.s4 1983009808
      %v2534 = vunpack.c.0.s8 %v2533
      %v2535 = vlaneseq
      %v2536 = vshrl.u32 %v2535, 7
      %v2537 = vsub.s32 %v2534, %v2536
      %v2538 = vrot.slane %v2524, %v2537
      %v2539 = vcombine.high %v2531, %v2531
      %v2540 = vcombine.high %v2538, %v2538
      %v2541 = vcombine.high %v2201, %v2201
      %v2543 = vunpack.c.l.s4 1983009808
      %v2544 = vunpack.c.0.s8 %v2543
      %v2545 = vlaneseq
      %v2546 = vshrl.u32 %v2545, 7
      %v2547 = vsub.s32 %v2544, %v2546
      %v2548 = vrot.slane %v2201, %v2547
      %v2550 = vunpack.c.l.s4 1983009808
      %v2551 = vunpack.c.0.s8 %v2550
      %v2552 = vlaneseq
      %v2553 = vshrl.u32 %v2552, 7
      %v2554 = vsub.s32 %v2551, %v2553
      %v2555 = vrot.slane %v2541, %v2554
      %v2556 = vcombine.high %v2548, %v2548
      %v2557 = vcombine.high %v2555, %v2555
      %v2558 = vcombine.high %v2204, %v2204
      %v2560 = vunpack.c.l.s4 1983009808
      %v2561 = vunpack.c.0.s8 %v2560
      %v2562 = vlaneseq
      %v2563 = vshrl.u32 %v2562, 7
      %v2564 = vsub.s32 %v2561, %v2563
      %v2565 = vrot.slane %v2204, %v2564
      %v2567 = vunpack.c.l.s4 1983009808
      %v2568 = vunpack.c.0.s8 %v2567
      %v2569 = vlaneseq
      %v2570 = vshrl.u32 %v2569, 7
      %v2571 = vsub.s32 %v2568, %v2570
      %v2572 = vrot.slane %v2558, %v2571
      %v2573 = vcombine.high %v2565, %v2565
      %v2574 = vcombine.high %v2572, %v2572
      %v2575 = vcombine.high %v2209, %v2209
      %v2577 = vunpack.c.l.s4 1983009808
      %v2578 = vunpack.c.0.s8 %v2577
      %v2579 = vlaneseq
      %v2580 = vshrl.u32 %v2579, 7
      %v2581 = vsub.s32 %v2578, %v2580
      %v2582 = vrot.slane %v2209, %v2581
      %v2584 = vunpack.c.l.s4 1983009808
      %v2585 = vunpack.c.0.s8 %v2584
      %v2586 = vlaneseq
      %v2587 = vshrl.u32 %v2586, 7
      %v2588 = vsub.s32 %v2585, %v2587
      %v2589 = vrot.slane %v2575, %v2588
      %v2590 = vcombine.high %v2582, %v2582
      %v2591 = vcombine.high %v2589, %v2589
      %v2592 = vcombine.high %v2212, %v2212
      %v2594 = vunpack.c.l.s4 1983009808
      %v2595 = vunpack.c.0.s8 %v2594
      %v2596 = vlaneseq
      %v2597 = vshrl.u32 %v2596, 7
      %v2598 = vsub.s32 %v2595, %v2597
      %v2599 = vrot.slane %v2212, %v2598
      %v2601 = vunpack.c.l.s4 1983009808
      %v2602 = vunpack.c.0.s8 %v2601
      %v2603 = vlaneseq
      %v2604 = vshrl.u32 %v2603, 7
      %v2605 = vsub.s32 %v2602, %v2604
      %v2606 = vrot.slane %v2592, %v2605
      %v2607 = vcombine.high %v2599, %v2599
      %v2608 = vcombine.high %v2606, %v2606
      %v2609 = vcombine.high %v2217, %v2217
      %v2611 = vunpack.c.l.s4 1983009808
      %v2612 = vunpack.c.0.s8 %v2611
      %v2613 = vlaneseq
      %v2614 = vshrl.u32 %v2613, 7
      %v2615 = vsub.s32 %v2612, %v2614
      %v2616 = vrot.slane %v2217, %v2615
      %v2618 = vunpack.c.l.s4 1983009808
      %v2619 = vunpack.c.0.s8 %v2618
      %v2620 = vlaneseq
      %v2621 = vshrl.u32 %v2620, 7
      %v2622 = vsub.s32 %v2619, %v2621
      %v2623 = vrot.slane %v2609, %v2622
      %v2624 = vcombine.high %v2616, %v2616
      %v2625 = vcombine.high %v2623, %v2623
      %v2626 = vcombine.high %v2220, %v2220
      %v2628 = vunpack.c.l.s4 1983009808
      %v2629 = vunpack.c.0.s8 %v2628
      %v2630 = vlaneseq
      %v2631 = vshrl.u32 %v2630, 7
      %v2632 = vsub.s32 %v2629, %v2631
      %v2633 = vrot.slane %v2220, %v2632
      %v2635 = vunpack.c.l.s4 1983009808
      %v2636 = vunpack.c.0.s8 %v2635
      %v2637 = vlaneseq
      %v2638 = vshrl.u32 %v2637, 7
      %v2639 = vsub.s32 %v2636, %v2638
      %v2640 = vrot.slane %v2626, %v2639
      %v2641 = vcombine.high %v2633, %v2633
      %v2642 = vcombine.high %v2640, %v2640
      %v2643 = vcombine.high %v2225, %v2225
      %v2645 = vunpack.c.l.s4 1983009808
      %v2646 = vunpack.c.0.s8 %v2645
      %v2647 = vlaneseq
      %v2648 = vshrl.u32 %v2647, 7
      %v2649 = vsub.s32 %v2646, %v2648
      %v2650 = vrot.slane %v2225, %v2649
      %v2652 = vunpack.c.l.s4 1983009808
      %v2653 = vunpack.c.0.s8 %v2652
      %v2654 = vlaneseq
      %v2655 = vshrl.u32 %v2654, 7
      %v2656 = vsub.s32 %v2653, %v2655
      %v2657 = vrot.slane %v2643, %v2656
      %v2658 = vcombine.high %v2650, %v2650
      %v2659 = vcombine.high %v2657, %v2657
      %v2660 = vcombine.high %v2228, %v2228
      %v2662 = vunpack.c.l.s4 1983009808
      %v2663 = vunpack.c.0.s8 %v2662
      %v2664 = vlaneseq
      %v2665 = vshrl.u32 %v2664, 7
      %v2666 = vsub.s32 %v2663, %v2665
      %v2667 = vrot.slane %v2228, %v2666
      %v2669 = vunpack.c.l.s4 1983009808
      %v2670 = vunpack.c.0.s8 %v2669
      %v2671 = vlaneseq
      %v2672 = vshrl.u32 %v2671, 7
      %v2673 = vsub.s32 %v2670, %v2672
      %v2674 = vrot.slane %v2660, %v2673
      %v2675 = vcombine.high %v2667, %v2667
      %v2676 = vcombine.high %v2674, %v2674
      %v2677 = vcombine.high %v2233, %v2233
      %v2679 = vunpack.c.l.s4 1983009808
      %v2680 = vunpack.c.0.s8 %v2679
      %v2681 = vlaneseq
      %v2682 = vshrl.u32 %v2681, 7
      %v2683 = vsub.s32 %v2680, %v2682
      %v2684 = vrot.slane %v2233, %v2683
      %v2686 = vunpack.c.l.s4 1983009808
      %v2687 = vunpack.c.0.s8 %v2686
      %v2688 = vlaneseq
      %v2689 = vshrl.u32 %v2688, 7
      %v2690 = vsub.s32 %v2687, %v2689
      %v2691 = vrot.slane %v2677, %v2690
      %v2692 = vcombine.high %v2684, %v2684
      %v2693 = vcombine.high %v2691, %v2691
      %v2694 = vcombine.high %v2236, %v2236
      %v2696 = vunpack.c.l.s4 1983009808
      %v2697 = vunpack.c.0.s8 %v2696
      %v2698 = vlaneseq
      %v2699 = vshrl.u32 %v2698, 7
      %v2700 = vsub.s32 %v2697, %v2699
      %v2701 = vrot.slane %v2236, %v2700
      %v2703 = vunpack.c.l.s4 1983009808
      %v2704 = vunpack.c.0.s8 %v2703
      %v2705 = vlaneseq
      %v2706 = vshrl.u32 %v2705, 7
      %v2707 = vsub.s32 %v2704, %v2706
      %v2708 = vrot.slane %v2694, %v2707
      %v2709 = vcombine.high %v2701, %v2701
      %v2710 = vcombine.high %v2708, %v2708
      %v2711 = vcombine.high %v2241, %v2241
      %v2713 = vunpack.c.l.s4 1983009808
      %v2714 = vunpack.c.0.s8 %v2713
      %v2715 = vlaneseq
      %v2716 = vshrl.u32 %v2715, 7
      %v2717 = vsub.s32 %v2714, %v2716
      %v2718 = vrot.slane %v2241, %v2717
      %v2720 = vunpack.c.l.s4 1983009808
      %v2721 = vunpack.c.0.s8 %v2720
      %v2722 = vlaneseq
      %v2723 = vshrl.u32 %v2722, 7
      %v2724 = vsub.s32 %v2721, %v2723
      %v2725 = vrot.slane %v2711, %v2724
      %v2726 = vcombine.high %v2718, %v2718
      %v2727 = vcombine.high %v2725, %v2725
      %v2728 = vcombine.high %v2244, %v2244
      %v2730 = vunpack.c.l.s4 1983009808
      %v2731 = vunpack.c.0.s8 %v2730
      %v2732 = vlaneseq
      %v2733 = vshrl.u32 %v2732, 7
      %v2734 = vsub.s32 %v2731, %v2733
      %v2735 = vrot.slane %v2244, %v2734
      %v2737 = vunpack.c.l.s4 1983009808
      %v2738 = vunpack.c.0.s8 %v2737
      %v2739 = vlaneseq
      %v2740 = vshrl.u32 %v2739, 7
      %v2741 = vsub.s32 %v2738, %v2740
      %v2742 = vrot.slane %v2728, %v2741
      %v2743 = vcombine.high %v2735, %v2735
      %v2744 = vcombine.high %v2742, %v2742
      %v2745 = vcombine.high %v2249, %v2249
      %v2747 = vunpack.c.l.s4 1983009808
      %v2748 = vunpack.c.0.s8 %v2747
      %v2749 = vlaneseq
      %v2750 = vshrl.u32 %v2749, 7
      %v2751 = vsub.s32 %v2748, %v2750
      %v2752 = vrot.slane %v2249, %v2751
      %v2754 = vunpack.c.l.s4 1983009808
      %v2755 = vunpack.c.0.s8 %v2754
      %v2756 = vlaneseq
      %v2757 = vshrl.u32 %v2756, 7
      %v2758 = vsub.s32 %v2755, %v2757
      %v2759 = vrot.slane %v2745, %v2758
      %v2760 = vcombine.high %v2752, %v2752
      %v2761 = vcombine.high %v2759, %v2759
      %v2762 = vcombine.high %v2252, %v2252
      %v2764 = vunpack.c.l.s4 1983009808
      %v2765 = vunpack.c.0.s8 %v2764
      %v2766 = vlaneseq
      %v2767 = vshrl.u32 %v2766, 7
      %v2768 = vsub.s32 %v2765, %v2767
      %v2769 = vrot.slane %v2252, %v2768
      %v2771 = vunpack.c.l.s4 1983009808
      %v2772 = vunpack.c.0.s8 %v2771
      %v2773 = vlaneseq
      %v2774 = vshrl.u32 %v2773, 7
      %v2775 = vsub.s32 %v2772, %v2774
      %v2776 = vrot.slane %v2762, %v2775
      %v2777 = vcombine.high %v2769, %v2769
      %v2778 = vcombine.high %v2776, %v2776
      %v2779 = vcombine.high %v2257, %v2257
      %v2781 = vunpack.c.l.s4 1983009808
      %v2782 = vunpack.c.0.s8 %v2781
      %v2783 = vlaneseq
      %v2784 = vshrl.u32 %v2783, 7
      %v2785 = vsub.s32 %v2782, %v2784
      %v2786 = vrot.slane %v2257, %v2785
      %v2788 = vunpack.c.l.s4 1983009808
      %v2789 = vunpack.c.0.s8 %v2788
      %v2790 = vlaneseq
      %v2791 = vshrl.u32 %v2790, 7
      %v2792 = vsub.s32 %v2789, %v2791
      %v2793 = vrot.slane %v2779, %v2792
      %v2794 = vcombine.high %v2786, %v2786
      %v2795 = vcombine.high %v2793, %v2793
      %v2796 = vcombine.high %v2260, %v2260
      %v2798 = vunpack.c.l.s4 1983009808
      %v2799 = vunpack.c.0.s8 %v2798
      %v2800 = vlaneseq
      %v2801 = vshrl.u32 %v2800, 7
      %v2802 = vsub.s32 %v2799, %v2801
      %v2803 = vrot.slane %v2260, %v2802
      %v2805 = vunpack.c.l.s4 1983009808
      %v2806 = vunpack.c.0.s8 %v2805
      %v2807 = vlaneseq
      %v2808 = vshrl.u32 %v2807, 7
      %v2809 = vsub.s32 %v2806, %v2808
      %v2810 = vrot.slane %v2796, %v2809
      %v2811 = vcombine.high %v2803, %v2803
      %v2812 = vcombine.high %v2810, %v2810
      %v2813 = vcombine.high %v2265, %v2265
      %v2815 = vunpack.c.l.s4 1983009808
      %v2816 = vunpack.c.0.s8 %v2815
      %v2817 = vlaneseq
      %v2818 = vshrl.u32 %v2817, 7
      %v2819 = vsub.s32 %v2816, %v2818
      %v2820 = vrot.slane %v2265, %v2819
      %v2822 = vunpack.c.l.s4 1983009808
      %v2823 = vunpack.c.0.s8 %v2822
      %v2824 = vlaneseq
      %v2825 = vshrl.u32 %v2824, 7
      %v2826 = vsub.s32 %v2823, %v2825
      %v2827 = vrot.slane %v2813, %v2826
      %v2828 = vcombine.high %v2820, %v2820
      %v2829 = vcombine.high %v2827, %v2827
      %v2830 = vcombine.high %v2268, %v2268
      %v2832 = vunpack.c.l.s4 1983009808
      %v2833 = vunpack.c.0.s8 %v2832
      %v2834 = vlaneseq
      %v2835 = vshrl.u32 %v2834, 7
      %v2836 = vsub.s32 %v2833, %v2835
      %v2837 = vrot.slane %v2268, %v2836
      %v2839 = vunpack.c.l.s4 1983009808
      %v2840 = vunpack.c.0.s8 %v2839
      %v2841 = vlaneseq
      %v2842 = vshrl.u32 %v2841, 7
      %v2843 = vsub.s32 %v2840, %v2842
      %v2844 = vrot.slane %v2830, %v2843
      %v2845 = vcombine.high %v2837, %v2837
      %v2846 = vcombine.high %v2844, %v2844
      %v2975 = vrot.slane %v2310, 7
      %v2976 = vrot.slane %v2975, 2
      %v2977 = vrot.slane %v2318, 7
      %v2978 = vrot.slane %v2977, 2
      %v2979 = vrot.slane %v2317, 7
      %v2980 = vrot.slane %v2979, 2
      %v2981 = vrot.slane %v2319, 7
      %v2982 = vrot.slane %v2981, 2
      %v2983 = vrot.slane %v2327, 7
      %v2984 = vrot.slane %v2983, 2
      %v2985 = vrot.slane %v2335, 7
      %v2986 = vrot.slane %v2985, 2
      %v2987 = vrot.slane %v2334, 7
      %v2988 = vrot.slane %v2987, 2
      %v2989 = vrot.slane %v2336, 7
      %v2990 = vrot.slane %v2989, 2
      %v2991 = vrot.slane %v2344, 7
      %v2992 = vrot.slane %v2991, 2
      %v2993 = vrot.slane %v2352, 7
      %v2994 = vrot.slane %v2993, 2
      %v2995 = vrot.slane %v2351, 7
      %v2996 = vrot.slane %v2995, 2
      %v2997 = vrot.slane %v2353, 7
      %v2998 = vrot.slane %v2997, 2
      %v2999 = vrot.slane %v2361, 7
      %v3000 = vrot.slane %v2999, 2
      %v3001 = vrot.slane %v2369, 7
      %v3002 = vrot.slane %v3001, 2
      %v3003 = vrot.slane %v2368, 7
      %v3004 = vrot.slane %v3003, 2
      %v3005 = vrot.slane %v2370, 7
      %v3006 = vrot.slane %v3005, 2
      %v3007 = vrot.slane %v2378, 7
      %v3008 = vrot.slane %v3007, 2
      %v3009 = vrot.slane %v2386, 7
      %v3010 = vrot.slane %v3009, 2
      %v3011 = vrot.slane %v2385, 7
      %v3012 = vrot.slane %v3011, 2
      %v3013 = vrot.slane %v2387, 7
      %v3014 = vrot.slane %v3013, 2
      %v3015 = vrot.slane %v2395, 7
      %v3016 = vrot.slane %v3015, 2
      %v3017 = vrot.slane %v2403, 7
      %v3018 = vrot.slane %v3017, 2
      %v3019 = vrot.slane %v2402, 7
      %v3020 = vrot.slane %v3019, 2
      %v3021 = vrot.slane %v2404, 7
      %v3022 = vrot.slane %v3021, 2
      %v3023 = vrot.slane %v2412, 7
      %v3024 = vrot.slane %v3023, 2
      %v3025 = vrot.slane %v2420, 7
      %v3026 = vrot.slane %v3025, 2
      %v3027 = vrot.slane %v2419, 7
      %v3028 = vrot.slane %v3027, 2
      %v3029 = vrot.slane %v2421, 7
      %v3030 = vrot.slane %v3029, 2
      %v3031 = vrot.slane %v2429, 7
      %v3032 = vrot.slane %v3031, 2
      %v3033 = vrot.slane %v2437, 7
      %v3034 = vrot.slane %v3033, 2
      %v3035 = vrot.slane %v2436, 7
      %v3036 = vrot.slane %v3035, 2
      %v3037 = vrot.slane %v2438, 7
      %v3038 = vrot.slane %v3037, 2
      %v3039 = vrot.slane %v2446, 7
      %v3040 = vrot.slane %v3039, 2
      %v3041 = vrot.slane %v2454, 7
      %v3042 = vrot.slane %v3041, 2
      %v3043 = vrot.slane %v2453, 7
      %v3044 = vrot.slane %v3043, 2
      %v3045 = vrot.slane %v2455, 7
      %v3046 = vrot.slane %v3045, 2
      %v3047 = vrot.slane %v2463, 7
      %v3048 = vrot.slane %v3047, 2
      %v3049 = vrot.slane %v2471, 7
      %v3050 = vrot.slane %v3049, 2
      %v3051 = vrot.slane %v2470, 7
      %v3052 = vrot.slane %v3051, 2
      %v3053 = vrot.slane %v2472, 7
      %v3054 = vrot.slane %v3053, 2
      %v3055 = vrot.slane %v2480, 7
      %v3056 = vrot.slane %v3055, 2
      %v3057 = vrot.slane %v2488, 7
      %v3058 = vrot.slane %v3057, 2
      %v3059 = vrot.slane %v2487, 7
      %v3060 = vrot.slane %v3059, 2
      %v3061 = vrot.slane %v2489, 7
      %v3062 = vrot.slane %v3061, 2
      %v3063 = vrot.slane %v2497, 7
      %v3064 = vrot.slane %v3063, 2
      %v3065 = vrot.slane %v2505, 7
      %v3066 = vrot.slane %v3065, 2
      %v3067 = vrot.slane %v2504, 7
      %v3068 = vrot.slane %v3067, 2
      %v3069 = vrot.slane %v2506, 7
      %v3070 = vrot.slane %v3069, 2
      %v3071 = vrot.slane %v2514, 7
      %v3072 = vrot.slane %v3071, 2
      %v3073 = vrot.slane %v2522, 7
      %v3074 = vrot.slane %v3073, 2
      %v3075 = vrot.slane %v2521, 7
      %v3076 = vrot.slane %v3075, 2
      %v3077 = vrot.slane %v2523, 7
      %v3078 = vrot.slane %v3077, 2
      %v3079 = vrot.slane %v2531, 7
      %v3080 = vrot.slane %v3079, 2
      %v3081 = vrot.slane %v2539, 7
      %v3082 = vrot.slane %v3081, 2
      %v3083 = vrot.slane %v2538, 7
      %v3084 = vrot.slane %v3083, 2
      %v3085 = vrot.slane %v2540, 7
      %v3086 = vrot.slane %v3085, 2
      %v3087 = vrot.slane %v2548, 7
      %v3088 = vrot.slane %v3087, 2
      %v3089 = vrot.slane %v2556, 7
      %v3090 = vrot.slane %v3089, 2
      %v3091 = vrot.slane %v2555, 7
      %v3092 = vrot.slane %v3091, 2
      %v3093 = vrot.slane %v2557, 7
      %v3094 = vrot.slane %v3093, 2
      %v3095 = vrot.slane %v2565, 7
      %v3096 = vrot.slane %v3095, 2
      %v3097 = vrot.slane %v2573, 7
      %v3098 = vrot.slane %v3097, 2
      %v3099 = vrot.slane %v2572, 7
      %v3100 = vrot.slane %v3099, 2
      %v3101 = vrot.slane %v2574, 7
      %v3102 = vrot.slane %v3101, 2
      %v3103 = vrot.slane %v2582, 7
      %v3104 = vrot.slane %v3103, 2
      %v3105 = vrot.slane %v2590, 7
      %v3106 = vrot.slane %v3105, 2
      %v3107 = vrot.slane %v2589, 7
      %v3108 = vrot.slane %v3107, 2
      %v3109 = vrot.slane %v2591, 7
      %v3110 = vrot.slane %v3109, 2
      %v3111 = vrot.slane %v2599, 7
      %v3112 = vrot.slane %v3111, 2
      %v3113 = vrot.slane %v2607, 7
      %v3114 = vrot.slane %v3113, 2
      %v3115 = vrot.slane %v2606, 7
      %v3116 = vrot.slane %v3115, 2
      %v3117 = vrot.slane %v2608, 7
      %v3118 = vrot.slane %v3117, 2
      %v3119 = vrot.slane %v2616, 7
      %v3120 = vrot.slane %v3119, 2
      %v3121 = vrot.slane %v2624, 7
      %v3122 = vrot.slane %v3121, 2
      %v3123 = vrot.slane %v2623, 7
      %v3124 = vrot.slane %v3123, 2
      %v3125 = vrot.slane %v2625, 7
      %v3126 = vrot.slane %v3125, 2
      %v3127 = vrot.slane %v2633, 7
      %v3128 = vrot.slane %v3127, 2
      %v3129 = vrot.slane %v2641, 7
      %v3130 = vrot.slane %v3129, 2
      %v3131 = vrot.slane %v2640, 7
      %v3132 = vrot.slane %v3131, 2
      %v3133 = vrot.slane %v2642, 7
      %v3134 = vrot.slane %v3133, 2
      %v3135 = vrot.slane %v2650, 7
      %v3136 = vrot.slane %v3135, 2
      %v3137 = vrot.slane %v2658, 7
      %v3138 = vrot.slane %v3137, 2
      %v3139 = vrot.slane %v2657, 7
      %v3140 = vrot.slane %v3139, 2
      %v3141 = vrot.slane %v2659, 7
      %v3142 = vrot.slane %v3141, 2
      %v3143 = vrot.slane %v2667, 7
      %v3144 = vrot.slane %v3143, 2
      %v3145 = vrot.slane %v2675, 7
      %v3146 = vrot.slane %v3145, 2
      %v3147 = vrot.slane %v2674, 7
      %v3148 = vrot.slane %v3147, 2
      %v3149 = vrot.slane %v2676, 7
      %v3150 = vrot.slane %v3149, 2
      %v3151 = vrot.slane %v2684, 7
      %v3152 = vrot.slane %v3151, 2
      %v3153 = vrot.slane %v2692, 7
      %v3154 = vrot.slane %v3153, 2
      %v3155 = vrot.slane %v2691, 7
      %v3156 = vrot.slane %v3155, 2
      %v3157 = vrot.slane %v2693, 7
      %v3158 = vrot.slane %v3157, 2
      %v3159 = vrot.slane %v2701, 7
      %v3160 = vrot.slane %v3159, 2
      %v3161 = vrot.slane %v2709, 7
      %v3162 = vrot.slane %v3161, 2
      %v3163 = vrot.slane %v2708, 7
      %v3164 = vrot.slane %v3163, 2
      %v3165 = vrot.slane %v2710, 7
      %v3166 = vrot.slane %v3165, 2
      %v3167 = vrot.slane %v2718, 7
      %v3168 = vrot.slane %v3167, 2
      %v3169 = vrot.slane %v2726, 7
      %v3170 = vrot.slane %v3169, 2
      %v3171 = vrot.slane %v2725, 7
      %v3172 = vrot.slane %v3171, 2
      %v3173 = vrot.slane %v2727, 7
      %v3174 = vrot.slane %v3173, 2
      %v3175 = vrot.slane %v2735, 7
      %v3176 = vrot.slane %v3175, 2
      %v3177 = vrot.slane %v2743, 7
      %v3178 = vrot.slane %v3177, 2
      %v3179 = vrot.slane %v2742, 7
      %v3180 = vrot.slane %v3179, 2
      %v3181 = vrot.slane %v2744, 7
      %v3182 = vrot.slane %v3181, 2
      %v3183 = vrot.slane %v2752, 7
      %v3184 = vrot.slane %v3183, 2
      %v3185 = vrot.slane %v2760, 7
      %v3186 = vrot.slane %v3185, 2
      %v3187 = vrot.slane %v2759, 7
      %v3188 = vrot.slane %v3187, 2
      %v3189 = vrot.slane %v2761, 7
      %v3190 = vrot.slane %v3189, 2
      %v3191 = vrot.slane %v2769, 7
      %v3192 = vrot.slane %v3191, 2
      %v3193 = vrot.slane %v2777, 7
      %v3194 = vrot.slane %v3193, 2
      %v3195 = vrot.slane %v2776, 7
      %v3196 = vrot.slane %v3195, 2
      %v3197 = vrot.slane %v2778, 7
      %v3198 = vrot.slane %v3197, 2
      %v3199 = vrot.slane %v2786, 7
      %v3200 = vrot.slane %v3199, 2
      %v3201 = vrot.slane %v2794, 7
      %v3202 = vrot.slane %v3201, 2
      %v3203 = vrot.slane %v2793, 7
      %v3204 = vrot.slane %v3203, 2
      %v3205 = vrot.slane %v2795, 7
      %v3206 = vrot.slane %v3205, 2
      %v3207 = vrot.slane %v2803, 7
      %v3208 = vrot.slane %v3207, 2
      %v3209 = vrot.slane %v2811, 7
      %v3210 = vrot.slane %v3209, 2
      %v3211 = vrot.slane %v2810, 7
      %v3212 = vrot.slane %v3211, 2
      %v3213 = vrot.slane %v2812, 7
      %v3214 = vrot.slane %v3213, 2
      %v3215 = vrot.slane %v2820, 7
      %v3216 = vrot.slane %v3215, 2
      %v3217 = vrot.slane %v2828, 7
      %v3218 = vrot.slane %v3217, 2
      %v3219 = vrot.slane %v2827, 7
      %v3220 = vrot.slane %v3219, 2
      %v3221 = vrot.slane %v2829, 7
      %v3222 = vrot.slane %v3221, 2
      %v3223 = vrot.slane %v2837, 7
      %v3224 = vrot.slane %v3223, 2
      %v3225 = vrot.slane %v2845, 7
      %v3226 = vrot.slane %v3225, 2
      %v3227 = vrot.slane %v2844, 7
      %v3228 = vrot.slane %v3227, 2
      %v3229 = vrot.slane %v2846, 7
      %v3230 = vrot.slane %v3229, 2
      %v3359 = vmax.f32 %v2310, %v2976
      %v3360 = vmax.f32 %v2318, %v2978
      %v3361 = vmax.f32 %v2317, %v2980
      %v3362 = vmax.f32 %v2319, %v2982
      %v3363 = vmax.f32 %v2327, %v2984
      %v3364 = vmax.f32 %v2335, %v2986
      %v3365 = vmax.f32 %v2334, %v2988
      %v3366 = vmax.f32 %v2336, %v2990
      %v3367 = vmax.f32 %v2344, %v2992
      %v3368 = vmax.f32 %v2352, %v2994
      %v3369 = vmax.f32 %v2351, %v2996
      %v3370 = vmax.f32 %v2353, %v2998
      %v3371 = vmax.f32 %v2361, %v3000
      %v3372 = vmax.f32 %v2369, %v3002
      %v3373 = vmax.f32 %v2368, %v3004
      %v3374 = vmax.f32 %v2370, %v3006
      %v3375 = vmax.f32 %v2378, %v3008
      %v3376 = vmax.f32 %v2386, %v3010
      %v3377 = vmax.f32 %v2385, %v3012
      %v3378 = vmax.f32 %v2387, %v3014
      %v3379 = vmax.f32 %v2395, %v3016
      %v3380 = vmax.f32 %v2403, %v3018
      %v3381 = vmax.f32 %v2402, %v3020
      %v3382 = vmax.f32 %v2404, %v3022
      %v3383 = vmax.f32 %v2412, %v3024
      %v3384 = vmax.f32 %v2420, %v3026
      %v3385 = vmax.f32 %v2419, %v3028
      %v3386 = vmax.f32 %v2421, %v3030
      %v3387 = vmax.f32 %v2429, %v3032
      %v3388 = vmax.f32 %v2437, %v3034
      %v3389 = vmax.f32 %v2436, %v3036
      %v3390 = vmax.f32 %v2438, %v3038
      %v3391 = vmax.f32 %v2446, %v3040
      %v3392 = vmax.f32 %v2454, %v3042
      %v3393 = vmax.f32 %v2453, %v3044
      %v3394 = vmax.f32 %v2455, %v3046
      %v3395 = vmax.f32 %v2463, %v3048
      %v3396 = vmax.f32 %v2471, %v3050
      %v3397 = vmax.f32 %v2470, %v3052
      %v3398 = vmax.f32 %v2472, %v3054
      %v3399 = vmax.f32 %v2480, %v3056
      %v3400 = vmax.f32 %v2488, %v3058
      %v3401 = vmax.f32 %v2487, %v3060
      %v3402 = vmax.f32 %v2489, %v3062
      %v3403 = vmax.f32 %v2497, %v3064
      %v3404 = vmax.f32 %v2505, %v3066
      %v3405 = vmax.f32 %v2504, %v3068
      %v3406 = vmax.f32 %v2506, %v3070
      %v3407 = vmax.f32 %v2514, %v3072
      %v3408 = vmax.f32 %v2522, %v3074
      %v3409 = vmax.f32 %v2521, %v3076
      %v3410 = vmax.f32 %v2523, %v3078
      %v3411 = vmax.f32 %v2531, %v3080
      %v3412 = vmax.f32 %v2539, %v3082
      %v3413 = vmax.f32 %v2538, %v3084
      %v3414 = vmax.f32 %v2540, %v3086
      %v3415 = vmax.f32 %v2548, %v3088
      %v3416 = vmax.f32 %v2556, %v3090
      %v3417 = vmax.f32 %v2555, %v3092
      %v3418 = vmax.f32 %v2557, %v3094
      %v3419 = vmax.f32 %v2565, %v3096
      %v3420 = vmax.f32 %v2573, %v3098
      %v3421 = vmax.f32 %v2572, %v3100
      %v3422 = vmax.f32 %v2574, %v3102
      %v3423 = vmax.f32 %v2582, %v3104
      %v3424 = vmax.f32 %v2590, %v3106
      %v3425 = vmax.f32 %v2589, %v3108
      %v3426 = vmax.f32 %v2591, %v3110
      %v3427 = vmax.f32 %v2599, %v3112
      %v3428 = vmax.f32 %v2607, %v3114
      %v3429 = vmax.f32 %v2606, %v3116
      %v3430 = vmax.f32 %v2608, %v3118
      %v3431 = vmax.f32 %v2616, %v3120
      %v3432 = vmax.f32 %v2624, %v3122
      %v3433 = vmax.f32 %v2623, %v3124
      %v3434 = vmax.f32 %v2625, %v3126
      %v3435 = vmax.f32 %v2633, %v3128
      %v3436 = vmax.f32 %v2641, %v3130
      %v3437 = vmax.f32 %v2640, %v3132
      %v3438 = vmax.f32 %v2642, %v3134
      %v3439 = vmax.f32 %v2650, %v3136
      %v3440 = vmax.f32 %v2658, %v3138
      %v3441 = vmax.f32 %v2657, %v3140
      %v3442 = vmax.f32 %v2659, %v3142
      %v3443 = vmax.f32 %v2667, %v3144
      %v3444 = vmax.f32 %v2675, %v3146
      %v3445 = vmax.f32 %v2674, %v3148
      %v3446 = vmax.f32 %v2676, %v3150
      %v3447 = vmax.f32 %v2684, %v3152
      %v3448 = vmax.f32 %v2692, %v3154
      %v3449 = vmax.f32 %v2691, %v3156
      %v3450 = vmax.f32 %v2693, %v3158
      %v3451 = vmax.f32 %v2701, %v3160
      %v3452 = vmax.f32 %v2709, %v3162
      %v3453 = vmax.f32 %v2708, %v3164
      %v3454 = vmax.f32 %v2710, %v3166
      %v3455 = vmax.f32 %v2718, %v3168
      %v3456 = vmax.f32 %v2726, %v3170
      %v3457 = vmax.f32 %v2725, %v3172
      %v3458 = vmax.f32 %v2727, %v3174
      %v3459 = vmax.f32 %v2735, %v3176
      %v3460 = vmax.f32 %v2743, %v3178
      %v3461 = vmax.f32 %v2742, %v3180
      %v3462 = vmax.f32 %v2744, %v3182
      %v3463 = vmax.f32 %v2752, %v3184
      %v3464 = vmax.f32 %v2760, %v3186
      %v3465 = vmax.f32 %v2759, %v3188
      %v3466 = vmax.f32 %v2761, %v3190
      %v3467 = vmax.f32 %v2769, %v3192
      %v3468 = vmax.f32 %v2777, %v3194
      %v3469 = vmax.f32 %v2776, %v3196
      %v3470 = vmax.f32 %v2778, %v3198
      %v3471 = vmax.f32 %v2786, %v3200
      %v3472 = vmax.f32 %v2794, %v3202
      %v3473 = vmax.f32 %v2793, %v3204
      %v3474 = vmax.f32 %v2795, %v3206
      %v3475 = vmax.f32 %v2803, %v3208
      %v3476 = vmax.f32 %v2811, %v3210
      %v3477 = vmax.f32 %v2810, %v3212
      %v3478 = vmax.f32 %v2812, %v3214
      %v3479 = vmax.f32 %v2820, %v3216
      %v3480 = vmax.f32 %v2828, %v3218
      %v3481 = vmax.f32 %v2827, %v3220
      %v3482 = vmax.f32 %v2829, %v3222
      %v3483 = vmax.f32 %v2837, %v3224
      %v3484 = vmax.f32 %v2845, %v3226
      %v3485 = vmax.f32 %v2844, %v3228
      %v3486 = vmax.f32 %v2846, %v3230
      %v3487 = vmax.f32 %v3359, %v3367
      %v3488 = vmax.f32 %v3360, %v3368
      %v3489 = vmax.f32 %v3361, %v3369
      %v3490 = vmax.f32 %v3362, %v3370
      %v3491 = vmax.f32 %v3363, %v3371
      %v3492 = vmax.f32 %v3364, %v3372
      %v3493 = vmax.f32 %v3365, %v3373
      %v3494 = vmax.f32 %v3366, %v3374
      %v3495 = vmax.f32 %v3375, %v3383
      %v3496 = vmax.f32 %v3376, %v3384
      %v3497 = vmax.f32 %v3377, %v3385
      %v3498 = vmax.f32 %v3378, %v3386
      %v3499 = vmax.f32 %v3379, %v3387
      %v3500 = vmax.f32 %v3380, %v3388
      %v3501 = vmax.f32 %v3381, %v3389
      %v3502 = vmax.f32 %v3382, %v3390
      %v3503 = vmax.f32 %v3391, %v3399
      %v3504 = vmax.f32 %v3392, %v3400
      %v3505 = vmax.f32 %v3393, %v3401
      %v3506 = vmax.f32 %v3394, %v3402
      %v3507 = vmax.f32 %v3395, %v3403
      %v3508 = vmax.f32 %v3396, %v3404
      %v3509 = vmax.f32 %v3397, %v3405
      %v3510 = vmax.f32 %v3398, %v3406
      %v3511 = vmax.f32 %v3407, %v3415
      %v3512 = vmax.f32 %v3408, %v3416
      %v3513 = vmax.f32 %v3409, %v3417
      %v3514 = vmax.f32 %v3410, %v3418
      %v3515 = vmax.f32 %v3411, %v3419
      %v3516 = vmax.f32 %v3412, %v3420
      %v3517 = vmax.f32 %v3413, %v3421
      %v3518 = vmax.f32 %v3414, %v3422
      %v3519 = vmax.f32 %v3423, %v3431
      %v3520 = vmax.f32 %v3424, %v3432
      %v3521 = vmax.f32 %v3425, %v3433
      %v3522 = vmax.f32 %v3426, %v3434
      %v3523 = vmax.f32 %v3427, %v3435
      %v3524 = vmax.f32 %v3428, %v3436
      %v3525 = vmax.f32 %v3429, %v3437
      %v3526 = vmax.f32 %v3430, %v3438
      %v3527 = vmax.f32 %v3439, %v3447
      %v3528 = vmax.f32 %v3440, %v3448
      %v3529 = vmax.f32 %v3441, %v3449
      %v3530 = vmax.f32 %v3442, %v3450
      %v3531 = vmax.f32 %v3443, %v3451
      %v3532 = vmax.f32 %v3444, %v3452
      %v3533 = vmax.f32 %v3445, %v3453
      %v3534 = vmax.f32 %v3446, %v3454
      %v3535 = vmax.f32 %v3455, %v3463
      %v3536 = vmax.f32 %v3456, %v3464
      %v3537 = vmax.f32 %v3457, %v3465
      %v3538 = vmax.f32 %v3458, %v3466
      %v3539 = vmax.f32 %v3459, %v3467
      %v3540 = vmax.f32 %v3460, %v3468
      %v3541 = vmax.f32 %v3461, %v3469
      %v3542 = vmax.f32 %v3462, %v3470
      %v3543 = vmax.f32 %v3471, %v3479
      %v3544 = vmax.f32 %v3472, %v3480
      %v3545 = vmax.f32 %v3473, %v3481
      %v3546 = vmax.f32 %v3474, %v3482
      %v3547 = vmax.f32 %v3475, %v3483
      %v3548 = vmax.f32 %v3476, %v3484
      %v3549 = vmax.f32 %v3477, %v3485
      %v3550 = vmax.f32 %v3478, %v3486
      %v3551 = vld [vmem:[%s2] sm:$0x1]
      %v3553 = vlaneseq
      %v3554 = vshrl.u32 %v3553, 7
      %v3555 = vsub.s32 0, %v3554
      %v3556 = vrot.slane %v3551, %v3555
      %v3557 = vcombine.high %v3556, %v3556
      %v3559 = vunpack.c.l.s4 1983009808
      %v3560 = vunpack.c.0.s8 %v3559
      %v3561 = vlaneseq
      %v3562 = vshrl.u32 %v3561, 7
      %v3563 = vsub.s32 %v3560, %v3562
      %v3564 = vrot.slane %v3556, %v3563
      %v3566 = vunpack.c.l.s4 1983009808
      %v3567 = vunpack.c.0.s8 %v3566
      %v3568 = vlaneseq
      %v3569 = vshrl.u32 %v3568, 7
      %v3570 = vsub.s32 %v3567, %v3569
      %v3571 = vrot.slane %v3557, %v3570
      %v3572 = vcombine.high %v3564, %v3564
      %v3573 = vcombine.high %v3571, %v3571
      %v3574 = vrot.slane %v3564, 1
      %v3575 = vrot.slane %v3572, 1
      %v3576 = vrot.slane %v3571, 1
      %v3577 = vrot.slane %v3573, 1
      %v3586 = vadd.f32 %v3487, %v3564
      %v3587 = vadd.f32 %v3488, %v3574
      %v3588 = vadd.f32 %v3489, %v3572
      %v3589 = vadd.f32 %v3490, %v3575
      %v3590 = vadd.f32 %v3491, %v3571
      %v3591 = vadd.f32 %v3492, %v3576
      %v3592 = vadd.f32 %v3493, %v3573
      %v3593 = vadd.f32 %v3494, %v3577
      %v3594 = vadd.f32 %v3495, %v3564
      %v3595 = vadd.f32 %v3496, %v3574
      %v3596 = vadd.f32 %v3497, %v3572
      %v3597 = vadd.f32 %v3498, %v3575
      %v3598 = vadd.f32 %v3499, %v3571
      %v3599 = vadd.f32 %v3500, %v3576
      %v3600 = vadd.f32 %v3501, %v3573
      %v3601 = vadd.f32 %v3502, %v3577
      %v3602 = vadd.f32 %v3503, %v3564
      %v3603 = vadd.f32 %v3504, %v3574
      %v3604 = vadd.f32 %v3505, %v3572
      %v3605 = vadd.f32 %v3506, %v3575
      %v3606 = vadd.f32 %v3507, %v3571
      %v3607 = vadd.f32 %v3508, %v3576
      %v3608 = vadd.f32 %v3509, %v3573
      %v3609 = vadd.f32 %v3510, %v3577
      %v3610 = vadd.f32 %v3511, %v3564
      %v3611 = vadd.f32 %v3512, %v3574
      %v3612 = vadd.f32 %v3513, %v3572
      %v3613 = vadd.f32 %v3514, %v3575
      %v3614 = vadd.f32 %v3515, %v3571
      %v3615 = vadd.f32 %v3516, %v3576
      %v3616 = vadd.f32 %v3517, %v3573
      %v3617 = vadd.f32 %v3518, %v3577
      %v3618 = vadd.f32 %v3519, %v3564
      %v3619 = vadd.f32 %v3520, %v3574
      %v3620 = vadd.f32 %v3521, %v3572
      %v3621 = vadd.f32 %v3522, %v3575
      %v3622 = vadd.f32 %v3523, %v3571
      %v3623 = vadd.f32 %v3524, %v3576
      %v3624 = vadd.f32 %v3525, %v3573
      %v3625 = vadd.f32 %v3526, %v3577
      %v3626 = vadd.f32 %v3527, %v3564
      %v3627 = vadd.f32 %v3528, %v3574
      %v3628 = vadd.f32 %v3529, %v3572
      %v3629 = vadd.f32 %v3530, %v3575
      %v3630 = vadd.f32 %v3531, %v3571
      %v3631 = vadd.f32 %v3532, %v3576
      %v3632 = vadd.f32 %v3533, %v3573
      %v3633 = vadd.f32 %v3534, %v3577
      %v3634 = vadd.f32 %v3535, %v3564
      %v3635 = vadd.f32 %v3536, %v3574
      %v3636 = vadd.f32 %v3537, %v3572
      %v3637 = vadd.f32 %v3538, %v3575
      %v3638 = vadd.f32 %v3539, %v3571
      %v3639 = vadd.f32 %v3540, %v3576
      %v3640 = vadd.f32 %v3541, %v3573
      %v3641 = vadd.f32 %v3542, %v3577
      %v3642 = vadd.f32 %v3543, %v3564
      %v3643 = vadd.f32 %v3544, %v3574
      %v3644 = vadd.f32 %v3545, %v3572
      %v3645 = vadd.f32 %v3546, %v3575
      %v3646 = vadd.f32 %v3547, %v3571
      %v3647 = vadd.f32 %v3548, %v3576
      %v3648 = vadd.f32 %v3549, %v3573
      %v3649 = vadd.f32 %v3550, %v3577
      %v3650 = vmax.f32 %v3586, 0.0
      %v3651 = vmax.f32 %v3587, 0.0
      %v3652 = vmax.f32 %v3588, 0.0
      %v3653 = vmax.f32 %v3589, 0.0
      %v3654 = vmax.f32 %v3590, 0.0
      %v3655 = vmax.f32 %v3591, 0.0
      %v3656 = vmax.f32 %v3592, 0.0
      %v3657 = vmax.f32 %v3593, 0.0
      %v3658 = vmax.f32 %v3594, 0.0
      %v3659 = vmax.f32 %v3595, 0.0
      %v3660 = vmax.f32 %v3596, 0.0
      %v3661 = vmax.f32 %v3597, 0.0
      %v3662 = vmax.f32 %v3598, 0.0
      %v3663 = vmax.f32 %v3599, 0.0
      %v3664 = vmax.f32 %v3600, 0.0
      %v3665 = vmax.f32 %v3601, 0.0
      %v3666 = vmax.f32 %v3602, 0.0
      %v3667 = vmax.f32 %v3603, 0.0
      %v3668 = vmax.f32 %v3604, 0.0
      %v3669 = vmax.f32 %v3605, 0.0
      %v3670 = vmax.f32 %v3606, 0.0
      %v3671 = vmax.f32 %v3607, 0.0
      %v3672 = vmax.f32 %v3608, 0.0
      %v3673 = vmax.f32 %v3609, 0.0
      %v3674 = vmax.f32 %v3610, 0.0
      %v3675 = vmax.f32 %v3611, 0.0
      %v3676 = vmax.f32 %v3612, 0.0
      %v3677 = vmax.f32 %v3613, 0.0
      %v3678 = vmax.f32 %v3614, 0.0
      %v3679 = vmax.f32 %v3615, 0.0
      %v3680 = vmax.f32 %v3616, 0.0
      %v3681 = vmax.f32 %v3617, 0.0
      %v3682 = vmax.f32 %v3618, 0.0
      %v3683 = vmax.f32 %v3619, 0.0
      %v3684 = vmax.f32 %v3620, 0.0
      %v3685 = vmax.f32 %v3621, 0.0
      %v3686 = vmax.f32 %v3622, 0.0
      %v3687 = vmax.f32 %v3623, 0.0
      %v3688 = vmax.f32 %v3624, 0.0
      %v3689 = vmax.f32 %v3625, 0.0
      %v3690 = vmax.f32 %v3626, 0.0
      %v3691 = vmax.f32 %v3627, 0.0
      %v3692 = vmax.f32 %v3628, 0.0
      %v3693 = vmax.f32 %v3629, 0.0
      %v3694 = vmax.f32 %v3630, 0.0
      %v3695 = vmax.f32 %v3631, 0.0
      %v3696 = vmax.f32 %v3632, 0.0
      %v3697 = vmax.f32 %v3633, 0.0
      %v3698 = vmax.f32 %v3634, 0.0
      %v3699 = vmax.f32 %v3635, 0.0
      %v3700 = vmax.f32 %v3636, 0.0
      %v3701 = vmax.f32 %v3637, 0.0
      %v3702 = vmax.f32 %v3638, 0.0
      %v3703 = vmax.f32 %v3639, 0.0
      %v3704 = vmax.f32 %v3640, 0.0
      %v3705 = vmax.f32 %v3641, 0.0
      %v3706 = vmax.f32 %v3642, 0.0
      %v3707 = vmax.f32 %v3643, 0.0
      %v3708 = vmax.f32 %v3644, 0.0
      %v3709 = vmax.f32 %v3645, 0.0
      %v3710 = vmax.f32 %v3646, 0.0
      %v3711 = vmax.f32 %v3647, 0.0
      %v3712 = vmax.f32 %v3648, 0.0
      %v3713 = vmax.f32 %v3649, 0.0
      %v3714 = vpack.c.bf16 %v3650, %v3650
      %v3715 = vpack.c.bf16 %v3651, %v3651
      %v3716 = vpack.c.bf16 %v3652, %v3652
      %v3717 = vpack.c.bf16 %v3653, %v3653
      %v3718 = vpack.c.bf16 %v3654, %v3654
      %v3719 = vpack.c.bf16 %v3655, %v3655
      %v3720 = vpack.c.bf16 %v3656, %v3656
      %v3721 = vpack.c.bf16 %v3657, %v3657
      %v3722 = vpack.c.bf16 %v3658, %v3658
      %v3723 = vpack.c.bf16 %v3659, %v3659
      %v3724 = vpack.c.bf16 %v3660, %v3660
      %v3725 = vpack.c.bf16 %v3661, %v3661
      %v3726 = vpack.c.bf16 %v3662, %v3662
      %v3727 = vpack.c.bf16 %v3663, %v3663
      %v3728 = vpack.c.bf16 %v3664, %v3664
      %v3729 = vpack.c.bf16 %v3665, %v3665
      %v3730 = vpack.c.bf16 %v3666, %v3666
      %v3731 = vpack.c.bf16 %v3667, %v3667
      %v3732 = vpack.c.bf16 %v3668, %v3668
      %v3733 = vpack.c.bf16 %v3669, %v3669
      %v3734 = vpack.c.bf16 %v3670, %v3670
      %v3735 = vpack.c.bf16 %v3671, %v3671
      %v3736 = vpack.c.bf16 %v3672, %v3672
      %v3737 = vpack.c.bf16 %v3673, %v3673
      %v3738 = vpack.c.bf16 %v3674, %v3674
      %v3739 = vpack.c.bf16 %v3675, %v3675
      %v3740 = vpack.c.bf16 %v3676, %v3676
      %v3741 = vpack.c.bf16 %v3677, %v3677
      %v3742 = vpack.c.bf16 %v3678, %v3678
      %v3743 = vpack.c.bf16 %v3679, %v3679
      %v3744 = vpack.c.bf16 %v3680, %v3680
      %v3745 = vpack.c.bf16 %v3681, %v3681
      %v3746 = vpack.c.bf16 %v3682, %v3682
      %v3747 = vpack.c.bf16 %v3683, %v3683
      %v3748 = vpack.c.bf16 %v3684, %v3684
      %v3749 = vpack.c.bf16 %v3685, %v3685
      %v3750 = vpack.c.bf16 %v3686, %v3686
      %v3751 = vpack.c.bf16 %v3687, %v3687
      %v3752 = vpack.c.bf16 %v3688, %v3688
      %v3753 = vpack.c.bf16 %v3689, %v3689
      %v3754 = vpack.c.bf16 %v3690, %v3690
      %v3755 = vpack.c.bf16 %v3691, %v3691
      %v3756 = vpack.c.bf16 %v3692, %v3692
      %v3757 = vpack.c.bf16 %v3693, %v3693
      %v3758 = vpack.c.bf16 %v3694, %v3694
      %v3759 = vpack.c.bf16 %v3695, %v3695
      %v3760 = vpack.c.bf16 %v3696, %v3696
      %v3761 = vpack.c.bf16 %v3697, %v3697
      %v3762 = vpack.c.bf16 %v3698, %v3698
      %v3763 = vpack.c.bf16 %v3699, %v3699
      %v3764 = vpack.c.bf16 %v3700, %v3700
      %v3765 = vpack.c.bf16 %v3701, %v3701
      %v3766 = vpack.c.bf16 %v3702, %v3702
      %v3767 = vpack.c.bf16 %v3703, %v3703
      %v3768 = vpack.c.bf16 %v3704, %v3704
      %v3769 = vpack.c.bf16 %v3705, %v3705
      %v3770 = vpack.c.bf16 %v3706, %v3706
      %v3771 = vpack.c.bf16 %v3707, %v3707
      %v3772 = vpack.c.bf16 %v3708, %v3708
      %v3773 = vpack.c.bf16 %v3709, %v3709
      %v3774 = vpack.c.bf16 %v3710, %v3710
      %v3775 = vpack.c.bf16 %v3711, %v3711
      %v3776 = vpack.c.bf16 %v3712, %v3712
      %v3777 = vpack.c.bf16 %v3713, %v3713
      %v3842 = vunpack.c.l.b16 %v3714
      %v3843 = vunpack.c.l.b16 %v3715
      %v3844 = vunpack.c.l.b16 %v3716
      %v3845 = vunpack.c.l.b16 %v3717
      %v3846 = vunpack.c.l.b16 %v3718
      %v3847 = vunpack.c.l.b16 %v3719
      %v3848 = vunpack.c.l.b16 %v3720
      %v3849 = vunpack.c.l.b16 %v3721
      %v3850 = vunpack.c.l.b16 %v3722
      %v3851 = vunpack.c.l.b16 %v3723
      %v3852 = vunpack.c.l.b16 %v3724
      %v3853 = vunpack.c.l.b16 %v3725
      %v3854 = vunpack.c.l.b16 %v3726
      %v3855 = vunpack.c.l.b16 %v3727
      %v3856 = vunpack.c.l.b16 %v3728
      %v3857 = vunpack.c.l.b16 %v3729
      %v3858 = vunpack.c.l.b16 %v3730
      %v3859 = vunpack.c.l.b16 %v3731
      %v3860 = vunpack.c.l.b16 %v3732
      %v3861 = vunpack.c.l.b16 %v3733
      %v3862 = vunpack.c.l.b16 %v3734
      %v3863 = vunpack.c.l.b16 %v3735
      %v3864 = vunpack.c.l.b16 %v3736
      %v3865 = vunpack.c.l.b16 %v3737
      %v3866 = vunpack.c.l.b16 %v3738
      %v3867 = vunpack.c.l.b16 %v3739
      %v3868 = vunpack.c.l.b16 %v3740
      %v3869 = vunpack.c.l.b16 %v3741
      %v3870 = vunpack.c.l.b16 %v3742
      %v3871 = vunpack.c.l.b16 %v3743
      %v3872 = vunpack.c.l.b16 %v3744
      %v3873 = vunpack.c.l.b16 %v3745
      %v3874 = vunpack.c.l.b16 %v3746
      %v3875 = vunpack.c.l.b16 %v3747
      %v3876 = vunpack.c.l.b16 %v3748
      %v3877 = vunpack.c.l.b16 %v3749
      %v3878 = vunpack.c.l.b16 %v3750
      %v3879 = vunpack.c.l.b16 %v3751
      %v3880 = vunpack.c.l.b16 %v3752
      %v3881 = vunpack.c.l.b16 %v3753
      %v3882 = vunpack.c.l.b16 %v3754
      %v3883 = vunpack.c.l.b16 %v3755
      %v3884 = vunpack.c.l.b16 %v3756
      %v3885 = vunpack.c.l.b16 %v3757
      %v3886 = vunpack.c.l.b16 %v3758
      %v3887 = vunpack.c.l.b16 %v3759
      %v3888 = vunpack.c.l.b16 %v3760
      %v3889 = vunpack.c.l.b16 %v3761
      %v3890 = vunpack.c.l.b16 %v3762
      %v3891 = vunpack.c.l.b16 %v3763
      %v3892 = vunpack.c.l.b16 %v3764
      %v3893 = vunpack.c.l.b16 %v3765
      %v3894 = vunpack.c.l.b16 %v3766
      %v3895 = vunpack.c.l.b16 %v3767
      %v3896 = vunpack.c.l.b16 %v3768
      %v3897 = vunpack.c.l.b16 %v3769
      %v3898 = vunpack.c.l.b16 %v3770
      %v3899 = vunpack.c.l.b16 %v3771
      %v3900 = vunpack.c.l.b16 %v3772
      %v3901 = vunpack.c.l.b16 %v3773
      %v3902 = vunpack.c.l.b16 %v3774
      %v3903 = vunpack.c.l.b16 %v3775
      %v3904 = vunpack.c.l.b16 %v3776
      %v3905 = vunpack.c.l.b16 %v3777
      %v3906 = vpack.c.b16 %v3842, %v3842
      %v3907 = vpack.c.b16 %v3843, %v3843
      %v3908 = vpack.c.b16 %v3844, %v3844
      %v3909 = vpack.c.b16 %v3845, %v3845
      %v3910 = vpack.c.b16 %v3846, %v3846
      %v3911 = vpack.c.b16 %v3847, %v3847
      %v3912 = vpack.c.b16 %v3848, %v3848
      %v3913 = vpack.c.b16 %v3849, %v3849
      %v3914 = vpack.c.b16 %v3850, %v3850
      %v3915 = vpack.c.b16 %v3851, %v3851
      %v3916 = vpack.c.b16 %v3852, %v3852
      %v3917 = vpack.c.b16 %v3853, %v3853
      %v3918 = vpack.c.b16 %v3854, %v3854
      %v3919 = vpack.c.b16 %v3855, %v3855
      %v3920 = vpack.c.b16 %v3856, %v3856
      %v3921 = vpack.c.b16 %v3857, %v3857
      %v3922 = vpack.c.b16 %v3858, %v3858
      %v3923 = vpack.c.b16 %v3859, %v3859
      %v3924 = vpack.c.b16 %v3860, %v3860
      %v3925 = vpack.c.b16 %v3861, %v3861
      %v3926 = vpack.c.b16 %v3862, %v3862
      %v3927 = vpack.c.b16 %v3863, %v3863
      %v3928 = vpack.c.b16 %v3864, %v3864
      %v3929 = vpack.c.b16 %v3865, %v3865
      %v3930 = vpack.c.b16 %v3866, %v3866
      %v3931 = vpack.c.b16 %v3867, %v3867
      %v3932 = vpack.c.b16 %v3868, %v3868
      %v3933 = vpack.c.b16 %v3869, %v3869
      %v3934 = vpack.c.b16 %v3870, %v3870
      %v3935 = vpack.c.b16 %v3871, %v3871
      %v3936 = vpack.c.b16 %v3872, %v3872
      %v3937 = vpack.c.b16 %v3873, %v3873
      %v3938 = vpack.c.b16 %v3874, %v3874
      %v3939 = vpack.c.b16 %v3875, %v3875
      %v3940 = vpack.c.b16 %v3876, %v3876
      %v3941 = vpack.c.b16 %v3877, %v3877
      %v3942 = vpack.c.b16 %v3878, %v3878
      %v3943 = vpack.c.b16 %v3879, %v3879
      %v3944 = vpack.c.b16 %v3880, %v3880
      %v3945 = vpack.c.b16 %v3881, %v3881
      %v3946 = vpack.c.b16 %v3882, %v3882
      %v3947 = vpack.c.b16 %v3883, %v3883
      %v3948 = vpack.c.b16 %v3884, %v3884
      %v3949 = vpack.c.b16 %v3885, %v3885
      %v3950 = vpack.c.b16 %v3886, %v3886
      %v3951 = vpack.c.b16 %v3887, %v3887
      %v3952 = vpack.c.b16 %v3888, %v3888
      %v3953 = vpack.c.b16 %v3889, %v3889
      %v3954 = vpack.c.b16 %v3890, %v3890
      %v3955 = vpack.c.b16 %v3891, %v3891
      %v3956 = vpack.c.b16 %v3892, %v3892
      %v3957 = vpack.c.b16 %v3893, %v3893
      %v3958 = vpack.c.b16 %v3894, %v3894
      %v3959 = vpack.c.b16 %v3895, %v3895
      %v3960 = vpack.c.b16 %v3896, %v3896
      %v3961 = vpack.c.b16 %v3897, %v3897
      %v3962 = vpack.c.b16 %v3898, %v3898
      %v3963 = vpack.c.b16 %v3899, %v3899
      %v3964 = vpack.c.b16 %v3900, %v3900
      %v3965 = vpack.c.b16 %v3901, %v3901
      %v3966 = vpack.c.b16 %v3902, %v3902
      %v3967 = vpack.c.b16 %v3903, %v3903
      %v3968 = vpack.c.b16 %v3904, %v3904
      %v3969 = vpack.c.b16 %v3905, %v3905
      %v3970 = vunpack.c.l.b16 %v3906
      %v3971 = vunpack.c.l.b16 %v3907
      %v3972 = vunpack.c.l.b16 %v3908
      %v3973 = vunpack.c.l.b16 %v3909
      %v3974 = vunpack.c.l.b16 %v3910
      %v3975 = vunpack.c.l.b16 %v3911
      %v3976 = vunpack.c.l.b16 %v3912
      %v3977 = vunpack.c.l.b16 %v3913
      %v3978 = vunpack.c.l.b16 %v3914
      %v3979 = vunpack.c.l.b16 %v3915
      %v3980 = vunpack.c.l.b16 %v3916
      %v3981 = vunpack.c.l.b16 %v3917
      %v3982 = vunpack.c.l.b16 %v3918
      %v3983 = vunpack.c.l.b16 %v3919
      %v3984 = vunpack.c.l.b16 %v3920
      %v3985 = vunpack.c.l.b16 %v3921
      %v3986 = vunpack.c.l.b16 %v3922
      %v3987 = vunpack.c.l.b16 %v3923
      %v3988 = vunpack.c.l.b16 %v3924
      %v3989 = vunpack.c.l.b16 %v3925
      %v3990 = vunpack.c.l.b16 %v3926
      %v3991 = vunpack.c.l.b16 %v3927
      %v3992 = vunpack.c.l.b16 %v3928
      %v3993 = vunpack.c.l.b16 %v3929
      %v3994 = vunpack.c.l.b16 %v3930
      %v3995 = vunpack.c.l.b16 %v3931
      %v3996 = vunpack.c.l.b16 %v3932
      %v3997 = vunpack.c.l.b16 %v3933
      %v3998 = vunpack.c.l.b16 %v3934
      %v3999 = vunpack.c.l.b16 %v3935
      %v4000 = vunpack.c.l.b16 %v3936
      %v4001 = vunpack.c.l.b16 %v3937
      %v4002 = vunpack.c.l.b16 %v3938
      %v4003 = vunpack.c.l.b16 %v3939
      %v4004 = vunpack.c.l.b16 %v3940
      %v4005 = vunpack.c.l.b16 %v3941
      %v4006 = vunpack.c.l.b16 %v3942
      %v4007 = vunpack.c.l.b16 %v3943
      %v4008 = vunpack.c.l.b16 %v3944
      %v4009 = vunpack.c.l.b16 %v3945
      %v4010 = vunpack.c.l.b16 %v3946
      %v4011 = vunpack.c.l.b16 %v3947
      %v4012 = vunpack.c.l.b16 %v3948
      %v4013 = vunpack.c.l.b16 %v3949
      %v4014 = vunpack.c.l.b16 %v3950
      %v4015 = vunpack.c.l.b16 %v3951
      %v4016 = vunpack.c.l.b16 %v3952
      %v4017 = vunpack.c.l.b16 %v3953
      %v4018 = vunpack.c.l.b16 %v3954
      %v4019 = vunpack.c.l.b16 %v3955
      %v4020 = vunpack.c.l.b16 %v3956
      %v4021 = vunpack.c.l.b16 %v3957
      %v4022 = vunpack.c.l.b16 %v3958
      %v4023 = vunpack.c.l.b16 %v3959
      %v4024 = vunpack.c.l.b16 %v3960
      %v4025 = vunpack.c.l.b16 %v3961
      %v4026 = vunpack.c.l.b16 %v3962
      %v4027 = vunpack.c.l.b16 %v3963
      %v4028 = vunpack.c.l.b16 %v3964
      %v4029 = vunpack.c.l.b16 %v3965
      %v4030 = vunpack.c.l.b16 %v3966
      %v4031 = vunpack.c.l.b16 %v3967
      %v4032 = vunpack.c.l.b16 %v3968
      %v4033 = vunpack.c.l.b16 %v3969
      %v4034 = vrot.slane %v3971, 7
      %vm4035 = vcmask 1041409
      %v4036 = vsel %vm4035, %v4034, %v3970
      %v4037 = vrot.slane %v3972, 6
      %vm4038 = vcmask 1042434
      %v4039 = vsel %vm4038, %v4037, %v4036
      %v4040 = vrot.slane %v3973, 5
      %vm4041 = vcmask 1043459
      %v4042 = vsel %vm4041, %v4040, %v4039
      %v4043 = vrot.slane %v3974, 4
      %vm4044 = vcmask 1044484
      %v4045 = vsel %vm4044, %v4043, %v4042
      %v4046 = vrot.slane %v3975, 3
      %vm4047 = vcmask 1045509
      %v4048 = vsel %vm4047, %v4046, %v4045
      %v4049 = vrot.slane %v3976, 2
      %vm4050 = vcmask 1046534
      %v4051 = vsel %vm4050, %v4049, %v4048
      %v4052 = vrot.slane %v3977, 1
      %vm4053 = vcmask 1047559
      %v4054 = vsel %vm4053, %v4052, %v4051
      %v4055 = vrot.slane %v3979, 7
      %v4056 = vsel %vm4035, %v4055, %v3978
      %v4057 = vrot.slane %v3980, 6
      %v4058 = vsel %vm4038, %v4057, %v4056
      %v4059 = vrot.slane %v3981, 5
      %v4060 = vsel %vm4041, %v4059, %v4058
      %v4061 = vrot.slane %v3982, 4
      %v4062 = vsel %vm4044, %v4061, %v4060
      %v4063 = vrot.slane %v3983, 3
      %v4064 = vsel %vm4047, %v4063, %v4062
      %v4065 = vrot.slane %v3984, 2
      %v4066 = vsel %vm4050, %v4065, %v4064
      %v4067 = vrot.slane %v3985, 1
      %v4068 = vsel %vm4053, %v4067, %v4066
      %v4069 = vrot.slane %v3987, 7
      %v4070 = vsel %vm4035, %v4069, %v3986
      %v4071 = vrot.slane %v3988, 6
      %v4072 = vsel %vm4038, %v4071, %v4070
      %v4073 = vrot.slane %v3989, 5
      %v4074 = vsel %vm4041, %v4073, %v4072
      %v4075 = vrot.slane %v3990, 4
      %v4076 = vsel %vm4044, %v4075, %v4074
      %v4077 = vrot.slane %v3991, 3
      %v4078 = vsel %vm4047, %v4077, %v4076
      %v4079 = vrot.slane %v3992, 2
      %v4080 = vsel %vm4050, %v4079, %v4078
      %v4081 = vrot.slane %v3993, 1
      %v4082 = vsel %vm4053, %v4081, %v4080
      %v4083 = vrot.slane %v3995, 7
      %v4084 = vsel %vm4035, %v4083, %v3994
      %v4085 = vrot.slane %v3996, 6
      %v4086 = vsel %vm4038, %v4085, %v4084
      %v4087 = vrot.slane %v3997, 5
      %v4088 = vsel %vm4041, %v4087, %v4086
      %v4089 = vrot.slane %v3998, 4
      %v4090 = vsel %vm4044, %v4089, %v4088
      %v4091 = vrot.slane %v3999, 3
      %v4092 = vsel %vm4047, %v4091, %v4090
      %v4093 = vrot.slane %v4000, 2
      %v4094 = vsel %vm4050, %v4093, %v4092
      %v4095 = vrot.slane %v4001, 1
      %v4096 = vsel %vm4053, %v4095, %v4094
      %v4097 = vrot.slane %v4003, 7
      %v4098 = vsel %vm4035, %v4097, %v4002
      %v4099 = vrot.slane %v4004, 6
      %v4100 = vsel %vm4038, %v4099, %v4098
      %v4101 = vrot.slane %v4005, 5
      %v4102 = vsel %vm4041, %v4101, %v4100
      %v4103 = vrot.slane %v4006, 4
      %v4104 = vsel %vm4044, %v4103, %v4102
      %v4105 = vrot.slane %v4007, 3
      %v4106 = vsel %vm4047, %v4105, %v4104
      %v4107 = vrot.slane %v4008, 2
      %v4108 = vsel %vm4050, %v4107, %v4106
      %v4109 = vrot.slane %v4009, 1
      %v4110 = vsel %vm4053, %v4109, %v4108
      %v4111 = vrot.slane %v4011, 7
      %v4112 = vsel %vm4035, %v4111, %v4010
      %v4113 = vrot.slane %v4012, 6
      %v4114 = vsel %vm4038, %v4113, %v4112
      %v4115 = vrot.slane %v4013, 5
      %v4116 = vsel %vm4041, %v4115, %v4114
      %v4117 = vrot.slane %v4014, 4
      %v4118 = vsel %vm4044, %v4117, %v4116
      %v4119 = vrot.slane %v4015, 3
      %v4120 = vsel %vm4047, %v4119, %v4118
      %v4121 = vrot.slane %v4016, 2
      %v4122 = vsel %vm4050, %v4121, %v4120
      %v4123 = vrot.slane %v4017, 1
      %v4124 = vsel %vm4053, %v4123, %v4122
      %v4125 = vrot.slane %v4019, 7
      %v4126 = vsel %vm4035, %v4125, %v4018
      %v4127 = vrot.slane %v4020, 6
      %v4128 = vsel %vm4038, %v4127, %v4126
      %v4129 = vrot.slane %v4021, 5
      %v4130 = vsel %vm4041, %v4129, %v4128
      %v4131 = vrot.slane %v4022, 4
      %v4132 = vsel %vm4044, %v4131, %v4130
      %v4133 = vrot.slane %v4023, 3
      %v4134 = vsel %vm4047, %v4133, %v4132
      %v4135 = vrot.slane %v4024, 2
      %v4136 = vsel %vm4050, %v4135, %v4134
      %v4137 = vrot.slane %v4025, 1
      %v4138 = vsel %vm4053, %v4137, %v4136
      %v4139 = vrot.slane %v4027, 7
      %v4140 = vsel %vm4035, %v4139, %v4026
      %v4141 = vrot.slane %v4028, 6
      %v4142 = vsel %vm4038, %v4141, %v4140
      %v4143 = vrot.slane %v4029, 5
      %v4144 = vsel %vm4041, %v4143, %v4142
      %v4145 = vrot.slane %v4030, 4
      %v4146 = vsel %vm4044, %v4145, %v4144
      %v4147 = vrot.slane %v4031, 3
      %v4148 = vsel %vm4047, %v4147, %v4146
      %v4149 = vrot.slane %v4032, 2
      %v4150 = vsel %vm4050, %v4149, %v4148
      %v4151 = vrot.slane %v4033, 1
      %v4152 = vsel %vm4053, %v4151, %v4150
      %v4153 = vpack.c.b16 %v4054, %v4054
      %v4154 = vpack.c.b16 %v4068, %v4068
      %v4155 = vpack.c.b16 %v4082, %v4082
      %v4156 = vpack.c.b16 %v4096, %v4096
      %v4157 = vpack.c.b16 %v4110, %v4110
      %v4158 = vpack.c.b16 %v4124, %v4124
      %v4159 = vpack.c.b16 %v4138, %v4138
      %v4160 = vpack.c.b16 %v4152, %v4152
      %4169 = vst [vmem:[%s170] sm:$0xf] %v4153
      %4170 = vst [vmem:[%s170 + $0x4] sm:$0xf] %v4154
      %4171 = vst [vmem:[%s170 + $0x8] sm:$0xf] %v4155
      %4172 = vst [vmem:[%s170 + $0xc] sm:$0xf] %v4156
      %4173 = vst [vmem:[%s170 + $0x10] sm:$0xf] %v4157
      %4174 = vst [vmem:[%s170 + $0x14] sm:$0xf] %v4158
      %4175 = vst [vmem:[%s170 + $0x18] sm:$0xf] %v4159
      %4176 = vst [vmem:[%s170 + $0x1c] sm:$0xf] %v4160
      %p4177 = scmp.lt.s32.totalorder %s14, 1
      %s4178 = scalar_select %p4177, %s14, 1
      %s4179 = smul.addr %s4178, 8
      %s4180 = smul.addr %s4179, 4
      %s4181 = scalar_lea.vmem %s3, %s4180
      // Predicated region
      $region33: #{simple_cnn_forward.4} parent=31 // pred_check
        %p4182 = pneg %p100
      $region34: #{simple_cnn_forward.4} parent=31 // pred_check_branch
        %4184 = sbr.rel (%p4182) target = $region36
      $region35: #{simple_cnn_forward.4} parent=31 // pred_region
        _
      $region36: #{simple_cnn_forward.4} parent=31 // pred_fallthru
        _
    $region32: #{simple_cnn_forward.4} parent=5 // pred_fallthru
      _
    %p4185 = scmp.le.s32.totalorder 2, %s9
    // Predicated region
    $region37: #{simple_cnn_forward.4} parent=5 // pred_check
      %p4186 = pneg %p4185
    $region38: #{simple_cnn_forward.4} parent=5 // pred_check_branch
      %4188 = sbr.rel (%p4186) target = $region40
    $region39: #{simple_cnn_forward.4} parent=5 // pred_region
      %s4189 = ssub.s32 %s9, 2
      // Predicated region
      $region41: #{simple_cnn_forward.4} parent=39 // pred_check
        %p4190 = pneg %p106
      $region42: #{simple_cnn_forward.4} parent=39 // pred_check_branch
        %4192 = sbr.rel (%p4190) target = $region44
      $region43: #{simple_cnn_forward.4} parent=39 // pred_region
        %p4193 = scmp.lt.s32.totalorder %s15, 1
        %s4194 = scalar_select %p4193, %s15, 1
        %s4195 = smul.addr %s4194, 8
        %s4196 = smul.addr %s4195, 4
        %s4197 = scalar_lea.vmem %s3, %s4196
      $region44: #{simple_cnn_forward.4} parent=39 // pred_fallthru
        _
    $region40: #{simple_cnn_forward.4} parent=5 // pred_fallthru
      _
  $region6: #{simple_cnn_forward.4} parent=0 // loop_footer
    %s13 = sadd.s32 1, %s9
  $region7: #{simple_cnn_forward.4} parent=0 // loop_footer_branch
    %8 = sbr.rel target = $region3
  $region8: #{simple_cnn_forward.4} parent=0 // loop_exit
    _

</llo_original>
